<compile_context>
chip_gen: v6e
topology: v6e:2x2x1
jax: 0.10.0
libtpu: 0.0.40
codegen_flags: <defaults>
</compile_context>

<pallas_src>
import functools

import jax
import jax.numpy as jnp
from jax.experimental import pallas as pl
from jax.experimental.pallas import tpu as pltpu


def fold_bn(gamma, beta, mean, var, eps=1e-5):
    scale = gamma / jnp.sqrt(var + eps)
    shift = beta - mean * scale
    return scale, shift


# ---------------------------------------------------------------------------
# Fused forward kernel
#   grid = (N, L), dimension_semantics = ("parallel", "arbitrary")
#   scratch: feat_ref (H*W, C_pad) f32   -- VMEM-resident feature map across layers
#            tpad_ref (H+2, W+2, Cb) f32 -- zero-ringed halo scratch for 3x3 convs
# ---------------------------------------------------------------------------

def _densenet_kernel(x_ref, stem_w_ref, stem_b_ref,
                     bn1s_ref, bn1b_ref, w1_ref, b1_ref,
                     bn2s_ref, bn2b_ref, w2_ref, b2_ref,
                     fc1w_ref, fc1b_ref, fc2w_ref, fc2b_ref,
                     o_ref, feat_ref, tpad_ref):
    l = pl.program_id(1)
    num_layers = pl.num_programs(1)

    Hp, Wp, Cb = tpad_ref.shape
    H, W = Hp - 2, Wp - 2
    HW, C = feat_ref.shape

    def zero_halo_ring():
        # Only the thin halo ring needs zeros; the interior is fully overwritten.
        tpad_ref[0:1, :, :] = jnp.zeros((1, Wp, Cb), tpad_ref.dtype)
        tpad_ref[Hp - 1:Hp, :, :] = jnp.zeros((1, Wp, Cb), tpad_ref.dtype)
        tpad_ref[:, 0:1, :] = jnp.zeros((Hp, 1, Cb), tpad_ref.dtype)
        tpad_ref[:, Wp - 1:Wp, :] = jnp.zeros((Hp, 1, Cb), tpad_ref.dtype)

    def conv3x3_cols():
        # im2col materialized once from the zero-ringed halo scratch.  Each of the 9
        # taps is exactly one 128-lane group, so the concat is vreg placement and the
        # 3x3 conv becomes a single long-K (K = 9*Cb) bf16 MXU dot.
        wins = [tpad_ref[kh:kh + H, kw:kw + W, :].reshape(HW, Cb).astype(jnp.bfloat16)
                for kh in range(3) for kw in range(3)]
        return jnp.concatenate(wins, axis=-1)                 # (HW, 9*Cb) bf16

    # ---- stem: 3x3 conv + bias + ReLU (first layer step only) ---------------
    @pl.when(l == 0)
    def _stem():
        zero_halo_ring()
        tpad_ref[1:1 + H, 1:1 + W, :] = x_ref[...].astype(tpad_ref.dtype)
        y = jnp.dot(conv3x3_cols(), stem_w_ref[...],
                    preferred_element_type=jnp.float32)
        feat_ref[...] = jnp.maximum(y + stem_b_ref[...], 0.0)

    # ---- dense layer l: BN-ReLU -> 1x1 -> BN-ReLU -> 3x3, concat in place ---
    feat = feat_ref[...]                                       # (HW, C) f32
    a = jnp.maximum(feat * bn1s_ref[...] + bn1b_ref[...], 0.0)
    t = jnp.dot(a.astype(w1_ref.dtype), w1_ref[...],
                preferred_element_type=jnp.float32) + b1_ref[...]
    t = jnp.maximum(t * bn2s_ref[...] + bn2b_ref[...], 0.0)    # (HW, Cb) f32

    zero_halo_ring()
    tpad_ref[1:1 + H, 1:1 + W, :] = t.reshape(H, W, Cb).astype(tpad_ref.dtype)
    # The 3x3 weights/bias are pre-placed into this layer's growth channel slice of
    # the padded feature width (all other columns are exactly zero), so `new` is zero
    # on every existing channel and the DenseNet concat is a plain in-place add.
    new = jnp.dot(conv3x3_cols(), w2_ref[...], preferred_element_type=jnp.float32)
    feat_ref[...] = feat + new + b2_ref[...]

    # ---- GAP + classifier head (last layer step only) ------------------------
    @pl.when(l == num_layers - 1)
    def _head():
        pooled = jnp.sum(feat_ref[...], axis=0, keepdims=True) * (1.0 / HW)   # (1, C)
        h = jnp.dot(pooled.astype(fc1w_ref.dtype), fc1w_ref[...],
                    preferred_element_type=jnp.float32) + fc1b_ref[...]
        h = h * jax.nn.sigmoid(h)                               # SiLU (EUP)
        logits = jnp.dot(h.astype(fc2w_ref.dtype), fc2w_ref[...],
                         preferred_element_type=jnp.float32) + fc2b_ref[...]
        # single full (8, NC_pad) lane/sublane-dense store; row 0 holds the logits.
        o_ref[...] = jnp.broadcast_to(logits, o_ref.shape).astype(o_ref.dtype)


# ---------------------------------------------------------------------------
# pallas_call wrapper
# ---------------------------------------------------------------------------

def densenet_forward(params, x_nchw):
    """x: (N, 3, H, W) float32 (PyTorch NCHW) -> (N, num_classes)."""
    x = jnp.transpose(x_nchw, (0, 2, 3, 1)).astype(jnp.float32)   # -> NHWC
    N, H, W, cin = x.shape
    cin_pad = params["cin_pad"]
    c_pad = params["c_pad"]
    cb = params["cb"]
    L = params["num_layers"]
    fh = params["fc1_w"].shape[-1]
    nc_pad = params["fc2_w"].shape[-1]

    # Channel pad only; spatial dims stay 8-aligned (no HBM halo) -- the 1-pixel halo
    # is built in VMEM scratch inside the kernel.
    xp = jnp.pad(x, ((0, 0), (0, 0), (0, 0), (0, cin_pad - cin)))

    out = pl.pallas_call(
        _densenet_kernel,
        out_shape=jax.ShapeDtypeStruct((N, 8, nc_pad), jnp.float32),
        grid=(N, L),
        in_specs=[
            pl.BlockSpec((None, H, W, cin_pad), lambda n, l: (n, 0, 0, 0)),  # image
            pl.BlockSpec((9 * cin_pad, c_pad), lambda n, l: (0, 0)),         # stem w (im2col)
            pl.BlockSpec((1, c_pad), lambda n, l: (0, 0)),                   # stem b
            pl.BlockSpec((None, 1, c_pad), lambda n, l: (l, 0, 0)),          # bn1 scale
            pl.BlockSpec((None, 1, c_pad), lambda n, l: (l, 0, 0)),          # bn1 shift
            pl.BlockSpec((None, c_pad, cb), lambda n, l: (l, 0, 0)),         # 1x1 conv w
            pl.BlockSpec((None, 1, cb), lambda n, l: (l, 0, 0)),             # 1x1 conv b
            pl.BlockSpec((None, 1, cb), lambda n, l: (l, 0, 0)),             # bn2 scale
            pl.BlockSpec((None, 1, cb), lambda n, l: (l, 0, 0)),             # bn2 shift
            pl.BlockSpec((None, 9 * cb, c_pad), lambda n, l: (l, 0, 0)),     # 3x3 w (placed)
            pl.BlockSpec((None, 1, c_pad), lambda n, l: (l, 0, 0)),          # 3x3 b (placed)
            pl.BlockSpec((c_pad, fh), lambda n, l: (0, 0)),                  # fc1 w (BN folded)
            pl.BlockSpec((1, fh), lambda n, l: (0, 0)),                      # fc1 b
            pl.BlockSpec((fh, nc_pad), lambda n, l: (0, 0)),                 # fc2 w
            pl.BlockSpec((1, nc_pad), lambda n, l: (0, 0)),                  # fc2 b
        ],
        out_specs=pl.BlockSpec((None, 8, nc_pad), lambda n, l: (n, 0, 0)),
        scratch_shapes=[
            pltpu.VMEM((H * W, c_pad), jnp.float32),        # VMEM-resident feature map
            pltpu.VMEM((H + 2, W + 2, cb), jnp.float32),    # zero-ringed halo scratch
        ],
        compiler_params=pltpu.CompilerParams(
            dimension_semantics=("parallel", "arbitrary")),
    )(xp, params["stem_w"], params["stem_b"],
      params["bn1_s"], params["bn1_sh"], params["w1"], params["b1"],
      params["bn2_s"], params["bn2_sh"], params["w2"], params["b2"],
      params["fc1_w"], params["fc1_b"], params["fc2_w"], params["fc2_b"])

    return out[:, 0, :params["num_classes"]]


# ---------------------------------------------------------------------------
# Parameter initialization (deterministic, synthetic stand-in for the timm backbone)
# ---------------------------------------------------------------------------

def init_params(key, num_classes=10, in_ch=3, stem_ch=64, growth=32,
                bottleneck=128, num_dense_layers=2, fc_hidden=512):
    keys = iter(jax.random.split(key, 64))

    def nrm(shape, scale=0.05):
        return (scale * jax.random.normal(next(keys), shape)).astype(jnp.float32)

    c_total = stem_ch + growth * num_dense_layers          # "last_channel"
    c_pad = ((c_total + 127) // 128) * 128                 # lane-dense feature width
    cb = bottleneck                                        # bottleneck width (128)
    cin_pad = cb                                           # stem reuses the halo scratch
    nc_pad = 128                                           # lane-dense logits
    L = num_dense_layers

    p = dict(num_classes=num_classes, last_channel=c_total,
             c_pad=c_pad, cin_pad=cin_pad, cb=cb, num_layers=L)

    # Stem 3x3 conv: in_ch -> stem_ch, stored in im2col layout (row = tap*cin_pad + ch).
    w = nrm((9, in_ch, stem_ch))
    stem_w = jnp.zeros((9, cin_pad, c_pad), jnp.float32).at[:, :in_ch, :stem_ch].set(w)
    p["stem_w"] = stem_w.reshape(9 * cin_pad, c_pad).astype(jnp.bfloat16)
    p["stem_b"] = jnp.zeros((1, c_pad), jnp.float32).at[0, :stem_ch].set(nrm((stem_ch,)))

    # Per-layer params stacked along a leading L axis (indexed by the L grid coord).
    bn1_s = jnp.zeros((L, 1, c_pad), jnp.float32)
    bn1_sh = jnp.zeros((L, 1, c_pad), jnp.float32)
    w1 = jnp.zeros((L, c_pad, cb), jnp.float32)
    b1 = jnp.zeros((L, 1, cb), jnp.float32)
    bn2_s = jnp.zeros((L, 1, cb), jnp.float32)
    bn2_sh = jnp.zeros((L, 1, cb), jnp.float32)
    w2 = jnp.zeros((L, 9, cb, c_pad), jnp.float32)
    b2 = jnp.zeros((L, 1, c_pad), jnp.float32)

    c_in = stem_ch
    for i in range(L):
        g1 = 1.0 + 0.1 * jax.random.normal(next(keys), (c_in,)).astype(jnp.float32)
        s1, sh1 = fold_bn(g1, nrm((c_in,)), jnp.zeros((c_in,)), jnp.ones((c_in,)))
        bn1_s = bn1_s.at[i, 0, :c_in].set(s1)
        bn1_sh = bn1_sh.at[i, 0, :c_in].set(sh1)
        w1 = w1.at[i, :c_in, :].set(nrm((c_in, cb)))
        b1 = b1.at[i, 0, :].set(nrm((cb,)))
        g2 = 1.0 + 0.1 * jax.random.normal(next(keys), (cb,)).astype(jnp.float32)
        s2, sh2 = fold_bn(g2, nrm((cb,)), jnp.zeros((cb,)), jnp.ones((cb,)))
        bn2_s = bn2_s.at[i, 0, :].set(s2)
        bn2_sh = bn2_sh.at[i, 0, :].set(sh2)
        # Invariant required by the in-place concat: every 3x3 weight/bias column
        # outside this layer's growth slice [c_in, c_in+growth) is exactly zero.
        w2 = w2.at[i, :, :, c_in:c_in + growth].set(nrm((9, cb, growth)))
        b2 = b2.at[i, 0, c_in:c_in + growth].set(nrm((growth,)))
        c_in += growth

    p["bn1_s"], p["bn1_sh"] = bn1_s, bn1_sh
    p["w1"] = w1.astype(jnp.bfloat16)
    p["b1"] = b1
    p["bn2_s"], p["bn2_sh"] = bn2_s, bn2_sh
    p["w2"] = w2.reshape(L, 9 * cb, c_pad).astype(jnp.bfloat16)   # im2col row layout
    p["b2"] = b2

    # Classifier head: Linear(last_channel, 512) -> BatchNorm1d(512) (folded) -> SiLU
    #                  -> Dropout(0.5) [identity, eval] -> Linear(512, num_classes).
    fc1_w = jnp.zeros((c_pad, fc_hidden), jnp.float32).at[:c_total, :].set(
        nrm((c_total, fc_hidden)))
    fc1_b = nrm((fc_hidden,))
    g = 1.0 + 0.1 * jax.random.normal(next(keys), (fc_hidden,)).astype(jnp.float32)
    bn_s, bn_sh = fold_bn(g, nrm((fc_hidden,)), jnp.zeros((fc_hidden,)), jnp.ones((fc_hidden,)))
    p["fc1_w"] = (fc1_w * bn_s[None, :]).astype(jnp.bfloat16)
    p["fc1_b"] = (fc1_b * bn_s + bn_sh).reshape(1, fc_hidden)
    p["fc2_w"] = jnp.zeros((fc_hidden, nc_pad), jnp.float32) \
                    .at[:, :num_classes].set(nrm((fc_hidden, num_classes))) \
                    .astype(jnp.bfloat16)
    p["fc2_b"] = jnp.zeros((1, nc_pad), jnp.float32).at[0, :num_classes].set(nrm((num_classes,)))
    return p


# ---------------------------------------------------------------------------
# Plain-JAX reference with identical math (incl. bf16 matmul inputs)
# ---------------------------------------------------------------------------

def reference_forward(params, x_nchw):
    x = jnp.transpose(x_nchw, (0, 2, 3, 1)).astype(jnp.float32)
    N, H, W, cin = x.shape
    cin_pad, cb, L = params["cin_pad"], params["cb"], params["num_layers"]
    xp = jnp.pad(x, ((0, 0), (0, 0), (0, 0), (0, cin_pad - cin)))

    def im2col(t):  # (N,H,W,C) -> (N, H*W, 9*C) bf16
        tb = t.astype(jnp.bfloat16)
        tp = jnp.pad(tb, ((0, 0), (1, 1), (1, 1), (0, 0)))
        wins = [tp[:, kh:kh + H, kw:kw + W, :] for kh in range(3) for kw in range(3)]
        return jnp.concatenate(wins, axis=-1).reshape(N, H * W, 9 * t.shape[-1])

    feat = jnp.maximum(
        jnp.einsum("npk,kc->npc", im2col(xp), params["stem_w"],
                   preferred_element_type=jnp.float32) + params["stem_b"][0], 0.0)
    for i in range(L):
        a = jnp.maximum(feat * params["bn1_s"][i, 0] + params["bn1_sh"][i, 0], 0.0)
        t = jnp.einsum("npc,cd->npd", a.astype(jnp.bfloat16), params["w1"][i],
                       preferred_element_type=jnp.float32) + params["b1"][i, 0]
        t = jnp.maximum(t * params["bn2_s"][i, 0] + params["bn2_sh"][i, 0], 0.0)
        cols = im2col(t.reshape(N, H, W, cb))
        feat = feat + jnp.einsum("npk,kc->npc", cols, params["w2"][i],
                                 preferred_element_type=jnp.float32) + params["b2"][i, 0]
    pooled = jnp.mean(feat, axis=1)
    h = jnp.einsum("nc,cd->nd", pooled.astype(jnp.bfloat16), params["fc1_w"],
                   preferred_element_type=jnp.float32) + params["fc1_b"][0]
    h = h * jax.nn.sigmoid(h)
    logits = jnp.einsum("nd,dk->nk", h.astype(jnp.bfloat16), params["fc2_w"],
                        preferred_element_type=jnp.float32) + params["fc2_b"][0]
    return logits[:, :params["num_classes"]]


# ---------------------------------------------------------------------------
# Main
# ---------------------------------------------------------------------------

if __name__ == "__main__":
    key = jax.random.PRNGKey(0)
    k_param, k_input = jax.random.split(key)

    num_classes = 10
    params = init_params(k_param, num_classes=num_classes)

    # Small deterministic input, PyTorch NCHW convention: batch=2, 3 channels, 16x16.
    x = jax.random.normal(k_input, (2, 3, 16, 16), dtype=jnp.float32)

    fwd = jax.jit(functools.partial(densenet_forward, params))
    y = fwd(x)
    jax.block_until_ready(y)

    assert y.shape == (2, num_classes), y.shape
    assert bool(jnp.all(jnp.isfinite(y)))

    y_ref = reference_forward(params, x)
    err = float(jnp.max(jnp.abs(y - y_ref)))
    assert err < 5e-3, f"kernel/reference mismatch: max|diff|={err}"
    print("KERNEL_OK")
</pallas_src>

<mosaic_0001>
module attributes {stable_mosaic.version = 11 : i64} {
  func.func @_densenet_kernel(%arg0: i32, %arg1: i32, %arg2: memref<1x16x16x128xf32, #tpu.memory_space<vmem>>, %arg3: memref<1152x128xbf16, #tpu.memory_space<vmem>>, %arg4: memref<1x128xf32, #tpu.memory_space<vmem>>, %arg5: memref<1x1x128xf32, #tpu.memory_space<vmem>>, %arg6: memref<1x1x128xf32, #tpu.memory_space<vmem>>, %arg7: memref<1x128x128xbf16, #tpu.memory_space<vmem>>, %arg8: memref<1x1x128xf32, #tpu.memory_space<vmem>>, %arg9: memref<1x1x128xf32, #tpu.memory_space<vmem>>, %arg10: memref<1x1x128xf32, #tpu.memory_space<vmem>>, %arg11: memref<1x1152x128xbf16, #tpu.memory_space<vmem>>, %arg12: memref<1x1x128xf32, #tpu.memory_space<vmem>>, %arg13: memref<128x512xbf16, #tpu.memory_space<vmem>>, %arg14: memref<1x512xf32, #tpu.memory_space<vmem>>, %arg15: memref<512x128xbf16, #tpu.memory_space<vmem>>, %arg16: memref<1x128xf32, #tpu.memory_space<vmem>>, %arg17: memref<1x8x128xf32, #tpu.memory_space<vmem>>, %arg18: memref<256x128xf32, #tpu.memory_space<vmem>>, %arg19: memref<18x18x128xf32, #tpu.memory_space<vmem>>) attributes {dimension_semantics = [#tpu.dimension_semantics<parallel>, #tpu.dimension_semantics<arbitrary>], iteration_bounds = array<i64: 2, 2>, scalar_prefetch = 0 : i64, scratch_operands = 2 : i64, tpu.core_type = #tpu.core_type<tc>, window_params = [{transform_indices = @transform_0, window_bounds = array<i64: 1, 16, 16, 128>}, {pipeline_mode = #tpu.pipeline_mode<synchronous>, transform_indices = @transform_1, window_bounds = array<i64: 1152, 128>}, {pipeline_mode = #tpu.pipeline_mode<synchronous>, transform_indices = @transform_2, window_bounds = array<i64: 1, 128>}, {transform_indices = @transform_3, window_bounds = array<i64: 1, 1, 128>}, {transform_indices = @transform_4, window_bounds = array<i64: 1, 1, 128>}, {transform_indices = @transform_5, window_bounds = array<i64: 1, 128, 128>}, {transform_indices = @transform_6, window_bounds = array<i64: 1, 1, 128>}, {transform_indices = @transform_7, window_bounds = array<i64: 1, 1, 128>}, {transform_indices = @transform_8, window_bounds = array<i64: 1, 1, 128>}, {transform_indices = @transform_9, window_bounds = array<i64: 1, 1152, 128>}, {transform_indices = @transform_10, window_bounds = array<i64: 1, 1, 128>}, {pipeline_mode = #tpu.pipeline_mode<synchronous>, transform_indices = @transform_11, window_bounds = array<i64: 128, 512>}, {pipeline_mode = #tpu.pipeline_mode<synchronous>, transform_indices = @transform_12, window_bounds = array<i64: 1, 512>}, {pipeline_mode = #tpu.pipeline_mode<synchronous>, transform_indices = @transform_13, window_bounds = array<i64: 512, 128>}, {pipeline_mode = #tpu.pipeline_mode<synchronous>, transform_indices = @transform_14, window_bounds = array<i64: 1, 128>}, {transform_indices = @transform_15, window_bounds = array<i64: 1, 8, 128>}]} {
    %c0_i32 = arith.constant 0 : i32
    %0 = arith.cmpi eq, %arg1, %c0_i32 : i32
    %1 = arith.extui %0 : i1 to i32
    %c0_i32_0 = arith.constant 0 : i32
    %2 = arith.cmpi ne, %1, %c0_i32_0 : i32
    scf.if %2 {
      %cst_75 = arith.constant 0.000000e+00 : f32
      %82 = vector.broadcast %cst_75 : f32 to vector<1x18x128xf32>
      %c0_76 = arith.constant 0 : index
      %c0_77 = arith.constant 0 : index
      %c0_78 = arith.constant 0 : index
      %83 = vector.load %arg19[%c0_76, %c0_77, %c0_78] : memref<18x18x128xf32, #tpu.memory_space<vmem>>, vector<1x18x128xf32>
      tpu.vector_store %arg19[%c0_76, %c0_77, %c0_78], %82 {strides = array<i32>} : memref<18x18x128xf32, #tpu.memory_space<vmem>>, vector<1x18x128xf32>,
      %cst_79 = arith.constant 0.000000e+00 : f32
      %84 = vector.broadcast %cst_79 : f32 to vector<1x18x128xf32>
      %c17_80 = arith.constant 17 : index
      %c0_81 = arith.constant 0 : index
      %c0_82 = arith.constant 0 : index
      %85 = vector.load %arg19[%c17_80, %c0_81, %c0_82] : memref<18x18x128xf32, #tpu.memory_space<vmem>>, vector<1x18x128xf32>
      tpu.vector_store %arg19[%c17_80, %c0_81, %c0_82], %84 {strides = array<i32>} : memref<18x18x128xf32, #tpu.memory_space<vmem>>, vector<1x18x128xf32>,
      %cst_83 = arith.constant 0.000000e+00 : f32
      %86 = vector.broadcast %cst_83 : f32 to vector<18x1x128xf32>
      %c0_84 = arith.constant 0 : index
      %c0_85 = arith.constant 0 : index
      %c0_86 = arith.constant 0 : index
      %87 = vector.load %arg19[%c0_84, %c0_85, %c0_86] : memref<18x18x128xf32, #tpu.memory_space<vmem>>, vector<18x1x128xf32>
      tpu.vector_store %arg19[%c0_84, %c0_85, %c0_86], %86 {strides = array<i32>} : memref<18x18x128xf32, #tpu.memory_space<vmem>>, vector<18x1x128xf32>,
      %cst_87 = arith.constant 0.000000e+00 : f32
      %88 = vector.broadcast %cst_87 : f32 to vector<18x1x128xf32>
      %c0_88 = arith.constant 0 : index
      %c17_89 = arith.constant 17 : index
      %c0_90 = arith.constant 0 : index
      %89 = vector.load %arg19[%c0_88, %c17_89, %c0_90] : memref<18x18x128xf32, #tpu.memory_space<vmem>>, vector<18x1x128xf32>
      tpu.vector_store %arg19[%c0_88, %c17_89, %c0_90], %88 {strides = array<i32>} : memref<18x18x128xf32, #tpu.memory_space<vmem>>, vector<18x1x128xf32>,
      %c0_91 = arith.constant 0 : index
      %c0_92 = arith.constant 0 : index
      %c0_93 = arith.constant 0 : index
      %c0_94 = arith.constant 0 : index
      %90 = vector.load %arg2[%c0_91, %c0_92, %c0_93, %c0_94] : memref<1x16x16x128xf32, #tpu.memory_space<vmem>>, vector<1x16x16x128xf32>
      %91 = vector.shape_cast %90 : vector<1x16x16x128xf32> to vector<16x16x128xf32>
      %c1_95 = arith.constant 1 : index
      %c1_96 = arith.constant 1 : index
      %c0_97 = arith.constant 0 : index
      %92 = vector.load %arg19[%c1_95, %c1_96, %c0_97] : memref<18x18x128xf32, #tpu.memory_space<vmem>>, vector<16x16x128xf32>
      tpu.vector_store %arg19[%c1_95, %c1_96, %c0_97], %91 {strides = array<i32>} : memref<18x18x128xf32, #tpu.memory_space<vmem>>, vector<16x16x128xf32>,
      %c0_98 = arith.constant 0 : index
      %c0_99 = arith.constant 0 : index
      %c0_100 = arith.constant 0 : index
      %93 = vector.load %arg19[%c0_98, %c0_99, %c0_100] : memref<18x18x128xf32, #tpu.memory_space<vmem>>, vector<16x16x128xf32>
      %94 = vector.shape_cast %93 : vector<16x16x128xf32> to vector<256x128xf32>
      %95 = arith.truncf %94 : vector<256x128xf32> to vector<256x128xbf16>
      %c0_101 = arith.constant 0 : index
      %c1_102 = arith.constant 1 : index
      %c0_103 = arith.constant 0 : index
      %96 = vector.load %arg19[%c0_101, %c1_102, %c0_103] : memref<18x18x128xf32, #tpu.memory_space<vmem>>, vector<16x16x128xf32>
      %97 = vector.shape_cast %96 : vector<16x16x128xf32> to vector<256x128xf32>
      %98 = arith.truncf %97 : vector<256x128xf32> to vector<256x128xbf16>
      %c0_104 = arith.constant 0 : index
      %c2_105 = arith.constant 2 : index
      %c0_106 = arith.constant 0 : index
      %99 = vector.load %arg19[%c0_104, %c2_105, %c0_106] : memref<18x18x128xf32, #tpu.memory_space<vmem>>, vector<16x16x128xf32>
      %100 = vector.shape_cast %99 : vector<16x16x128xf32> to vector<256x128xf32>
      %101 = arith.truncf %100 : vector<256x128xf32> to vector<256x128xbf16>
      %c1_107 = arith.constant 1 : index
      %c0_108 = arith.constant 0 : index
      %c0_109 = arith.constant 0 : index
      %102 = vector.load %arg19[%c1_107, %c0_108, %c0_109] : memref<18x18x128xf32, #tpu.memory_space<vmem>>, vector<16x16x128xf32>
      %103 = vector.shape_cast %102 : vector<16x16x128xf32> to vector<256x128xf32>
      %104 = arith.truncf %103 : vector<256x128xf32> to vector<256x128xbf16>
      %c1_110 = arith.constant 1 : index
      %c1_111 = arith.constant 1 : index
      %c0_112 = arith.constant 0 : index
      %105 = vector.load %arg19[%c1_110, %c1_111, %c0_112] : memref<18x18x128xf32, #tpu.memory_space<vmem>>, vector<16x16x128xf32>
      %106 = vector.shape_cast %105 : vector<16x16x128xf32> to vector<256x128xf32>
      %107 = arith.truncf %106 : vector<256x128xf32> to vector<256x128xbf16>
      %c1_113 = arith.constant 1 : index
      %c2_114 = arith.constant 2 : index
      %c0_115 = arith.constant 0 : index
      %108 = vector.load %arg19[%c1_113, %c2_114, %c0_115] : memref<18x18x128xf32, #tpu.memory_space<vmem>>, vector<16x16x128xf32>
      %109 = vector.shape_cast %108 : vector<16x16x128xf32> to vector<256x128xf32>
      %110 = arith.truncf %109 : vector<256x128xf32> to vector<256x128xbf16>
      %c2_116 = arith.constant 2 : index
      %c0_117 = arith.constant 0 : index
      %c0_118 = arith.constant 0 : index
      %111 = vector.load %arg19[%c2_116, %c0_117, %c0_118] : memref<18x18x128xf32, #tpu.memory_space<vmem>>, vector<16x16x128xf32>
      %112 = vector.shape_cast %111 : vector<16x16x128xf32> to vector<256x128xf32>
      %113 = arith.truncf %112 : vector<256x128xf32> to vector<256x128xbf16>
      %c2_119 = arith.constant 2 : index
      %c1_120 = arith.constant 1 : index
      %c0_121 = arith.constant 0 : index
      %114 = vector.load %arg19[%c2_119, %c1_120, %c0_121] : memref<18x18x128xf32, #tpu.memory_space<vmem>>, vector<16x16x128xf32>
      %115 = vector.shape_cast %114 : vector<16x16x128xf32> to vector<256x128xf32>
      %116 = arith.truncf %115 : vector<256x128xf32> to vector<256x128xbf16>
      %c2_122 = arith.constant 2 : index
      %c2_123 = arith.constant 2 : index
      %c0_124 = arith.constant 0 : index
      %117 = vector.load %arg19[%c2_122, %c2_123, %c0_124] : memref<18x18x128xf32, #tpu.memory_space<vmem>>, vector<16x16x128xf32>
      %118 = vector.shape_cast %117 : vector<16x16x128xf32> to vector<256x128xf32>
      %119 = arith.truncf %118 : vector<256x128xf32> to vector<256x128xbf16>
      %120 = tpu.concatenate %95, %98, %101, %104, %107, %110, %113, %116, %119 in 1 : vector<256x128xbf16>, vector<256x128xbf16>, vector<256x128xbf16>, vector<256x128xbf16>, vector<256x128xbf16>, vector<256x128xbf16>, vector<256x128xbf16>, vector<256x128xbf16>, vector<256x128xbf16> -> vector<256x1152xbf16>
      %c0_125 = arith.constant 0 : index
      %c0_126 = arith.constant 0 : index
      %121 = vector.load %arg3[%c0_125, %c0_126] : memref<1152x128xbf16, #tpu.memory_space<vmem>>, vector<1152x128xbf16>
      %cst_127 = arith.constant dense<0.000000e+00> : vector<256x128xf32>
      %122 = tpu.matmul %120, %121, %cst_127 {dimension_numbers = #tpu.dot_dimension_numbers<[1], [0], [0], [1], [0, 0, 1, 1], [], []>} : vector<256x1152xbf16>, vector<1152x128xbf16>, vector<256x128xf32> -> vector<256x128xf32>
      %c0_128 = arith.constant 0 : index
      %c0_129 = arith.constant 0 : index
      %123 = vector.load %arg4[%c0_128, %c0_129] : memref<1x128xf32, #tpu.memory_space<vmem>>, vector<1x128xf32>
      %124 = vector.broadcast %123 : vector<1x128xf32> to vector<256x128xf32>
      %125 = arith.addf %122, %124 : vector<256x128xf32>
      %cst_130 = arith.constant 0.000000e+00 : f32
      %126 = vector.broadcast %cst_130 : f32 to vector<256x128xf32>
      %127 = arith.maximumf %125, %126 : vector<256x128xf32>
      %c0_131 = arith.constant 0 : index
      %c0_132 = arith.constant 0 : index
      %128 = vector.load %arg18[%c0_131, %c0_132] : memref<256x128xf32, #tpu.memory_space<vmem>>, vector<256x128xf32>
      tpu.vector_store %arg18[%c0_131, %c0_132], %127 {strides = array<i32>} : memref<256x128xf32, #tpu.memory_space<vmem>>, vector<256x128xf32>,
    } else {
    }
    %c0 = arith.constant 0 : index
    %c0_1 = arith.constant 0 : index
    %3 = vector.load %arg18[%c0, %c0_1] : memref<256x128xf32, #tpu.memory_space<vmem>>, vector<256x128xf32>
    %c0_2 = arith.constant 0 : index
    %c0_3 = arith.constant 0 : index
    %c0_4 = arith.constant 0 : index
    %4 = vector.load %arg5[%c0_2, %c0_3, %c0_4] : memref<1x1x128xf32, #tpu.memory_space<vmem>>, vector<1x1x128xf32>
    %5 = vector.shape_cast %4 : vector<1x1x128xf32> to vector<1x128xf32>
    %6 = vector.broadcast %5 : vector<1x128xf32> to vector<256x128xf32>
    %7 = arith.mulf %3, %6 : vector<256x128xf32>
    %c0_5 = arith.constant 0 : index
    %c0_6 = arith.constant 0 : index
    %c0_7 = arith.constant 0 : index
    %8 = vector.load %arg6[%c0_5, %c0_6, %c0_7] : memref<1x1x128xf32, #tpu.memory_space<vmem>>, vector<1x1x128xf32>
    %9 = vector.shape_cast %8 : vector<1x1x128xf32> to vector<1x128xf32>
    %10 = vector.broadcast %9 : vector<1x128xf32> to vector<256x128xf32>
    %11 = arith.addf %7, %10 : vector<256x128xf32>
    %cst = arith.constant 0.000000e+00 : f32
    %12 = vector.broadcast %cst : f32 to vector<256x128xf32>
    %13 = arith.maximumf %11, %12 : vector<256x128xf32>
    %14 = arith.truncf %13 : vector<256x128xf32> to vector<256x128xbf16>
    %c0_8 = arith.constant 0 : index
    %c0_9 = arith.constant 0 : index
    %c0_10 = arith.constant 0 : index
    %15 = vector.load %arg7[%c0_8, %c0_9, %c0_10] : memref<1x128x128xbf16, #tpu.memory_space<vmem>>, vector<1x128x128xbf16>
    %16 = vector.shape_cast %15 : vector<1x128x128xbf16> to vector<128x128xbf16>
    %cst_11 = arith.constant dense<0.000000e+00> : vector<256x128xf32>
    %17 = tpu.matmul %14, %16, %cst_11 {dimension_numbers = #tpu.dot_dimension_numbers<[1], [0], [0], [1], [0, 0, 1, 1], [], []>} : vector<256x128xbf16>, vector<128x128xbf16>, vector<256x128xf32> -> vector<256x128xf32>
    %c0_12 = arith.constant 0 : index
    %c0_13 = arith.constant 0 : index
    %c0_14 = arith.constant 0 : index
    %18 = vector.load %arg8[%c0_12, %c0_13, %c0_14] : memref<1x1x128xf32, #tpu.memory_space<vmem>>, vector<1x1x128xf32>
    %19 = vector.shape_cast %18 : vector<1x1x128xf32> to vector<1x128xf32>
    %20 = vector.broadcast %19 : vector<1x128xf32> to vector<256x128xf32>
    %21 = arith.addf %17, %20 : vector<256x128xf32>
    %c0_15 = arith.constant 0 : index
    %c0_16 = arith.constant 0 : index
    %c0_17 = arith.constant 0 : index
    %22 = vector.load %arg9[%c0_15, %c0_16, %c0_17] : memref<1x1x128xf32, #tpu.memory_space<vmem>>, vector<1x1x128xf32>
    %23 = vector.shape_cast %22 : vector<1x1x128xf32> to vector<1x128xf32>
    %24 = vector.broadcast %23 : vector<1x128xf32> to vector<256x128xf32>
    %25 = arith.mulf %21, %24 : vector<256x128xf32>
    %c0_18 = arith.constant 0 : index
    %c0_19 = arith.constant 0 : index
    %c0_20 = arith.constant 0 : index
    %26 = vector.load %arg10[%c0_18, %c0_19, %c0_20] : memref<1x1x128xf32, #tpu.memory_space<vmem>>, vector<1x1x128xf32>
    %27 = vector.shape_cast %26 : vector<1x1x128xf32> to vector<1x128xf32>
    %28 = vector.broadcast %27 : vector<1x128xf32> to vector<256x128xf32>
    %29 = arith.addf %25, %28 : vector<256x128xf32>
    %cst_21 = arith.constant 0.000000e+00 : f32
    %30 = vector.broadcast %cst_21 : f32 to vector<256x128xf32>
    %31 = arith.maximumf %29, %30 : vector<256x128xf32>
    %cst_22 = arith.constant 0.000000e+00 : f32
    %32 = vector.broadcast %cst_22 : f32 to vector<1x18x128xf32>
    %c0_23 = arith.constant 0 : index
    %c0_24 = arith.constant 0 : index
    %c0_25 = arith.constant 0 : index
    %33 = vector.load %arg19[%c0_23, %c0_24, %c0_25] : memref<18x18x128xf32, #tpu.memory_space<vmem>>, vector<1x18x128xf32>
    tpu.vector_store %arg19[%c0_23, %c0_24, %c0_25], %32 {strides = array<i32>} : memref<18x18x128xf32, #tpu.memory_space<vmem>>, vector<1x18x128xf32>,
    %cst_26 = arith.constant 0.000000e+00 : f32
    %34 = vector.broadcast %cst_26 : f32 to vector<1x18x128xf32>
    %c17 = arith.constant 17 : index
    %c0_27 = arith.constant 0 : index
    %c0_28 = arith.constant 0 : index
    %35 = vector.load %arg19[%c17, %c0_27, %c0_28] : memref<18x18x128xf32, #tpu.memory_space<vmem>>, vector<1x18x128xf32>
    tpu.vector_store %arg19[%c17, %c0_27, %c0_28], %34 {strides = array<i32>} : memref<18x18x128xf32, #tpu.memory_space<vmem>>, vector<1x18x128xf32>,
    %cst_29 = arith.constant 0.000000e+00 : f32
    %36 = vector.broadcast %cst_29 : f32 to vector<18x1x128xf32>
    %c0_30 = arith.constant 0 : index
    %c0_31 = arith.constant 0 : index
    %c0_32 = arith.constant 0 : index
    %37 = vector.load %arg19[%c0_30, %c0_31, %c0_32] : memref<18x18x128xf32, #tpu.memory_space<vmem>>, vector<18x1x128xf32>
    tpu.vector_store %arg19[%c0_30, %c0_31, %c0_32], %36 {strides = array<i32>} : memref<18x18x128xf32, #tpu.memory_space<vmem>>, vector<18x1x128xf32>,
    %cst_33 = arith.constant 0.000000e+00 : f32
    %38 = vector.broadcast %cst_33 : f32 to vector<18x1x128xf32>
    %c0_34 = arith.constant 0 : index
    %c17_35 = arith.constant 17 : index
    %c0_36 = arith.constant 0 : index
    %39 = vector.load %arg19[%c0_34, %c17_35, %c0_36] : memref<18x18x128xf32, #tpu.memory_space<vmem>>, vector<18x1x128xf32>
    tpu.vector_store %arg19[%c0_34, %c17_35, %c0_36], %38 {strides = array<i32>} : memref<18x18x128xf32, #tpu.memory_space<vmem>>, vector<18x1x128xf32>,
    %40 = vector.shape_cast %31 : vector<256x128xf32> to vector<16x16x128xf32>
    %c1 = arith.constant 1 : index
    %c1_37 = arith.constant 1 : index
    %c0_38 = arith.constant 0 : index
    %41 = vector.load %arg19[%c1, %c1_37, %c0_38] : memref<18x18x128xf32, #tpu.memory_space<vmem>>, vector<16x16x128xf32>
    tpu.vector_store %arg19[%c1, %c1_37, %c0_38], %40 {strides = array<i32>} : memref<18x18x128xf32, #tpu.memory_space<vmem>>, vector<16x16x128xf32>,
    %c0_39 = arith.constant 0 : index
    %c0_40 = arith.constant 0 : index
    %c0_41 = arith.constant 0 : index
    %42 = vector.load %arg19[%c0_39, %c0_40, %c0_41] : memref<18x18x128xf32, #tpu.memory_space<vmem>>, vector<16x16x128xf32>
    %43 = vector.shape_cast %42 : vector<16x16x128xf32> to vector<256x128xf32>
    %44 = arith.truncf %43 : vector<256x128xf32> to vector<256x128xbf16>
    %c0_42 = arith.constant 0 : index
    %c1_43 = arith.constant 1 : index
    %c0_44 = arith.constant 0 : index
    %45 = vector.load %arg19[%c0_42, %c1_43, %c0_44] : memref<18x18x128xf32, #tpu.memory_space<vmem>>, vector<16x16x128xf32>
    %46 = vector.shape_cast %45 : vector<16x16x128xf32> to vector<256x128xf32>
    %47 = arith.truncf %46 : vector<256x128xf32> to vector<256x128xbf16>
    %c0_45 = arith.constant 0 : index
    %c2 = arith.constant 2 : index
    %c0_46 = arith.constant 0 : index
    %48 = vector.load %arg19[%c0_45, %c2, %c0_46] : memref<18x18x128xf32, #tpu.memory_space<vmem>>, vector<16x16x128xf32>
    %49 = vector.shape_cast %48 : vector<16x16x128xf32> to vector<256x128xf32>
    %50 = arith.truncf %49 : vector<256x128xf32> to vector<256x128xbf16>
    %c1_47 = arith.constant 1 : index
    %c0_48 = arith.constant 0 : index
    %c0_49 = arith.constant 0 : index
    %51 = vector.load %arg19[%c1_47, %c0_48, %c0_49] : memref<18x18x128xf32, #tpu.memory_space<vmem>>, vector<16x16x128xf32>
    %52 = vector.shape_cast %51 : vector<16x16x128xf32> to vector<256x128xf32>
    %53 = arith.truncf %52 : vector<256x128xf32> to vector<256x128xbf16>
    %c1_50 = arith.constant 1 : index
    %c1_51 = arith.constant 1 : index
    %c0_52 = arith.constant 0 : index
    %54 = vector.load %arg19[%c1_50, %c1_51, %c0_52] : memref<18x18x128xf32, #tpu.memory_space<vmem>>, vector<16x16x128xf32>
    %55 = vector.shape_cast %54 : vector<16x16x128xf32> to vector<256x128xf32>
    %56 = arith.truncf %55 : vector<256x128xf32> to vector<256x128xbf16>
    %c1_53 = arith.constant 1 : index
    %c2_54 = arith.constant 2 : index
    %c0_55 = arith.constant 0 : index
    %57 = vector.load %arg19[%c1_53, %c2_54, %c0_55] : memref<18x18x128xf32, #tpu.memory_space<vmem>>, vector<16x16x128xf32>
    %58 = vector.shape_cast %57 : vector<16x16x128xf32> to vector<256x128xf32>
    %59 = arith.truncf %58 : vector<256x128xf32> to vector<256x128xbf16>
    %c2_56 = arith.constant 2 : index
    %c0_57 = arith.constant 0 : index
    %c0_58 = arith.constant 0 : index
    %60 = vector.load %arg19[%c2_56, %c0_57, %c0_58] : memref<18x18x128xf32, #tpu.memory_space<vmem>>, vector<16x16x128xf32>
    %61 = vector.shape_cast %60 : vector<16x16x128xf32> to vector<256x128xf32>
    %62 = arith.truncf %61 : vector<256x128xf32> to vector<256x128xbf16>
    %c2_59 = arith.constant 2 : index
    %c1_60 = arith.constant 1 : index
    %c0_61 = arith.constant 0 : index
    %63 = vector.load %arg19[%c2_59, %c1_60, %c0_61] : memref<18x18x128xf32, #tpu.memory_space<vmem>>, vector<16x16x128xf32>
    %64 = vector.shape_cast %63 : vector<16x16x128xf32> to vector<256x128xf32>
    %65 = arith.truncf %64 : vector<256x128xf32> to vector<256x128xbf16>
    %c2_62 = arith.constant 2 : index
    %c2_63 = arith.constant 2 : index
    %c0_64 = arith.constant 0 : index
    %66 = vector.load %arg19[%c2_62, %c2_63, %c0_64] : memref<18x18x128xf32, #tpu.memory_space<vmem>>, vector<16x16x128xf32>
    %67 = vector.shape_cast %66 : vector<16x16x128xf32> to vector<256x128xf32>
    %68 = arith.truncf %67 : vector<256x128xf32> to vector<256x128xbf16>
    %69 = tpu.concatenate %44, %47, %50, %53, %56, %59, %62, %65, %68 in 1 : vector<256x128xbf16>, vector<256x128xbf16>, vector<256x128xbf16>, vector<256x128xbf16>, vector<256x128xbf16>, vector<256x128xbf16>, vector<256x128xbf16>, vector<256x128xbf16>, vector<256x128xbf16> -> vector<256x1152xbf16>
    %c0_65 = arith.constant 0 : index
    %c0_66 = arith.constant 0 : index
    %c0_67 = arith.constant 0 : index
    %70 = vector.load %arg11[%c0_65, %c0_66, %c0_67] : memref<1x1152x128xbf16, #tpu.memory_space<vmem>>, vector<1x1152x128xbf16>
    %71 = vector.shape_cast %70 : vector<1x1152x128xbf16> to vector<1152x128xbf16>
    %cst_68 = arith.constant dense<0.000000e+00> : vector<256x128xf32>
    %72 = tpu.matmul %69, %71, %cst_68 {dimension_numbers = #tpu.dot_dimension_numbers<[1], [0], [0], [1], [0, 0, 1, 1], [], []>} : vector<256x1152xbf16>, vector<1152x128xbf16>, vector<256x128xf32> -> vector<256x128xf32>
    %73 = arith.addf %3, %72 : vector<256x128xf32>
    %c0_69 = arith.constant 0 : index
    %c0_70 = arith.constant 0 : index
    %c0_71 = arith.constant 0 : index
    %74 = vector.load %arg12[%c0_69, %c0_70, %c0_71] : memref<1x1x128xf32, #tpu.memory_space<vmem>>, vector<1x1x128xf32>
    %75 = vector.shape_cast %74 : vector<1x1x128xf32> to vector<1x128xf32>
    %76 = vector.broadcast %75 : vector<1x128xf32> to vector<256x128xf32>
    %77 = arith.addf %73, %76 : vector<256x128xf32>
    %c0_72 = arith.constant 0 : index
    %c0_73 = arith.constant 0 : index
    %78 = vector.load %arg18[%c0_72, %c0_73] : memref<256x128xf32, #tpu.memory_space<vmem>>, vector<256x128xf32>
    tpu.vector_store %arg18[%c0_72, %c0_73], %77 {strides = array<i32>} : memref<256x128xf32, #tpu.memory_space<vmem>>, vector<256x128xf32>,
    %c1_i32 = arith.constant 1 : i32
    %79 = arith.cmpi eq, %arg1, %c1_i32 : i32
    %80 = arith.extui %79 : i1 to i32
    %c0_i32_74 = arith.constant 0 : i32
    %81 = arith.cmpi ne, %80, %c0_i32_74 : i32
    scf.if %81 {
      %c0_75 = arith.constant 0 : index
      %c0_76 = arith.constant 0 : index
      %82 = vector.load %arg18[%c0_75, %c0_76] : memref<256x128xf32, #tpu.memory_space<vmem>>, vector<256x128xf32>
      %cst_77 = arith.constant dense<0.000000e+00> : vector<128xf32>
      %83 = vector.multi_reduction <add>, %82, %cst_77 [0] : vector<256x128xf32> to vector<128xf32>
      %84 = vector.shape_cast %83 : vector<128xf32> to vector<1x128xf32>
      %cst_78 = arith.constant 3.906250e-03 : f32
      %85 = vector.broadcast %cst_78 : f32 to vector<1x128xf32>
      %86 = arith.mulf %84, %85 : vector<1x128xf32>
      %87 = arith.truncf %86 : vector<1x128xf32> to vector<1x128xbf16>
      %c0_79 = arith.constant 0 : index
      %c0_80 = arith.constant 0 : index
      %88 = vector.load %arg13[%c0_79, %c0_80] : memref<128x512xbf16, #tpu.memory_space<vmem>>, vector<128x512xbf16>
      %cst_81 = arith.constant dense<0.000000e+00> : vector<1x512xf32>
      %89 = tpu.matmul %87, %88, %cst_81 {dimension_numbers = #tpu.dot_dimension_numbers<[1], [0], [0], [1], [0, 0, 1, 1], [], []>} : vector<1x128xbf16>, vector<128x512xbf16>, vector<1x512xf32> -> vector<1x512xf32>
      %c0_82 = arith.constant 0 : index
      %c0_83 = arith.constant 0 : index
      %90 = vector.load %arg14[%c0_82, %c0_83] : memref<1x512xf32, #tpu.memory_space<vmem>>, vector<1x512xf32>
      %91 = arith.addf %89, %90 : vector<1x512xf32>
      %92 = arith.negf %91 : vector<1x512xf32>
      %93 = math.exp %92 : vector<1x512xf32>
      %cst_84 = arith.constant 1.000000e+00 : f32
      %94 = vector.broadcast %cst_84 : f32 to vector<1x512xf32>
      %95 = arith.addf %94, %93 : vector<1x512xf32>
      %96 = arith.divf %94, %95 : vector<1x512xf32>
      %97 = arith.mulf %91, %96 : vector<1x512xf32>
      %98 = arith.truncf %97 : vector<1x512xf32> to vector<1x512xbf16>
      %c0_85 = arith.constant 0 : index
      %c0_86 = arith.constant 0 : index
      %99 = vector.load %arg15[%c0_85, %c0_86] : memref<512x128xbf16, #tpu.memory_space<vmem>>, vector<512x128xbf16>
      %cst_87 = arith.constant dense<0.000000e+00> : vector<1x128xf32>
      %100 = tpu.matmul %98, %99, %cst_87 {dimension_numbers = #tpu.dot_dimension_numbers<[1], [0], [0], [1], [0, 0, 1, 1], [], []>} : vector<1x512xbf16>, vector<512x128xbf16>, vector<1x128xf32> -> vector<1x128xf32>
      %c0_88 = arith.constant 0 : index
      %c0_89 = arith.constant 0 : index
      %101 = vector.load %arg16[%c0_88, %c0_89] : memref<1x128xf32, #tpu.memory_space<vmem>>, vector<1x128xf32>
      %102 = arith.addf %100, %101 : vector<1x128xf32>
      %103 = vector.shape_cast %102 : vector<1x128xf32> to vector<1x128xf32>
      %104 = vector.broadcast %103 : vector<1x128xf32> to vector<8x128xf32>
      %c0_90 = arith.constant 0 : index
      %c0_91 = arith.constant 0 : index
      %c0_92 = arith.constant 0 : index
      %105 = vector.load %arg17[%c0_90, %c0_91, %c0_92] : memref<1x8x128xf32, #tpu.memory_space<vmem>>, vector<1x8x128xf32>
      %106 = vector.shape_cast %105 : vector<1x8x128xf32> to vector<8x128xf32>
      %107 = vector.shape_cast %104 : vector<8x128xf32> to vector<1x8x128xf32>
      tpu.vector_store %arg17[%c0_90, %c0_91, %c0_92], %107 {strides = array<i32>} : memref<1x8x128xf32, #tpu.memory_space<vmem>>, vector<1x8x128xf32>,
    } else {
    }
    return
  }
  func.func @transform_0(%arg0: i32, %arg1: i32) -> (i32, i32, i32, i32) {
    %c0_i32 = arith.constant 0 : i32
    %c0_i32_0 = arith.constant 0 : i32
    %c0_i32_1 = arith.constant 0 : i32
    %c0_i32_2 = arith.constant 0 : i32
    return %arg0, %c0_i32, %c0_i32_0, %c0_i32_1 : i32, i32, i32, i32
  }
  func.func @transform_1(%arg0: i32, %arg1: i32) -> (i32, i32) {
    %c0_i32 = arith.constant 0 : i32
    %c0_i32_0 = arith.constant 0 : i32
    %c0_i32_1 = arith.constant 0 : i32
    return %c0_i32, %c0_i32_0 : i32, i32
  }
  func.func @transform_2(%arg0: i32, %arg1: i32) -> (i32, i32) {
    %c0_i32 = arith.constant 0 : i32
    %c0_i32_0 = arith.constant 0 : i32
    %c0_i32_1 = arith.constant 0 : i32
    return %c0_i32, %c0_i32_0 : i32, i32
  }
  func.func @transform_3(%arg0: i32, %arg1: i32) -> (i32, i32, i32) {
    %c0_i32 = arith.constant 0 : i32
    %c0_i32_0 = arith.constant 0 : i32
    %c0_i32_1 = arith.constant 0 : i32
    return %arg1, %c0_i32, %c0_i32_0 : i32, i32, i32
  }
  func.func @transform_4(%arg0: i32, %arg1: i32) -> (i32, i32, i32) {
    %c0_i32 = arith.constant 0 : i32
    %c0_i32_0 = arith.constant 0 : i32
    %c0_i32_1 = arith.constant 0 : i32
    return %arg1, %c0_i32, %c0_i32_0 : i32, i32, i32
  }
  func.func @transform_5(%arg0: i32, %arg1: i32) -> (i32, i32, i32) {
    %c0_i32 = arith.constant 0 : i32
    %c0_i32_0 = arith.constant 0 : i32
    %c0_i32_1 = arith.constant 0 : i32
    return %arg1, %c0_i32, %c0_i32_0 : i32, i32, i32
  }
  func.func @transform_6(%arg0: i32, %arg1: i32) -> (i32, i32, i32) {
    %c0_i32 = arith.constant 0 : i32
    %c0_i32_0 = arith.constant 0 : i32
    %c0_i32_1 = arith.constant 0 : i32
    return %arg1, %c0_i32, %c0_i32_0 : i32, i32, i32
  }
  func.func @transform_7(%arg0: i32, %arg1: i32) -> (i32, i32, i32) {
    %c0_i32 = arith.constant 0 : i32
    %c0_i32_0 = arith.constant 0 : i32
    %c0_i32_1 = arith.constant 0 : i32
    return %arg1, %c0_i32, %c0_i32_0 : i32, i32, i32
  }
  func.func @transform_8(%arg0: i32, %arg1: i32) -> (i32, i32, i32) {
    %c0_i32 = arith.constant 0 : i32
    %c0_i32_0 = arith.constant 0 : i32
    %c0_i32_1 = arith.constant 0 : i32
    return %arg1, %c0_i32, %c0_i32_0 : i32, i32, i32
  }
  func.func @transform_9(%arg0: i32, %arg1: i32) -> (i32, i32, i32) {
    %c0_i32 = arith.constant 0 : i32
    %c0_i32_0 = arith.constant 0 : i32
    %c0_i32_1 = arith.constant 0 : i32
    return %arg1, %c0_i32, %c0_i32_0 : i32, i32, i32
  }
  func.func @transform_10(%arg0: i32, %arg1: i32) -> (i32, i32, i32) {
    %c0_i32 = arith.constant 0 : i32
    %c0_i32_0 = arith.constant 0 : i32
    %c0_i32_1 = arith.constant 0 : i32
    return %arg1, %c0_i32, %c0_i32_0 : i32, i32, i32
  }
  func.func @transform_11(%arg0: i32, %arg1: i32) -> (i32, i32) {
    %c0_i32 = arith.constant 0 : i32
    %c0_i32_0 = arith.constant 0 : i32
    %c0_i32_1 = arith.constant 0 : i32
    return %c0_i32, %c0_i32_0 : i32, i32
  }
  func.func @transform_12(%arg0: i32, %arg1: i32) -> (i32, i32) {
    %c0_i32 = arith.constant 0 : i32
    %c0_i32_0 = arith.constant 0 : i32
    %c0_i32_1 = arith.constant 0 : i32
    return %c0_i32, %c0_i32_0 : i32, i32
  }
  func.func @transform_13(%arg0: i32, %arg1: i32) -> (i32, i32) {
    %c0_i32 = arith.constant 0 : i32
    %c0_i32_0 = arith.constant 0 : i32
    %c0_i32_1 = arith.constant 0 : i32
    return %c0_i32, %c0_i32_0 : i32, i32
  }
  func.func @transform_14(%arg0: i32, %arg1: i32) -> (i32, i32) {
    %c0_i32 = arith.constant 0 : i32
    %c0_i32_0 = arith.constant 0 : i32
    %c0_i32_1 = arith.constant 0 : i32
    return %c0_i32, %c0_i32_0 : i32, i32
  }
  func.func @transform_15(%arg0: i32, %arg1: i32) -> (i32, i32, i32) {
    %c0_i32 = arith.constant 0 : i32
    %c0_i32_0 = arith.constant 0 : i32
    %c0_i32_1 = arith.constant 0 : i32
    return %arg0, %c0_i32, %c0_i32_0 : i32, i32, i32
  }
}

</mosaic_0001>

<llo_original>
// kernel: densenet_forward.1
$region0: #{densenet_forward.1}
  #allocation0 [shape = 'u32[]', space=smem, size = 0x4, offset = 0x4, fixed_abs, tag = 'smem constant byte address 0x4 - core index']
  #allocation1 [shape = 'u32[144,128]{1,0:T(1,128)}', space=vmem, size = 0x12000, scoped, tag = 'internal scratch']
  #allocation2 [shape = 'f32[256,128]{1,0:T(8,128)}', space=vmem, size = 0x20000, scoped, tag = 'scratch operand']
  #allocation3 [shape = 'f32[18,18,128]{2,1,0:T(8,128)}', space=vmem, size = 0x36000, scoped, tag = 'scratch operand']
  %s0 = inlined_call_operand.vmem [shape: f32[2,16,16,128], index: 0, kind: input, shape index: {}]
  %s1 = inlined_call_operand.hbm [shape: bf16[1152,128], index: 1, kind: input, shape index: {}]
  %s2 = inlined_call_operand.vmem [shape: f32[1,128], index: 2, kind: input, shape index: {}]
  %s3 = inlined_call_operand.vmem [shape: f32[2,1,128], index: 3, kind: input, shape index: {}]
  %s4 = inlined_call_operand.vmem [shape: f32[2,1,128], index: 4, kind: input, shape index: {}]
  %s5 = inlined_call_operand.vmem [shape: bf16[2,128,128], index: 5, kind: input, shape index: {}]
  %s6 = inlined_call_operand.vmem [shape: f32[2,1,128], index: 6, kind: input, shape index: {}]
  %s7 = inlined_call_operand.vmem [shape: f32[2,1,128], index: 7, kind: input, shape index: {}]
  %s8 = inlined_call_operand.vmem [shape: f32[2,1,128], index: 8, kind: input, shape index: {}]
  %s9 = inlined_call_operand.vmem [shape: bf16[2,1152,128], index: 9, kind: input, shape index: {}]
  %s10 = inlined_call_operand.vmem [shape: f32[2,1,128], index: 10, kind: input, shape index: {}]
  %s11 = inlined_call_operand.hbm [shape: bf16[128,512], index: 11, kind: input, shape index: {}]
  %s12 = inlined_call_operand.vmem [shape: f32[1,512], index: 12, kind: input, shape index: {}]
  %s13 = inlined_call_operand.vmem [shape: bf16[512,128], index: 13, kind: input, shape index: {}]
  %s14 = inlined_call_operand.vmem [shape: f32[1,128], index: 14, kind: input, shape index: {}]
  %s15 = inlined_call_operand.vmem [shape: f32[2,8,128], index: 15, kind: output, shape index: {}]
  %s16 = sld [smem:[#allocation0]]
  $region109: #{densenet_forward.1} parent=0
    _
  %s18 = ssub.s32 1, %s16
  %s19 = scalar_select 0, %s18, %s16
  $region1: #{densenet_forward.1} parent=0
    #allocation4 [shape = 'u8[294912]{0}', space=vmem, size = 0x48000, scoped, tag = 'input window, operand 1, single buffered']
    #allocation5 [shape = 's32[2]{0}', space=sflag, size = 0x8, scoped, tag = 'scoped memory for densenet_forward.1']
    #allocation6 [shape = 'u8[131072]{0}', space=vmem, size = 0x20000, scoped, tag = 'input window, operand 11, single buffered']
    #allocation7 [shape = 's32[1]{0}', space=sflag, size = 0x4, scoped, tag = 'scoped memory for densenet_forward.1']
    %20 = vsyncpa [#allocation5], 0
    %21 = vsyncpa [#allocation7], 0
    loop: start=0, step=1, limit=6
    $region2: #{densenet_forward.1} parent=1 // loop_pre_header
      _
    $region3: #{densenet_forward.1} parent=1 // loop_header
      %s23 = sphi 0, %s27
      %p24 = scmp.ge.s32.totalorder %s23, 6
      %s30 = sphi 0, %s42
      %s31 = sphi 0, %s38
      %s32 = sphi 0, %s30
      %s33 = sphi 0, %s31
      %s34 = sphi 0, %s32
      %s35 = sphi 0, %s33
      %s45 = sphi 0, %s47
      %s48 = sphi 0, %s45
      %s49 = sphi 0, %s48
      %s65 = sphi 0, %s49
      %s69 = sphi 0, %s69
      %s71 = sphi 0, %s69
      %s72 = sphi 0, %s71
      %s86 = sphi 0, %s72
      %s90 = sphi 0, %s90
      %s92 = sphi 0, %s90
      %s93 = sphi 0, %s92
      %s107 = sphi 0, %s93
      %s113 = sphi 0, %s115
      %s116 = sphi 0, %s113
      %s117 = sphi 0, %s116
      %s133 = sphi 0, %s117
      %s139 = sphi 0, %s141
      %s142 = sphi 0, %s139
      %s143 = sphi 0, %s142
      %s159 = sphi 0, %s143
      %s165 = sphi 0, %s167
      %s168 = sphi 0, %s165
      %s169 = sphi 0, %s168
      %s185 = sphi 0, %s169
      %s191 = sphi 0, %s193
      %s194 = sphi 0, %s191
      %s195 = sphi 0, %s194
      %s211 = sphi 0, %s195
      %s217 = sphi 0, %s219
      %s220 = sphi 0, %s217
      %s221 = sphi 0, %s220
      %s237 = sphi 0, %s221
      %s243 = sphi 0, %s245
      %s246 = sphi 0, %s243
      %s247 = sphi 0, %s246
      %s263 = sphi 0, %s247
      %s269 = sphi 0, %s271
      %s272 = sphi 0, %s269
      %s273 = sphi 0, %s272
      %s289 = sphi 0, %s273
      %s295 = sphi 0, %s297
      %s298 = sphi 0, %s295
      %s299 = sphi 0, %s298
      %s315 = sphi 0, %s299
      %s319 = sphi 0, %s319
      %s321 = sphi 0, %s319
      %s322 = sphi 0, %s321
      %s336 = sphi 0, %s322
      %s340 = sphi 0, %s340
      %s342 = sphi 0, %s340
      %s343 = sphi 0, %s342
      %s357 = sphi 0, %s343
      %s361 = sphi 0, %s361
      %s363 = sphi 0, %s361
      %s364 = sphi 0, %s363
      %s378 = sphi 0, %s364
      %s382 = sphi 0, %s382
      %s384 = sphi 0, %s382
      %s385 = sphi 0, %s384
      %s399 = sphi 0, %s385
      %s405 = sphi 0, %s407
      %s408 = sphi 0, %s405
      %s409 = sphi 0, %s408
      %s425 = sphi 0, %s409
    $region4: #{densenet_forward.1} parent=1 // loop_header_branch
      %26 = sbr.rel (%p24) target = $region8
    $region5: #{densenet_forward.1} parent=1 // loop_body
      %s28 = ssub.s32 %s23, 1
      %s29 = ssub.s32 %s23, 2
      %s36 = sadd.s32 1, %s31
      %p37 = scmp.ge.s32.totalorder %s36, 2
      %s38 = scalar_select %p37, 0, %s36
      %s39 = sadd.s32 1, %s30
      %s40 = scalar_select %p37, %s39, %s30
      %p41 = scmp.ge.s32.totalorder %s40, 2
      %s42 = scalar_select %p41, 0, %s40
      %s43 = ssub.s32 %s30, %s42
      %p44 = scmp.eq.s32.totalorder %s43, 0
      %s46 = sadd.s32 %s45, 1
      %s47 = scalar_select %p44, %s45, %s46
      %p50 = pneg %p44
      %p51 = scmp.eq.s32.totalorder %s23, 3
      %p52 = por %p50, %p51
      %p53 = scmp.ne.s32.totalorder %s45, %s48
      %p54 = scmp.eq.s32.totalorder %s23, 0
      %p55 = por %p53, %p54
      %p56 = scmp.ne.s32.totalorder %s45, %s48
      %p57 = scmp.eq.s32.totalorder %s28, 3
      %p58 = por %p56, %p57
      %p59 = scmp.ne.s32.totalorder %s48, %s49
      %p60 = scmp.eq.s32.totalorder %s28, 0
      %p61 = por %p59, %p60
      %p62 = scmp.ne.s32.totalorder %s48, %s49
      %p63 = scmp.eq.s32.totalorder %s29, 3
      %p64 = por %p62, %p63
      %p66 = scmp.ne.s32.totalorder %s49, %s65
      %p67 = scmp.eq.s32.totalorder %s29, 0
      %p68 = por %p66, %p67
      %s70 = sadd.s32 %s69, 1
      %p73 = scmp.eq.s32.totalorder %s23, 3
      %p74 = scmp.ne.s32.totalorder %s69, %s71
      %p75 = scmp.eq.s32.totalorder %s23, 0
      %p76 = por %p74, %p75
      %p77 = scmp.ne.s32.totalorder %s69, %s71
      %p78 = scmp.eq.s32.totalorder %s28, 3
      %p79 = por %p77, %p78
      %p80 = scmp.ne.s32.totalorder %s71, %s72
      %p81 = scmp.eq.s32.totalorder %s28, 0
      %p82 = por %p80, %p81
      %p83 = scmp.ne.s32.totalorder %s71, %s72
      %p84 = scmp.eq.s32.totalorder %s29, 3
      %p85 = por %p83, %p84
      %p87 = scmp.ne.s32.totalorder %s72, %s86
      %p88 = scmp.eq.s32.totalorder %s29, 0
      %p89 = por %p87, %p88
      %s91 = sadd.s32 %s90, 1
      %p94 = scmp.eq.s32.totalorder %s23, 3
      %p95 = scmp.ne.s32.totalorder %s90, %s92
      %p96 = scmp.eq.s32.totalorder %s23, 0
      %p97 = por %p95, %p96
      %p98 = scmp.ne.s32.totalorder %s90, %s92
      %p99 = scmp.eq.s32.totalorder %s28, 3
      %p100 = por %p98, %p99
      %p101 = scmp.ne.s32.totalorder %s92, %s93
      %p102 = scmp.eq.s32.totalorder %s28, 0
      %p103 = por %p101, %p102
      %p104 = scmp.ne.s32.totalorder %s92, %s93
      %p105 = scmp.eq.s32.totalorder %s29, 3
      %p106 = por %p104, %p105
      %p108 = scmp.ne.s32.totalorder %s93, %s107
      %p109 = scmp.eq.s32.totalorder %s29, 0
      %p110 = por %p108, %p109
      %s111 = ssub.s32 %s31, %s38
      %p112 = scmp.eq.s32.totalorder %s111, 0
      %s114 = sadd.s32 %s113, 1
      %s115 = scalar_select %p112, %s113, %s114
      %p118 = pneg %p112
      %p119 = scmp.eq.s32.totalorder %s23, 3
      %p120 = por %p118, %p119
      %p121 = scmp.ne.s32.totalorder %s113, %s116
      %p122 = scmp.eq.s32.totalorder %s23, 0
      %p123 = por %p121, %p122
      %p124 = scmp.ne.s32.totalorder %s113, %s116
      %p125 = scmp.eq.s32.totalorder %s28, 3
      %p126 = por %p124, %p125
      %p127 = scmp.ne.s32.totalorder %s116, %s117
      %p128 = scmp.eq.s32.totalorder %s28, 0
      %p129 = por %p127, %p128
      %p130 = scmp.ne.s32.totalorder %s116, %s117
      %p131 = scmp.eq.s32.totalorder %s29, 3
      %p132 = por %p130, %p131
      %p134 = scmp.ne.s32.totalorder %s117, %s133
      %p135 = scmp.eq.s32.totalorder %s29, 0
      %p136 = por %p134, %p135
      %s137 = ssub.s32 %s31, %s38
      %p138 = scmp.eq.s32.totalorder %s137, 0
      %s140 = sadd.s32 %s139, 1
      %s141 = scalar_select %p138, %s139, %s140
      %p144 = pneg %p138
      %p145 = scmp.eq.s32.totalorder %s23, 3
      %p146 = por %p144, %p145
      %p147 = scmp.ne.s32.totalorder %s139, %s142
      %p148 = scmp.eq.s32.totalorder %s23, 0
      %p149 = por %p147, %p148
      %p150 = scmp.ne.s32.totalorder %s139, %s142
      %p151 = scmp.eq.s32.totalorder %s28, 3
      %p152 = por %p150, %p151
      %p153 = scmp.ne.s32.totalorder %s142, %s143
      %p154 = scmp.eq.s32.totalorder %s28, 0
      %p155 = por %p153, %p154
      %p156 = scmp.ne.s32.totalorder %s142, %s143
      %p157 = scmp.eq.s32.totalorder %s29, 3
      %p158 = por %p156, %p157
      %p160 = scmp.ne.s32.totalorder %s143, %s159
      %p161 = scmp.eq.s32.totalorder %s29, 0
      %p162 = por %p160, %p161
      %s163 = ssub.s32 %s31, %s38
      %p164 = scmp.eq.s32.totalorder %s163, 0
      %s166 = sadd.s32 %s165, 1
      %s167 = scalar_select %p164, %s165, %s166
      %p170 = pneg %p164
      %p171 = scmp.eq.s32.totalorder %s23, 3
      %p172 = por %p170, %p171
      %p173 = scmp.ne.s32.totalorder %s165, %s168
      %p174 = scmp.eq.s32.totalorder %s23, 0
      %p175 = por %p173, %p174
      %p176 = scmp.ne.s32.totalorder %s165, %s168
      %p177 = scmp.eq.s32.totalorder %s28, 3
      %p178 = por %p176, %p177
      %p179 = scmp.ne.s32.totalorder %s168, %s169
      %p180 = scmp.eq.s32.totalorder %s28, 0
      %p181 = por %p179, %p180
      %p182 = scmp.ne.s32.totalorder %s168, %s169
      %p183 = scmp.eq.s32.totalorder %s29, 3
      %p184 = por %p182, %p183
      %p186 = scmp.ne.s32.totalorder %s169, %s185
      %p187 = scmp.eq.s32.totalorder %s29, 0
      %p188 = por %p186, %p187
      %s189 = ssub.s32 %s31, %s38
      %p190 = scmp.eq.s32.totalorder %s189, 0
      %s192 = sadd.s32 %s191, 1
      %s193 = scalar_select %p190, %s191, %s192
      %p196 = pneg %p190
      %p197 = scmp.eq.s32.totalorder %s23, 3
      %p198 = por %p196, %p197
      %p199 = scmp.ne.s32.totalorder %s191, %s194
      %p200 = scmp.eq.s32.totalorder %s23, 0
      %p201 = por %p199, %p200
      %p202 = scmp.ne.s32.totalorder %s191, %s194
      %p203 = scmp.eq.s32.totalorder %s28, 3
      %p204 = por %p202, %p203
      %p205 = scmp.ne.s32.totalorder %s194, %s195
      %p206 = scmp.eq.s32.totalorder %s28, 0
      %p207 = por %p205, %p206
      %p208 = scmp.ne.s32.totalorder %s194, %s195
      %p209 = scmp.eq.s32.totalorder %s29, 3
      %p210 = por %p208, %p209
      %p212 = scmp.ne.s32.totalorder %s195, %s211
      %p213 = scmp.eq.s32.totalorder %s29, 0
      %p214 = por %p212, %p213
      %s215 = ssub.s32 %s31, %s38
      %p216 = scmp.eq.s32.totalorder %s215, 0
      %s218 = sadd.s32 %s217, 1
      %s219 = scalar_select %p216, %s217, %s218
      %p222 = pneg %p216
      %p223 = scmp.eq.s32.totalorder %s23, 3
      %p224 = por %p222, %p223
      %p225 = scmp.ne.s32.totalorder %s217, %s220
      %p226 = scmp.eq.s32.totalorder %s23, 0
      %p227 = por %p225, %p226
      %p228 = scmp.ne.s32.totalorder %s217, %s220
      %p229 = scmp.eq.s32.totalorder %s28, 3
      %p230 = por %p228, %p229
      %p231 = scmp.ne.s32.totalorder %s220, %s221
      %p232 = scmp.eq.s32.totalorder %s28, 0
      %p233 = por %p231, %p232
      %p234 = scmp.ne.s32.totalorder %s220, %s221
      %p235 = scmp.eq.s32.totalorder %s29, 3
      %p236 = por %p234, %p235
      %p238 = scmp.ne.s32.totalorder %s221, %s237
      %p239 = scmp.eq.s32.totalorder %s29, 0
      %p240 = por %p238, %p239
      %s241 = ssub.s32 %s31, %s38
      %p242 = scmp.eq.s32.totalorder %s241, 0
      %s244 = sadd.s32 %s243, 1
      %s245 = scalar_select %p242, %s243, %s244
      %p248 = pneg %p242
      %p249 = scmp.eq.s32.totalorder %s23, 3
      %p250 = por %p248, %p249
      %p251 = scmp.ne.s32.totalorder %s243, %s246
      %p252 = scmp.eq.s32.totalorder %s23, 0
      %p253 = por %p251, %p252
      %p254 = scmp.ne.s32.totalorder %s243, %s246
      %p255 = scmp.eq.s32.totalorder %s28, 3
      %p256 = por %p254, %p255
      %p257 = scmp.ne.s32.totalorder %s246, %s247
      %p258 = scmp.eq.s32.totalorder %s28, 0
      %p259 = por %p257, %p258
      %p260 = scmp.ne.s32.totalorder %s246, %s247
      %p261 = scmp.eq.s32.totalorder %s29, 3
      %p262 = por %p260, %p261
      %p264 = scmp.ne.s32.totalorder %s247, %s263
      %p265 = scmp.eq.s32.totalorder %s29, 0
      %p266 = por %p264, %p265
      %s267 = ssub.s32 %s31, %s38
      %p268 = scmp.eq.s32.totalorder %s267, 0
      %s270 = sadd.s32 %s269, 1
      %s271 = scalar_select %p268, %s269, %s270
      %p274 = pneg %p268
      %p275 = scmp.eq.s32.totalorder %s23, 3
      %p276 = por %p274, %p275
      %p277 = scmp.ne.s32.totalorder %s269, %s272
      %p278 = scmp.eq.s32.totalorder %s23, 0
      %p279 = por %p277, %p278
      %p280 = scmp.ne.s32.totalorder %s269, %s272
      %p281 = scmp.eq.s32.totalorder %s28, 3
      %p282 = por %p280, %p281
      %p283 = scmp.ne.s32.totalorder %s272, %s273
      %p284 = scmp.eq.s32.totalorder %s28, 0
      %p285 = por %p283, %p284
      %p286 = scmp.ne.s32.totalorder %s272, %s273
      %p287 = scmp.eq.s32.totalorder %s29, 3
      %p288 = por %p286, %p287
      %p290 = scmp.ne.s32.totalorder %s273, %s289
      %p291 = scmp.eq.s32.totalorder %s29, 0
      %p292 = por %p290, %p291
      %s293 = ssub.s32 %s31, %s38
      %p294 = scmp.eq.s32.totalorder %s293, 0
      %s296 = sadd.s32 %s295, 1
      %s297 = scalar_select %p294, %s295, %s296
      %p300 = pneg %p294
      %p301 = scmp.eq.s32.totalorder %s23, 3
      %p302 = por %p300, %p301
      %p303 = scmp.ne.s32.totalorder %s295, %s298
      %p304 = scmp.eq.s32.totalorder %s23, 0
      %p305 = por %p303, %p304
      %p306 = scmp.ne.s32.totalorder %s295, %s298
      %p307 = scmp.eq.s32.totalorder %s28, 3
      %p308 = por %p306, %p307
      %p309 = scmp.ne.s32.totalorder %s298, %s299
      %p310 = scmp.eq.s32.totalorder %s28, 0
      %p311 = por %p309, %p310
      %p312 = scmp.ne.s32.totalorder %s298, %s299
      %p313 = scmp.eq.s32.totalorder %s29, 3
      %p314 = por %p312, %p313
      %p316 = scmp.ne.s32.totalorder %s299, %s315
      %p317 = scmp.eq.s32.totalorder %s29, 0
      %p318 = por %p316, %p317
      %s320 = sadd.s32 %s319, 1
      %p323 = scmp.eq.s32.totalorder %s23, 3
      %p324 = scmp.ne.s32.totalorder %s319, %s321
      %p325 = scmp.eq.s32.totalorder %s23, 0
      %p326 = por %p324, %p325
      %p327 = scmp.ne.s32.totalorder %s319, %s321
      %p328 = scmp.eq.s32.totalorder %s28, 3
      %p329 = por %p327, %p328
      %p330 = scmp.ne.s32.totalorder %s321, %s322
      %p331 = scmp.eq.s32.totalorder %s28, 0
      %p332 = por %p330, %p331
      %p333 = scmp.ne.s32.totalorder %s321, %s322
      %p334 = scmp.eq.s32.totalorder %s29, 3
      %p335 = por %p333, %p334
      %p337 = scmp.ne.s32.totalorder %s322, %s336
      %p338 = scmp.eq.s32.totalorder %s29, 0
      %p339 = por %p337, %p338
      %s341 = sadd.s32 %s340, 1
      %p344 = scmp.eq.s32.totalorder %s23, 3
      %p345 = scmp.ne.s32.totalorder %s340, %s342
      %p346 = scmp.eq.s32.totalorder %s23, 0
      %p347 = por %p345, %p346
      %p348 = scmp.ne.s32.totalorder %s340, %s342
      %p349 = scmp.eq.s32.totalorder %s28, 3
      %p350 = por %p348, %p349
      %p351 = scmp.ne.s32.totalorder %s342, %s343
      %p352 = scmp.eq.s32.totalorder %s28, 0
      %p353 = por %p351, %p352
      %p354 = scmp.ne.s32.totalorder %s342, %s343
      %p355 = scmp.eq.s32.totalorder %s29, 3
      %p356 = por %p354, %p355
      %p358 = scmp.ne.s32.totalorder %s343, %s357
      %p359 = scmp.eq.s32.totalorder %s29, 0
      %p360 = por %p358, %p359
      %s362 = sadd.s32 %s361, 1
      %p365 = scmp.eq.s32.totalorder %s23, 3
      %p366 = scmp.ne.s32.totalorder %s361, %s363
      %p367 = scmp.eq.s32.totalorder %s23, 0
      %p368 = por %p366, %p367
      %p369 = scmp.ne.s32.totalorder %s361, %s363
      %p370 = scmp.eq.s32.totalorder %s28, 3
      %p371 = por %p369, %p370
      %p372 = scmp.ne.s32.totalorder %s363, %s364
      %p373 = scmp.eq.s32.totalorder %s28, 0
      %p374 = por %p372, %p373
      %p375 = scmp.ne.s32.totalorder %s363, %s364
      %p376 = scmp.eq.s32.totalorder %s29, 3
      %p377 = por %p375, %p376
      %p379 = scmp.ne.s32.totalorder %s364, %s378
      %p380 = scmp.eq.s32.totalorder %s29, 0
      %p381 = por %p379, %p380
      %s383 = sadd.s32 %s382, 1
      %p386 = scmp.eq.s32.totalorder %s23, 3
      %p387 = scmp.ne.s32.totalorder %s382, %s384
      %p388 = scmp.eq.s32.totalorder %s23, 0
      %p389 = por %p387, %p388
      %p390 = scmp.ne.s32.totalorder %s382, %s384
      %p391 = scmp.eq.s32.totalorder %s28, 3
      %p392 = por %p390, %p391
      %p393 = scmp.ne.s32.totalorder %s384, %s385
      %p394 = scmp.eq.s32.totalorder %s28, 0
      %p395 = por %p393, %p394
      %p396 = scmp.ne.s32.totalorder %s384, %s385
      %p397 = scmp.eq.s32.totalorder %s29, 3
      %p398 = por %p396, %p397
      %p400 = scmp.ne.s32.totalorder %s385, %s399
      %p401 = scmp.eq.s32.totalorder %s29, 0
      %p402 = por %p400, %p401
      %s403 = ssub.s32 %s30, %s42
      %p404 = scmp.eq.s32.totalorder %s403, 0
      %s406 = sadd.s32 %s405, 1
      %s407 = scalar_select %p404, %s405, %s406
      %p410 = pneg %p404
      %p411 = scmp.eq.s32.totalorder %s23, 3
      %p412 = por %p410, %p411
      %p413 = scmp.ne.s32.totalorder %s405, %s408
      %p414 = scmp.eq.s32.totalorder %s23, 0
      %p415 = por %p413, %p414
      %p416 = scmp.ne.s32.totalorder %s405, %s408
      %p417 = scmp.eq.s32.totalorder %s28, 3
      %p418 = por %p416, %p417
      %p419 = scmp.ne.s32.totalorder %s408, %s409
      %p420 = scmp.eq.s32.totalorder %s28, 0
      %p421 = por %p419, %p420
      %p422 = scmp.ne.s32.totalorder %s408, %s409
      %p423 = scmp.eq.s32.totalorder %s29, 3
      %p424 = por %p422, %p423
      %p426 = scmp.ne.s32.totalorder %s409, %s425
      %p427 = scmp.eq.s32.totalorder %s29, 0
      %p428 = por %p426, %p427
      %p429 = scmp.le.s32.totalorder 1, %s23
      %p430 = scmp.lt.s32.totalorder %s23, 5
      %p431 = pnand %p429, %p430
      %p432 = pneg %p431
      // Predicated region
      $region9: #{densenet_forward.1} parent=5 // pred_check
        _
      $region10: #{densenet_forward.1} parent=5 // pred_check_branch
        %434 = sbr.rel (%p431) target = $region12
      $region11: #{densenet_forward.1} parent=5 // pred_region
        %s435 = ssub.s32 %s23, 1
        // Predicated region
        $region13: #{densenet_forward.1} parent=11 // pred_check
          %p436 = pneg %p82
        $region14: #{densenet_forward.1} parent=11 // pred_check_branch
          %438 = sbr.rel (%p436) target = $region16
        $region15: #{densenet_forward.1} parent=11 // pred_region
          %s440 = ssub.s32 9216, 9216
          %441 = vsyncadd [#allocation5], %s440
          %s442 = sshll.u32 [#allocation4], 4
          %s443 = int_to_ptr.vmem [resolvable:$true] %s442
          %448 = dma.hbm_to_vmem [thread:$0]  %s1, 9216, %s443, [#allocation5], 64, 64, 4
        $region16: #{densenet_forward.1} parent=11 // pred_fallthru
          _
        // Predicated region
        $region17: #{densenet_forward.1} parent=11 // pred_check
          %p449 = pneg %p103
        $region18: #{densenet_forward.1} parent=11 // pred_check_branch
          %451 = sbr.rel (%p449) target = $region20
        $region19: #{densenet_forward.1} parent=11 // pred_region
          _
        $region20: #{densenet_forward.1} parent=11 // pred_fallthru
          _
        // Predicated region
        $region21: #{densenet_forward.1} parent=11 // pred_check
          %p452 = pneg %p332
        $region22: #{densenet_forward.1} parent=11 // pred_check_branch
          %454 = sbr.rel (%p452) target = $region24
        $region23: #{densenet_forward.1} parent=11 // pred_region
          %s456 = ssub.s32 4096, 4096
          %457 = vsyncadd [#allocation7], %s456
          %s458 = sshll.u32 [#allocation6], 4
          %s459 = int_to_ptr.vmem [resolvable:$true] %s458
          %464 = dma.hbm_to_vmem [thread:$0]  %s11, 4096, %s459, [#allocation7], 256, 256, 16
        $region24: #{densenet_forward.1} parent=11 // pred_fallthru
          _
        // Predicated region
        $region25: #{densenet_forward.1} parent=11 // pred_check
          %p465 = pneg %p353
        $region26: #{densenet_forward.1} parent=11 // pred_check_branch
          %467 = sbr.rel (%p465) target = $region28
        $region27: #{densenet_forward.1} parent=11 // pred_region
          _
        $region28: #{densenet_forward.1} parent=11 // pred_fallthru
          _
        // Predicated region
        $region29: #{densenet_forward.1} parent=11 // pred_check
          %p468 = pneg %p374
        $region30: #{densenet_forward.1} parent=11 // pred_check_branch
          %470 = sbr.rel (%p468) target = $region32
        $region31: #{densenet_forward.1} parent=11 // pred_region
          _
        $region32: #{densenet_forward.1} parent=11 // pred_fallthru
          _
        // Predicated region
        $region33: #{densenet_forward.1} parent=11 // pred_check
          %p471 = pneg %p395
        $region34: #{densenet_forward.1} parent=11 // pred_check_branch
          %473 = sbr.rel (%p471) target = $region36
        $region35: #{densenet_forward.1} parent=11 // pred_region
          _
        $region36: #{densenet_forward.1} parent=11 // pred_fallthru
          _
      $region12: #{densenet_forward.1} parent=5 // pred_fallthru
        _
      %p474 = scmp.lt.s32.totalorder %s23, 4
      // Predicated region
      $region37: #{densenet_forward.1} parent=5 // pred_check
        %p475 = pneg %p474
      $region38: #{densenet_forward.1} parent=5 // pred_check_branch
        %477 = sbr.rel (%p475) target = $region40
      $region39: #{densenet_forward.1} parent=5 // pred_region
        // Predicated region
        $region41: #{densenet_forward.1} parent=39 // pred_check
          %p478 = pneg %p55
        $region42: #{densenet_forward.1} parent=39 // pred_check_branch
          %480 = sbr.rel (%p478) target = $region44
        $region43: #{densenet_forward.1} parent=39 // pred_region
          %p481 = scmp.lt.s32.totalorder %s30, 1
          %s482 = scalar_select %p481, %s30, 1
          %s483 = smul.addr %s482, 32
          %s484 = smul.addr %s483, 8
          %s485 = scalar_lea.vmem %s0, %s484
        $region44: #{densenet_forward.1} parent=39 // pred_fallthru
          _
        // Predicated region
        $region45: #{densenet_forward.1} parent=39 // pred_check
          %p486 = pneg %p123
        $region46: #{densenet_forward.1} parent=39 // pred_check_branch
          %488 = sbr.rel (%p486) target = $region48
        $region47: #{densenet_forward.1} parent=39 // pred_region
          %p489 = scmp.lt.s32.totalorder %s31, 1
          %s490 = scalar_select %p489, %s31, 1
          %s491 = scalar_lea.vmem %s3, %s490
        $region48: #{densenet_forward.1} parent=39 // pred_fallthru
          _
        // Predicated region
        $region49: #{densenet_forward.1} parent=39 // pred_check
          %p492 = pneg %p149
        $region50: #{densenet_forward.1} parent=39 // pred_check_branch
          %494 = sbr.rel (%p492) target = $region52
        $region51: #{densenet_forward.1} parent=39 // pred_region
          %p495 = scmp.lt.s32.totalorder %s31, 1
          %s496 = scalar_select %p495, %s31, 1
          %s497 = scalar_lea.vmem %s4, %s496
        $region52: #{densenet_forward.1} parent=39 // pred_fallthru
          _
        // Predicated region
        $region53: #{densenet_forward.1} parent=39 // pred_check
          %p498 = pneg %p175
        $region54: #{densenet_forward.1} parent=39 // pred_check_branch
          %500 = sbr.rel (%p498) target = $region56
        $region55: #{densenet_forward.1} parent=39 // pred_region
          %p501 = scmp.lt.s32.totalorder %s31, 1
          %s502 = scalar_select %p501, %s31, 1
          %s503 = smul.addr %s502, 16
          %s504 = smul.addr %s503, 4
          %s505 = scalar_lea.vmem %s5, %s504
        $region56: #{densenet_forward.1} parent=39 // pred_fallthru
          _
        // Predicated region
        $region57: #{densenet_forward.1} parent=39 // pred_check
          %p506 = pneg %p201
        $region58: #{densenet_forward.1} parent=39 // pred_check_branch
          %508 = sbr.rel (%p506) target = $region60
        $region59: #{densenet_forward.1} parent=39 // pred_region
          %p509 = scmp.lt.s32.totalorder %s31, 1
          %s510 = scalar_select %p509, %s31, 1
          %s511 = scalar_lea.vmem %s6, %s510
        $region60: #{densenet_forward.1} parent=39 // pred_fallthru
          _
        // Predicated region
        $region61: #{densenet_forward.1} parent=39 // pred_check
          %p512 = pneg %p227
        $region62: #{densenet_forward.1} parent=39 // pred_check_branch
          %514 = sbr.rel (%p512) target = $region64
        $region63: #{densenet_forward.1} parent=39 // pred_region
          %p515 = scmp.lt.s32.totalorder %s31, 1
          %s516 = scalar_select %p515, %s31, 1
          %s517 = scalar_lea.vmem %s7, %s516
        $region64: #{densenet_forward.1} parent=39 // pred_fallthru
          _
        // Predicated region
        $region65: #{densenet_forward.1} parent=39 // pred_check
          %p518 = pneg %p253
        $region66: #{densenet_forward.1} parent=39 // pred_check_branch
          %520 = sbr.rel (%p518) target = $region68
        $region67: #{densenet_forward.1} parent=39 // pred_region
          %p521 = scmp.lt.s32.totalorder %s31, 1
          %s522 = scalar_select %p521, %s31, 1
          %s523 = scalar_lea.vmem %s8, %s522
        $region68: #{densenet_forward.1} parent=39 // pred_fallthru
          _
        // Predicated region
        $region69: #{densenet_forward.1} parent=39 // pred_check
          %p524 = pneg %p279
        $region70: #{densenet_forward.1} parent=39 // pred_check_branch
          %526 = sbr.rel (%p524) target = $region72
        $region71: #{densenet_forward.1} parent=39 // pred_region
          %p527 = scmp.lt.s32.totalorder %s31, 1
          %s528 = scalar_select %p527, %s31, 1
          %s529 = smul.addr %s528, 144
          %s530 = smul.addr %s529, 4
          %s531 = scalar_lea.vmem %s9, %s530
        $region72: #{densenet_forward.1} parent=39 // pred_fallthru
          _
        // Predicated region
        $region73: #{densenet_forward.1} parent=39 // pred_check
          %p532 = pneg %p305
        $region74: #{densenet_forward.1} parent=39 // pred_check_branch
          %534 = sbr.rel (%p532) target = $region76
        $region75: #{densenet_forward.1} parent=39 // pred_region
          %p535 = scmp.lt.s32.totalorder %s31, 1
          %s536 = scalar_select %p535, %s31, 1
          %s537 = scalar_lea.vmem %s10, %s536
        $region76: #{densenet_forward.1} parent=39 // pred_fallthru
          _
      $region40: #{densenet_forward.1} parent=5 // pred_fallthru
        _
      %p538 = scmp.le.s32.totalorder 1, %s23
      %p539 = scmp.lt.s32.totalorder %s23, 5
      %p540 = pnand %p538, %p539
      %p541 = pneg %p540
      // Predicated region
      $region77: #{densenet_forward.1} parent=5 // pred_check
        _
      $region78: #{densenet_forward.1} parent=5 // pred_check_branch
        %543 = sbr.rel (%p540) target = $region80
      $region79: #{densenet_forward.1} parent=5 // pred_region
        %s544 = ssub.s32 %s23, 1
        // Predicated region
        $region81: #{densenet_forward.1} parent=79 // pred_check
          %p545 = pneg %p82
        $region82: #{densenet_forward.1} parent=79 // pred_check_branch
          %547 = sbr.rel (%p545) target = $region84
        $region83: #{densenet_forward.1} parent=79 // pred_region
          %548 = dma.done [#allocation5], 9216
        $region84: #{densenet_forward.1} parent=79 // pred_fallthru
          _
        // Predicated region
        $region85: #{densenet_forward.1} parent=79 // pred_check
          %p549 = pneg %p332
        $region86: #{densenet_forward.1} parent=79 // pred_check_branch
          %551 = sbr.rel (%p549) target = $region88
        $region87: #{densenet_forward.1} parent=79 // pred_region
          %552 = dma.done [#allocation7], 4096
        $region88: #{densenet_forward.1} parent=79 // pred_fallthru
          _
        %p553 = scmp.lt.s32.totalorder %s32, 1
        %s554 = scalar_select %p553, %s32, 1
        %s555 = smul.addr %s554, 32
        %s556 = smul.addr %s555, 8
        %s557 = scalar_lea.vmem %s0, %s556
        %p558 = pneg %p61
        %p559 = pneg %p58
        %p560 = pneg %p82
        %p561 = pneg %p79
        %p562 = pneg %p103
        %p563 = pneg %p100
        %p564 = scmp.lt.s32.totalorder %s33, 1
        %s565 = scalar_select %p564, %s33, 1
        %s566 = scalar_lea.vmem %s3, %s565
        %p567 = pneg %p129
        %p568 = pneg %p126
        %p569 = scmp.lt.s32.totalorder %s33, 1
        %s570 = scalar_select %p569, %s33, 1
        %s571 = scalar_lea.vmem %s4, %s570
        %p572 = pneg %p155
        %p573 = pneg %p152
        %p574 = scmp.lt.s32.totalorder %s33, 1
        %s575 = scalar_select %p574, %s33, 1
        %s576 = smul.addr %s575, 16
        %s577 = smul.addr %s576, 4
        %s578 = scalar_lea.vmem %s5, %s577
        %p579 = pneg %p181
        %p580 = pneg %p178
        %p581 = scmp.lt.s32.totalorder %s33, 1
        %s582 = scalar_select %p581, %s33, 1
        %s583 = scalar_lea.vmem %s6, %s582
        %p584 = pneg %p207
        %p585 = pneg %p204
        %p586 = scmp.lt.s32.totalorder %s33, 1
        %s587 = scalar_select %p586, %s33, 1
        %s588 = scalar_lea.vmem %s7, %s587
        %p589 = pneg %p233
        %p590 = pneg %p230
        %p591 = scmp.lt.s32.totalorder %s33, 1
        %s592 = scalar_select %p591, %s33, 1
        %s593 = scalar_lea.vmem %s8, %s592
        %p594 = pneg %p259
        %p595 = pneg %p256
        %p596 = scmp.lt.s32.totalorder %s33, 1
        %s597 = scalar_select %p596, %s33, 1
        %s598 = smul.addr %s597, 144
        %s599 = smul.addr %s598, 4
        %s600 = scalar_lea.vmem %s9, %s599
        %p601 = pneg %p285
        %p602 = pneg %p282
        %p603 = scmp.lt.s32.totalorder %s33, 1
        %s604 = scalar_select %p603, %s33, 1
        %s605 = scalar_lea.vmem %s10, %s604
        %p606 = pneg %p311
        %p607 = pneg %p308
        %p608 = pneg %p332
        %p609 = pneg %p329
        %p610 = pneg %p353
        %p611 = pneg %p350
        %p612 = pneg %p374
        %p613 = pneg %p371
        %p614 = pneg %p395
        %p615 = pneg %p392
        %p616 = pneg %p421
        %p617 = pneg %p418
        %p618 = scmp.lt.s32.totalorder %s32, 1
        %s619 = scalar_select %p618, %s32, 1
        %s620 = smul.addr %s619, 8
        %s621 = scalar_lea.vmem %s15, %s620
        %p622 = scmp.lt.s32.totalorder %s32, 1
        %s623 = scalar_select %p622, %s32, 1
        %s624 = smul.addr %s623, 32
        %s625 = smul.addr %s624, 8
        %s626 = scalar_lea.vmem %s0, %s625
        %p627 = scmp.lt.s32.totalorder %s33, 1
        %s628 = scalar_select %p627, %s33, 1
        %s629 = scalar_lea.vmem %s3, %s628
        %p630 = scmp.lt.s32.totalorder %s33, 1
        %s631 = scalar_select %p630, %s33, 1
        %s632 = scalar_lea.vmem %s4, %s631
        %p633 = scmp.lt.s32.totalorder %s33, 1
        %s634 = scalar_select %p633, %s33, 1
        %s635 = smul.addr %s634, 16
        %s636 = smul.addr %s635, 4
        %s637 = scalar_lea.vmem %s5, %s636
        %p638 = scmp.lt.s32.totalorder %s33, 1
        %s639 = scalar_select %p638, %s33, 1
        %s640 = scalar_lea.vmem %s6, %s639
        %p641 = scmp.lt.s32.totalorder %s33, 1
        %s642 = scalar_select %p641, %s33, 1
        %s643 = scalar_lea.vmem %s7, %s642
        %p644 = scmp.lt.s32.totalorder %s33, 1
        %s645 = scalar_select %p644, %s33, 1
        %s646 = scalar_lea.vmem %s8, %s645
        %p647 = scmp.lt.s32.totalorder %s33, 1
        %s648 = scalar_select %p647, %s33, 1
        %s649 = smul.addr %s648, 144
        %s650 = smul.addr %s649, 4
        %s651 = scalar_lea.vmem %s9, %s650
        %p652 = scmp.lt.s32.totalorder %s33, 1
        %s653 = scalar_select %p652, %s33, 1
        %s654 = scalar_lea.vmem %s10, %s653
        %p655 = scmp.lt.s32.totalorder %s32, 1
        %s656 = scalar_select %p655, %s32, 1
        %s657 = smul.addr %s656, 8
        %s658 = scalar_lea.vmem %s15, %s657
        %p660 = scmp.eq.s32.totalorder %s33, 0
        // Predicated region
        $region89: #{densenet_forward.1} parent=79 // pred_check
          %p661 = pneg %p660
        $region90: #{densenet_forward.1} parent=79 // pred_check_branch
          %663 = sbr.rel (%p661) target = $region92
        $region91: #{densenet_forward.1} parent=79 // pred_region
          %664 = vst [vmem:[#allocation3] sm:$0xff] 0.0
          %665 = vst [vmem:[#allocation3 + $0x8] sm:$0xff] 0.0
          %666 = vst [vmem:[#allocation3 + $0x10] sm:$0x3] 0.0
          %s667 = scalar_lea.vmem [#allocation3], 408
          %668 = vst [vmem:[%s667] sm:$0xff] 0.0
          %669 = vst [vmem:[%s667 + $0x8] sm:$0xff] 0.0
          %670 = vst [vmem:[%s667 + $0x10] sm:$0x3] 0.0
          %671 = vst [vmem:[#allocation3] sm:$0x1] 0.0
          %672 = vst [vmem:[#allocation3 + $0x18] sm:$0x1] 0.0
          %673 = vst [vmem:[#allocation3 + $0x30] sm:$0x1] 0.0
          %674 = vst [vmem:[#allocation3 + $0x48] sm:$0x1] 0.0
          %675 = vst [vmem:[#allocation3 + $0x60] sm:$0x1] 0.0
          %676 = vst [vmem:[#allocation3 + $0x78] sm:$0x1] 0.0
          %677 = vst [vmem:[#allocation3 + $0x90] sm:$0x1] 0.0
          %678 = vst [vmem:[#allocation3 + $0xa8] sm:$0x1] 0.0
          %679 = vst [vmem:[#allocation3 + $0xc0] sm:$0x1] 0.0
          %680 = vst [vmem:[#allocation3 + $0xd8] sm:$0x1] 0.0
          %681 = vst [vmem:[#allocation3 + $0xf0] sm:$0x1] 0.0
          %682 = vst [vmem:[#allocation3 + $0x108] sm:$0x1] 0.0
          %683 = vst [vmem:[#allocation3 + $0x120] sm:$0x1] 0.0
          %684 = vst [vmem:[#allocation3 + $0x138] sm:$0x1] 0.0
          %685 = vst [vmem:[#allocation3 + $0x150] sm:$0x1] 0.0
          %686 = vst [vmem:[#allocation3 + $0x168] sm:$0x1] 0.0
          %687 = vst [vmem:[#allocation3 + $0x180] sm:$0x1] 0.0
          %688 = vst [vmem:[#allocation3 + $0x198] sm:$0x1] 0.0
          %689 = vst [vmem:[#allocation3 + $0x11] sm:$0x1] 0.0
          %690 = vst [vmem:[#allocation3 + $0x29] sm:$0x1] 0.0
          %691 = vst [vmem:[#allocation3 + $0x41] sm:$0x1] 0.0
          %692 = vst [vmem:[#allocation3 + $0x59] sm:$0x1] 0.0
          %693 = vst [vmem:[#allocation3 + $0x71] sm:$0x1] 0.0
          %694 = vst [vmem:[#allocation3 + $0x89] sm:$0x1] 0.0
          %695 = vst [vmem:[#allocation3 + $0xa1] sm:$0x1] 0.0
          %696 = vst [vmem:[#allocation3 + $0xb9] sm:$0x1] 0.0
          %697 = vst [vmem:[#allocation3 + $0xd1] sm:$0x1] 0.0
          %698 = vst [vmem:[#allocation3 + $0xe9] sm:$0x1] 0.0
          %699 = vst [vmem:[#allocation3 + $0x101] sm:$0x1] 0.0
          %700 = vst [vmem:[#allocation3 + $0x119] sm:$0x1] 0.0
          %701 = vst [vmem:[#allocation3 + $0x131] sm:$0x1] 0.0
          %702 = vst [vmem:[#allocation3 + $0x149] sm:$0x1] 0.0
          %703 = vst [vmem:[#allocation3 + $0x161] sm:$0x1] 0.0
          %704 = vst [vmem:[#allocation3 + $0x179] sm:$0x1] 0.0
          %705 = vst [vmem:[#allocation3 + $0x191] sm:$0x1] 0.0
          %706 = vst [vmem:[#allocation3 + $0x1a9] sm:$0x1] 0.0
          %v707 = vld [vmem:[%s626] sm:$0xff]
          %v708 = vld [vmem:[%s626 + $0x8] sm:$0xff]
          %v709 = vld [vmem:[%s626 + $0x10] sm:$0xff]
          %v710 = vld [vmem:[%s626 + $0x18] sm:$0xff]
          %v711 = vld [vmem:[%s626 + $0x20] sm:$0xff]
          %v712 = vld [vmem:[%s626 + $0x28] sm:$0xff]
          %v713 = vld [vmem:[%s626 + $0x30] sm:$0xff]
          %v714 = vld [vmem:[%s626 + $0x38] sm:$0xff]
          %v715 = vld [vmem:[%s626 + $0x40] sm:$0xff]
          %v716 = vld [vmem:[%s626 + $0x48] sm:$0xff]
          %v717 = vld [vmem:[%s626 + $0x50] sm:$0xff]
          %v718 = vld [vmem:[%s626 + $0x58] sm:$0xff]
          %v719 = vld [vmem:[%s626 + $0x60] sm:$0xff]
          %v720 = vld [vmem:[%s626 + $0x68] sm:$0xff]
          %v721 = vld [vmem:[%s626 + $0x70] sm:$0xff]
          %v722 = vld [vmem:[%s626 + $0x78] sm:$0xff]
          %v723 = vld [vmem:[%s626 + $0x80] sm:$0xff]
          %v724 = vld [vmem:[%s626 + $0x88] sm:$0xff]
          %v725 = vld [vmem:[%s626 + $0x90] sm:$0xff]
          %v726 = vld [vmem:[%s626 + $0x98] sm:$0xff]
          %v727 = vld [vmem:[%s626 + $0xa0] sm:$0xff]
          %v728 = vld [vmem:[%s626 + $0xa8] sm:$0xff]
          %v729 = vld [vmem:[%s626 + $0xb0] sm:$0xff]
          %v730 = vld [vmem:[%s626 + $0xb8] sm:$0xff]
          %v731 = vld [vmem:[%s626 + $0xc0] sm:$0xff]
          %v732 = vld [vmem:[%s626 + $0xc8] sm:$0xff]
          %v733 = vld [vmem:[%s626 + $0xd0] sm:$0xff]
          %v734 = vld [vmem:[%s626 + $0xd8] sm:$0xff]
          %v735 = vld [vmem:[%s626 + $0xe0] sm:$0xff]
          %v736 = vld [vmem:[%s626 + $0xe8] sm:$0xff]
          %v737 = vld [vmem:[%s626 + $0xf0] sm:$0xff]
          %v738 = vld [vmem:[%s626 + $0xf8] sm:$0xff]
          %s739 = scalar_lea.vmem [#allocation3], 24
          %740 = vst [vmem:[%s739 + $0x1] sm:$0xff] %v707
          %741 = vst [vmem:[%s739 + $0x9] sm:$0xff] %v708
          %742 = vst [vmem:[%s739 + $0x19] sm:$0xff] %v709
          %743 = vst [vmem:[%s739 + $0x21] sm:$0xff] %v710
          %744 = vst [vmem:[%s739 + $0x31] sm:$0xff] %v711
          %745 = vst [vmem:[%s739 + $0x39] sm:$0xff] %v712
          %746 = vst [vmem:[%s739 + $0x49] sm:$0xff] %v713
          %747 = vst [vmem:[%s739 + $0x51] sm:$0xff] %v714
          %748 = vst [vmem:[%s739 + $0x61] sm:$0xff] %v715
          %749 = vst [vmem:[%s739 + $0x69] sm:$0xff] %v716
          %750 = vst [vmem:[%s739 + $0x79] sm:$0xff] %v717
          %751 = vst [vmem:[%s739 + $0x81] sm:$0xff] %v718
          %752 = vst [vmem:[%s739 + $0x91] sm:$0xff] %v719
          %753 = vst [vmem:[%s739 + $0x99] sm:$0xff] %v720
          %754 = vst [vmem:[%s739 + $0xa9] sm:$0xff] %v721
          %755 = vst [vmem:[%s739 + $0xb1] sm:$0xff] %v722
          %756 = vst [vmem:[%s739 + $0xc1] sm:$0xff] %v723
          %757 = vst [vmem:[%s739 + $0xc9] sm:$0xff] %v724
          %758 = vst [vmem:[%s739 + $0xd9] sm:$0xff] %v725
          %759 = vst [vmem:[%s739 + $0xe1] sm:$0xff] %v726
          %760 = vst [vmem:[%s739 + $0xf1] sm:$0xff] %v727
          %761 = vst [vmem:[%s739 + $0xf9] sm:$0xff] %v728
          %762 = vst [vmem:[%s739 + $0x109] sm:$0xff] %v729
          %763 = vst [vmem:[%s739 + $0x111] sm:$0xff] %v730
          %764 = vst [vmem:[%s739 + $0x121] sm:$0xff] %v731
          %765 = vst [vmem:[%s739 + $0x129] sm:$0xff] %v732
          %766 = vst [vmem:[%s739 + $0x139] sm:$0xff] %v733
          %767 = vst [vmem:[%s739 + $0x141] sm:$0xff] %v734
          %768 = vst [vmem:[%s739 + $0x151] sm:$0xff] %v735
          %769 = vst [vmem:[%s739 + $0x159] sm:$0xff] %v736
          %770 = vst [vmem:[%s739 + $0x169] sm:$0xff] %v737
          %771 = vst [vmem:[%s739 + $0x171] sm:$0xff] %v738
          %v772 = vld [vmem:[#allocation3] sm:$0xff]
          %v773 = vld [vmem:[#allocation3 + $0x8] sm:$0xff]
          %v774 = vld [vmem:[#allocation3 + $0x18] sm:$0xff]
          %v775 = vld [vmem:[#allocation3 + $0x20] sm:$0xff]
          %v776 = vld [vmem:[#allocation3 + $0x30] sm:$0xff]
          %v777 = vld [vmem:[#allocation3 + $0x38] sm:$0xff]
          %v778 = vld [vmem:[#allocation3 + $0x48] sm:$0xff]
          %v779 = vld [vmem:[#allocation3 + $0x50] sm:$0xff]
          %v780 = vld [vmem:[#allocation3 + $0x60] sm:$0xff]
          %v781 = vld [vmem:[#allocation3 + $0x68] sm:$0xff]
          %v782 = vld [vmem:[#allocation3 + $0x78] sm:$0xff]
          %v783 = vld [vmem:[#allocation3 + $0x80] sm:$0xff]
          %v784 = vld [vmem:[#allocation3 + $0x90] sm:$0xff]
          %v785 = vld [vmem:[#allocation3 + $0x98] sm:$0xff]
          %v786 = vld [vmem:[#allocation3 + $0xa8] sm:$0xff]
          %v787 = vld [vmem:[#allocation3 + $0xb0] sm:$0xff]
          %v788 = vld [vmem:[#allocation3 + $0xc0] sm:$0xff]
          %v789 = vld [vmem:[#allocation3 + $0xc8] sm:$0xff]
          %v790 = vld [vmem:[#allocation3 + $0xd8] sm:$0xff]
          %v791 = vld [vmem:[#allocation3 + $0xe0] sm:$0xff]
          %v792 = vld [vmem:[#allocation3 + $0xf0] sm:$0xff]
          %v793 = vld [vmem:[#allocation3 + $0xf8] sm:$0xff]
          %v794 = vld [vmem:[#allocation3 + $0x108] sm:$0xff]
          %v795 = vld [vmem:[#allocation3 + $0x110] sm:$0xff]
          %v796 = vld [vmem:[#allocation3 + $0x120] sm:$0xff]
          %v797 = vld [vmem:[#allocation3 + $0x128] sm:$0xff]
          %v798 = vld [vmem:[#allocation3 + $0x138] sm:$0xff]
          %v799 = vld [vmem:[#allocation3 + $0x140] sm:$0xff]
          %v800 = vld [vmem:[#allocation3 + $0x150] sm:$0xff]
          %v801 = vld [vmem:[#allocation3 + $0x158] sm:$0xff]
          %v802 = vld [vmem:[#allocation3 + $0x168] sm:$0xff]
          %v803 = vld [vmem:[#allocation3 + $0x170] sm:$0xff]
          %v804 = vpack.c.bf16 %v773, %v772
          %v805 = vpack.c.bf16 %v775, %v774
          %v806 = vpack.c.bf16 %v777, %v776
          %v807 = vpack.c.bf16 %v779, %v778
          %v808 = vpack.c.bf16 %v781, %v780
          %v809 = vpack.c.bf16 %v783, %v782
          %v810 = vpack.c.bf16 %v785, %v784
          %v811 = vpack.c.bf16 %v787, %v786
          %v812 = vpack.c.bf16 %v789, %v788
          %v813 = vpack.c.bf16 %v791, %v790
          %v814 = vpack.c.bf16 %v793, %v792
          %v815 = vpack.c.bf16 %v795, %v794
          %v816 = vpack.c.bf16 %v797, %v796
          %v817 = vpack.c.bf16 %v799, %v798
          %v818 = vpack.c.bf16 %v801, %v800
          %v819 = vpack.c.bf16 %v803, %v802
          %v820 = vld [vmem:[#allocation3 + $0x1] sm:$0xff]
          %v821 = vld [vmem:[#allocation3 + $0x9] sm:$0xff]
          %v822 = vld [vmem:[#allocation3 + $0x19] sm:$0xff]
          %v823 = vld [vmem:[#allocation3 + $0x21] sm:$0xff]
          %v824 = vld [vmem:[#allocation3 + $0x31] sm:$0xff]
          %v825 = vld [vmem:[#allocation3 + $0x39] sm:$0xff]
          %v826 = vld [vmem:[#allocation3 + $0x49] sm:$0xff]
          %v827 = vld [vmem:[#allocation3 + $0x51] sm:$0xff]
          %v828 = vld [vmem:[#allocation3 + $0x61] sm:$0xff]
          %v829 = vld [vmem:[#allocation3 + $0x69] sm:$0xff]
          %v830 = vld [vmem:[#allocation3 + $0x79] sm:$0xff]
          %v831 = vld [vmem:[#allocation3 + $0x81] sm:$0xff]
          %v832 = vld [vmem:[#allocation3 + $0x91] sm:$0xff]
          %v833 = vld [vmem:[#allocation3 + $0x99] sm:$0xff]
          %v834 = vld [vmem:[#allocation3 + $0xa9] sm:$0xff]
          %v835 = vld [vmem:[#allocation3 + $0xb1] sm:$0xff]
          %v836 = vld [vmem:[#allocation3 + $0xc1] sm:$0xff]
          %v837 = vld [vmem:[#allocation3 + $0xc9] sm:$0xff]
          %v838 = vld [vmem:[#allocation3 + $0xd9] sm:$0xff]
          %v839 = vld [vmem:[#allocation3 + $0xe1] sm:$0xff]
          %v840 = vld [vmem:[#allocation3 + $0xf1] sm:$0xff]
          %v841 = vld [vmem:[#allocation3 + $0xf9] sm:$0xff]
          %v842 = vld [vmem:[#allocation3 + $0x109] sm:$0xff]
          %v843 = vld [vmem:[#allocation3 + $0x111] sm:$0xff]
          %v844 = vld [vmem:[#allocation3 + $0x121] sm:$0xff]
          %v845 = vld [vmem:[#allocation3 + $0x129] sm:$0xff]
          %v846 = vld [vmem:[#allocation3 + $0x139] sm:$0xff]
          %v847 = vld [vmem:[#allocation3 + $0x141] sm:$0xff]
          %v848 = vld [vmem:[#allocation3 + $0x151] sm:$0xff]
          %v849 = vld [vmem:[#allocation3 + $0x159] sm:$0xff]
          %v850 = vld [vmem:[#allocation3 + $0x169] sm:$0xff]
          %v851 = vld [vmem:[#allocation3 + $0x171] sm:$0xff]
          %v852 = vpack.c.bf16 %v821, %v820
          %v853 = vpack.c.bf16 %v823, %v822
          %v854 = vpack.c.bf16 %v825, %v824
          %v855 = vpack.c.bf16 %v827, %v826
          %v856 = vpack.c.bf16 %v829, %v828
          %v857 = vpack.c.bf16 %v831, %v830
          %v858 = vpack.c.bf16 %v833, %v832
          %v859 = vpack.c.bf16 %v835, %v834
          %v860 = vpack.c.bf16 %v837, %v836
          %v861 = vpack.c.bf16 %v839, %v838
          %v862 = vpack.c.bf16 %v841, %v840
          %v863 = vpack.c.bf16 %v843, %v842
          %v864 = vpack.c.bf16 %v845, %v844
          %v865 = vpack.c.bf16 %v847, %v846
          %v866 = vpack.c.bf16 %v849, %v848
          %v867 = vpack.c.bf16 %v851, %v850
          %v868 = vld [vmem:[#allocation3 + $0x2] sm:$0xff]
          %v869 = vld [vmem:[#allocation3 + $0xa] sm:$0xff]
          %v870 = vld [vmem:[#allocation3 + $0x1a] sm:$0xff]
          %v871 = vld [vmem:[#allocation3 + $0x22] sm:$0xff]
          %v872 = vld [vmem:[#allocation3 + $0x32] sm:$0xff]
          %v873 = vld [vmem:[#allocation3 + $0x3a] sm:$0xff]
          %v874 = vld [vmem:[#allocation3 + $0x4a] sm:$0xff]
          %v875 = vld [vmem:[#allocation3 + $0x52] sm:$0xff]
          %v876 = vld [vmem:[#allocation3 + $0x62] sm:$0xff]
          %v877 = vld [vmem:[#allocation3 + $0x6a] sm:$0xff]
          %v878 = vld [vmem:[#allocation3 + $0x7a] sm:$0xff]
          %v879 = vld [vmem:[#allocation3 + $0x82] sm:$0xff]
          %v880 = vld [vmem:[#allocation3 + $0x92] sm:$0xff]
          %v881 = vld [vmem:[#allocation3 + $0x9a] sm:$0xff]
          %v882 = vld [vmem:[#allocation3 + $0xaa] sm:$0xff]
          %v883 = vld [vmem:[#allocation3 + $0xb2] sm:$0xff]
          %v884 = vld [vmem:[#allocation3 + $0xc2] sm:$0xff]
          %v885 = vld [vmem:[#allocation3 + $0xca] sm:$0xff]
          %v886 = vld [vmem:[#allocation3 + $0xda] sm:$0xff]
          %v887 = vld [vmem:[#allocation3 + $0xe2] sm:$0xff]
          %v888 = vld [vmem:[#allocation3 + $0xf2] sm:$0xff]
          %v889 = vld [vmem:[#allocation3 + $0xfa] sm:$0xff]
          %v890 = vld [vmem:[#allocation3 + $0x10a] sm:$0xff]
          %v891 = vld [vmem:[#allocation3 + $0x112] sm:$0xff]
          %v892 = vld [vmem:[#allocation3 + $0x122] sm:$0xff]
          %v893 = vld [vmem:[#allocation3 + $0x12a] sm:$0xff]
          %v894 = vld [vmem:[#allocation3 + $0x13a] sm:$0xff]
          %v895 = vld [vmem:[#allocation3 + $0x142] sm:$0xff]
          %v896 = vld [vmem:[#allocation3 + $0x152] sm:$0xff]
          %v897 = vld [vmem:[#allocation3 + $0x15a] sm:$0xff]
          %v898 = vld [vmem:[#allocation3 + $0x16a] sm:$0xff]
          %v899 = vld [vmem:[#allocation3 + $0x172] sm:$0xff]
          %v900 = vpack.c.bf16 %v869, %v868
          %v901 = vpack.c.bf16 %v871, %v870
          %v902 = vpack.c.bf16 %v873, %v872
          %v903 = vpack.c.bf16 %v875, %v874
          %v904 = vpack.c.bf16 %v877, %v876
          %v905 = vpack.c.bf16 %v879, %v878
          %v906 = vpack.c.bf16 %v881, %v880
          %v907 = vpack.c.bf16 %v883, %v882
          %v908 = vpack.c.bf16 %v885, %v884
          %v909 = vpack.c.bf16 %v887, %v886
          %v910 = vpack.c.bf16 %v889, %v888
          %v911 = vpack.c.bf16 %v891, %v890
          %v912 = vpack.c.bf16 %v893, %v892
          %v913 = vpack.c.bf16 %v895, %v894
          %v914 = vpack.c.bf16 %v897, %v896
          %v915 = vpack.c.bf16 %v899, %v898
          %v916 = vld [vmem:[%s739] sm:$0xff]
          %v917 = vld [vmem:[%s739 + $0x8] sm:$0xff]
          %v918 = vld [vmem:[%s739 + $0x18] sm:$0xff]
          %v919 = vld [vmem:[%s739 + $0x20] sm:$0xff]
          %v920 = vld [vmem:[%s739 + $0x30] sm:$0xff]
          %v921 = vld [vmem:[%s739 + $0x38] sm:$0xff]
          %v922 = vld [vmem:[%s739 + $0x48] sm:$0xff]
          %v923 = vld [vmem:[%s739 + $0x50] sm:$0xff]
          %v924 = vld [vmem:[%s739 + $0x60] sm:$0xff]
          %v925 = vld [vmem:[%s739 + $0x68] sm:$0xff]
          %v926 = vld [vmem:[%s739 + $0x78] sm:$0xff]
          %v927 = vld [vmem:[%s739 + $0x80] sm:$0xff]
          %v928 = vld [vmem:[%s739 + $0x90] sm:$0xff]
          %v929 = vld [vmem:[%s739 + $0x98] sm:$0xff]
          %v930 = vld [vmem:[%s739 + $0xa8] sm:$0xff]
          %v931 = vld [vmem:[%s739 + $0xb0] sm:$0xff]
          %v932 = vld [vmem:[%s739 + $0xc0] sm:$0xff]
          %v933 = vld [vmem:[%s739 + $0xc8] sm:$0xff]
          %v934 = vld [vmem:[%s739 + $0xd8] sm:$0xff]
          %v935 = vld [vmem:[%s739 + $0xe0] sm:$0xff]
          %v936 = vld [vmem:[%s739 + $0xf0] sm:$0xff]
          %v937 = vld [vmem:[%s739 + $0xf8] sm:$0xff]
          %v938 = vld [vmem:[%s739 + $0x108] sm:$0xff]
          %v939 = vld [vmem:[%s739 + $0x110] sm:$0xff]
          %v940 = vld [vmem:[%s739 + $0x120] sm:$0xff]
          %v941 = vld [vmem:[%s739 + $0x128] sm:$0xff]
          %v942 = vld [vmem:[%s739 + $0x138] sm:$0xff]
          %v943 = vld [vmem:[%s739 + $0x140] sm:$0xff]
          %v944 = vld [vmem:[%s739 + $0x150] sm:$0xff]
          %v945 = vld [vmem:[%s739 + $0x158] sm:$0xff]
          %v946 = vld [vmem:[%s739 + $0x168] sm:$0xff]
          %v947 = vld [vmem:[%s739 + $0x170] sm:$0xff]
          %v948 = vpack.c.bf16 %v917, %v916
          %v949 = vpack.c.bf16 %v919, %v918
          %v950 = vpack.c.bf16 %v921, %v920
          %v951 = vpack.c.bf16 %v923, %v922
          %v952 = vpack.c.bf16 %v925, %v924
          %v953 = vpack.c.bf16 %v927, %v926
          %v954 = vpack.c.bf16 %v929, %v928
          %v955 = vpack.c.bf16 %v931, %v930
          %v956 = vpack.c.bf16 %v933, %v932
          %v957 = vpack.c.bf16 %v935, %v934
          %v958 = vpack.c.bf16 %v937, %v936
          %v959 = vpack.c.bf16 %v939, %v938
          %v960 = vpack.c.bf16 %v941, %v940
          %v961 = vpack.c.bf16 %v943, %v942
          %v962 = vpack.c.bf16 %v945, %v944
          %v963 = vpack.c.bf16 %v947, %v946
          %v964 = vld [vmem:[%s739 + $0x1] sm:$0xff]
          %v965 = vld [vmem:[%s739 + $0x9] sm:$0xff]
          %v966 = vld [vmem:[%s739 + $0x19] sm:$0xff]
          %v967 = vld [vmem:[%s739 + $0x21] sm:$0xff]
          %v968 = vld [vmem:[%s739 + $0x31] sm:$0xff]
          %v969 = vld [vmem:[%s739 + $0x39] sm:$0xff]
          %v970 = vld [vmem:[%s739 + $0x49] sm:$0xff]
          %v971 = vld [vmem:[%s739 + $0x51] sm:$0xff]
          %v972 = vld [vmem:[%s739 + $0x61] sm:$0xff]
          %v973 = vld [vmem:[%s739 + $0x69] sm:$0xff]
          %v974 = vld [vmem:[%s739 + $0x79] sm:$0xff]
          %v975 = vld [vmem:[%s739 + $0x81] sm:$0xff]
          %v976 = vld [vmem:[%s739 + $0x91] sm:$0xff]
          %v977 = vld [vmem:[%s739 + $0x99] sm:$0xff]
          %v978 = vld [vmem:[%s739 + $0xa9] sm:$0xff]
          %v979 = vld [vmem:[%s739 + $0xb1] sm:$0xff]
          %v980 = vld [vmem:[%s739 + $0xc1] sm:$0xff]
          %v981 = vld [vmem:[%s739 + $0xc9] sm:$0xff]
          %v982 = vld [vmem:[%s739 + $0xd9] sm:$0xff]
          %v983 = vld [vmem:[%s739 + $0xe1] sm:$0xff]
          %v984 = vld [vmem:[%s739 + $0xf1] sm:$0xff]
          %v985 = vld [vmem:[%s739 + $0xf9] sm:$0xff]
          %v986 = vld [vmem:[%s739 + $0x109] sm:$0xff]
          %v987 = vld [vmem:[%s739 + $0x111] sm:$0xff]
          %v988 = vld [vmem:[%s739 + $0x121] sm:$0xff]
          %v989 = vld [vmem:[%s739 + $0x129] sm:$0xff]
          %v990 = vld [vmem:[%s739 + $0x139] sm:$0xff]
          %v991 = vld [vmem:[%s739 + $0x141] sm:$0xff]
          %v992 = vld [vmem:[%s739 + $0x151] sm:$0xff]
          %v993 = vld [vmem:[%s739 + $0x159] sm:$0xff]
          %v994 = vld [vmem:[%s739 + $0x169] sm:$0xff]
          %v995 = vld [vmem:[%s739 + $0x171] sm:$0xff]
          %v996 = vpack.c.bf16 %v965, %v964
          %v997 = vpack.c.bf16 %v967, %v966
          %v998 = vpack.c.bf16 %v969, %v968
          %v999 = vpack.c.bf16 %v971, %v970
          %v1000 = vpack.c.bf16 %v973, %v972
          %v1001 = vpack.c.bf16 %v975, %v974
          %v1002 = vpack.c.bf16 %v977, %v976
          %v1003 = vpack.c.bf16 %v979, %v978
          %v1004 = vpack.c.bf16 %v981, %v980
          %v1005 = vpack.c.bf16 %v983, %v982
          %v1006 = vpack.c.bf16 %v985, %v984
          %v1007 = vpack.c.bf16 %v987, %v986
          %v1008 = vpack.c.bf16 %v989, %v988
          %v1009 = vpack.c.bf16 %v991, %v990
          %v1010 = vpack.c.bf16 %v993, %v992
          %v1011 = vpack.c.bf16 %v995, %v994
          %v1012 = vld [vmem:[%s739 + $0x2] sm:$0xff]
          %v1013 = vld [vmem:[%s739 + $0xa] sm:$0xff]
          %v1014 = vld [vmem:[%s739 + $0x1a] sm:$0xff]
          %v1015 = vld [vmem:[%s739 + $0x22] sm:$0xff]
          %v1016 = vld [vmem:[%s739 + $0x32] sm:$0xff]
          %v1017 = vld [vmem:[%s739 + $0x3a] sm:$0xff]
          %v1018 = vld [vmem:[%s739 + $0x4a] sm:$0xff]
          %v1019 = vld [vmem:[%s739 + $0x52] sm:$0xff]
          %v1020 = vld [vmem:[%s739 + $0x62] sm:$0xff]
          %v1021 = vld [vmem:[%s739 + $0x6a] sm:$0xff]
          %v1022 = vld [vmem:[%s739 + $0x7a] sm:$0xff]
          %v1023 = vld [vmem:[%s739 + $0x82] sm:$0xff]
          %v1024 = vld [vmem:[%s739 + $0x92] sm:$0xff]
          %v1025 = vld [vmem:[%s739 + $0x9a] sm:$0xff]
          %v1026 = vld [vmem:[%s739 + $0xaa] sm:$0xff]
          %v1027 = vld [vmem:[%s739 + $0xb2] sm:$0xff]
          %v1028 = vld [vmem:[%s739 + $0xc2] sm:$0xff]
          %v1029 = vld [vmem:[%s739 + $0xca] sm:$0xff]
          %v1030 = vld [vmem:[%s739 + $0xda] sm:$0xff]
          %v1031 = vld [vmem:[%s739 + $0xe2] sm:$0xff]
          %v1032 = vld [vmem:[%s739 + $0xf2] sm:$0xff]
          %v1033 = vld [vmem:[%s739 + $0xfa] sm:$0xff]
          %v1034 = vld [vmem:[%s739 + $0x10a] sm:$0xff]
          %v1035 = vld [vmem:[%s739 + $0x112] sm:$0xff]
          %v1036 = vld [vmem:[%s739 + $0x122] sm:$0xff]
          %v1037 = vld [vmem:[%s739 + $0x12a] sm:$0xff]
          %v1038 = vld [vmem:[%s739 + $0x13a] sm:$0xff]
          %v1039 = vld [vmem:[%s739 + $0x142] sm:$0xff]
          %v1040 = vld [vmem:[%s739 + $0x152] sm:$0xff]
          %v1041 = vld [vmem:[%s739 + $0x15a] sm:$0xff]
          %v1042 = vld [vmem:[%s739 + $0x16a] sm:$0xff]
          %v1043 = vld [vmem:[%s739 + $0x172] sm:$0xff]
          %v1044 = vpack.c.bf16 %v1013, %v1012
          %v1045 = vpack.c.bf16 %v1015, %v1014
          %v1046 = vpack.c.bf16 %v1017, %v1016
          %v1047 = vpack.c.bf16 %v1019, %v1018
          %v1048 = vpack.c.bf16 %v1021, %v1020
          %v1049 = vpack.c.bf16 %v1023, %v1022
          %v1050 = vpack.c.bf16 %v1025, %v1024
          %v1051 = vpack.c.bf16 %v1027, %v1026
          %v1052 = vpack.c.bf16 %v1029, %v1028
          %v1053 = vpack.c.bf16 %v1031, %v1030
          %v1054 = vpack.c.bf16 %v1033, %v1032
          %v1055 = vpack.c.bf16 %v1035, %v1034
          %v1056 = vpack.c.bf16 %v1037, %v1036
          %v1057 = vpack.c.bf16 %v1039, %v1038
          %v1058 = vpack.c.bf16 %v1041, %v1040
          %v1059 = vpack.c.bf16 %v1043, %v1042
          %s1060 = scalar_lea.vmem [#allocation3], 48
          %v1061 = vld [vmem:[%s1060] sm:$0xff]
          %v1062 = vld [vmem:[%s1060 + $0x8] sm:$0xff]
          %v1063 = vld [vmem:[%s1060 + $0x18] sm:$0xff]
          %v1064 = vld [vmem:[%s1060 + $0x20] sm:$0xff]
          %v1065 = vld [vmem:[%s1060 + $0x30] sm:$0xff]
          %v1066 = vld [vmem:[%s1060 + $0x38] sm:$0xff]
          %v1067 = vld [vmem:[%s1060 + $0x48] sm:$0xff]
          %v1068 = vld [vmem:[%s1060 + $0x50] sm:$0xff]
          %v1069 = vld [vmem:[%s1060 + $0x60] sm:$0xff]
          %v1070 = vld [vmem:[%s1060 + $0x68] sm:$0xff]
          %v1071 = vld [vmem:[%s1060 + $0x78] sm:$0xff]
          %v1072 = vld [vmem:[%s1060 + $0x80] sm:$0xff]
          %v1073 = vld [vmem:[%s1060 + $0x90] sm:$0xff]
          %v1074 = vld [vmem:[%s1060 + $0x98] sm:$0xff]
          %v1075 = vld [vmem:[%s1060 + $0xa8] sm:$0xff]
          %v1076 = vld [vmem:[%s1060 + $0xb0] sm:$0xff]
          %v1077 = vld [vmem:[%s1060 + $0xc0] sm:$0xff]
          %v1078 = vld [vmem:[%s1060 + $0xc8] sm:$0xff]
          %v1079 = vld [vmem:[%s1060 + $0xd8] sm:$0xff]
          %v1080 = vld [vmem:[%s1060 + $0xe0] sm:$0xff]
          %v1081 = vld [vmem:[%s1060 + $0xf0] sm:$0xff]
          %v1082 = vld [vmem:[%s1060 + $0xf8] sm:$0xff]
          %v1083 = vld [vmem:[%s1060 + $0x108] sm:$0xff]
          %v1084 = vld [vmem:[%s1060 + $0x110] sm:$0xff]
          %v1085 = vld [vmem:[%s1060 + $0x120] sm:$0xff]
          %v1086 = vld [vmem:[%s1060 + $0x128] sm:$0xff]
          %v1087 = vld [vmem:[%s1060 + $0x138] sm:$0xff]
          %v1088 = vld [vmem:[%s1060 + $0x140] sm:$0xff]
          %v1089 = vld [vmem:[%s1060 + $0x150] sm:$0xff]
          %v1090 = vld [vmem:[%s1060 + $0x158] sm:$0xff]
          %v1091 = vld [vmem:[%s1060 + $0x168] sm:$0xff]
          %v1092 = vld [vmem:[%s1060 + $0x170] sm:$0xff]
          %v1093 = vpack.c.bf16 %v1062, %v1061
          %v1094 = vpack.c.bf16 %v1064, %v1063
          %v1095 = vpack.c.bf16 %v1066, %v1065
          %v1096 = vpack.c.bf16 %v1068, %v1067
          %v1097 = vpack.c.bf16 %v1070, %v1069
          %v1098 = vpack.c.bf16 %v1072, %v1071
          %v1099 = vpack.c.bf16 %v1074, %v1073
          %v1100 = vpack.c.bf16 %v1076, %v1075
          %v1101 = vpack.c.bf16 %v1078, %v1077
          %v1102 = vpack.c.bf16 %v1080, %v1079
          %v1103 = vpack.c.bf16 %v1082, %v1081
          %v1104 = vpack.c.bf16 %v1084, %v1083
          %v1105 = vpack.c.bf16 %v1086, %v1085
          %v1106 = vpack.c.bf16 %v1088, %v1087
          %v1107 = vpack.c.bf16 %v1090, %v1089
          %v1108 = vpack.c.bf16 %v1092, %v1091
          %v1109 = vld [vmem:[%s1060 + $0x1] sm:$0xff]
          %v1110 = vld [vmem:[%s1060 + $0x9] sm:$0xff]
          %v1111 = vld [vmem:[%s1060 + $0x19] sm:$0xff]
          %v1112 = vld [vmem:[%s1060 + $0x21] sm:$0xff]
          %v1113 = vld [vmem:[%s1060 + $0x31] sm:$0xff]
          %v1114 = vld [vmem:[%s1060 + $0x39] sm:$0xff]
          %v1115 = vld [vmem:[%s1060 + $0x49] sm:$0xff]
          %v1116 = vld [vmem:[%s1060 + $0x51] sm:$0xff]
          %v1117 = vld [vmem:[%s1060 + $0x61] sm:$0xff]
          %v1118 = vld [vmem:[%s1060 + $0x69] sm:$0xff]
          %v1119 = vld [vmem:[%s1060 + $0x79] sm:$0xff]
          %v1120 = vld [vmem:[%s1060 + $0x81] sm:$0xff]
          %v1121 = vld [vmem:[%s1060 + $0x91] sm:$0xff]
          %v1122 = vld [vmem:[%s1060 + $0x99] sm:$0xff]
          %v1123 = vld [vmem:[%s1060 + $0xa9] sm:$0xff]
          %v1124 = vld [vmem:[%s1060 + $0xb1] sm:$0xff]
          %v1125 = vld [vmem:[%s1060 + $0xc1] sm:$0xff]
          %v1126 = vld [vmem:[%s1060 + $0xc9] sm:$0xff]
          %v1127 = vld [vmem:[%s1060 + $0xd9] sm:$0xff]
          %v1128 = vld [vmem:[%s1060 + $0xe1] sm:$0xff]
          %v1129 = vld [vmem:[%s1060 + $0xf1] sm:$0xff]
          %v1130 = vld [vmem:[%s1060 + $0xf9] sm:$0xff]
          %v1131 = vld [vmem:[%s1060 + $0x109] sm:$0xff]
          %v1132 = vld [vmem:[%s1060 + $0x111] sm:$0xff]
          %v1133 = vld [vmem:[%s1060 + $0x121] sm:$0xff]
          %v1134 = vld [vmem:[%s1060 + $0x129] sm:$0xff]
          %v1135 = vld [vmem:[%s1060 + $0x139] sm:$0xff]
          %v1136 = vld [vmem:[%s1060 + $0x141] sm:$0xff]
          %v1137 = vld [vmem:[%s1060 + $0x151] sm:$0xff]
          %v1138 = vld [vmem:[%s1060 + $0x159] sm:$0xff]
          %v1139 = vld [vmem:[%s1060 + $0x169] sm:$0xff]
          %v1140 = vld [vmem:[%s1060 + $0x171] sm:$0xff]
          %v1141 = vpack.c.bf16 %v1110, %v1109
          %v1142 = vpack.c.bf16 %v1112, %v1111
          %v1143 = vpack.c.bf16 %v1114, %v1113
          %v1144 = vpack.c.bf16 %v1116, %v1115
          %v1145 = vpack.c.bf16 %v1118, %v1117
          %v1146 = vpack.c.bf16 %v1120, %v1119
          %v1147 = vpack.c.bf16 %v1122, %v1121
          %v1148 = vpack.c.bf16 %v1124, %v1123
          %v1149 = vpack.c.bf16 %v1126, %v1125
          %v1150 = vpack.c.bf16 %v1128, %v1127
          %v1151 = vpack.c.bf16 %v1130, %v1129
          %v1152 = vpack.c.bf16 %v1132, %v1131
          %v1153 = vpack.c.bf16 %v1134, %v1133
          %v1154 = vpack.c.bf16 %v1136, %v1135
          %v1155 = vpack.c.bf16 %v1138, %v1137
          %v1156 = vpack.c.bf16 %v1140, %v1139
          %v1157 = vld [vmem:[%s1060 + $0x2] sm:$0xff]
          %v1158 = vld [vmem:[%s1060 + $0xa] sm:$0xff]
          %v1159 = vld [vmem:[%s1060 + $0x1a] sm:$0xff]
          %v1160 = vld [vmem:[%s1060 + $0x22] sm:$0xff]
          %v1161 = vld [vmem:[%s1060 + $0x32] sm:$0xff]
          %v1162 = vld [vmem:[%s1060 + $0x3a] sm:$0xff]
          %v1163 = vld [vmem:[%s1060 + $0x4a] sm:$0xff]
          %v1164 = vld [vmem:[%s1060 + $0x52] sm:$0xff]
          %v1165 = vld [vmem:[%s1060 + $0x62] sm:$0xff]
          %v1166 = vld [vmem:[%s1060 + $0x6a] sm:$0xff]
          %v1167 = vld [vmem:[%s1060 + $0x7a] sm:$0xff]
          %v1168 = vld [vmem:[%s1060 + $0x82] sm:$0xff]
          %v1169 = vld [vmem:[%s1060 + $0x92] sm:$0xff]
          %v1170 = vld [vmem:[%s1060 + $0x9a] sm:$0xff]
          %v1171 = vld [vmem:[%s1060 + $0xaa] sm:$0xff]
          %v1172 = vld [vmem:[%s1060 + $0xb2] sm:$0xff]
          %v1173 = vld [vmem:[%s1060 + $0xc2] sm:$0xff]
          %v1174 = vld [vmem:[%s1060 + $0xca] sm:$0xff]
          %v1175 = vld [vmem:[%s1060 + $0xda] sm:$0xff]
          %v1176 = vld [vmem:[%s1060 + $0xe2] sm:$0xff]
          %v1177 = vld [vmem:[%s1060 + $0xf2] sm:$0xff]
          %v1178 = vld [vmem:[%s1060 + $0xfa] sm:$0xff]
          %v1179 = vld [vmem:[%s1060 + $0x10a] sm:$0xff]
          %v1180 = vld [vmem:[%s1060 + $0x112] sm:$0xff]
          %v1181 = vld [vmem:[%s1060 + $0x122] sm:$0xff]
          %v1182 = vld [vmem:[%s1060 + $0x12a] sm:$0xff]
          %v1183 = vld [vmem:[%s1060 + $0x13a] sm:$0xff]
          %v1184 = vld [vmem:[%s1060 + $0x142] sm:$0xff]
          %v1185 = vld [vmem:[%s1060 + $0x152] sm:$0xff]
          %v1186 = vld [vmem:[%s1060 + $0x15a] sm:$0xff]
          %v1187 = vld [vmem:[%s1060 + $0x16a] sm:$0xff]
          %v1188 = vld [vmem:[%s1060 + $0x172] sm:$0xff]
          %v1189 = vpack.c.bf16 %v1158, %v1157
          %v1190 = vpack.c.bf16 %v1160, %v1159
          %v1191 = vpack.c.bf16 %v1162, %v1161
          %v1192 = vpack.c.bf16 %v1164, %v1163
          %v1193 = vpack.c.bf16 %v1166, %v1165
          %v1194 = vpack.c.bf16 %v1168, %v1167
          %v1195 = vpack.c.bf16 %v1170, %v1169
          %v1196 = vpack.c.bf16 %v1172, %v1171
          %v1197 = vpack.c.bf16 %v1174, %v1173
          %v1198 = vpack.c.bf16 %v1176, %v1175
          %v1199 = vpack.c.bf16 %v1178, %v1177
          %v1200 = vpack.c.bf16 %v1180, %v1179
          %v1201 = vpack.c.bf16 %v1182, %v1181
          %v1202 = vpack.c.bf16 %v1184, %v1183
          %v1203 = vpack.c.bf16 %v1186, %v1185
          %v1204 = vpack.c.bf16 %v1188, %v1187
          %v1205 = vld [vmem:[#allocation4] sm:$0xf]
          %v1206 = vld [vmem:[#allocation4 + $0x4] sm:$0xf]
          %v1207 = vld [vmem:[#allocation4 + $0x8] sm:$0xf]
          %v1208 = vld [vmem:[#allocation4 + $0xc] sm:$0xf]
          %v1209 = vld [vmem:[#allocation4 + $0x10] sm:$0xf]
          %v1210 = vld [vmem:[#allocation4 + $0x14] sm:$0xf]
          %v1211 = vld [vmem:[#allocation4 + $0x18] sm:$0xf]
          %v1212 = vld [vmem:[#allocation4 + $0x1c] sm:$0xf]
          %v1213 = vld [vmem:[#allocation4 + $0x20] sm:$0xf]
          %v1214 = vld [vmem:[#allocation4 + $0x24] sm:$0xf]
          %v1215 = vld [vmem:[#allocation4 + $0x28] sm:$0xf]
          %v1216 = vld [vmem:[#allocation4 + $0x2c] sm:$0xf]
          %v1217 = vld [vmem:[#allocation4 + $0x30] sm:$0xf]
          %v1218 = vld [vmem:[#allocation4 + $0x34] sm:$0xf]
          %v1219 = vld [vmem:[#allocation4 + $0x38] sm:$0xf]
          %v1220 = vld [vmem:[#allocation4 + $0x3c] sm:$0xf]
          %v1221 = vld [vmem:[#allocation4 + $0x40] sm:$0xf]
          %v1222 = vld [vmem:[#allocation4 + $0x44] sm:$0xf]
          %v1223 = vld [vmem:[#allocation4 + $0x48] sm:$0xf]
          %v1224 = vld [vmem:[#allocation4 + $0x4c] sm:$0xf]
          %v1225 = vld [vmem:[#allocation4 + $0x50] sm:$0xf]
          %v1226 = vld [vmem:[#allocation4 + $0x54] sm:$0xf]
          %v1227 = vld [vmem:[#allocation4 + $0x58] sm:$0xf]
          %v1228 = vld [vmem:[#allocation4 + $0x5c] sm:$0xf]
          %v1229 = vld [vmem:[#allocation4 + $0x60] sm:$0xf]
          %v1230 = vld [vmem:[#allocation4 + $0x64] sm:$0xf]
          %v1231 = vld [vmem:[#allocation4 + $0x68] sm:$0xf]
          %v1232 = vld [vmem:[#allocation4 + $0x6c] sm:$0xf]
          %v1233 = vld [vmem:[#allocation4 + $0x70] sm:$0xf]
          %v1234 = vld [vmem:[#allocation4 + $0x74] sm:$0xf]
          %v1235 = vld [vmem:[#allocation4 + $0x78] sm:$0xf]
          %v1236 = vld [vmem:[#allocation4 + $0x7c] sm:$0xf]
          %v1237 = vld [vmem:[#allocation4 + $0x80] sm:$0xf]
          %v1238 = vld [vmem:[#allocation4 + $0x84] sm:$0xf]
          %v1239 = vld [vmem:[#allocation4 + $0x88] sm:$0xf]
          %v1240 = vld [vmem:[#allocation4 + $0x8c] sm:$0xf]
          %v1241 = vld [vmem:[#allocation4 + $0x90] sm:$0xf]
          %v1242 = vld [vmem:[#allocation4 + $0x94] sm:$0xf]
          %v1243 = vld [vmem:[#allocation4 + $0x98] sm:$0xf]
          %v1244 = vld [vmem:[#allocation4 + $0x9c] sm:$0xf]
          %v1245 = vld [vmem:[#allocation4 + $0xa0] sm:$0xf]
          %v1246 = vld [vmem:[#allocation4 + $0xa4] sm:$0xf]
          %v1247 = vld [vmem:[#allocation4 + $0xa8] sm:$0xf]
          %v1248 = vld [vmem:[#allocation4 + $0xac] sm:$0xf]
          %v1249 = vld [vmem:[#allocation4 + $0xb0] sm:$0xf]
          %v1250 = vld [vmem:[#allocation4 + $0xb4] sm:$0xf]
          %v1251 = vld [vmem:[#allocation4 + $0xb8] sm:$0xf]
          %v1252 = vld [vmem:[#allocation4 + $0xbc] sm:$0xf]
          %v1253 = vld [vmem:[#allocation4 + $0xc0] sm:$0xf]
          %v1254 = vld [vmem:[#allocation4 + $0xc4] sm:$0xf]
          %v1255 = vld [vmem:[#allocation4 + $0xc8] sm:$0xf]
          %v1256 = vld [vmem:[#allocation4 + $0xcc] sm:$0xf]
          %v1257 = vld [vmem:[#allocation4 + $0xd0] sm:$0xf]
          %v1258 = vld [vmem:[#allocation4 + $0xd4] sm:$0xf]
          %v1259 = vld [vmem:[#allocation4 + $0xd8] sm:$0xf]
          %v1260 = vld [vmem:[#allocation4 + $0xdc] sm:$0xf]
          %v1261 = vld [vmem:[#allocation4 + $0xe0] sm:$0xf]
          %v1262 = vld [vmem:[#allocation4 + $0xe4] sm:$0xf]
          %v1263 = vld [vmem:[#allocation4 + $0xe8] sm:$0xf]
          %v1264 = vld [vmem:[#allocation4 + $0xec] sm:$0xf]
          %v1265 = vld [vmem:[#allocation4 + $0xf0] sm:$0xf]
          %v1266 = vld [vmem:[#allocation4 + $0xf4] sm:$0xf]
          %v1267 = vld [vmem:[#allocation4 + $0xf8] sm:$0xf]
          %v1268 = vld [vmem:[#allocation4 + $0xfc] sm:$0xf]
          %v1269 = vld [vmem:[#allocation4 + $0x100] sm:$0xf]
          %v1270 = vld [vmem:[#allocation4 + $0x104] sm:$0xf]
          %v1271 = vld [vmem:[#allocation4 + $0x108] sm:$0xf]
          %v1272 = vld [vmem:[#allocation4 + $0x10c] sm:$0xf]
          %v1273 = vld [vmem:[#allocation4 + $0x110] sm:$0xf]
          %v1274 = vld [vmem:[#allocation4 + $0x114] sm:$0xf]
          %v1275 = vld [vmem:[#allocation4 + $0x118] sm:$0xf]
          %v1276 = vld [vmem:[#allocation4 + $0x11c] sm:$0xf]
          %v1277 = vld [vmem:[#allocation4 + $0x120] sm:$0xf]
          %v1278 = vld [vmem:[#allocation4 + $0x124] sm:$0xf]
          %v1279 = vld [vmem:[#allocation4 + $0x128] sm:$0xf]
          %v1280 = vld [vmem:[#allocation4 + $0x12c] sm:$0xf]
          %v1281 = vld [vmem:[#allocation4 + $0x130] sm:$0xf]
          %v1282 = vld [vmem:[#allocation4 + $0x134] sm:$0xf]
          %v1283 = vld [vmem:[#allocation4 + $0x138] sm:$0xf]
          %v1284 = vld [vmem:[#allocation4 + $0x13c] sm:$0xf]
          %v1285 = vld [vmem:[#allocation4 + $0x140] sm:$0xf]
          %v1286 = vld [vmem:[#allocation4 + $0x144] sm:$0xf]
          %v1287 = vld [vmem:[#allocation4 + $0x148] sm:$0xf]
          %v1288 = vld [vmem:[#allocation4 + $0x14c] sm:$0xf]
          %v1289 = vld [vmem:[#allocation4 + $0x150] sm:$0xf]
          %v1290 = vld [vmem:[#allocation4 + $0x154] sm:$0xf]
          %v1291 = vld [vmem:[#allocation4 + $0x158] sm:$0xf]
          %v1292 = vld [vmem:[#allocation4 + $0x15c] sm:$0xf]
          %v1293 = vld [vmem:[#allocation4 + $0x160] sm:$0xf]
          %v1294 = vld [vmem:[#allocation4 + $0x164] sm:$0xf]
          %v1295 = vld [vmem:[#allocation4 + $0x168] sm:$0xf]
          %v1296 = vld [vmem:[#allocation4 + $0x16c] sm:$0xf]
          %v1297 = vld [vmem:[#allocation4 + $0x170] sm:$0xf]
          %v1298 = vld [vmem:[#allocation4 + $0x174] sm:$0xf]
          %v1299 = vld [vmem:[#allocation4 + $0x178] sm:$0xf]
          %v1300 = vld [vmem:[#allocation4 + $0x17c] sm:$0xf]
          %v1301 = vld [vmem:[#allocation4 + $0x180] sm:$0xf]
          %v1302 = vld [vmem:[#allocation4 + $0x184] sm:$0xf]
          %v1303 = vld [vmem:[#allocation4 + $0x188] sm:$0xf]
          %v1304 = vld [vmem:[#allocation4 + $0x18c] sm:$0xf]
          %v1305 = vld [vmem:[#allocation4 + $0x190] sm:$0xf]
          %v1306 = vld [vmem:[#allocation4 + $0x194] sm:$0xf]
          %v1307 = vld [vmem:[#allocation4 + $0x198] sm:$0xf]
          %v1308 = vld [vmem:[#allocation4 + $0x19c] sm:$0xf]
          %v1309 = vld [vmem:[#allocation4 + $0x1a0] sm:$0xf]
          %v1310 = vld [vmem:[#allocation4 + $0x1a4] sm:$0xf]
          %v1311 = vld [vmem:[#allocation4 + $0x1a8] sm:$0xf]
          %v1312 = vld [vmem:[#allocation4 + $0x1ac] sm:$0xf]
          %v1313 = vld [vmem:[#allocation4 + $0x1b0] sm:$0xf]
          %v1314 = vld [vmem:[#allocation4 + $0x1b4] sm:$0xf]
          %v1315 = vld [vmem:[#allocation4 + $0x1b8] sm:$0xf]
          %v1316 = vld [vmem:[#allocation4 + $0x1bc] sm:$0xf]
          %v1317 = vld [vmem:[#allocation4 + $0x1c0] sm:$0xf]
          %v1318 = vld [vmem:[#allocation4 + $0x1c4] sm:$0xf]
          %v1319 = vld [vmem:[#allocation4 + $0x1c8] sm:$0xf]
          %v1320 = vld [vmem:[#allocation4 + $0x1cc] sm:$0xf]
          %v1321 = vld [vmem:[#allocation4 + $0x1d0] sm:$0xf]
          %v1322 = vld [vmem:[#allocation4 + $0x1d4] sm:$0xf]
          %v1323 = vld [vmem:[#allocation4 + $0x1d8] sm:$0xf]
          %v1324 = vld [vmem:[#allocation4 + $0x1dc] sm:$0xf]
          %v1325 = vld [vmem:[#allocation4 + $0x1e0] sm:$0xf]
          %v1326 = vld [vmem:[#allocation4 + $0x1e4] sm:$0xf]
          %v1327 = vld [vmem:[#allocation4 + $0x1e8] sm:$0xf]
          %v1328 = vld [vmem:[#allocation4 + $0x1ec] sm:$0xf]
          %v1329 = vld [vmem:[#allocation4 + $0x1f0] sm:$0xf]
          %v1330 = vld [vmem:[#allocation4 + $0x1f4] sm:$0xf]
          %v1331 = vld [vmem:[#allocation4 + $0x1f8] sm:$0xf]
          %v1332 = vld [vmem:[#allocation4 + $0x1fc] sm:$0xf]
          %v1333 = vld [vmem:[#allocation4 + $0x200] sm:$0xf]
          %v1334 = vld [vmem:[#allocation4 + $0x204] sm:$0xf]
          %v1335 = vld [vmem:[#allocation4 + $0x208] sm:$0xf]
          %v1336 = vld [vmem:[#allocation4 + $0x20c] sm:$0xf]
          %v1337 = vld [vmem:[#allocation4 + $0x210] sm:$0xf]
          %v1338 = vld [vmem:[#allocation4 + $0x214] sm:$0xf]
          %v1339 = vld [vmem:[#allocation4 + $0x218] sm:$0xf]
          %v1340 = vld [vmem:[#allocation4 + $0x21c] sm:$0xf]
          %v1341 = vld [vmem:[#allocation4 + $0x220] sm:$0xf]
          %v1342 = vld [vmem:[#allocation4 + $0x224] sm:$0xf]
          %v1343 = vld [vmem:[#allocation4 + $0x228] sm:$0xf]
          %v1344 = vld [vmem:[#allocation4 + $0x22c] sm:$0xf]
          %v1345 = vld [vmem:[#allocation4 + $0x230] sm:$0xf]
          %v1346 = vld [vmem:[#allocation4 + $0x234] sm:$0xf]
          %v1347 = vld [vmem:[#allocation4 + $0x238] sm:$0xf]
          %v1348 = vld [vmem:[#allocation4 + $0x23c] sm:$0xf]
          %v1349 = vld [vmem:[%s2] sm:$0x1]
          %v1351 = vlaneseq
          %v1352 = vshrl.u32 %v1351, 7
          %v1353 = vsub.s32 0, %v1352
          %v1354 = vrot.slane %v1349, %v1353
          %v1500 = vunpack.c.l.b16 %v1205
          %v1501 = vunpack.c.l.b16 %v1206
          %v1502 = vunpack.c.l.b16 %v1207
          %v1503 = vunpack.c.l.b16 %v1208
          %v1504 = vunpack.c.l.b16 %v1209
          %v1505 = vunpack.c.l.b16 %v1210
          %v1506 = vunpack.c.l.b16 %v1211
          %v1507 = vunpack.c.l.b16 %v1212
          %v1508 = vunpack.c.l.b16 %v1213
          %v1509 = vunpack.c.l.b16 %v1214
          %v1510 = vunpack.c.l.b16 %v1215
          %v1511 = vunpack.c.l.b16 %v1216
          %v1512 = vunpack.c.l.b16 %v1217
          %v1513 = vunpack.c.l.b16 %v1218
          %v1514 = vunpack.c.l.b16 %v1219
          %v1515 = vunpack.c.l.b16 %v1220
          %v1516 = vunpack.c.l.b16 %v1221
          %v1517 = vunpack.c.l.b16 %v1222
          %v1518 = vunpack.c.l.b16 %v1223
          %v1519 = vunpack.c.l.b16 %v1224
          %v1520 = vunpack.c.l.b16 %v1225
          %v1521 = vunpack.c.l.b16 %v1226
          %v1522 = vunpack.c.l.b16 %v1227
          %v1523 = vunpack.c.l.b16 %v1228
          %v1524 = vunpack.c.l.b16 %v1229
          %v1525 = vunpack.c.l.b16 %v1230
          %v1526 = vunpack.c.l.b16 %v1231
          %v1527 = vunpack.c.l.b16 %v1232
          %v1528 = vunpack.c.l.b16 %v1233
          %v1529 = vunpack.c.l.b16 %v1234
          %v1530 = vunpack.c.l.b16 %v1235
          %v1531 = vunpack.c.l.b16 %v1236
          %v1532 = vunpack.c.l.b16 %v1237
          %v1533 = vunpack.c.l.b16 %v1238
          %v1534 = vunpack.c.l.b16 %v1239
          %v1535 = vunpack.c.l.b16 %v1240
          %v1536 = vunpack.c.l.b16 %v1241
          %v1537 = vunpack.c.l.b16 %v1242
          %v1538 = vunpack.c.l.b16 %v1243
          %v1539 = vunpack.c.l.b16 %v1244
          %v1540 = vunpack.c.l.b16 %v1245
          %v1541 = vunpack.c.l.b16 %v1246
          %v1542 = vunpack.c.l.b16 %v1247
          %v1543 = vunpack.c.l.b16 %v1248
          %v1544 = vunpack.c.l.b16 %v1249
          %v1545 = vunpack.c.l.b16 %v1250
          %v1546 = vunpack.c.l.b16 %v1251
          %v1547 = vunpack.c.l.b16 %v1252
          %v1548 = vunpack.c.l.b16 %v1253
          %v1549 = vunpack.c.l.b16 %v1254
          %v1550 = vunpack.c.l.b16 %v1255
          %v1551 = vunpack.c.l.b16 %v1256
          %v1552 = vunpack.c.l.b16 %v1257
          %v1553 = vunpack.c.l.b16 %v1258
          %v1554 = vunpack.c.l.b16 %v1259
          %v1555 = vunpack.c.l.b16 %v1260
          %v1556 = vunpack.c.l.b16 %v1261
          %v1557 = vunpack.c.l.b16 %v1262
          %v1558 = vunpack.c.l.b16 %v1263
          %v1559 = vunpack.c.l.b16 %v1264
          %v1560 = vunpack.c.l.b16 %v1265
          %v1561 = vunpack.c.l.b16 %v1266
          %v1562 = vunpack.c.l.b16 %v1267
          %v1563 = vunpack.c.l.b16 %v1268
          %v1564 = vunpack.c.l.b16 %v1269
          %v1565 = vunpack.c.l.b16 %v1270
          %v1566 = vunpack.c.l.b16 %v1271
          %v1567 = vunpack.c.l.b16 %v1272
          %v1568 = vunpack.c.l.b16 %v1273
          %v1569 = vunpack.c.l.b16 %v1274
          %v1570 = vunpack.c.l.b16 %v1275
          %v1571 = vunpack.c.l.b16 %v1276
          %v1572 = vunpack.c.l.b16 %v1277
          %v1573 = vunpack.c.l.b16 %v1278
          %v1574 = vunpack.c.l.b16 %v1279
          %v1575 = vunpack.c.l.b16 %v1280
          %v1576 = vunpack.c.l.b16 %v1281
          %v1577 = vunpack.c.l.b16 %v1282
          %v1578 = vunpack.c.l.b16 %v1283
          %v1579 = vunpack.c.l.b16 %v1284
          %v1580 = vunpack.c.l.b16 %v1285
          %v1581 = vunpack.c.l.b16 %v1286
          %v1582 = vunpack.c.l.b16 %v1287
          %v1583 = vunpack.c.l.b16 %v1288
          %v1584 = vunpack.c.l.b16 %v1289
          %v1585 = vunpack.c.l.b16 %v1290
          %v1586 = vunpack.c.l.b16 %v1291
          %v1587 = vunpack.c.l.b16 %v1292
          %v1588 = vunpack.c.l.b16 %v1293
          %v1589 = vunpack.c.l.b16 %v1294
          %v1590 = vunpack.c.l.b16 %v1295
          %v1591 = vunpack.c.l.b16 %v1296
          %v1592 = vunpack.c.l.b16 %v1297
          %v1593 = vunpack.c.l.b16 %v1298
          %v1594 = vunpack.c.l.b16 %v1299
          %v1595 = vunpack.c.l.b16 %v1300
          %v1596 = vunpack.c.l.b16 %v1301
          %v1597 = vunpack.c.l.b16 %v1302
          %v1598 = vunpack.c.l.b16 %v1303
          %v1599 = vunpack.c.l.b16 %v1304
          %v1600 = vunpack.c.l.b16 %v1305
          %v1601 = vunpack.c.l.b16 %v1306
          %v1602 = vunpack.c.l.b16 %v1307
          %v1603 = vunpack.c.l.b16 %v1308
          %v1604 = vunpack.c.l.b16 %v1309
          %v1605 = vunpack.c.l.b16 %v1310
          %v1606 = vunpack.c.l.b16 %v1311
          %v1607 = vunpack.c.l.b16 %v1312
          %v1608 = vunpack.c.l.b16 %v1313
          %v1609 = vunpack.c.l.b16 %v1314
          %v1610 = vunpack.c.l.b16 %v1315
          %v1611 = vunpack.c.l.b16 %v1316
          %v1612 = vunpack.c.l.b16 %v1317
          %v1613 = vunpack.c.l.b16 %v1318
          %v1614 = vunpack.c.l.b16 %v1319
          %v1615 = vunpack.c.l.b16 %v1320
          %v1616 = vunpack.c.l.b16 %v1321
          %v1617 = vunpack.c.l.b16 %v1322
          %v1618 = vunpack.c.l.b16 %v1323
          %v1619 = vunpack.c.l.b16 %v1324
          %v1620 = vunpack.c.l.b16 %v1325
          %v1621 = vunpack.c.l.b16 %v1326
          %v1622 = vunpack.c.l.b16 %v1327
          %v1623 = vunpack.c.l.b16 %v1328
          %v1624 = vunpack.c.l.b16 %v1329
          %v1625 = vunpack.c.l.b16 %v1330
          %v1626 = vunpack.c.l.b16 %v1331
          %v1627 = vunpack.c.l.b16 %v1332
          %v1628 = vunpack.c.l.b16 %v1333
          %v1629 = vunpack.c.l.b16 %v1334
          %v1630 = vunpack.c.l.b16 %v1335
          %v1631 = vunpack.c.l.b16 %v1336
          %v1632 = vunpack.c.l.b16 %v1337
          %v1633 = vunpack.c.l.b16 %v1338
          %v1634 = vunpack.c.l.b16 %v1339
          %v1635 = vunpack.c.l.b16 %v1340
          %v1636 = vunpack.c.l.b16 %v1341
          %v1637 = vunpack.c.l.b16 %v1342
          %v1638 = vunpack.c.l.b16 %v1343
          %v1639 = vunpack.c.l.b16 %v1344
          %v1640 = vunpack.c.l.b16 %v1345
          %v1641 = vunpack.c.l.b16 %v1346
          %v1642 = vunpack.c.l.b16 %v1347
          %v1643 = vunpack.c.l.b16 %v1348
          %v1644 = vpack.c.b16 %v1501, %v1500
          %v1645 = vpack.c.b16 %v1503, %v1502
          %v1646 = vpack.c.b16 %v1505, %v1504
          %v1647 = vpack.c.b16 %v1507, %v1506
          %v1648 = vpack.c.b16 %v1509, %v1508
          %v1649 = vpack.c.b16 %v1511, %v1510
          %v1650 = vpack.c.b16 %v1513, %v1512
          %v1651 = vpack.c.b16 %v1515, %v1514
          %v1652 = vpack.c.b16 %v1517, %v1516
          %v1653 = vpack.c.b16 %v1519, %v1518
          %v1654 = vpack.c.b16 %v1521, %v1520
          %v1655 = vpack.c.b16 %v1523, %v1522
          %v1656 = vpack.c.b16 %v1525, %v1524
          %v1657 = vpack.c.b16 %v1527, %v1526
          %v1658 = vpack.c.b16 %v1529, %v1528
          %v1659 = vpack.c.b16 %v1531, %v1530
          %v1660 = vpack.c.b16 %v1533, %v1532
          %v1661 = vpack.c.b16 %v1535, %v1534
          %v1662 = vpack.c.b16 %v1537, %v1536
          %v1663 = vpack.c.b16 %v1539, %v1538
          %v1664 = vpack.c.b16 %v1541, %v1540
          %v1665 = vpack.c.b16 %v1543, %v1542
          %v1666 = vpack.c.b16 %v1545, %v1544
          %v1667 = vpack.c.b16 %v1547, %v1546
          %v1668 = vpack.c.b16 %v1549, %v1548
          %v1669 = vpack.c.b16 %v1551, %v1550
          %v1670 = vpack.c.b16 %v1553, %v1552
          %v1671 = vpack.c.b16 %v1555, %v1554
          %v1672 = vpack.c.b16 %v1557, %v1556
          %v1673 = vpack.c.b16 %v1559, %v1558
          %v1674 = vpack.c.b16 %v1561, %v1560
          %v1675 = vpack.c.b16 %v1563, %v1562
          %v1676 = vpack.c.b16 %v1565, %v1564
          %v1677 = vpack.c.b16 %v1567, %v1566
          %v1678 = vpack.c.b16 %v1569, %v1568
          %v1679 = vpack.c.b16 %v1571, %v1570
          %v1680 = vpack.c.b16 %v1573, %v1572
          %v1681 = vpack.c.b16 %v1575, %v1574
          %v1682 = vpack.c.b16 %v1577, %v1576
          %v1683 = vpack.c.b16 %v1579, %v1578
          %v1684 = vpack.c.b16 %v1581, %v1580
          %v1685 = vpack.c.b16 %v1583, %v1582
          %v1686 = vpack.c.b16 %v1585, %v1584
          %v1687 = vpack.c.b16 %v1587, %v1586
          %v1688 = vpack.c.b16 %v1589, %v1588
          %v1689 = vpack.c.b16 %v1591, %v1590
          %v1690 = vpack.c.b16 %v1593, %v1592
          %v1691 = vpack.c.b16 %v1595, %v1594
          %v1692 = vpack.c.b16 %v1597, %v1596
          %v1693 = vpack.c.b16 %v1599, %v1598
          %v1694 = vpack.c.b16 %v1601, %v1600
          %v1695 = vpack.c.b16 %v1603, %v1602
          %v1696 = vpack.c.b16 %v1605, %v1604
          %v1697 = vpack.c.b16 %v1607, %v1606
          %v1698 = vpack.c.b16 %v1609, %v1608
          %v1699 = vpack.c.b16 %v1611, %v1610
          %v1700 = vpack.c.b16 %v1613, %v1612
          %v1701 = vpack.c.b16 %v1615, %v1614
          %v1702 = vpack.c.b16 %v1617, %v1616
          %v1703 = vpack.c.b16 %v1619, %v1618
          %v1704 = vpack.c.b16 %v1621, %v1620
          %v1705 = vpack.c.b16 %v1623, %v1622
          %v1706 = vpack.c.b16 %v1625, %v1624
          %v1707 = vpack.c.b16 %v1627, %v1626
          %v1708 = vpack.c.b16 %v1629, %v1628
          %v1709 = vpack.c.b16 %v1631, %v1630
          %v1710 = vpack.c.b16 %v1633, %v1632
          %v1711 = vpack.c.b16 %v1635, %v1634
          %v1712 = vpack.c.b16 %v1637, %v1636
          %v1713 = vpack.c.b16 %v1639, %v1638
          %v1714 = vpack.c.b16 %v1641, %v1640
          %v1715 = vpack.c.b16 %v1643, %v1642
          %1788 = vmatprep.subr.bf16.mxu0 0
          %1789 = vmatpush1.bf16.msra.mxu0 %v1651
          %1790 = vmatprep.subr.bf16.mxu0 0
          %1791 = vmatpush1.bf16.msra.mxu0 %v1650
          %1792 = vmatprep.subr.bf16.mxu0 0
          %1793 = vmatpush1.bf16.msra.mxu0 %v1649
          %1794 = vmatprep.subr.bf16.mxu0 0
          %1795 = vmatpush1.bf16.msra.mxu0 %v1648
          %1796 = vmatprep.subr.bf16.mxu0 0
          %1797 = vmatpush1.bf16.msra.mxu0 %v1647
          %1798 = vmatprep.subr.bf16.mxu0 0
          %1799 = vmatpush1.bf16.msra.mxu0 %v1646
          %1800 = vmatprep.subr.bf16.mxu0 0
          %1801 = vmatpush1.bf16.msra.mxu0 %v1645
          %1802 = vmatprep.subr.bf16.mxu0 0
          %1803 = vmatpush1.bf16.msra.mxu0 %v1644
          %1804 = vmatprep.subr.bf16.mxu0 0
          %1805 = vmatpush2.bf16.msra.mxu0 %v1659
          %1806 = vmatprep.subr.bf16.mxu0 0
          %1807 = vmatpush2.bf16.msra.mxu0 %v1658
          %1808 = vmatprep.subr.bf16.mxu0 0
          %1809 = vmatpush2.bf16.msra.mxu0 %v1657
          %1810 = vmatprep.subr.bf16.mxu0 0
          %1811 = vmatpush2.bf16.msra.mxu0 %v1656
          %1812 = vmatprep.subr.bf16.mxu0 0
          %1813 = vmatpush2.bf16.msra.mxu0 %v1655
          %1814 = vmatprep.subr.bf16.mxu0 0
          %1815 = vmatpush2.bf16.msra.mxu0 %v1654
          %1816 = vmatprep.subr.bf16.mxu0 0
          %1817 = vmatpush2.bf16.msra.mxu0 %v1653
          %1818 = vmatprep.subr.bf16.mxu0 0
          %1819 = vmatpush2.bf16.msra.mxu0 %v1652
          %1820 = vmatprep.mubr.bf16.mxu0 %v852
          %1821 = vmatmul.mubr.bf16.gmra.mxu0 %v804
          %v1822 = vpop.f32.mrf.mxu0
          %v1823 = vadd.f32 %v1354, %v1822
          %v1824 = vpop.f32.mrf.mxu0
          %v1825 = vpop.f32.mrf.mxu0
          %v1826 = vadd.f32 %v1354, %v1825
          %v1827 = vpop.f32.mrf.mxu0
          %1828 = vmatprep.mubr.bf16.mxu0 %v853
          %1829 = vmatmul.mubr.bf16.gmra.mxu0 %v805
          %v1830 = vpop.f32.mrf.mxu0
          %v1831 = vadd.f32 %v1354, %v1830
          %v1832 = vpop.f32.mrf.mxu0
          %v1833 = vpop.f32.mrf.mxu0
          %v1834 = vadd.f32 %v1354, %v1833
          %v1835 = vpop.f32.mrf.mxu0
          %1836 = vmatprep.mubr.bf16.mxu0 %v854
          %1837 = vmatmul.mubr.bf16.gmra.mxu0 %v806
          %v1838 = vpop.f32.mrf.mxu0
          %v1839 = vadd.f32 %v1354, %v1838
          %v1840 = vpop.f32.mrf.mxu0
          %v1841 = vpop.f32.mrf.mxu0
          %v1842 = vadd.f32 %v1354, %v1841
          %v1843 = vpop.f32.mrf.mxu0
          %1844 = vmatprep.mubr.bf16.mxu0 %v855
          %1845 = vmatmul.mubr.bf16.gmra.mxu0 %v807
          %v1846 = vpop.f32.mrf.mxu0
          %v1847 = vadd.f32 %v1354, %v1846
          %v1848 = vpop.f32.mrf.mxu0
          %v1849 = vpop.f32.mrf.mxu0
          %v1850 = vadd.f32 %v1354, %v1849
          %v1851 = vpop.f32.mrf.mxu0
          %1852 = vmatprep.mubr.bf16.mxu0 %v856
          %1853 = vmatmul.mubr.bf16.gmra.mxu0 %v808
          %v1854 = vpop.f32.mrf.mxu0
          %v1855 = vadd.f32 %v1354, %v1854
          %v1856 = vpop.f32.mrf.mxu0
          %v1857 = vpop.f32.mrf.mxu0
          %v1858 = vadd.f32 %v1354, %v1857
          %v1859 = vpop.f32.mrf.mxu0
          %1860 = vmatprep.mubr.bf16.mxu0 %v857
          %1861 = vmatmul.mubr.bf16.gmra.mxu0 %v809
          %v1862 = vpop.f32.mrf.mxu0
          %v1863 = vadd.f32 %v1354, %v1862
          %v1864 = vpop.f32.mrf.mxu0
          %v1865 = vpop.f32.mrf.mxu0
          %v1866 = vadd.f32 %v1354, %v1865
          %v1867 = vpop.f32.mrf.mxu0
          %1868 = vmatprep.mubr.bf16.mxu0 %v858
          %1869 = vmatmul.mubr.bf16.gmra.mxu0 %v810
          %v1870 = vpop.f32.mrf.mxu0
          %v1871 = vadd.f32 %v1354, %v1870
          %v1872 = vpop.f32.mrf.mxu0
          %v1873 = vpop.f32.mrf.mxu0
          %v1874 = vadd.f32 %v1354, %v1873
          %v1875 = vpop.f32.mrf.mxu0
          %1876 = vmatprep.mubr.bf16.mxu0 %v859
          %1877 = vmatmul.mubr.bf16.gmra.mxu0 %v811
          %v1878 = vpop.f32.mrf.mxu0
          %v1879 = vadd.f32 %v1354, %v1878
          %v1880 = vpop.f32.mrf.mxu0
          %v1881 = vpop.f32.mrf.mxu0
          %v1882 = vadd.f32 %v1354, %v1881
          %v1883 = vpop.f32.mrf.mxu0
          %1884 = vmatprep.mubr.bf16.mxu0 %v860
          %1885 = vmatmul.mubr.bf16.gmra.mxu0 %v812
          %v1886 = vpop.f32.mrf.mxu0
          %v1887 = vadd.f32 %v1354, %v1886
          %v1888 = vpop.f32.mrf.mxu0
          %v1889 = vpop.f32.mrf.mxu0
          %v1890 = vadd.f32 %v1354, %v1889
          %v1891 = vpop.f32.mrf.mxu0
          %1892 = vmatprep.mubr.bf16.mxu0 %v861
          %1893 = vmatmul.mubr.bf16.gmra.mxu0 %v813
          %v1894 = vpop.f32.mrf.mxu0
          %v1895 = vadd.f32 %v1354, %v1894
          %v1896 = vpop.f32.mrf.mxu0
          %v1897 = vpop.f32.mrf.mxu0
          %v1898 = vadd.f32 %v1354, %v1897
          %v1899 = vpop.f32.mrf.mxu0
          %1900 = vmatprep.mubr.bf16.mxu0 %v862
          %1901 = vmatmul.mubr.bf16.gmra.mxu0 %v814
          %v1902 = vpop.f32.mrf.mxu0
          %v1903 = vadd.f32 %v1354, %v1902
          %v1904 = vpop.f32.mrf.mxu0
          %v1905 = vpop.f32.mrf.mxu0
          %v1906 = vadd.f32 %v1354, %v1905
          %v1907 = vpop.f32.mrf.mxu0
          %1908 = vmatprep.mubr.bf16.mxu0 %v863
          %1909 = vmatmul.mubr.bf16.gmra.mxu0 %v815
          %v1910 = vpop.f32.mrf.mxu0
          %v1911 = vadd.f32 %v1354, %v1910
          %v1912 = vpop.f32.mrf.mxu0
          %v1913 = vpop.f32.mrf.mxu0
          %v1914 = vadd.f32 %v1354, %v1913
          %v1915 = vpop.f32.mrf.mxu0
          %1916 = vmatprep.mubr.bf16.mxu0 %v864
          %1917 = vmatmul.mubr.bf16.gmra.mxu0 %v816
          %v1918 = vpop.f32.mrf.mxu0
          %v1919 = vadd.f32 %v1354, %v1918
          %v1920 = vpop.f32.mrf.mxu0
          %v1921 = vpop.f32.mrf.mxu0
          %v1922 = vadd.f32 %v1354, %v1921
          %v1923 = vpop.f32.mrf.mxu0
          %1924 = vmatprep.mubr.bf16.mxu0 %v865
          %1925 = vmatmul.mubr.bf16.gmra.mxu0 %v817
          %v1926 = vpop.f32.mrf.mxu0
          %v1927 = vadd.f32 %v1354, %v1926
          %v1928 = vpop.f32.mrf.mxu0
          %v1929 = vpop.f32.mrf.mxu0
          %v1930 = vadd.f32 %v1354, %v1929
          %v1931 = vpop.f32.mrf.mxu0
          %1932 = vmatprep.mubr.bf16.mxu0 %v866
          %1933 = vmatmul.mubr.bf16.gmra.mxu0 %v818
          %v1934 = vpop.f32.mrf.mxu0
          %v1935 = vadd.f32 %v1354, %v1934
          %v1936 = vpop.f32.mrf.mxu0
          %v1937 = vpop.f32.mrf.mxu0
          %v1938 = vadd.f32 %v1354, %v1937
          %v1939 = vpop.f32.mrf.mxu0
          %1940 = vmatprep.mubr.bf16.mxu0 %v867
          %1941 = vmatmul.mubr.bf16.gmra.mxu0 %v819
          %v1942 = vpop.f32.mrf.mxu0
          %v1943 = vadd.f32 %v1354, %v1942
          %v1944 = vpop.f32.mrf.mxu0
          %v1945 = vpop.f32.mrf.mxu0
          %v1946 = vadd.f32 %v1354, %v1945
          %v1947 = vpop.f32.mrf.mxu0
          %1948 = vdwg.mxu0
          %1949 = vmatprep.subr.bf16.mxu0 0
          %1950 = vmatpush1.bf16.msra.mxu0 %v1667
          %1951 = vmatprep.subr.bf16.mxu0 0
          %1952 = vmatpush1.bf16.msra.mxu0 %v1666
          %1953 = vmatprep.subr.bf16.mxu0 0
          %1954 = vmatpush1.bf16.msra.mxu0 %v1665
          %1955 = vmatprep.subr.bf16.mxu0 0
          %1956 = vmatpush1.bf16.msra.mxu0 %v1664
          %1957 = vmatprep.subr.bf16.mxu0 0
          %1958 = vmatpush1.bf16.msra.mxu0 %v1663
          %1959 = vmatprep.subr.bf16.mxu0 0
          %1960 = vmatpush1.bf16.msra.mxu0 %v1662
          %1961 = vmatprep.subr.bf16.mxu0 0
          %1962 = vmatpush1.bf16.msra.mxu0 %v1661
          %1963 = vmatprep.subr.bf16.mxu0 0
          %1964 = vmatpush1.bf16.msra.mxu0 %v1660
          %1965 = vmatprep.subr.bf16.mxu0 0
          %1966 = vmatpush2.bf16.msra.mxu0 %v1675
          %1967 = vmatprep.subr.bf16.mxu0 0
          %1968 = vmatpush2.bf16.msra.mxu0 %v1674
          %1969 = vmatprep.subr.bf16.mxu0 0
          %1970 = vmatpush2.bf16.msra.mxu0 %v1673
          %1971 = vmatprep.subr.bf16.mxu0 0
          %1972 = vmatpush2.bf16.msra.mxu0 %v1672
          %1973 = vmatprep.subr.bf16.mxu0 0
          %1974 = vmatpush2.bf16.msra.mxu0 %v1671
          %1975 = vmatprep.subr.bf16.mxu0 0
          %1976 = vmatpush2.bf16.msra.mxu0 %v1670
          %1977 = vmatprep.subr.bf16.mxu0 0
          %1978 = vmatpush2.bf16.msra.mxu0 %v1669
          %1979 = vmatprep.subr.bf16.mxu0 0
          %1980 = vmatpush2.bf16.msra.mxu0 %v1668
          %1981 = vmatprep.mubr.bf16.mxu0 %v948
          %1982 = vmatmul.mubr.bf16.gmra.mxu0 %v900
          %v1983 = vpop.f32.mrf.mxu0
          %v1984 = vadd.f32 %v1823, %v1983
          %v1985 = vpop.f32.mrf.mxu0
          %v1986 = vpop.f32.mrf.mxu0
          %v1987 = vadd.f32 %v1826, %v1986
          %v1988 = vpop.f32.mrf.mxu0
          %1989 = vmatprep.mubr.bf16.mxu0 %v949
          %1990 = vmatmul.mubr.bf16.gmra.mxu0 %v901
          %v1991 = vpop.f32.mrf.mxu0
          %v1992 = vadd.f32 %v1831, %v1991
          %v1993 = vpop.f32.mrf.mxu0
          %v1994 = vpop.f32.mrf.mxu0
          %v1995 = vadd.f32 %v1834, %v1994
          %v1996 = vpop.f32.mrf.mxu0
          %1997 = vmatprep.mubr.bf16.mxu0 %v950
          %1998 = vmatmul.mubr.bf16.gmra.mxu0 %v902
          %v1999 = vpop.f32.mrf.mxu0
          %v2000 = vadd.f32 %v1839, %v1999
          %v2001 = vpop.f32.mrf.mxu0
          %v2002 = vpop.f32.mrf.mxu0
          %v2003 = vadd.f32 %v1842, %v2002
          %v2004 = vpop.f32.mrf.mxu0
          %2005 = vmatprep.mubr.bf16.mxu0 %v951
          %2006 = vmatmul.mubr.bf16.gmra.mxu0 %v903
          %v2007 = vpop.f32.mrf.mxu0
          %v2008 = vadd.f32 %v1847, %v2007
          %v2009 = vpop.f32.mrf.mxu0
          %v2010 = vpop.f32.mrf.mxu0
          %v2011 = vadd.f32 %v1850, %v2010
          %v2012 = vpop.f32.mrf.mxu0
          %2013 = vmatprep.mubr.bf16.mxu0 %v952
          %2014 = vmatmul.mubr.bf16.gmra.mxu0 %v904
          %v2015 = vpop.f32.mrf.mxu0
          %v2016 = vadd.f32 %v1855, %v2015
          %v2017 = vpop.f32.mrf.mxu0
          %v2018 = vpop.f32.mrf.mxu0
          %v2019 = vadd.f32 %v1858, %v2018
          %v2020 = vpop.f32.mrf.mxu0
          %2021 = vmatprep.mubr.bf16.mxu0 %v953
          %2022 = vmatmul.mubr.bf16.gmra.mxu0 %v905
          %v2023 = vpop.f32.mrf.mxu0
          %v2024 = vadd.f32 %v1863, %v2023
          %v2025 = vpop.f32.mrf.mxu0
          %v2026 = vpop.f32.mrf.mxu0
          %v2027 = vadd.f32 %v1866, %v2026
          %v2028 = vpop.f32.mrf.mxu0
          %2029 = vmatprep.mubr.bf16.mxu0 %v954
          %2030 = vmatmul.mubr.bf16.gmra.mxu0 %v906
          %v2031 = vpop.f32.mrf.mxu0
          %v2032 = vadd.f32 %v1871, %v2031
          %v2033 = vpop.f32.mrf.mxu0
          %v2034 = vpop.f32.mrf.mxu0
          %v2035 = vadd.f32 %v1874, %v2034
          %v2036 = vpop.f32.mrf.mxu0
          %2037 = vmatprep.mubr.bf16.mxu0 %v955
          %2038 = vmatmul.mubr.bf16.gmra.mxu0 %v907
          %v2039 = vpop.f32.mrf.mxu0
          %v2040 = vadd.f32 %v1879, %v2039
          %v2041 = vpop.f32.mrf.mxu0
          %v2042 = vpop.f32.mrf.mxu0
          %v2043 = vadd.f32 %v1882, %v2042
          %v2044 = vpop.f32.mrf.mxu0
          %2045 = vmatprep.mubr.bf16.mxu0 %v956
          %2046 = vmatmul.mubr.bf16.gmra.mxu0 %v908
          %v2047 = vpop.f32.mrf.mxu0
          %v2048 = vadd.f32 %v1887, %v2047
          %v2049 = vpop.f32.mrf.mxu0
          %v2050 = vpop.f32.mrf.mxu0
          %v2051 = vadd.f32 %v1890, %v2050
          %v2052 = vpop.f32.mrf.mxu0
          %2053 = vmatprep.mubr.bf16.mxu0 %v957
          %2054 = vmatmul.mubr.bf16.gmra.mxu0 %v909
          %v2055 = vpop.f32.mrf.mxu0
          %v2056 = vadd.f32 %v1895, %v2055
          %v2057 = vpop.f32.mrf.mxu0
          %v2058 = vpop.f32.mrf.mxu0
          %v2059 = vadd.f32 %v1898, %v2058
          %v2060 = vpop.f32.mrf.mxu0
          %2061 = vmatprep.mubr.bf16.mxu0 %v958
          %2062 = vmatmul.mubr.bf16.gmra.mxu0 %v910
          %v2063 = vpop.f32.mrf.mxu0
          %v2064 = vadd.f32 %v1903, %v2063
          %v2065 = vpop.f32.mrf.mxu0
          %v2066 = vpop.f32.mrf.mxu0
          %v2067 = vadd.f32 %v1906, %v2066
          %v2068 = vpop.f32.mrf.mxu0
          %2069 = vmatprep.mubr.bf16.mxu0 %v959
          %2070 = vmatmul.mubr.bf16.gmra.mxu0 %v911
          %v2071 = vpop.f32.mrf.mxu0
          %v2072 = vadd.f32 %v1911, %v2071
          %v2073 = vpop.f32.mrf.mxu0
          %v2074 = vpop.f32.mrf.mxu0
          %v2075 = vadd.f32 %v1914, %v2074
          %v2076 = vpop.f32.mrf.mxu0
          %2077 = vmatprep.mubr.bf16.mxu0 %v960
          %2078 = vmatmul.mubr.bf16.gmra.mxu0 %v912
          %v2079 = vpop.f32.mrf.mxu0
          %v2080 = vadd.f32 %v1919, %v2079
          %v2081 = vpop.f32.mrf.mxu0
          %v2082 = vpop.f32.mrf.mxu0
          %v2083 = vadd.f32 %v1922, %v2082
          %v2084 = vpop.f32.mrf.mxu0
          %2085 = vmatprep.mubr.bf16.mxu0 %v961
          %2086 = vmatmul.mubr.bf16.gmra.mxu0 %v913
          %v2087 = vpop.f32.mrf.mxu0
          %v2088 = vadd.f32 %v1927, %v2087
          %v2089 = vpop.f32.mrf.mxu0
          %v2090 = vpop.f32.mrf.mxu0
          %v2091 = vadd.f32 %v1930, %v2090
          %v2092 = vpop.f32.mrf.mxu0
          %2093 = vmatprep.mubr.bf16.mxu0 %v962
          %2094 = vmatmul.mubr.bf16.gmra.mxu0 %v914
          %v2095 = vpop.f32.mrf.mxu0
          %v2096 = vadd.f32 %v1935, %v2095
          %v2097 = vpop.f32.mrf.mxu0
          %v2098 = vpop.f32.mrf.mxu0
          %v2099 = vadd.f32 %v1938, %v2098
          %v2100 = vpop.f32.mrf.mxu0
          %2101 = vmatprep.mubr.bf16.mxu0 %v963
          %2102 = vmatmul.mubr.bf16.gmra.mxu0 %v915
          %v2103 = vpop.f32.mrf.mxu0
          %v2104 = vadd.f32 %v1943, %v2103
          %v2105 = vpop.f32.mrf.mxu0
          %v2106 = vpop.f32.mrf.mxu0
          %v2107 = vadd.f32 %v1946, %v2106
          %v2108 = vpop.f32.mrf.mxu0
          %2109 = vdwg.mxu0
          %2110 = vmatprep.subr.bf16.mxu0 0
          %2111 = vmatpush1.bf16.msra.mxu0 %v1683
          %2112 = vmatprep.subr.bf16.mxu0 0
          %2113 = vmatpush1.bf16.msra.mxu0 %v1682
          %2114 = vmatprep.subr.bf16.mxu0 0
          %2115 = vmatpush1.bf16.msra.mxu0 %v1681
          %2116 = vmatprep.subr.bf16.mxu0 0
          %2117 = vmatpush1.bf16.msra.mxu0 %v1680
          %2118 = vmatprep.subr.bf16.mxu0 0
          %2119 = vmatpush1.bf16.msra.mxu0 %v1679
          %2120 = vmatprep.subr.bf16.mxu0 0
          %2121 = vmatpush1.bf16.msra.mxu0 %v1678
          %2122 = vmatprep.subr.bf16.mxu0 0
          %2123 = vmatpush1.bf16.msra.mxu0 %v1677
          %2124 = vmatprep.subr.bf16.mxu0 0
          %2125 = vmatpush1.bf16.msra.mxu0 %v1676
          %2126 = vmatprep.subr.bf16.mxu0 0
          %2127 = vmatpush2.bf16.msra.mxu0 %v1691
          %2128 = vmatprep.subr.bf16.mxu0 0
          %2129 = vmatpush2.bf16.msra.mxu0 %v1690
          %2130 = vmatprep.subr.bf16.mxu0 0
          %2131 = vmatpush2.bf16.msra.mxu0 %v1689
          %2132 = vmatprep.subr.bf16.mxu0 0
          %2133 = vmatpush2.bf16.msra.mxu0 %v1688
          %2134 = vmatprep.subr.bf16.mxu0 0
          %2135 = vmatpush2.bf16.msra.mxu0 %v1687
          %2136 = vmatprep.subr.bf16.mxu0 0
          %2137 = vmatpush2.bf16.msra.mxu0 %v1686
          %2138 = vmatprep.subr.bf16.mxu0 0
          %2139 = vmatpush2.bf16.msra.mxu0 %v1685
          %2140 = vmatprep.subr.bf16.mxu0 0
          %2141 = vmatpush2.bf16.msra.mxu0 %v1684
          %2142 = vmatprep.mubr.bf16.mxu0 %v1044
          %2143 = vmatmul.mubr.bf16.gmra.mxu0 %v996
          %v2144 = vpop.f32.mrf.mxu0
          %v2145 = vadd.f32 %v1984, %v2144
          %v2146 = vpop.f32.mrf.mxu0
          %v2147 = vpop.f32.mrf.mxu0
          %v2148 = vadd.f32 %v1987, %v2147
          %v2149 = vpop.f32.mrf.mxu0
          %2150 = vmatprep.mubr.bf16.mxu0 %v1045
          %2151 = vmatmul.mubr.bf16.gmra.mxu0 %v997
          %v2152 = vpop.f32.mrf.mxu0
          %v2153 = vadd.f32 %v1992, %v2152
          %v2154 = vpop.f32.mrf.mxu0
          %v2155 = vpop.f32.mrf.mxu0
          %v2156 = vadd.f32 %v1995, %v2155
          %v2157 = vpop.f32.mrf.mxu0
          %2158 = vmatprep.mubr.bf16.mxu0 %v1046
          %2159 = vmatmul.mubr.bf16.gmra.mxu0 %v998
          %v2160 = vpop.f32.mrf.mxu0
          %v2161 = vadd.f32 %v2000, %v2160
          %v2162 = vpop.f32.mrf.mxu0
          %v2163 = vpop.f32.mrf.mxu0
          %v2164 = vadd.f32 %v2003, %v2163
          %v2165 = vpop.f32.mrf.mxu0
          %2166 = vmatprep.mubr.bf16.mxu0 %v1047
          %2167 = vmatmul.mubr.bf16.gmra.mxu0 %v999
          %v2168 = vpop.f32.mrf.mxu0
          %v2169 = vadd.f32 %v2008, %v2168
          %v2170 = vpop.f32.mrf.mxu0
          %v2171 = vpop.f32.mrf.mxu0
          %v2172 = vadd.f32 %v2011, %v2171
          %v2173 = vpop.f32.mrf.mxu0
          %2174 = vmatprep.mubr.bf16.mxu0 %v1048
          %2175 = vmatmul.mubr.bf16.gmra.mxu0 %v1000
          %v2176 = vpop.f32.mrf.mxu0
          %v2177 = vadd.f32 %v2016, %v2176
          %v2178 = vpop.f32.mrf.mxu0
          %v2179 = vpop.f32.mrf.mxu0
          %v2180 = vadd.f32 %v2019, %v2179
          %v2181 = vpop.f32.mrf.mxu0
          %2182 = vmatprep.mubr.bf16.mxu0 %v1049
          %2183 = vmatmul.mubr.bf16.gmra.mxu0 %v1001
          %v2184 = vpop.f32.mrf.mxu0
          %v2185 = vadd.f32 %v2024, %v2184
          %v2186 = vpop.f32.mrf.mxu0
          %v2187 = vpop.f32.mrf.mxu0
          %v2188 = vadd.f32 %v2027, %v2187
          %v2189 = vpop.f32.mrf.mxu0
          %2190 = vmatprep.mubr.bf16.mxu0 %v1050
          %2191 = vmatmul.mubr.bf16.gmra.mxu0 %v1002
          %v2192 = vpop.f32.mrf.mxu0
          %v2193 = vadd.f32 %v2032, %v2192
          %v2194 = vpop.f32.mrf.mxu0
          %v2195 = vpop.f32.mrf.mxu0
          %v2196 = vadd.f32 %v2035, %v2195
          %v2197 = vpop.f32.mrf.mxu0
          %2198 = vmatprep.mubr.bf16.mxu0 %v1051
          %2199 = vmatmul.mubr.bf16.gmra.mxu0 %v1003
          %v2200 = vpop.f32.mrf.mxu0
          %v2201 = vadd.f32 %v2040, %v2200
          %v2202 = vpop.f32.mrf.mxu0
          %v2203 = vpop.f32.mrf.mxu0
          %v2204 = vadd.f32 %v2043, %v2203
          %v2205 = vpop.f32.mrf.mxu0
          %2206 = vmatprep.mubr.bf16.mxu0 %v1052
          %2207 = vmatmul.mubr.bf16.gmra.mxu0 %v1004
          %v2208 = vpop.f32.mrf.mxu0
          %v2209 = vadd.f32 %v2048, %v2208
          %v2210 = vpop.f32.mrf.mxu0
          %v2211 = vpop.f32.mrf.mxu0
          %v2212 = vadd.f32 %v2051, %v2211
          %v2213 = vpop.f32.mrf.mxu0
          %2214 = vmatprep.mubr.bf16.mxu0 %v1053
          %2215 = vmatmul.mubr.bf16.gmra.mxu0 %v1005
          %v2216 = vpop.f32.mrf.mxu0
          %v2217 = vadd.f32 %v2056, %v2216
          %v2218 = vpop.f32.mrf.mxu0
          %v2219 = vpop.f32.mrf.mxu0
          %v2220 = vadd.f32 %v2059, %v2219
          %v2221 = vpop.f32.mrf.mxu0
          %2222 = vmatprep.mubr.bf16.mxu0 %v1054
          %2223 = vmatmul.mubr.bf16.gmra.mxu0 %v1006
          %v2224 = vpop.f32.mrf.mxu0
          %v2225 = vadd.f32 %v2064, %v2224
          %v2226 = vpop.f32.mrf.mxu0
          %v2227 = vpop.f32.mrf.mxu0
          %v2228 = vadd.f32 %v2067, %v2227
          %v2229 = vpop.f32.mrf.mxu0
          %2230 = vmatprep.mubr.bf16.mxu0 %v1055
          %2231 = vmatmul.mubr.bf16.gmra.mxu0 %v1007
          %v2232 = vpop.f32.mrf.mxu0
          %v2233 = vadd.f32 %v2072, %v2232
          %v2234 = vpop.f32.mrf.mxu0
          %v2235 = vpop.f32.mrf.mxu0
          %v2236 = vadd.f32 %v2075, %v2235
          %v2237 = vpop.f32.mrf.mxu0
          %2238 = vmatprep.mubr.bf16.mxu0 %v1056
          %2239 = vmatmul.mubr.bf16.gmra.mxu0 %v1008
          %v2240 = vpop.f32.mrf.mxu0
          %v2241 = vadd.f32 %v2080, %v2240
          %v2242 = vpop.f32.mrf.mxu0
          %v2243 = vpop.f32.mrf.mxu0
          %v2244 = vadd.f32 %v2083, %v2243
          %v2245 = vpop.f32.mrf.mxu0
          %2246 = vmatprep.mubr.bf16.mxu0 %v1057
          %2247 = vmatmul.mubr.bf16.gmra.mxu0 %v1009
          %v2248 = vpop.f32.mrf.mxu0
          %v2249 = vadd.f32 %v2088, %v2248
          %v2250 = vpop.f32.mrf.mxu0
          %v2251 = vpop.f32.mrf.mxu0
          %v2252 = vadd.f32 %v2091, %v2251
          %v2253 = vpop.f32.mrf.mxu0
          %2254 = vmatprep.mubr.bf16.mxu0 %v1058
          %2255 = vmatmul.mubr.bf16.gmra.mxu0 %v1010
          %v2256 = vpop.f32.mrf.mxu0
          %v2257 = vadd.f32 %v2096, %v2256
          %v2258 = vpop.f32.mrf.mxu0
          %v2259 = vpop.f32.mrf.mxu0
          %v2260 = vadd.f32 %v2099, %v2259
          %v2261 = vpop.f32.mrf.mxu0
          %2262 = vmatprep.mubr.bf16.mxu0 %v1059
          %2263 = vmatmul.mubr.bf16.gmra.mxu0 %v1011
          %v2264 = vpop.f32.mrf.mxu0
          %v2265 = vadd.f32 %v2104, %v2264
          %v2266 = vpop.f32.mrf.mxu0
          %v2267 = vpop.f32.mrf.mxu0
          %v2268 = vadd.f32 %v2107, %v2267
          %v2269 = vpop.f32.mrf.mxu0
          %2270 = vdwg.mxu0
          %2271 = vmatprep.subr.bf16.mxu0 0
          %2272 = vmatpush1.bf16.msra.mxu0 %v1699
          %2273 = vmatprep.subr.bf16.mxu0 0
          %2274 = vmatpush1.bf16.msra.mxu0 %v1698
          %2275 = vmatprep.subr.bf16.mxu0 0
          %2276 = vmatpush1.bf16.msra.mxu0 %v1697
          %2277 = vmatprep.subr.bf16.mxu0 0
          %2278 = vmatpush1.bf16.msra.mxu0 %v1696
          %2279 = vmatprep.subr.bf16.mxu0 0
          %2280 = vmatpush1.bf16.msra.mxu0 %v1695
          %2281 = vmatprep.subr.bf16.mxu0 0
          %2282 = vmatpush1.bf16.msra.mxu0 %v1694
          %2283 = vmatprep.subr.bf16.mxu0 0
          %2284 = vmatpush1.bf16.msra.mxu0 %v1693
          %2285 = vmatprep.subr.bf16.mxu0 0
          %2286 = vmatpush1.bf16.msra.mxu0 %v1692
          %2287 = vmatprep.subr.bf16.mxu0 0
          %2288 = vmatpush2.bf16.msra.mxu0 %v1707
          %2289 = vmatprep.subr.bf16.mxu0 0
          %2290 = vmatpush2.bf16.msra.mxu0 %v1706
          %2291 = vmatprep.subr.bf16.mxu0 0
          %2292 = vmatpush2.bf16.msra.mxu0 %v1705
          %2293 = vmatprep.subr.bf16.mxu0 0
          %2294 = vmatpush2.bf16.msra.mxu0 %v1704
          %2295 = vmatprep.subr.bf16.mxu0 0
          %2296 = vmatpush2.bf16.msra.mxu0 %v1703
          %2297 = vmatprep.subr.bf16.mxu0 0
          %2298 = vmatpush2.bf16.msra.mxu0 %v1702
          %2299 = vmatprep.subr.bf16.mxu0 0
          %2300 = vmatpush2.bf16.msra.mxu0 %v1701
          %2301 = vmatprep.subr.bf16.mxu0 0
          %2302 = vmatpush2.bf16.msra.mxu0 %v1700
          %2303 = vmatprep.mubr.bf16.mxu0 %v1141
          %2304 = vmatmul.mubr.bf16.gmra.mxu0 %v1093
          %v2305 = vpop.f32.mrf.mxu0
          %v2306 = vadd.f32 %v2145, %v2305
          %v2307 = vpop.f32.mrf.mxu0
          %v2308 = vpop.f32.mrf.mxu0
          %v2309 = vadd.f32 %v2148, %v2308
          %v2310 = vpop.f32.mrf.mxu0
          %2311 = vmatprep.mubr.bf16.mxu0 %v1142
          %2312 = vmatmul.mubr.bf16.gmra.mxu0 %v1094
          %v2313 = vpop.f32.mrf.mxu0
          %v2314 = vadd.f32 %v2153, %v2313
          %v2315 = vpop.f32.mrf.mxu0
          %v2316 = vpop.f32.mrf.mxu0
          %v2317 = vadd.f32 %v2156, %v2316
          %v2318 = vpop.f32.mrf.mxu0
          %2319 = vmatprep.mubr.bf16.mxu0 %v1143
          %2320 = vmatmul.mubr.bf16.gmra.mxu0 %v1095
          %v2321 = vpop.f32.mrf.mxu0
          %v2322 = vadd.f32 %v2161, %v2321
          %v2323 = vpop.f32.mrf.mxu0
          %v2324 = vpop.f32.mrf.mxu0
          %v2325 = vadd.f32 %v2164, %v2324
          %v2326 = vpop.f32.mrf.mxu0
          %2327 = vmatprep.mubr.bf16.mxu0 %v1144
          %2328 = vmatmul.mubr.bf16.gmra.mxu0 %v1096
          %v2329 = vpop.f32.mrf.mxu0
          %v2330 = vadd.f32 %v2169, %v2329
          %v2331 = vpop.f32.mrf.mxu0
          %v2332 = vpop.f32.mrf.mxu0
          %v2333 = vadd.f32 %v2172, %v2332
          %v2334 = vpop.f32.mrf.mxu0
          %2335 = vmatprep.mubr.bf16.mxu0 %v1145
          %2336 = vmatmul.mubr.bf16.gmra.mxu0 %v1097
          %v2337 = vpop.f32.mrf.mxu0
          %v2338 = vadd.f32 %v2177, %v2337
          %v2339 = vpop.f32.mrf.mxu0
          %v2340 = vpop.f32.mrf.mxu0
          %v2341 = vadd.f32 %v2180, %v2340
          %v2342 = vpop.f32.mrf.mxu0
          %2343 = vmatprep.mubr.bf16.mxu0 %v1146
          %2344 = vmatmul.mubr.bf16.gmra.mxu0 %v1098
          %v2345 = vpop.f32.mrf.mxu0
          %v2346 = vadd.f32 %v2185, %v2345
          %v2347 = vpop.f32.mrf.mxu0
          %v2348 = vpop.f32.mrf.mxu0
          %v2349 = vadd.f32 %v2188, %v2348
          %v2350 = vpop.f32.mrf.mxu0
          %2351 = vmatprep.mubr.bf16.mxu0 %v1147
          %2352 = vmatmul.mubr.bf16.gmra.mxu0 %v1099
          %v2353 = vpop.f32.mrf.mxu0
          %v2354 = vadd.f32 %v2193, %v2353
          %v2355 = vpop.f32.mrf.mxu0
          %v2356 = vpop.f32.mrf.mxu0
          %v2357 = vadd.f32 %v2196, %v2356
          %v2358 = vpop.f32.mrf.mxu0
          %2359 = vmatprep.mubr.bf16.mxu0 %v1148
          %2360 = vmatmul.mubr.bf16.gmra.mxu0 %v1100
          %v2361 = vpop.f32.mrf.mxu0
          %v2362 = vadd.f32 %v2201, %v2361
          %v2363 = vpop.f32.mrf.mxu0
          %v2364 = vpop.f32.mrf.mxu0
          %v2365 = vadd.f32 %v2204, %v2364
          %v2366 = vpop.f32.mrf.mxu0
          %2367 = vmatprep.mubr.bf16.mxu0 %v1149
          %2368 = vmatmul.mubr.bf16.gmra.mxu0 %v1101
          %v2369 = vpop.f32.mrf.mxu0
          %v2370 = vadd.f32 %v2209, %v2369
          %v2371 = vpop.f32.mrf.mxu0
          %v2372 = vpop.f32.mrf.mxu0
          %v2373 = vadd.f32 %v2212, %v2372
          %v2374 = vpop.f32.mrf.mxu0
          %2375 = vmatprep.mubr.bf16.mxu0 %v1150
          %2376 = vmatmul.mubr.bf16.gmra.mxu0 %v1102
          %v2377 = vpop.f32.mrf.mxu0
          %v2378 = vadd.f32 %v2217, %v2377
          %v2379 = vpop.f32.mrf.mxu0
          %v2380 = vpop.f32.mrf.mxu0
          %v2381 = vadd.f32 %v2220, %v2380
          %v2382 = vpop.f32.mrf.mxu0
          %2383 = vmatprep.mubr.bf16.mxu0 %v1151
          %2384 = vmatmul.mubr.bf16.gmra.mxu0 %v1103
          %v2385 = vpop.f32.mrf.mxu0
          %v2386 = vadd.f32 %v2225, %v2385
          %v2387 = vpop.f32.mrf.mxu0
          %v2388 = vpop.f32.mrf.mxu0
          %v2389 = vadd.f32 %v2228, %v2388
          %v2390 = vpop.f32.mrf.mxu0
          %2391 = vmatprep.mubr.bf16.mxu0 %v1152
          %2392 = vmatmul.mubr.bf16.gmra.mxu0 %v1104
          %v2393 = vpop.f32.mrf.mxu0
          %v2394 = vadd.f32 %v2233, %v2393
          %v2395 = vpop.f32.mrf.mxu0
          %v2396 = vpop.f32.mrf.mxu0
          %v2397 = vadd.f32 %v2236, %v2396
          %v2398 = vpop.f32.mrf.mxu0
          %2399 = vmatprep.mubr.bf16.mxu0 %v1153
          %2400 = vmatmul.mubr.bf16.gmra.mxu0 %v1105
          %v2401 = vpop.f32.mrf.mxu0
          %v2402 = vadd.f32 %v2241, %v2401
          %v2403 = vpop.f32.mrf.mxu0
          %v2404 = vpop.f32.mrf.mxu0
          %v2405 = vadd.f32 %v2244, %v2404
          %v2406 = vpop.f32.mrf.mxu0
          %2407 = vmatprep.mubr.bf16.mxu0 %v1154
          %2408 = vmatmul.mubr.bf16.gmra.mxu0 %v1106
          %v2409 = vpop.f32.mrf.mxu0
          %v2410 = vadd.f32 %v2249, %v2409
          %v2411 = vpop.f32.mrf.mxu0
          %v2412 = vpop.f32.mrf.mxu0
          %v2413 = vadd.f32 %v2252, %v2412
          %v2414 = vpop.f32.mrf.mxu0
          %2415 = vmatprep.mubr.bf16.mxu0 %v1155
          %2416 = vmatmul.mubr.bf16.gmra.mxu0 %v1107
          %v2417 = vpop.f32.mrf.mxu0
          %v2418 = vadd.f32 %v2257, %v2417
          %v2419 = vpop.f32.mrf.mxu0
          %v2420 = vpop.f32.mrf.mxu0
          %v2421 = vadd.f32 %v2260, %v2420
          %v2422 = vpop.f32.mrf.mxu0
          %2423 = vmatprep.mubr.bf16.mxu0 %v1156
          %2424 = vmatmul.mubr.bf16.gmra.mxu0 %v1108
          %v2425 = vpop.f32.mrf.mxu0
          %v2426 = vadd.f32 %v2265, %v2425
          %v2427 = vpop.f32.mrf.mxu0
          %v2428 = vpop.f32.mrf.mxu0
          %v2429 = vadd.f32 %v2268, %v2428
          %v2430 = vpop.f32.mrf.mxu0
          %2431 = vdwg.mxu0
          %2432 = vmatprep.subr.bf16.mxu0 0
          %2433 = vmatpush1.bf16.msra.mxu0 %v1715
          %2434 = vmatprep.subr.bf16.mxu0 0
          %2435 = vmatpush1.bf16.msra.mxu0 %v1714
          %2436 = vmatprep.subr.bf16.mxu0 0
          %2437 = vmatpush1.bf16.msra.mxu0 %v1713
          %2438 = vmatprep.subr.bf16.mxu0 0
          %2439 = vmatpush1.bf16.msra.mxu0 %v1712
          %2440 = vmatprep.subr.bf16.mxu0 0
          %2441 = vmatpush1.bf16.msra.mxu0 %v1711
          %2442 = vmatprep.subr.bf16.mxu0 0
          %2443 = vmatpush1.bf16.msra.mxu0 %v1710
          %2444 = vmatprep.subr.bf16.mxu0 0
          %2445 = vmatpush1.bf16.msra.mxu0 %v1709
          %2446 = vmatprep.subr.bf16.mxu0 0
          %2447 = vmatpush1.bf16.msra.mxu0 %v1708
          %2448 = vmatprep.subr.bf16.mxu0 0
          %2449 = vmatpush2.bf16.msra.mxu0 0
          %2450 = vmatprep.subr.bf16.mxu0 0
          %2451 = vmatpush2.bf16.msra.mxu0 0
          %2452 = vmatprep.subr.bf16.mxu0 0
          %2453 = vmatpush2.bf16.msra.mxu0 0
          %2454 = vmatprep.subr.bf16.mxu0 0
          %2455 = vmatpush2.bf16.msra.mxu0 0
          %2456 = vmatprep.subr.bf16.mxu0 0
          %2457 = vmatpush2.bf16.msra.mxu0 0
          %2458 = vmatprep.subr.bf16.mxu0 0
          %2459 = vmatpush2.bf16.msra.mxu0 0
          %2460 = vmatprep.subr.bf16.mxu0 0
          %2461 = vmatpush2.bf16.msra.mxu0 0
          %2462 = vmatprep.subr.bf16.mxu0 0
          %2463 = vmatpush2.bf16.msra.mxu0 0
          %2464 = vmatprep.mubr.bf16.mxu0 0
          %2465 = vmatmul.mubr.bf16.gmra.mxu0 %v1189
          %v2466 = vpop.f32.mrf.mxu0
          %v2467 = vadd.f32 %v2306, %v2466
          %v2468 = vpop.f32.mrf.mxu0
          %v2469 = vpop.f32.mrf.mxu0
          %v2470 = vadd.f32 %v2309, %v2469
          %v2471 = vpop.f32.mrf.mxu0
          %2472 = vmatprep.mubr.bf16.mxu0 0
          %2473 = vmatmul.mubr.bf16.gmra.mxu0 %v1190
          %v2474 = vpop.f32.mrf.mxu0
          %v2475 = vadd.f32 %v2314, %v2474
          %v2476 = vpop.f32.mrf.mxu0
          %v2477 = vpop.f32.mrf.mxu0
          %v2478 = vadd.f32 %v2317, %v2477
          %v2479 = vpop.f32.mrf.mxu0
          %2480 = vmatprep.mubr.bf16.mxu0 0
          %2481 = vmatmul.mubr.bf16.gmra.mxu0 %v1191
          %v2482 = vpop.f32.mrf.mxu0
          %v2483 = vadd.f32 %v2322, %v2482
          %v2484 = vpop.f32.mrf.mxu0
          %v2485 = vpop.f32.mrf.mxu0
          %v2486 = vadd.f32 %v2325, %v2485
          %v2487 = vpop.f32.mrf.mxu0
          %2488 = vmatprep.mubr.bf16.mxu0 0
          %2489 = vmatmul.mubr.bf16.gmra.mxu0 %v1192
          %v2490 = vpop.f32.mrf.mxu0
          %v2491 = vadd.f32 %v2330, %v2490
          %v2492 = vpop.f32.mrf.mxu0
          %v2493 = vpop.f32.mrf.mxu0
          %v2494 = vadd.f32 %v2333, %v2493
          %v2495 = vpop.f32.mrf.mxu0
          %2496 = vmatprep.mubr.bf16.mxu0 0
          %2497 = vmatmul.mubr.bf16.gmra.mxu0 %v1193
          %v2498 = vpop.f32.mrf.mxu0
          %v2499 = vadd.f32 %v2338, %v2498
          %v2500 = vpop.f32.mrf.mxu0
          %v2501 = vpop.f32.mrf.mxu0
          %v2502 = vadd.f32 %v2341, %v2501
          %v2503 = vpop.f32.mrf.mxu0
          %2504 = vmatprep.mubr.bf16.mxu0 0
          %2505 = vmatmul.mubr.bf16.gmra.mxu0 %v1194
          %v2506 = vpop.f32.mrf.mxu0
          %v2507 = vadd.f32 %v2346, %v2506
          %v2508 = vpop.f32.mrf.mxu0
          %v2509 = vpop.f32.mrf.mxu0
          %v2510 = vadd.f32 %v2349, %v2509
          %v2511 = vpop.f32.mrf.mxu0
          %2512 = vmatprep.mubr.bf16.mxu0 0
          %2513 = vmatmul.mubr.bf16.gmra.mxu0 %v1195
          %v2514 = vpop.f32.mrf.mxu0
          %v2515 = vadd.f32 %v2354, %v2514
          %v2516 = vpop.f32.mrf.mxu0
          %v2517 = vpop.f32.mrf.mxu0
          %v2518 = vadd.f32 %v2357, %v2517
          %v2519 = vpop.f32.mrf.mxu0
          %2520 = vmatprep.mubr.bf16.mxu0 0
          %2521 = vmatmul.mubr.bf16.gmra.mxu0 %v1196
          %v2522 = vpop.f32.mrf.mxu0
          %v2523 = vadd.f32 %v2362, %v2522
          %v2524 = vpop.f32.mrf.mxu0
          %v2525 = vpop.f32.mrf.mxu0
          %v2526 = vadd.f32 %v2365, %v2525
          %v2527 = vpop.f32.mrf.mxu0
          %2528 = vmatprep.mubr.bf16.mxu0 0
          %2529 = vmatmul.mubr.bf16.gmra.mxu0 %v1197
          %v2530 = vpop.f32.mrf.mxu0
          %v2531 = vadd.f32 %v2370, %v2530
          %v2532 = vpop.f32.mrf.mxu0
          %v2533 = vpop.f32.mrf.mxu0
          %v2534 = vadd.f32 %v2373, %v2533
          %v2535 = vpop.f32.mrf.mxu0
          %2536 = vmatprep.mubr.bf16.mxu0 0
          %2537 = vmatmul.mubr.bf16.gmra.mxu0 %v1198
          %v2538 = vpop.f32.mrf.mxu0
          %v2539 = vadd.f32 %v2378, %v2538
          %v2540 = vpop.f32.mrf.mxu0
          %v2541 = vpop.f32.mrf.mxu0
          %v2542 = vadd.f32 %v2381, %v2541
          %v2543 = vpop.f32.mrf.mxu0
          %2544 = vmatprep.mubr.bf16.mxu0 0
          %2545 = vmatmul.mubr.bf16.gmra.mxu0 %v1199
          %v2546 = vpop.f32.mrf.mxu0
          %v2547 = vadd.f32 %v2386, %v2546
          %v2548 = vpop.f32.mrf.mxu0
          %v2549 = vpop.f32.mrf.mxu0
          %v2550 = vadd.f32 %v2389, %v2549
          %v2551 = vpop.f32.mrf.mxu0
          %2552 = vmatprep.mubr.bf16.mxu0 0
          %2553 = vmatmul.mubr.bf16.gmra.mxu0 %v1200
          %v2554 = vpop.f32.mrf.mxu0
          %v2555 = vadd.f32 %v2394, %v2554
          %v2556 = vpop.f32.mrf.mxu0
          %v2557 = vpop.f32.mrf.mxu0
          %v2558 = vadd.f32 %v2397, %v2557
          %v2559 = vpop.f32.mrf.mxu0
          %2560 = vmatprep.mubr.bf16.mxu0 0
          %2561 = vmatmul.mubr.bf16.gmra.mxu0 %v1201
          %v2562 = vpop.f32.mrf.mxu0
          %v2563 = vadd.f32 %v2402, %v2562
          %v2564 = vpop.f32.mrf.mxu0
          %v2565 = vpop.f32.mrf.mxu0
          %v2566 = vadd.f32 %v2405, %v2565
          %v2567 = vpop.f32.mrf.mxu0
          %2568 = vmatprep.mubr.bf16.mxu0 0
          %2569 = vmatmul.mubr.bf16.gmra.mxu0 %v1202
          %v2570 = vpop.f32.mrf.mxu0
          %v2571 = vadd.f32 %v2410, %v2570
          %v2572 = vpop.f32.mrf.mxu0
          %v2573 = vpop.f32.mrf.mxu0
          %v2574 = vadd.f32 %v2413, %v2573
          %v2575 = vpop.f32.mrf.mxu0
          %2576 = vmatprep.mubr.bf16.mxu0 0
          %2577 = vmatmul.mubr.bf16.gmra.mxu0 %v1203
          %v2578 = vpop.f32.mrf.mxu0
          %v2579 = vadd.f32 %v2418, %v2578
          %v2580 = vpop.f32.mrf.mxu0
          %v2581 = vpop.f32.mrf.mxu0
          %v2582 = vadd.f32 %v2421, %v2581
          %v2583 = vpop.f32.mrf.mxu0
          %2584 = vmatprep.mubr.bf16.mxu0 0
          %2585 = vmatmul.mubr.bf16.gmra.mxu0 %v1204
          %v2586 = vpop.f32.mrf.mxu0
          %v2587 = vadd.f32 %v2426, %v2586
          %v2588 = vpop.f32.mrf.mxu0
          %v2589 = vpop.f32.mrf.mxu0
          %v2590 = vadd.f32 %v2429, %v2589
          %v2591 = vpop.f32.mrf.mxu0
          %2592 = vdwg.mxu0
          %v2593 = vmax.f32 %v2467, 0.0
          %v2594 = vmax.f32 %v2470, 0.0
          %v2595 = vmax.f32 %v2475, 0.0
          %v2596 = vmax.f32 %v2478, 0.0
          %v2597 = vmax.f32 %v2483, 0.0
          %v2598 = vmax.f32 %v2486, 0.0
          %v2599 = vmax.f32 %v2491, 0.0
          %v2600 = vmax.f32 %v2494, 0.0
          %v2601 = vmax.f32 %v2499, 0.0
          %v2602 = vmax.f32 %v2502, 0.0
          %v2603 = vmax.f32 %v2507, 0.0
          %v2604 = vmax.f32 %v2510, 0.0
          %v2605 = vmax.f32 %v2515, 0.0
          %v2606 = vmax.f32 %v2518, 0.0
          %v2607 = vmax.f32 %v2523, 0.0
          %v2608 = vmax.f32 %v2526, 0.0
          %v2609 = vmax.f32 %v2531, 0.0
          %v2610 = vmax.f32 %v2534, 0.0
          %v2611 = vmax.f32 %v2539, 0.0
          %v2612 = vmax.f32 %v2542, 0.0
          %v2613 = vmax.f32 %v2547, 0.0
          %v2614 = vmax.f32 %v2550, 0.0
          %v2615 = vmax.f32 %v2555, 0.0
          %v2616 = vmax.f32 %v2558, 0.0
          %v2617 = vmax.f32 %v2563, 0.0
          %v2618 = vmax.f32 %v2566, 0.0
          %v2619 = vmax.f32 %v2571, 0.0
          %v2620 = vmax.f32 %v2574, 0.0
          %v2621 = vmax.f32 %v2579, 0.0
          %v2622 = vmax.f32 %v2582, 0.0
          %v2623 = vmax.f32 %v2587, 0.0
          %v2624 = vmax.f32 %v2590, 0.0
          %2625 = vst [vmem:[#allocation2] sm:$0xff] %v2593
          %2626 = vst [vmem:[#allocation2 + $0x8] sm:$0xff] %v2594
          %2627 = vst [vmem:[#allocation2 + $0x10] sm:$0xff] %v2595
          %2628 = vst [vmem:[#allocation2 + $0x18] sm:$0xff] %v2596
          %2629 = vst [vmem:[#allocation2 + $0x20] sm:$0xff] %v2597
          %2630 = vst [vmem:[#allocation2 + $0x28] sm:$0xff] %v2598
          %2631 = vst [vmem:[#allocation2 + $0x30] sm:$0xff] %v2599
          %2632 = vst [vmem:[#allocation2 + $0x38] sm:$0xff] %v2600
          %2633 = vst [vmem:[#allocation2 + $0x40] sm:$0xff] %v2601
          %2634 = vst [vmem:[#allocation2 + $0x48] sm:$0xff] %v2602
          %2635 = vst [vmem:[#allocation2 + $0x50] sm:$0xff] %v2603
          %2636 = vst [vmem:[#allocation2 + $0x58] sm:$0xff] %v2604
          %2637 = vst [vmem:[#allocation2 + $0x60] sm:$0xff] %v2605
          %2638 = vst [vmem:[#allocation2 + $0x68] sm:$0xff] %v2606
          %2639 = vst [vmem:[#allocation2 + $0x70] sm:$0xff] %v2607
          %2640 = vst [vmem:[#allocation2 + $0x78] sm:$0xff] %v2608
          %2641 = vst [vmem:[#allocation2 + $0x80] sm:$0xff] %v2609
          %2642 = vst [vmem:[#allocation2 + $0x88] sm:$0xff] %v2610
          %2643 = vst [vmem:[#allocation2 + $0x90] sm:$0xff] %v2611
          %2644 = vst [vmem:[#allocation2 + $0x98] sm:$0xff] %v2612
          %2645 = vst [vmem:[#allocation2 + $0xa0] sm:$0xff] %v2613
          %2646 = vst [vmem:[#allocation2 + $0xa8] sm:$0xff] %v2614
          %2647 = vst [vmem:[#allocation2 + $0xb0] sm:$0xff] %v2615
          %2648 = vst [vmem:[#allocation2 + $0xb8] sm:$0xff] %v2616
          %2649 = vst [vmem:[#allocation2 + $0xc0] sm:$0xff] %v2617
          %2650 = vst [vmem:[#allocation2 + $0xc8] sm:$0xff] %v2618
          %2651 = vst [vmem:[#allocation2 + $0xd0] sm:$0xff] %v2619
          %2652 = vst [vmem:[#allocation2 + $0xd8] sm:$0xff] %v2620
          %2653 = vst [vmem:[#allocation2 + $0xe0] sm:$0xff] %v2621
          %2654 = vst [vmem:[#allocation2 + $0xe8] sm:$0xff] %v2622
          %2655 = vst [vmem:[#allocation2 + $0xf0] sm:$0xff] %v2623
          %2656 = vst [vmem:[#allocation2 + $0xf8] sm:$0xff] %v2624
        $region92: #{densenet_forward.1} parent=79 // pred_fallthru
          _
        %v2657 = vld [vmem:[#allocation2] sm:$0xff]
        %v2658 = vld [vmem:[#allocation2 + $0x8] sm:$0xff]
        %v2659 = vld [vmem:[#allocation2 + $0x10] sm:$0xff]
        %v2660 = vld [vmem:[#allocation2 + $0x18] sm:$0xff]
        %v2661 = vld [vmem:[#allocation2 + $0x20] sm:$0xff]
        %v2662 = vld [vmem:[#allocation2 + $0x28] sm:$0xff]
        %v2663 = vld [vmem:[#allocation2 + $0x30] sm:$0xff]
        %v2664 = vld [vmem:[#allocation2 + $0x38] sm:$0xff]
        %v2665 = vld [vmem:[#allocation2 + $0x40] sm:$0xff]
        %v2666 = vld [vmem:[#allocation2 + $0x48] sm:$0xff]
        %v2667 = vld [vmem:[#allocation2 + $0x50] sm:$0xff]
        %v2668 = vld [vmem:[#allocation2 + $0x58] sm:$0xff]
        %v2669 = vld [vmem:[#allocation2 + $0x60] sm:$0xff]
        %v2670 = vld [vmem:[#allocation2 + $0x68] sm:$0xff]
        %v2671 = vld [vmem:[#allocation2 + $0x70] sm:$0xff]
        %v2672 = vld [vmem:[#allocation2 + $0x78] sm:$0xff]
        %v2673 = vld [vmem:[#allocation2 + $0x80] sm:$0xff]
        %v2674 = vld [vmem:[#allocation2 + $0x88] sm:$0xff]
        %v2675 = vld [vmem:[#allocation2 + $0x90] sm:$0xff]
        %v2676 = vld [vmem:[#allocation2 + $0x98] sm:$0xff]
        %v2677 = vld [vmem:[#allocation2 + $0xa0] sm:$0xff]
        %v2678 = vld [vmem:[#allocation2 + $0xa8] sm:$0xff]
        %v2679 = vld [vmem:[#allocation2 + $0xb0] sm:$0xff]
        %v2680 = vld [vmem:[#allocation2 + $0xb8] sm:$0xff]
        %v2681 = vld [vmem:[#allocation2 + $0xc0] sm:$0xff]
        %v2682 = vld [vmem:[#allocation2 + $0xc8] sm:$0xff]
        %v2683 = vld [vmem:[#allocation2 + $0xd0] sm:$0xff]
        %v2684 = vld [vmem:[#allocation2 + $0xd8] sm:$0xff]
        %v2685 = vld [vmem:[#allocation2 + $0xe0] sm:$0xff]
        %v2686 = vld [vmem:[#allocation2 + $0xe8] sm:$0xff]
        %v2687 = vld [vmem:[#allocation2 + $0xf0] sm:$0xff]
        %v2688 = vld [vmem:[#allocation2 + $0xf8] sm:$0xff]
        %v2689 = vld [vmem:[%s629] sm:$0x1]
        %v2691 = vlaneseq
        %v2692 = vshrl.u32 %v2691, 7
        %v2693 = vsub.s32 0, %v2692
        %v2694 = vrot.slane %v2689, %v2693
        %v2696 = vmul.f32 %v2657, %v2694
        %v2697 = vmul.f32 %v2658, %v2694
        %v2698 = vmul.f32 %v2659, %v2694
        %v2699 = vmul.f32 %v2660, %v2694
        %v2700 = vmul.f32 %v2661, %v2694
        %v2701 = vmul.f32 %v2662, %v2694
        %v2702 = vmul.f32 %v2663, %v2694
        %v2703 = vmul.f32 %v2664, %v2694
        %v2704 = vmul.f32 %v2665, %v2694
        %v2705 = vmul.f32 %v2666, %v2694
        %v2706 = vmul.f32 %v2667, %v2694
        %v2707 = vmul.f32 %v2668, %v2694
        %v2708 = vmul.f32 %v2669, %v2694
        %v2709 = vmul.f32 %v2670, %v2694
        %v2710 = vmul.f32 %v2671, %v2694
        %v2711 = vmul.f32 %v2672, %v2694
        %v2712 = vmul.f32 %v2673, %v2694
        %v2713 = vmul.f32 %v2674, %v2694
        %v2714 = vmul.f32 %v2675, %v2694
        %v2715 = vmul.f32 %v2676, %v2694
        %v2716 = vmul.f32 %v2677, %v2694
        %v2717 = vmul.f32 %v2678, %v2694
        %v2718 = vmul.f32 %v2679, %v2694
        %v2719 = vmul.f32 %v2680, %v2694
        %v2720 = vmul.f32 %v2681, %v2694
        %v2721 = vmul.f32 %v2682, %v2694
        %v2722 = vmul.f32 %v2683, %v2694
        %v2723 = vmul.f32 %v2684, %v2694
        %v2724 = vmul.f32 %v2685, %v2694
        %v2725 = vmul.f32 %v2686, %v2694
        %v2726 = vmul.f32 %v2687, %v2694
        %v2727 = vmul.f32 %v2688, %v2694
        %v2728 = vld [vmem:[%s632] sm:$0x1]
        %v2730 = vlaneseq
        %v2731 = vshrl.u32 %v2730, 7
        %v2732 = vsub.s32 0, %v2731
        %v2733 = vrot.slane %v2728, %v2732
        %v2735 = vadd.f32 %v2696, %v2733
        %v2736 = vadd.f32 %v2697, %v2733
        %v2737 = vadd.f32 %v2698, %v2733
        %v2738 = vadd.f32 %v2699, %v2733
        %v2739 = vadd.f32 %v2700, %v2733
        %v2740 = vadd.f32 %v2701, %v2733
        %v2741 = vadd.f32 %v2702, %v2733
        %v2742 = vadd.f32 %v2703, %v2733
        %v2743 = vadd.f32 %v2704, %v2733
        %v2744 = vadd.f32 %v2705, %v2733
        %v2745 = vadd.f32 %v2706, %v2733
        %v2746 = vadd.f32 %v2707, %v2733
        %v2747 = vadd.f32 %v2708, %v2733
        %v2748 = vadd.f32 %v2709, %v2733
        %v2749 = vadd.f32 %v2710, %v2733
        %v2750 = vadd.f32 %v2711, %v2733
        %v2751 = vadd.f32 %v2712, %v2733
        %v2752 = vadd.f32 %v2713, %v2733
        %v2753 = vadd.f32 %v2714, %v2733
        %v2754 = vadd.f32 %v2715, %v2733
        %v2755 = vadd.f32 %v2716, %v2733
        %v2756 = vadd.f32 %v2717, %v2733
        %v2757 = vadd.f32 %v2718, %v2733
        %v2758 = vadd.f32 %v2719, %v2733
        %v2759 = vadd.f32 %v2720, %v2733
        %v2760 = vadd.f32 %v2721, %v2733
        %v2761 = vadd.f32 %v2722, %v2733
        %v2762 = vadd.f32 %v2723, %v2733
        %v2763 = vadd.f32 %v2724, %v2733
        %v2764 = vadd.f32 %v2725, %v2733
        %v2765 = vadd.f32 %v2726, %v2733
        %v2766 = vadd.f32 %v2727, %v2733
        %v2767 = vmax.f32 %v2735, 0.0
        %v2768 = vmax.f32 %v2736, 0.0
        %v2769 = vmax.f32 %v2737, 0.0
        %v2770 = vmax.f32 %v2738, 0.0
        %v2771 = vmax.f32 %v2739, 0.0
        %v2772 = vmax.f32 %v2740, 0.0
        %v2773 = vmax.f32 %v2741, 0.0
        %v2774 = vmax.f32 %v2742, 0.0
        %v2775 = vmax.f32 %v2743, 0.0
        %v2776 = vmax.f32 %v2744, 0.0
        %v2777 = vmax.f32 %v2745, 0.0
        %v2778 = vmax.f32 %v2746, 0.0
        %v2779 = vmax.f32 %v2747, 0.0
        %v2780 = vmax.f32 %v2748, 0.0
        %v2781 = vmax.f32 %v2749, 0.0
        %v2782 = vmax.f32 %v2750, 0.0
        %v2783 = vmax.f32 %v2751, 0.0
        %v2784 = vmax.f32 %v2752, 0.0
        %v2785 = vmax.f32 %v2753, 0.0
        %v2786 = vmax.f32 %v2754, 0.0
        %v2787 = vmax.f32 %v2755, 0.0
        %v2788 = vmax.f32 %v2756, 0.0
        %v2789 = vmax.f32 %v2757, 0.0
        %v2790 = vmax.f32 %v2758, 0.0
        %v2791 = vmax.f32 %v2759, 0.0
        %v2792 = vmax.f32 %v2760, 0.0
        %v2793 = vmax.f32 %v2761, 0.0
        %v2794 = vmax.f32 %v2762, 0.0
        %v2795 = vmax.f32 %v2763, 0.0
        %v2796 = vmax.f32 %v2764, 0.0
        %v2797 = vmax.f32 %v2765, 0.0
        %v2798 = vmax.f32 %v2766, 0.0
        %v2799 = vpack.c.bf16 %v2768, %v2767
        %v2800 = vpack.c.bf16 %v2770, %v2769
        %v2801 = vpack.c.bf16 %v2772, %v2771
        %v2802 = vpack.c.bf16 %v2774, %v2773
        %v2803 = vpack.c.bf16 %v2776, %v2775
        %v2804 = vpack.c.bf16 %v2778, %v2777
        %v2805 = vpack.c.bf16 %v2780, %v2779
        %v2806 = vpack.c.bf16 %v2782, %v2781
        %v2807 = vpack.c.bf16 %v2784, %v2783
        %v2808 = vpack.c.bf16 %v2786, %v2785
        %v2809 = vpack.c.bf16 %v2788, %v2787
        %v2810 = vpack.c.bf16 %v2790, %v2789
        %v2811 = vpack.c.bf16 %v2792, %v2791
        %v2812 = vpack.c.bf16 %v2794, %v2793
        %v2813 = vpack.c.bf16 %v2796, %v2795
        %v2814 = vpack.c.bf16 %v2798, %v2797
        %v2815 = vld [vmem:[%s637] sm:$0xf]
        %v2816 = vld [vmem:[%s637 + $0x4] sm:$0xf]
        %v2817 = vld [vmem:[%s637 + $0x8] sm:$0xf]
        %v2818 = vld [vmem:[%s637 + $0xc] sm:$0xf]
        %v2819 = vld [vmem:[%s637 + $0x10] sm:$0xf]
        %v2820 = vld [vmem:[%s637 + $0x14] sm:$0xf]
        %v2821 = vld [vmem:[%s637 + $0x18] sm:$0xf]
        %v2822 = vld [vmem:[%s637 + $0x1c] sm:$0xf]
        %v2823 = vld [vmem:[%s637 + $0x20] sm:$0xf]
        %v2824 = vld [vmem:[%s637 + $0x24] sm:$0xf]
        %v2825 = vld [vmem:[%s637 + $0x28] sm:$0xf]
        %v2826 = vld [vmem:[%s637 + $0x2c] sm:$0xf]
        %v2827 = vld [vmem:[%s637 + $0x30] sm:$0xf]
        %v2828 = vld [vmem:[%s637 + $0x34] sm:$0xf]
        %v2829 = vld [vmem:[%s637 + $0x38] sm:$0xf]
        %v2830 = vld [vmem:[%s637 + $0x3c] sm:$0xf]
        %v2831 = vld [vmem:[%s640] sm:$0x1]
        %v2833 = vlaneseq
        %v2834 = vshrl.u32 %v2833, 7
        %v2835 = vsub.s32 0, %v2834
        %v2836 = vrot.slane %v2831, %v2835
        %v2854 = vunpack.c.l.b16 %v2815
        %v2855 = vunpack.c.l.b16 %v2816
        %v2856 = vunpack.c.l.b16 %v2817
        %v2857 = vunpack.c.l.b16 %v2818
        %v2858 = vunpack.c.l.b16 %v2819
        %v2859 = vunpack.c.l.b16 %v2820
        %v2860 = vunpack.c.l.b16 %v2821
        %v2861 = vunpack.c.l.b16 %v2822
        %v2862 = vunpack.c.l.b16 %v2823
        %v2863 = vunpack.c.l.b16 %v2824
        %v2864 = vunpack.c.l.b16 %v2825
        %v2865 = vunpack.c.l.b16 %v2826
        %v2866 = vunpack.c.l.b16 %v2827
        %v2867 = vunpack.c.l.b16 %v2828
        %v2868 = vunpack.c.l.b16 %v2829
        %v2869 = vunpack.c.l.b16 %v2830
        %v2870 = vpack.c.b16 %v2855, %v2854
        %v2871 = vpack.c.b16 %v2857, %v2856
        %v2872 = vpack.c.b16 %v2859, %v2858
        %v2873 = vpack.c.b16 %v2861, %v2860
        %v2874 = vpack.c.b16 %v2863, %v2862
        %v2875 = vpack.c.b16 %v2865, %v2864
        %v2876 = vpack.c.b16 %v2867, %v2866
        %v2877 = vpack.c.b16 %v2869, %v2868
        %2886 = vmatprep.subr.bf16.mxu0 0
        %2887 = vmatpush1.bf16.msra.mxu0 %v2877
        %2888 = vmatprep.subr.bf16.mxu0 0
        %2889 = vmatpush1.bf16.msra.mxu0 %v2876
        %2890 = vmatprep.subr.bf16.mxu0 0
        %2891 = vmatpush1.bf16.msra.mxu0 %v2875
        %2892 = vmatprep.subr.bf16.mxu0 0
        %2893 = vmatpush1.bf16.msra.mxu0 %v2874
        %2894 = vmatprep.subr.bf16.mxu0 0
        %2895 = vmatpush1.bf16.msra.mxu0 %v2873
        %2896 = vmatprep.subr.bf16.mxu0 0
        %2897 = vmatpush1.bf16.msra.mxu0 %v2872
        %2898 = vmatprep.subr.bf16.mxu0 0
        %2899 = vmatpush1.bf16.msra.mxu0 %v2871
        %2900 = vmatprep.subr.bf16.mxu0 0
        %2901 = vmatpush1.bf16.msra.mxu0 %v2870
        %2902 = vmatprep.subr.bf16.mxu0 0
        %2903 = vmatpush2.bf16.msra.mxu0 0
        %2904 = vmatprep.subr.bf16.mxu0 0
        %2905 = vmatpush2.bf16.msra.mxu0 0
        %2906 = vmatprep.subr.bf16.mxu0 0
        %2907 = vmatpush2.bf16.msra.mxu0 0
        %2908 = vmatprep.subr.bf16.mxu0 0
        %2909 = vmatpush2.bf16.msra.mxu0 0
        %2910 = vmatprep.subr.bf16.mxu0 0
        %2911 = vmatpush2.bf16.msra.mxu0 0
        %2912 = vmatprep.subr.bf16.mxu0 0
        %2913 = vmatpush2.bf16.msra.mxu0 0
        %2914 = vmatprep.subr.bf16.mxu0 0
        %2915 = vmatpush2.bf16.msra.mxu0 0
        %2916 = vmatprep.subr.bf16.mxu0 0
        %2917 = vmatpush2.bf16.msra.mxu0 0
        %2918 = vmatprep.mubr.bf16.mxu0 0
        %2919 = vmatmul.mubr.bf16.gmra.mxu0 %v2799
        %v2920 = vpop.f32.mrf.mxu0
        %v2921 = vadd.f32 %v2836, %v2920
        %v2922 = vpop.f32.mrf.mxu0
        %v2923 = vpop.f32.mrf.mxu0
        %v2924 = vadd.f32 %v2836, %v2923
        %v2925 = vpop.f32.mrf.mxu0
        %2926 = vmatprep.mubr.bf16.mxu0 0
        %2927 = vmatmul.mubr.bf16.gmra.mxu0 %v2800
        %v2928 = vpop.f32.mrf.mxu0
        %v2929 = vadd.f32 %v2836, %v2928
        %v2930 = vpop.f32.mrf.mxu0
        %v2931 = vpop.f32.mrf.mxu0
        %v2932 = vadd.f32 %v2836, %v2931
        %v2933 = vpop.f32.mrf.mxu0
        %2934 = vmatprep.mubr.bf16.mxu0 0
        %2935 = vmatmul.mubr.bf16.gmra.mxu0 %v2801
        %v2936 = vpop.f32.mrf.mxu0
        %v2937 = vadd.f32 %v2836, %v2936
        %v2938 = vpop.f32.mrf.mxu0
        %v2939 = vpop.f32.mrf.mxu0
        %v2940 = vadd.f32 %v2836, %v2939
        %v2941 = vpop.f32.mrf.mxu0
        %2942 = vmatprep.mubr.bf16.mxu0 0
        %2943 = vmatmul.mubr.bf16.gmra.mxu0 %v2802
        %v2944 = vpop.f32.mrf.mxu0
        %v2945 = vadd.f32 %v2836, %v2944
        %v2946 = vpop.f32.mrf.mxu0
        %v2947 = vpop.f32.mrf.mxu0
        %v2948 = vadd.f32 %v2836, %v2947
        %v2949 = vpop.f32.mrf.mxu0
        %2950 = vmatprep.mubr.bf16.mxu0 0
        %2951 = vmatmul.mubr.bf16.gmra.mxu0 %v2803
        %v2952 = vpop.f32.mrf.mxu0
        %v2953 = vadd.f32 %v2836, %v2952
        %v2954 = vpop.f32.mrf.mxu0
        %v2955 = vpop.f32.mrf.mxu0
        %v2956 = vadd.f32 %v2836, %v2955
        %v2957 = vpop.f32.mrf.mxu0
        %2958 = vmatprep.mubr.bf16.mxu0 0
        %2959 = vmatmul.mubr.bf16.gmra.mxu0 %v2804
        %v2960 = vpop.f32.mrf.mxu0
        %v2961 = vadd.f32 %v2836, %v2960
        %v2962 = vpop.f32.mrf.mxu0
        %v2963 = vpop.f32.mrf.mxu0
        %v2964 = vadd.f32 %v2836, %v2963
        %v2965 = vpop.f32.mrf.mxu0
        %2966 = vmatprep.mubr.bf16.mxu0 0
        %2967 = vmatmul.mubr.bf16.gmra.mxu0 %v2805
        %v2968 = vpop.f32.mrf.mxu0
        %v2969 = vadd.f32 %v2836, %v2968
        %v2970 = vpop.f32.mrf.mxu0
        %v2971 = vpop.f32.mrf.mxu0
        %v2972 = vadd.f32 %v2836, %v2971
        %v2973 = vpop.f32.mrf.mxu0
        %2974 = vmatprep.mubr.bf16.mxu0 0
        %2975 = vmatmul.mubr.bf16.gmra.mxu0 %v2806
        %v2976 = vpop.f32.mrf.mxu0
        %v2977 = vadd.f32 %v2836, %v2976
        %v2978 = vpop.f32.mrf.mxu0
        %v2979 = vpop.f32.mrf.mxu0
        %v2980 = vadd.f32 %v2836, %v2979
        %v2981 = vpop.f32.mrf.mxu0
        %2982 = vmatprep.mubr.bf16.mxu0 0
        %2983 = vmatmul.mubr.bf16.gmra.mxu0 %v2807
        %v2984 = vpop.f32.mrf.mxu0
        %v2985 = vadd.f32 %v2836, %v2984
        %v2986 = vpop.f32.mrf.mxu0
        %v2987 = vpop.f32.mrf.mxu0
        %v2988 = vadd.f32 %v2836, %v2987
        %v2989 = vpop.f32.mrf.mxu0
        %2990 = vmatprep.mubr.bf16.mxu0 0
        %2991 = vmatmul.mubr.bf16.gmra.mxu0 %v2808
        %v2992 = vpop.f32.mrf.mxu0
        %v2993 = vadd.f32 %v2836, %v2992
        %v2994 = vpop.f32.mrf.mxu0
        %v2995 = vpop.f32.mrf.mxu0
        %v2996 = vadd.f32 %v2836, %v2995
        %v2997 = vpop.f32.mrf.mxu0
        %2998 = vmatprep.mubr.bf16.mxu0 0
        %2999 = vmatmul.mubr.bf16.gmra.mxu0 %v2809
        %v3000 = vpop.f32.mrf.mxu0
        %v3001 = vadd.f32 %v2836, %v3000
        %v3002 = vpop.f32.mrf.mxu0
        %v3003 = vpop.f32.mrf.mxu0
        %v3004 = vadd.f32 %v2836, %v3003
        %v3005 = vpop.f32.mrf.mxu0
        %3006 = vmatprep.mubr.bf16.mxu0 0
        %3007 = vmatmul.mubr.bf16.gmra.mxu0 %v2810
        %v3008 = vpop.f32.mrf.mxu0
        %v3009 = vadd.f32 %v2836, %v3008
        %v3010 = vpop.f32.mrf.mxu0
        %v3011 = vpop.f32.mrf.mxu0
        %v3012 = vadd.f32 %v2836, %v3011
        %v3013 = vpop.f32.mrf.mxu0
        %3014 = vmatprep.mubr.bf16.mxu0 0
        %3015 = vmatmul.mubr.bf16.gmra.mxu0 %v2811
        %v3016 = vpop.f32.mrf.mxu0
        %v3017 = vadd.f32 %v2836, %v3016
        %v3018 = vpop.f32.mrf.mxu0
        %v3019 = vpop.f32.mrf.mxu0
        %v3020 = vadd.f32 %v2836, %v3019
        %v3021 = vpop.f32.mrf.mxu0
        %3022 = vmatprep.mubr.bf16.mxu0 0
        %3023 = vmatmul.mubr.bf16.gmra.mxu0 %v2812
        %v3024 = vpop.f32.mrf.mxu0
        %v3025 = vadd.f32 %v2836, %v3024
        %v3026 = vpop.f32.mrf.mxu0
        %v3027 = vpop.f32.mrf.mxu0
        %v3028 = vadd.f32 %v2836, %v3027
        %v3029 = vpop.f32.mrf.mxu0
        %3030 = vmatprep.mubr.bf16.mxu0 0
        %3031 = vmatmul.mubr.bf16.gmra.mxu0 %v2813
        %v3032 = vpop.f32.mrf.mxu0
        %v3033 = vadd.f32 %v2836, %v3032
        %v3034 = vpop.f32.mrf.mxu0
        %v3035 = vpop.f32.mrf.mxu0
        %v3036 = vadd.f32 %v2836, %v3035
        %v3037 = vpop.f32.mrf.mxu0
        %3038 = vmatprep.mubr.bf16.mxu0 0
        %3039 = vmatmul.mubr.bf16.gmra.mxu0 %v2814
        %v3040 = vpop.f32.mrf.mxu0
        %v3041 = vadd.f32 %v2836, %v3040
        %v3042 = vpop.f32.mrf.mxu0
        %v3043 = vpop.f32.mrf.mxu0
        %v3044 = vadd.f32 %v2836, %v3043
        %v3045 = vpop.f32.mrf.mxu0
        %3046 = vdwg.mxu0
        %v3047 = vld [vmem:[%s643] sm:$0x1]
        %v3049 = vlaneseq
        %v3050 = vshrl.u32 %v3049, 7
        %v3051 = vsub.s32 0, %v3050
        %v3052 = vrot.slane %v3047, %v3051
        %v3054 = vmul.f32 %v2921, %v3052
        %v3055 = vmul.f32 %v2924, %v3052
        %v3056 = vmul.f32 %v2929, %v3052
        %v3057 = vmul.f32 %v2932, %v3052
        %v3058 = vmul.f32 %v2937, %v3052
        %v3059 = vmul.f32 %v2940, %v3052
        %v3060 = vmul.f32 %v2945, %v3052
        %v3061 = vmul.f32 %v2948, %v3052
        %v3062 = vmul.f32 %v2953, %v3052
        %v3063 = vmul.f32 %v2956, %v3052
        %v3064 = vmul.f32 %v2961, %v3052
        %v3065 = vmul.f32 %v2964, %v3052
        %v3066 = vmul.f32 %v2969, %v3052
        %v3067 = vmul.f32 %v2972, %v3052
        %v3068 = vmul.f32 %v2977, %v3052
        %v3069 = vmul.f32 %v2980, %v3052
        %v3070 = vmul.f32 %v2985, %v3052
        %v3071 = vmul.f32 %v2988, %v3052
        %v3072 = vmul.f32 %v2993, %v3052
        %v3073 = vmul.f32 %v2996, %v3052
        %v3074 = vmul.f32 %v3001, %v3052
        %v3075 = vmul.f32 %v3004, %v3052
        %v3076 = vmul.f32 %v3009, %v3052
        %v3077 = vmul.f32 %v3012, %v3052
        %v3078 = vmul.f32 %v3017, %v3052
        %v3079 = vmul.f32 %v3020, %v3052
        %v3080 = vmul.f32 %v3025, %v3052
        %v3081 = vmul.f32 %v3028, %v3052
        %v3082 = vmul.f32 %v3033, %v3052
        %v3083 = vmul.f32 %v3036, %v3052
        %v3084 = vmul.f32 %v3041, %v3052
        %v3085 = vmul.f32 %v3044, %v3052
        %v3086 = vld [vmem:[%s646] sm:$0x1]
        %v3088 = vlaneseq
        %v3089 = vshrl.u32 %v3088, 7
        %v3090 = vsub.s32 0, %v3089
        %v3091 = vrot.slane %v3086, %v3090
        %v3093 = vadd.f32 %v3054, %v3091
        %v3094 = vadd.f32 %v3055, %v3091
        %v3095 = vadd.f32 %v3056, %v3091
        %v3096 = vadd.f32 %v3057, %v3091
        %v3097 = vadd.f32 %v3058, %v3091
        %v3098 = vadd.f32 %v3059, %v3091
        %v3099 = vadd.f32 %v3060, %v3091
        %v3100 = vadd.f32 %v3061, %v3091
        %v3101 = vadd.f32 %v3062, %v3091
        %v3102 = vadd.f32 %v3063, %v3091
        %v3103 = vadd.f32 %v3064, %v3091
        %v3104 = vadd.f32 %v3065, %v3091
        %v3105 = vadd.f32 %v3066, %v3091
        %v3106 = vadd.f32 %v3067, %v3091
        %v3107 = vadd.f32 %v3068, %v3091
        %v3108 = vadd.f32 %v3069, %v3091
        %v3109 = vadd.f32 %v3070, %v3091
        %v3110 = vadd.f32 %v3071, %v3091
        %v3111 = vadd.f32 %v3072, %v3091
        %v3112 = vadd.f32 %v3073, %v3091
        %v3113 = vadd.f32 %v3074, %v3091
        %v3114 = vadd.f32 %v3075, %v3091
        %v3115 = vadd.f32 %v3076, %v3091
        %v3116 = vadd.f32 %v3077, %v3091
        %v3117 = vadd.f32 %v3078, %v3091
        %v3118 = vadd.f32 %v3079, %v3091
        %v3119 = vadd.f32 %v3080, %v3091
        %v3120 = vadd.f32 %v3081, %v3091
        %v3121 = vadd.f32 %v3082, %v3091
        %v3122 = vadd.f32 %v3083, %v3091
        %v3123 = vadd.f32 %v3084, %v3091
        %v3124 = vadd.f32 %v3085, %v3091
        %v3125 = vmax.f32 %v3093, 0.0
        %v3126 = vmax.f32 %v3094, 0.0
        %v3127 = vmax.f32 %v3095, 0.0
        %v3128 = vmax.f32 %v3096, 0.0
        %v3129 = vmax.f32 %v3097, 0.0
        %v3130 = vmax.f32 %v3098, 0.0
        %v3131 = vmax.f32 %v3099, 0.0
        %v3132 = vmax.f32 %v3100, 0.0
        %v3133 = vmax.f32 %v3101, 0.0
        %v3134 = vmax.f32 %v3102, 0.0
        %v3135 = vmax.f32 %v3103, 0.0
        %v3136 = vmax.f32 %v3104, 0.0
        %v3137 = vmax.f32 %v3105, 0.0
        %v3138 = vmax.f32 %v3106, 0.0
        %v3139 = vmax.f32 %v3107, 0.0
        %v3140 = vmax.f32 %v3108, 0.0
        %v3141 = vmax.f32 %v3109, 0.0
        %v3142 = vmax.f32 %v3110, 0.0
        %v3143 = vmax.f32 %v3111, 0.0
        %v3144 = vmax.f32 %v3112, 0.0
        %v3145 = vmax.f32 %v3113, 0.0
        %v3146 = vmax.f32 %v3114, 0.0
        %v3147 = vmax.f32 %v3115, 0.0
        %v3148 = vmax.f32 %v3116, 0.0
        %v3149 = vmax.f32 %v3117, 0.0
        %v3150 = vmax.f32 %v3118, 0.0
        %v3151 = vmax.f32 %v3119, 0.0
        %v3152 = vmax.f32 %v3120, 0.0
        %v3153 = vmax.f32 %v3121, 0.0
        %v3154 = vmax.f32 %v3122, 0.0
        %v3155 = vmax.f32 %v3123, 0.0
        %v3156 = vmax.f32 %v3124, 0.0
        %3157 = vst [vmem:[#allocation3] sm:$0xff] 0.0
        %3158 = vst [vmem:[#allocation3 + $0x8] sm:$0xff] 0.0
        %3159 = vst [vmem:[#allocation3 + $0x10] sm:$0x3] 0.0
        %s3160 = scalar_lea.vmem [#allocation3], 408
        %3161 = vst [vmem:[%s3160] sm:$0xff] 0.0
        %3162 = vst [vmem:[%s3160 + $0x8] sm:$0xff] 0.0
        %3163 = vst [vmem:[%s3160 + $0x10] sm:$0x3] 0.0
        %3164 = vst [vmem:[#allocation3] sm:$0x1] 0.0
        %3165 = vst [vmem:[#allocation3 + $0x18] sm:$0x1] 0.0
        %3166 = vst [vmem:[#allocation3 + $0x30] sm:$0x1] 0.0
        %3167 = vst [vmem:[#allocation3 + $0x48] sm:$0x1] 0.0
        %3168 = vst [vmem:[#allocation3 + $0x60] sm:$0x1] 0.0
        %3169 = vst [vmem:[#allocation3 + $0x78] sm:$0x1] 0.0
        %3170 = vst [vmem:[#allocation3 + $0x90] sm:$0x1] 0.0
        %3171 = vst [vmem:[#allocation3 + $0xa8] sm:$0x1] 0.0
        %3172 = vst [vmem:[#allocation3 + $0xc0] sm:$0x1] 0.0
        %3173 = vst [vmem:[#allocation3 + $0xd8] sm:$0x1] 0.0
        %3174 = vst [vmem:[#allocation3 + $0xf0] sm:$0x1] 0.0
        %3175 = vst [vmem:[#allocation3 + $0x108] sm:$0x1] 0.0
        %3176 = vst [vmem:[#allocation3 + $0x120] sm:$0x1] 0.0
        %3177 = vst [vmem:[#allocation3 + $0x138] sm:$0x1] 0.0
        %3178 = vst [vmem:[#allocation3 + $0x150] sm:$0x1] 0.0
        %3179 = vst [vmem:[#allocation3 + $0x168] sm:$0x1] 0.0
        %3180 = vst [vmem:[#allocation3 + $0x180] sm:$0x1] 0.0
        %3181 = vst [vmem:[#allocation3 + $0x198] sm:$0x1] 0.0
        %3182 = vst [vmem:[#allocation3 + $0x11] sm:$0x1] 0.0
        %3183 = vst [vmem:[#allocation3 + $0x29] sm:$0x1] 0.0
        %3184 = vst [vmem:[#allocation3 + $0x41] sm:$0x1] 0.0
        %3185 = vst [vmem:[#allocation3 + $0x59] sm:$0x1] 0.0
        %3186 = vst [vmem:[#allocation3 + $0x71] sm:$0x1] 0.0
        %3187 = vst [vmem:[#allocation3 + $0x89] sm:$0x1] 0.0
        %3188 = vst [vmem:[#allocation3 + $0xa1] sm:$0x1] 0.0
        %3189 = vst [vmem:[#allocation3 + $0xb9] sm:$0x1] 0.0
        %3190 = vst [vmem:[#allocation3 + $0xd1] sm:$0x1] 0.0
        %3191 = vst [vmem:[#allocation3 + $0xe9] sm:$0x1] 0.0
        %3192 = vst [vmem:[#allocation3 + $0x101] sm:$0x1] 0.0
        %3193 = vst [vmem:[#allocation3 + $0x119] sm:$0x1] 0.0
        %3194 = vst [vmem:[#allocation3 + $0x131] sm:$0x1] 0.0
        %3195 = vst [vmem:[#allocation3 + $0x149] sm:$0x1] 0.0
        %3196 = vst [vmem:[#allocation3 + $0x161] sm:$0x1] 0.0
        %3197 = vst [vmem:[#allocation3 + $0x179] sm:$0x1] 0.0
        %3198 = vst [vmem:[#allocation3 + $0x191] sm:$0x1] 0.0
        %3199 = vst [vmem:[#allocation3 + $0x1a9] sm:$0x1] 0.0
        %s3200 = scalar_lea.vmem [#allocation3], 24
        %3201 = vst [vmem:[%s3200 + $0x1] sm:$0xff] %v3125
        %3202 = vst [vmem:[%s3200 + $0x9] sm:$0xff] %v3126
        %3203 = vst [vmem:[%s3200 + $0x19] sm:$0xff] %v3127
        %3204 = vst [vmem:[%s3200 + $0x21] sm:$0xff] %v3128
        %3205 = vst [vmem:[%s3200 + $0x31] sm:$0xff] %v3129
        %3206 = vst [vmem:[%s3200 + $0x39] sm:$0xff] %v3130
        %3207 = vst [vmem:[%s3200 + $0x49] sm:$0xff] %v3131
        %3208 = vst [vmem:[%s3200 + $0x51] sm:$0xff] %v3132
        %3209 = vst [vmem:[%s3200 + $0x61] sm:$0xff] %v3133
        %3210 = vst [vmem:[%s3200 + $0x69] sm:$0xff] %v3134
        %3211 = vst [vmem:[%s3200 + $0x79] sm:$0xff] %v3135
        %3212 = vst [vmem:[%s3200 + $0x81] sm:$0xff] %v3136
        %3213 = vst [vmem:[%s3200 + $0x91] sm:$0xff] %v3137
        %3214 = vst [vmem:[%s3200 + $0x99] sm:$0xff] %v3138
        %3215 = vst [vmem:[%s3200 + $0xa9] sm:$0xff] %v3139
        %3216 = vst [vmem:[%s3200 + $0xb1] sm:$0xff] %v3140
        %3217 = vst [vmem:[%s3200 + $0xc1] sm:$0xff] %v3141
        %3218 = vst [vmem:[%s3200 + $0xc9] sm:$0xff] %v3142
        %3219 = vst [vmem:[%s3200 + $0xd9] sm:$0xff] %v3143
        %3220 = vst [vmem:[%s3200 + $0xe1] sm:$0xff] %v3144
        %3221 = vst [vmem:[%s3200 + $0xf1] sm:$0xff] %v3145
        %3222 = vst [vmem:[%s3200 + $0xf9] sm:$0xff] %v3146
        %3223 = vst [vmem:[%s3200 + $0x109] sm:$0xff] %v3147
        %3224 = vst [vmem:[%s3200 + $0x111] sm:$0xff] %v3148
        %3225 = vst [vmem:[%s3200 + $0x121] sm:$0xff] %v3149
        %3226 = vst [vmem:[%s3200 + $0x129] sm:$0xff] %v3150
        %3227 = vst [vmem:[%s3200 + $0x139] sm:$0xff] %v3151
        %3228 = vst [vmem:[%s3200 + $0x141] sm:$0xff] %v3152
        %3229 = vst [vmem:[%s3200 + $0x151] sm:$0xff] %v3153
        %3230 = vst [vmem:[%s3200 + $0x159] sm:$0xff] %v3154
        %3231 = vst [vmem:[%s3200 + $0x169] sm:$0xff] %v3155
        %3232 = vst [vmem:[%s3200 + $0x171] sm:$0xff] %v3156
        %v3233 = vld [vmem:[#allocation3] sm:$0xff]
        %v3234 = vld [vmem:[#allocation3 + $0x8] sm:$0xff]
        %v3235 = vld [vmem:[#allocation3 + $0x18] sm:$0xff]
        %v3236 = vld [vmem:[#allocation3 + $0x20] sm:$0xff]
        %v3237 = vld [vmem:[#allocation3 + $0x30] sm:$0xff]
        %v3238 = vld [vmem:[#allocation3 + $0x38] sm:$0xff]
        %v3239 = vld [vmem:[#allocation3 + $0x48] sm:$0xff]
        %v3240 = vld [vmem:[#allocation3 + $0x50] sm:$0xff]
        %v3241 = vld [vmem:[#allocation3 + $0x60] sm:$0xff]
        %v3242 = vld [vmem:[#allocation3 + $0x68] sm:$0xff]
        %v3243 = vld [vmem:[#allocation3 + $0x78] sm:$0xff]
        %v3244 = vld [vmem:[#allocation3 + $0x80] sm:$0xff]
        %v3245 = vld [vmem:[#allocation3 + $0x90] sm:$0xff]
        %v3246 = vld [vmem:[#allocation3 + $0x98] sm:$0xff]
        %v3247 = vld [vmem:[#allocation3 + $0xa8] sm:$0xff]
        %v3248 = vld [vmem:[#allocation3 + $0xb0] sm:$0xff]
        %v3249 = vld [vmem:[#allocation3 + $0xc0] sm:$0xff]
        %v3250 = vld [vmem:[#allocation3 + $0xc8] sm:$0xff]
        %v3251 = vld [vmem:[#allocation3 + $0xd8] sm:$0xff]
        %v3252 = vld [vmem:[#allocation3 + $0xe0] sm:$0xff]
        %v3253 = vld [vmem:[#allocation3 + $0xf0] sm:$0xff]
        %v3254 = vld [vmem:[#allocation3 + $0xf8] sm:$0xff]
        %v3255 = vld [vmem:[#allocation3 + $0x108] sm:$0xff]
        %v3256 = vld [vmem:[#allocation3 + $0x110] sm:$0xff]
        %v3257 = vld [vmem:[#allocation3 + $0x120] sm:$0xff]
        %v3258 = vld [vmem:[#allocation3 + $0x128] sm:$0xff]
        %v3259 = vld [vmem:[#allocation3 + $0x138] sm:$0xff]
        %v3260 = vld [vmem:[#allocation3 + $0x140] sm:$0xff]
        %v3261 = vld [vmem:[#allocation3 + $0x150] sm:$0xff]
        %v3262 = vld [vmem:[#allocation3 + $0x158] sm:$0xff]
        %v3263 = vld [vmem:[#allocation3 + $0x168] sm:$0xff]
        %v3264 = vld [vmem:[#allocation3 + $0x170] sm:$0xff]
        %v3265 = vpack.c.bf16 %v3234, %v3233
        %v3266 = vpack.c.bf16 %v3236, %v3235
        %v3267 = vpack.c.bf16 %v3238, %v3237
        %v3268 = vpack.c.bf16 %v3240, %v3239
        %v3269 = vpack.c.bf16 %v3242, %v3241
        %v3270 = vpack.c.bf16 %v3244, %v3243
        %v3271 = vpack.c.bf16 %v3246, %v3245
        %v3272 = vpack.c.bf16 %v3248, %v3247
        %v3273 = vpack.c.bf16 %v3250, %v3249
        %v3274 = vpack.c.bf16 %v3252, %v3251
        %v3275 = vpack.c.bf16 %v3254, %v3253
        %v3276 = vpack.c.bf16 %v3256, %v3255
        %v3277 = vpack.c.bf16 %v3258, %v3257
        %v3278 = vpack.c.bf16 %v3260, %v3259
        %v3279 = vpack.c.bf16 %v3262, %v3261
        %v3280 = vpack.c.bf16 %v3264, %v3263
        %v3281 = vld [vmem:[#allocation3 + $0x1] sm:$0xff]
        %v3282 = vld [vmem:[#allocation3 + $0x9] sm:$0xff]
        %v3283 = vld [vmem:[#allocation3 + $0x19] sm:$0xff]
        %v3284 = vld [vmem:[#allocation3 + $0x21] sm:$0xff]
        %v3285 = vld [vmem:[#allocation3 + $0x31] sm:$0xff]
        %v3286 = vld [vmem:[#allocation3 + $0x39] sm:$0xff]
        %v3287 = vld [vmem:[#allocation3 + $0x49] sm:$0xff]
        %v3288 = vld [vmem:[#allocation3 + $0x51] sm:$0xff]
        %v3289 = vld [vmem:[#allocation3 + $0x61] sm:$0xff]
        %v3290 = vld [vmem:[#allocation3 + $0x69] sm:$0xff]
        %v3291 = vld [vmem:[#allocation3 + $0x79] sm:$0xff]
        %v3292 = vld [vmem:[#allocation3 + $0x81] sm:$0xff]
        %v3293 = vld [vmem:[#allocation3 + $0x91] sm:$0xff]
        %v3294 = vld [vmem:[#allocation3 + $0x99] sm:$0xff]
        %v3295 = vld [vmem:[#allocation3 + $0xa9] sm:$0xff]
        %v3296 = vld [vmem:[#allocation3 + $0xb1] sm:$0xff]
        %v3297 = vld [vmem:[#allocation3 + $0xc1] sm:$0xff]
        %v3298 = vld [vmem:[#allocation3 + $0xc9] sm:$0xff]
        %v3299 = vld [vmem:[#allocation3 + $0xd9] sm:$0xff]
        %v3300 = vld [vmem:[#allocation3 + $0xe1] sm:$0xff]
        %v3301 = vld [vmem:[#allocation3 + $0xf1] sm:$0xff]
        %v3302 = vld [vmem:[#allocation3 + $0xf9] sm:$0xff]
        %v3303 = vld [vmem:[#allocation3 + $0x109] sm:$0xff]
        %v3304 = vld [vmem:[#allocation3 + $0x111] sm:$0xff]
        %v3305 = vld [vmem:[#allocation3 + $0x121] sm:$0xff]
        %v3306 = vld [vmem:[#allocation3 + $0x129] sm:$0xff]
        %v3307 = vld [vmem:[#allocation3 + $0x139] sm:$0xff]
        %v3308 = vld [vmem:[#allocation3 + $0x141] sm:$0xff]
        %v3309 = vld [vmem:[#allocation3 + $0x151] sm:$0xff]
        %v3310 = vld [vmem:[#allocation3 + $0x159] sm:$0xff]
        %v3311 = vld [vmem:[#allocation3 + $0x169] sm:$0xff]
        %v3312 = vld [vmem:[#allocation3 + $0x171] sm:$0xff]
        %v3313 = vpack.c.bf16 %v3282, %v3281
        %v3314 = vpack.c.bf16 %v3284, %v3283
        %v3315 = vpack.c.bf16 %v3286, %v3285
        %v3316 = vpack.c.bf16 %v3288, %v3287
        %v3317 = vpack.c.bf16 %v3290, %v3289
        %v3318 = vpack.c.bf16 %v3292, %v3291
        %v3319 = vpack.c.bf16 %v3294, %v3293
        %v3320 = vpack.c.bf16 %v3296, %v3295
        %v3321 = vpack.c.bf16 %v3298, %v3297
        %v3322 = vpack.c.bf16 %v3300, %v3299
        %v3323 = vpack.c.bf16 %v3302, %v3301
        %v3324 = vpack.c.bf16 %v3304, %v3303
        %v3325 = vpack.c.bf16 %v3306, %v3305
        %v3326 = vpack.c.bf16 %v3308, %v3307
        %v3327 = vpack.c.bf16 %v3310, %v3309
        %v3328 = vpack.c.bf16 %v3312, %v3311
        %v3329 = vld [vmem:[#allocation3 + $0x2] sm:$0xff]
        %v3330 = vld [vmem:[#allocation3 + $0xa] sm:$0xff]
        %v3331 = vld [vmem:[#allocation3 + $0x1a] sm:$0xff]
        %v3332 = vld [vmem:[#allocation3 + $0x22] sm:$0xff]
        %v3333 = vld [vmem:[#allocation3 + $0x32] sm:$0xff]
        %v3334 = vld [vmem:[#allocation3 + $0x3a] sm:$0xff]
        %v3335 = vld [vmem:[#allocation3 + $0x4a] sm:$0xff]
        %v3336 = vld [vmem:[#allocation3 + $0x52] sm:$0xff]
        %v3337 = vld [vmem:[#allocation3 + $0x62] sm:$0xff]
        %v3338 = vld [vmem:[#allocation3 + $0x6a] sm:$0xff]
        %v3339 = vld [vmem:[#allocation3 + $0x7a] sm:$0xff]
        %v3340 = vld [vmem:[#allocation3 + $0x82] sm:$0xff]
        %v3341 = vld [vmem:[#allocation3 + $0x92] sm:$0xff]
        %v3342 = vld [vmem:[#allocation3 + $0x9a] sm:$0xff]
        %v3343 = vld [vmem:[#allocation3 + $0xaa] sm:$0xff]
        %v3344 = vld [vmem:[#allocation3 + $0xb2] sm:$0xff]
        %v3345 = vld [vmem:[#allocation3 + $0xc2] sm:$0xff]
        %v3346 = vld [vmem:[#allocation3 + $0xca] sm:$0xff]
        %v3347 = vld [vmem:[#allocation3 + $0xda] sm:$0xff]
        %v3348 = vld [vmem:[#allocation3 + $0xe2] sm:$0xff]
        %v3349 = vld [vmem:[#allocation3 + $0xf2] sm:$0xff]
        %v3350 = vld [vmem:[#allocation3 + $0xfa] sm:$0xff]
        %v3351 = vld [vmem:[#allocation3 + $0x10a] sm:$0xff]
        %v3352 = vld [vmem:[#allocation3 + $0x112] sm:$0xff]
        %v3353 = vld [vmem:[#allocation3 + $0x122] sm:$0xff]
        %v3354 = vld [vmem:[#allocation3 + $0x12a] sm:$0xff]
        %v3355 = vld [vmem:[#allocation3 + $0x13a] sm:$0xff]
        %v3356 = vld [vmem:[#allocation3 + $0x142] sm:$0xff]
        %v3357 = vld [vmem:[#allocation3 + $0x152] sm:$0xff]
        %v3358 = vld [vmem:[#allocation3 + $0x15a] sm:$0xff]
        %v3359 = vld [vmem:[#allocation3 + $0x16a] sm:$0xff]
        %v3360 = vld [vmem:[#allocation3 + $0x172] sm:$0xff]
        %v3361 = vpack.c.bf16 %v3330, %v3329
        %v3362 = vpack.c.bf16 %v3332, %v3331
        %v3363 = vpack.c.bf16 %v3334, %v3333
        %v3364 = vpack.c.bf16 %v3336, %v3335
        %v3365 = vpack.c.bf16 %v3338, %v3337
        %v3366 = vpack.c.bf16 %v3340, %v3339
        %v3367 = vpack.c.bf16 %v3342, %v3341
        %v3368 = vpack.c.bf16 %v3344, %v3343
        %v3369 = vpack.c.bf16 %v3346, %v3345
        %v3370 = vpack.c.bf16 %v3348, %v3347
        %v3371 = vpack.c.bf16 %v3350, %v3349
        %v3372 = vpack.c.bf16 %v3352, %v3351
        %v3373 = vpack.c.bf16 %v3354, %v3353
        %v3374 = vpack.c.bf16 %v3356, %v3355
        %v3375 = vpack.c.bf16 %v3358, %v3357
        %v3376 = vpack.c.bf16 %v3360, %v3359
        %v3377 = vld [vmem:[%s3200] sm:$0xff]
        %v3378 = vld [vmem:[%s3200 + $0x8] sm:$0xff]
        %v3379 = vld [vmem:[%s3200 + $0x18] sm:$0xff]
        %v3380 = vld [vmem:[%s3200 + $0x20] sm:$0xff]
        %v3381 = vld [vmem:[%s3200 + $0x30] sm:$0xff]
        %v3382 = vld [vmem:[%s3200 + $0x38] sm:$0xff]
        %v3383 = vld [vmem:[%s3200 + $0x48] sm:$0xff]
        %v3384 = vld [vmem:[%s3200 + $0x50] sm:$0xff]
        %v3385 = vld [vmem:[%s3200 + $0x60] sm:$0xff]
        %v3386 = vld [vmem:[%s3200 + $0x68] sm:$0xff]
        %v3387 = vld [vmem:[%s3200 + $0x78] sm:$0xff]
        %v3388 = vld [vmem:[%s3200 + $0x80] sm:$0xff]
        %v3389 = vld [vmem:[%s3200 + $0x90] sm:$0xff]
        %v3390 = vld [vmem:[%s3200 + $0x98] sm:$0xff]
        %v3391 = vld [vmem:[%s3200 + $0xa8] sm:$0xff]
        %v3392 = vld [vmem:[%s3200 + $0xb0] sm:$0xff]
        %v3393 = vld [vmem:[%s3200 + $0xc0] sm:$0xff]
        %v3394 = vld [vmem:[%s3200 + $0xc8] sm:$0xff]
        %v3395 = vld [vmem:[%s3200 + $0xd8] sm:$0xff]
        %v3396 = vld [vmem:[%s3200 + $0xe0] sm:$0xff]
        %v3397 = vld [vmem:[%s3200 + $0xf0] sm:$0xff]
        %v3398 = vld [vmem:[%s3200 + $0xf8] sm:$0xff]
        %v3399 = vld [vmem:[%s3200 + $0x108] sm:$0xff]
        %v3400 = vld [vmem:[%s3200 + $0x110] sm:$0xff]
        %v3401 = vld [vmem:[%s3200 + $0x120] sm:$0xff]
        %v3402 = vld [vmem:[%s3200 + $0x128] sm:$0xff]
        %v3403 = vld [vmem:[%s3200 + $0x138] sm:$0xff]
        %v3404 = vld [vmem:[%s3200 + $0x140] sm:$0xff]
        %v3405 = vld [vmem:[%s3200 + $0x150] sm:$0xff]
        %v3406 = vld [vmem:[%s3200 + $0x158] sm:$0xff]
        %v3407 = vld [vmem:[%s3200 + $0x168] sm:$0xff]
        %v3408 = vld [vmem:[%s3200 + $0x170] sm:$0xff]
        %v3409 = vpack.c.bf16 %v3378, %v3377
        %v3410 = vpack.c.bf16 %v3380, %v3379
        %v3411 = vpack.c.bf16 %v3382, %v3381
        %v3412 = vpack.c.bf16 %v3384, %v3383
        %v3413 = vpack.c.bf16 %v3386, %v3385
        %v3414 = vpack.c.bf16 %v3388, %v3387
        %v3415 = vpack.c.bf16 %v3390, %v3389
        %v3416 = vpack.c.bf16 %v3392, %v3391
        %v3417 = vpack.c.bf16 %v3394, %v3393
        %v3418 = vpack.c.bf16 %v3396, %v3395
        %v3419 = vpack.c.bf16 %v3398, %v3397
        %v3420 = vpack.c.bf16 %v3400, %v3399
        %v3421 = vpack.c.bf16 %v3402, %v3401
        %v3422 = vpack.c.bf16 %v3404, %v3403
        %v3423 = vpack.c.bf16 %v3406, %v3405
        %v3424 = vpack.c.bf16 %v3408, %v3407
        %v3425 = vld [vmem:[%s3200 + $0x1] sm:$0xff]
        %v3426 = vld [vmem:[%s3200 + $0x9] sm:$0xff]
        %v3427 = vld [vmem:[%s3200 + $0x19] sm:$0xff]
        %v3428 = vld [vmem:[%s3200 + $0x21] sm:$0xff]
        %v3429 = vld [vmem:[%s3200 + $0x31] sm:$0xff]
        %v3430 = vld [vmem:[%s3200 + $0x39] sm:$0xff]
        %v3431 = vld [vmem:[%s3200 + $0x49] sm:$0xff]
        %v3432 = vld [vmem:[%s3200 + $0x51] sm:$0xff]
        %v3433 = vld [vmem:[%s3200 + $0x61] sm:$0xff]
        %v3434 = vld [vmem:[%s3200 + $0x69] sm:$0xff]
        %v3435 = vld [vmem:[%s3200 + $0x79] sm:$0xff]
        %v3436 = vld [vmem:[%s3200 + $0x81] sm:$0xff]
        %v3437 = vld [vmem:[%s3200 + $0x91] sm:$0xff]
        %v3438 = vld [vmem:[%s3200 + $0x99] sm:$0xff]
        %v3439 = vld [vmem:[%s3200 + $0xa9] sm:$0xff]
        %v3440 = vld [vmem:[%s3200 + $0xb1] sm:$0xff]
        %v3441 = vld [vmem:[%s3200 + $0xc1] sm:$0xff]
        %v3442 = vld [vmem:[%s3200 + $0xc9] sm:$0xff]
        %v3443 = vld [vmem:[%s3200 + $0xd9] sm:$0xff]
        %v3444 = vld [vmem:[%s3200 + $0xe1] sm:$0xff]
        %v3445 = vld [vmem:[%s3200 + $0xf1] sm:$0xff]
        %v3446 = vld [vmem:[%s3200 + $0xf9] sm:$0xff]
        %v3447 = vld [vmem:[%s3200 + $0x109] sm:$0xff]
        %v3448 = vld [vmem:[%s3200 + $0x111] sm:$0xff]
        %v3449 = vld [vmem:[%s3200 + $0x121] sm:$0xff]
        %v3450 = vld [vmem:[%s3200 + $0x129] sm:$0xff]
        %v3451 = vld [vmem:[%s3200 + $0x139] sm:$0xff]
        %v3452 = vld [vmem:[%s3200 + $0x141] sm:$0xff]
        %v3453 = vld [vmem:[%s3200 + $0x151] sm:$0xff]
        %v3454 = vld [vmem:[%s3200 + $0x159] sm:$0xff]
        %v3455 = vld [vmem:[%s3200 + $0x169] sm:$0xff]
        %v3456 = vld [vmem:[%s3200 + $0x171] sm:$0xff]
        %v3457 = vpack.c.bf16 %v3426, %v3425
        %v3458 = vpack.c.bf16 %v3428, %v3427
        %v3459 = vpack.c.bf16 %v3430, %v3429
        %v3460 = vpack.c.bf16 %v3432, %v3431
        %v3461 = vpack.c.bf16 %v3434, %v3433
        %v3462 = vpack.c.bf16 %v3436, %v3435
        %v3463 = vpack.c.bf16 %v3438, %v3437
        %v3464 = vpack.c.bf16 %v3440, %v3439
        %v3465 = vpack.c.bf16 %v3442, %v3441
        %v3466 = vpack.c.bf16 %v3444, %v3443
        %v3467 = vpack.c.bf16 %v3446, %v3445
        %v3468 = vpack.c.bf16 %v3448, %v3447
        %v3469 = vpack.c.bf16 %v3450, %v3449
        %v3470 = vpack.c.bf16 %v3452, %v3451
        %v3471 = vpack.c.bf16 %v3454, %v3453
        %v3472 = vpack.c.bf16 %v3456, %v3455
        %v3473 = vld [vmem:[%s3200 + $0x2] sm:$0xff]
        %v3474 = vld [vmem:[%s3200 + $0xa] sm:$0xff]
        %v3475 = vld [vmem:[%s3200 + $0x1a] sm:$0xff]
        %v3476 = vld [vmem:[%s3200 + $0x22] sm:$0xff]
        %v3477 = vld [vmem:[%s3200 + $0x32] sm:$0xff]
        %v3478 = vld [vmem:[%s3200 + $0x3a] sm:$0xff]
        %v3479 = vld [vmem:[%s3200 + $0x4a] sm:$0xff]
        %v3480 = vld [vmem:[%s3200 + $0x52] sm:$0xff]
        %v3481 = vld [vmem:[%s3200 + $0x62] sm:$0xff]
        %v3482 = vld [vmem:[%s3200 + $0x6a] sm:$0xff]
        %v3483 = vld [vmem:[%s3200 + $0x7a] sm:$0xff]
        %v3484 = vld [vmem:[%s3200 + $0x82] sm:$0xff]
        %v3485 = vld [vmem:[%s3200 + $0x92] sm:$0xff]
        %v3486 = vld [vmem:[%s3200 + $0x9a] sm:$0xff]
        %v3487 = vld [vmem:[%s3200 + $0xaa] sm:$0xff]
        %v3488 = vld [vmem:[%s3200 + $0xb2] sm:$0xff]
        %v3489 = vld [vmem:[%s3200 + $0xc2] sm:$0xff]
        %v3490 = vld [vmem:[%s3200 + $0xca] sm:$0xff]
        %v3491 = vld [vmem:[%s3200 + $0xda] sm:$0xff]
        %v3492 = vld [vmem:[%s3200 + $0xe2] sm:$0xff]
        %v3493 = vld [vmem:[%s3200 + $0xf2] sm:$0xff]
        %v3494 = vld [vmem:[%s3200 + $0xfa] sm:$0xff]
        %v3495 = vld [vmem:[%s3200 + $0x10a] sm:$0xff]
        %v3496 = vld [vmem:[%s3200 + $0x112] sm:$0xff]
        %v3497 = vld [vmem:[%s3200 + $0x122] sm:$0xff]
        %v3498 = vld [vmem:[%s3200 + $0x12a] sm:$0xff]
        %v3499 = vld [vmem:[%s3200 + $0x13a] sm:$0xff]
        %v3500 = vld [vmem:[%s3200 + $0x142] sm:$0xff]
        %v3501 = vld [vmem:[%s3200 + $0x152] sm:$0xff]
        %v3502 = vld [vmem:[%s3200 + $0x15a] sm:$0xff]
        %v3503 = vld [vmem:[%s3200 + $0x16a] sm:$0xff]
        %v3504 = vld [vmem:[%s3200 + $0x172] sm:$0xff]
        %v3505 = vpack.c.bf16 %v3474, %v3473
        %v3506 = vpack.c.bf16 %v3476, %v3475
        %v3507 = vpack.c.bf16 %v3478, %v3477
        %v3508 = vpack.c.bf16 %v3480, %v3479
        %v3509 = vpack.c.bf16 %v3482, %v3481
        %v3510 = vpack.c.bf16 %v3484, %v3483
        %v3511 = vpack.c.bf16 %v3486, %v3485
        %v3512 = vpack.c.bf16 %v3488, %v3487
        %v3513 = vpack.c.bf16 %v3490, %v3489
        %v3514 = vpack.c.bf16 %v3492, %v3491
        %v3515 = vpack.c.bf16 %v3494, %v3493
        %v3516 = vpack.c.bf16 %v3496, %v3495
        %v3517 = vpack.c.bf16 %v3498, %v3497
        %v3518 = vpack.c.bf16 %v3500, %v3499
        %v3519 = vpack.c.bf16 %v3502, %v3501
        %v3520 = vpack.c.bf16 %v3504, %v3503
        %s3521 = scalar_lea.vmem [#allocation3], 48
        %v3522 = vld [vmem:[%s3521] sm:$0xff]
        %v3523 = vld [vmem:[%s3521 + $0x8] sm:$0xff]
        %v3524 = vld [vmem:[%s3521 + $0x18] sm:$0xff]
        %v3525 = vld [vmem:[%s3521 + $0x20] sm:$0xff]
        %v3526 = vld [vmem:[%s3521 + $0x30] sm:$0xff]
        %v3527 = vld [vmem:[%s3521 + $0x38] sm:$0xff]
        %v3528 = vld [vmem:[%s3521 + $0x48] sm:$0xff]
        %v3529 = vld [vmem:[%s3521 + $0x50] sm:$0xff]
        %v3530 = vld [vmem:[%s3521 + $0x60] sm:$0xff]
        %v3531 = vld [vmem:[%s3521 + $0x68] sm:$0xff]
        %v3532 = vld [vmem:[%s3521 + $0x78] sm:$0xff]
        %v3533 = vld [vmem:[%s3521 + $0x80] sm:$0xff]
        %v3534 = vld [vmem:[%s3521 + $0x90] sm:$0xff]
        %v3535 = vld [vmem:[%s3521 + $0x98] sm:$0xff]
        %v3536 = vld [vmem:[%s3521 + $0xa8] sm:$0xff]
        %v3537 = vld [vmem:[%s3521 + $0xb0] sm:$0xff]
        %v3538 = vld [vmem:[%s3521 + $0xc0] sm:$0xff]
        %v3539 = vld [vmem:[%s3521 + $0xc8] sm:$0xff]
        %v3540 = vld [vmem:[%s3521 + $0xd8] sm:$0xff]
        %v3541 = vld [vmem:[%s3521 + $0xe0] sm:$0xff]
        %v3542 = vld [vmem:[%s3521 + $0xf0] sm:$0xff]
        %v3543 = vld [vmem:[%s3521 + $0xf8] sm:$0xff]
        %v3544 = vld [vmem:[%s3521 + $0x108] sm:$0xff]
        %v3545 = vld [vmem:[%s3521 + $0x110] sm:$0xff]
        %v3546 = vld [vmem:[%s3521 + $0x120] sm:$0xff]
        %v3547 = vld [vmem:[%s3521 + $0x128] sm:$0xff]
        %v3548 = vld [vmem:[%s3521 + $0x138] sm:$0xff]
        %v3549 = vld [vmem:[%s3521 + $0x140] sm:$0xff]
        %v3550 = vld [vmem:[%s3521 + $0x150] sm:$0xff]
        %v3551 = vld [vmem:[%s3521 + $0x158] sm:$0xff]
        %v3552 = vld [vmem:[%s3521 + $0x168] sm:$0xff]
        %v3553 = vld [vmem:[%s3521 + $0x170] sm:$0xff]
        %v3554 = vpack.c.bf16 %v3523, %v3522
        %v3555 = vpack.c.bf16 %v3525, %v3524
        %v3556 = vpack.c.bf16 %v3527, %v3526
        %v3557 = vpack.c.bf16 %v3529, %v3528
        %v3558 = vpack.c.bf16 %v3531, %v3530
        %v3559 = vpack.c.bf16 %v3533, %v3532
        %v3560 = vpack.c.bf16 %v3535, %v3534
        %v3561 = vpack.c.bf16 %v3537, %v3536
        %v3562 = vpack.c.bf16 %v3539, %v3538
        %v3563 = vpack.c.bf16 %v3541, %v3540
        %v3564 = vpack.c.bf16 %v3543, %v3542
        %v3565 = vpack.c.bf16 %v3545, %v3544
        %v3566 = vpack.c.bf16 %v3547, %v3546
        %v3567 = vpack.c.bf16 %v3549, %v3548
        %v3568 = vpack.c.bf16 %v3551, %v3550
        %v3569 = vpack.c.bf16 %v3553, %v3552
        %v3570 = vld [vmem:[%s3521 + $0x1] sm:$0xff]
        %v3571 = vld [vmem:[%s3521 + $0x9] sm:$0xff]
        %v3572 = vld [vmem:[%s3521 + $0x19] sm:$0xff]
        %v3573 = vld [vmem:[%s3521 + $0x21] sm:$0xff]
        %v3574 = vld [vmem:[%s3521 + $0x31] sm:$0xff]
        %v3575 = vld [vmem:[%s3521 + $0x39] sm:$0xff]
        %v3576 = vld [vmem:[%s3521 + $0x49] sm:$0xff]
        %v3577 = vld [vmem:[%s3521 + $0x51] sm:$0xff]
        %v3578 = vld [vmem:[%s3521 + $0x61] sm:$0xff]
        %v3579 = vld [vmem:[%s3521 + $0x69] sm:$0xff]
        %v3580 = vld [vmem:[%s3521 + $0x79] sm:$0xff]
        %v3581 = vld [vmem:[%s3521 + $0x81] sm:$0xff]
        %v3582 = vld [vmem:[%s3521 + $0x91] sm:$0xff]
        %v3583 = vld [vmem:[%s3521 + $0x99] sm:$0xff]
        %v3584 = vld [vmem:[%s3521 + $0xa9] sm:$0xff]
        %v3585 = vld [vmem:[%s3521 + $0xb1] sm:$0xff]
        %v3586 = vld [vmem:[%s3521 + $0xc1] sm:$0xff]
        %v3587 = vld [vmem:[%s3521 + $0xc9] sm:$0xff]
        %v3588 = vld [vmem:[%s3521 + $0xd9] sm:$0xff]
        %v3589 = vld [vmem:[%s3521 + $0xe1] sm:$0xff]
        %v3590 = vld [vmem:[%s3521 + $0xf1] sm:$0xff]
        %v3591 = vld [vmem:[%s3521 + $0xf9] sm:$0xff]
        %v3592 = vld [vmem:[%s3521 + $0x109] sm:$0xff]
        %v3593 = vld [vmem:[%s3521 + $0x111] sm:$0xff]
        %v3594 = vld [vmem:[%s3521 + $0x121] sm:$0xff]
        %v3595 = vld [vmem:[%s3521 + $0x129] sm:$0xff]
        %v3596 = vld [vmem:[%s3521 + $0x139] sm:$0xff]
        %v3597 = vld [vmem:[%s3521 + $0x141] sm:$0xff]
        %v3598 = vld [vmem:[%s3521 + $0x151] sm:$0xff]
        %v3599 = vld [vmem:[%s3521 + $0x159] sm:$0xff]
        %v3600 = vld [vmem:[%s3521 + $0x169] sm:$0xff]
        %v3601 = vld [vmem:[%s3521 + $0x171] sm:$0xff]
        %v3602 = vpack.c.bf16 %v3571, %v3570
        %v3603 = vpack.c.bf16 %v3573, %v3572
        %v3604 = vpack.c.bf16 %v3575, %v3574
        %v3605 = vpack.c.bf16 %v3577, %v3576
        %v3606 = vpack.c.bf16 %v3579, %v3578
        %v3607 = vpack.c.bf16 %v3581, %v3580
        %v3608 = vpack.c.bf16 %v3583, %v3582
        %v3609 = vpack.c.bf16 %v3585, %v3584
        %v3610 = vpack.c.bf16 %v3587, %v3586
        %v3611 = vpack.c.bf16 %v3589, %v3588
        %v3612 = vpack.c.bf16 %v3591, %v3590
        %v3613 = vpack.c.bf16 %v3593, %v3592
        %v3614 = vpack.c.bf16 %v3595, %v3594
        %v3615 = vpack.c.bf16 %v3597, %v3596
        %v3616 = vpack.c.bf16 %v3599, %v3598
        %v3617 = vpack.c.bf16 %v3601, %v3600
        %v3618 = vld [vmem:[%s3521 + $0x2] sm:$0xff]
        %v3619 = vld [vmem:[%s3521 + $0xa] sm:$0xff]
        %v3620 = vld [vmem:[%s3521 + $0x1a] sm:$0xff]
        %v3621 = vld [vmem:[%s3521 + $0x22] sm:$0xff]
        %v3622 = vld [vmem:[%s3521 + $0x32] sm:$0xff]
        %v3623 = vld [vmem:[%s3521 + $0x3a] sm:$0xff]
        %v3624 = vld [vmem:[%s3521 + $0x4a] sm:$0xff]
        %v3625 = vld [vmem:[%s3521 + $0x52] sm:$0xff]
        %v3626 = vld [vmem:[%s3521 + $0x62] sm:$0xff]
        %v3627 = vld [vmem:[%s3521 + $0x6a] sm:$0xff]
        %v3628 = vld [vmem:[%s3521 + $0x7a] sm:$0xff]
        %v3629 = vld [vmem:[%s3521 + $0x82] sm:$0xff]
        %v3630 = vld [vmem:[%s3521 + $0x92] sm:$0xff]
        %v3631 = vld [vmem:[%s3521 + $0x9a] sm:$0xff]
        %v3632 = vld [vmem:[%s3521 + $0xaa] sm:$0xff]
        %v3633 = vld [vmem:[%s3521 + $0xb2] sm:$0xff]
        %v3634 = vld [vmem:[%s3521 + $0xc2] sm:$0xff]
        %v3635 = vld [vmem:[%s3521 + $0xca] sm:$0xff]
        %v3636 = vld [vmem:[%s3521 + $0xda] sm:$0xff]
        %v3637 = vld [vmem:[%s3521 + $0xe2] sm:$0xff]
        %v3638 = vld [vmem:[%s3521 + $0xf2] sm:$0xff]
        %v3639 = vld [vmem:[%s3521 + $0xfa] sm:$0xff]
        %v3640 = vld [vmem:[%s3521 + $0x10a] sm:$0xff]
        %v3641 = vld [vmem:[%s3521 + $0x112] sm:$0xff]
        %v3642 = vld [vmem:[%s3521 + $0x122] sm:$0xff]
        %v3643 = vld [vmem:[%s3521 + $0x12a] sm:$0xff]
        %v3644 = vld [vmem:[%s3521 + $0x13a] sm:$0xff]
        %v3645 = vld [vmem:[%s3521 + $0x142] sm:$0xff]
        %v3646 = vld [vmem:[%s3521 + $0x152] sm:$0xff]
        %v3647 = vld [vmem:[%s3521 + $0x15a] sm:$0xff]
        %v3648 = vld [vmem:[%s3521 + $0x16a] sm:$0xff]
        %v3649 = vld [vmem:[%s3521 + $0x172] sm:$0xff]
        %v3650 = vpack.c.bf16 %v3619, %v3618
        %v3651 = vpack.c.bf16 %v3621, %v3620
        %v3652 = vpack.c.bf16 %v3623, %v3622
        %v3653 = vpack.c.bf16 %v3625, %v3624
        %v3654 = vpack.c.bf16 %v3627, %v3626
        %v3655 = vpack.c.bf16 %v3629, %v3628
        %v3656 = vpack.c.bf16 %v3631, %v3630
        %v3657 = vpack.c.bf16 %v3633, %v3632
        %v3658 = vpack.c.bf16 %v3635, %v3634
        %v3659 = vpack.c.bf16 %v3637, %v3636
        %v3660 = vpack.c.bf16 %v3639, %v3638
        %v3661 = vpack.c.bf16 %v3641, %v3640
        %v3662 = vpack.c.bf16 %v3643, %v3642
        %v3663 = vpack.c.bf16 %v3645, %v3644
        %v3664 = vpack.c.bf16 %v3647, %v3646
        %v3665 = vpack.c.bf16 %v3649, %v3648
        %v3666 = vld [vmem:[%s651] sm:$0xf]
        %v3667 = vld [vmem:[%s651 + $0x4] sm:$0xf]
        %v3668 = vld [vmem:[%s651 + $0x8] sm:$0xf]
        %v3669 = vld [vmem:[%s651 + $0xc] sm:$0xf]
        %v3670 = vld [vmem:[%s651 + $0x10] sm:$0xf]
        %v3671 = vld [vmem:[%s651 + $0x14] sm:$0xf]
        %v3672 = vld [vmem:[%s651 + $0x18] sm:$0xf]
        %v3673 = vld [vmem:[%s651 + $0x1c] sm:$0xf]
        %v3674 = vld [vmem:[%s651 + $0x20] sm:$0xf]
        %v3675 = vld [vmem:[%s651 + $0x24] sm:$0xf]
        %v3676 = vld [vmem:[%s651 + $0x28] sm:$0xf]
        %v3677 = vld [vmem:[%s651 + $0x2c] sm:$0xf]
        %v3678 = vld [vmem:[%s651 + $0x30] sm:$0xf]
        %v3679 = vld [vmem:[%s651 + $0x34] sm:$0xf]
        %v3680 = vld [vmem:[%s651 + $0x38] sm:$0xf]
        %v3681 = vld [vmem:[%s651 + $0x3c] sm:$0xf]
        %v3682 = vld [vmem:[%s651 + $0x40] sm:$0xf]
        %v3683 = vld [vmem:[%s651 + $0x44] sm:$0xf]
        %v3684 = vld [vmem:[%s651 + $0x48] sm:$0xf]
        %v3685 = vld [vmem:[%s651 + $0x4c] sm:$0xf]
        %v3686 = vld [vmem:[%s651 + $0x50] sm:$0xf]
        %v3687 = vld [vmem:[%s651 + $0x54] sm:$0xf]
        %v3688 = vld [vmem:[%s651 + $0x58] sm:$0xf]
        %v3689 = vld [vmem:[%s651 + $0x5c] sm:$0xf]
        %v3690 = vld [vmem:[%s651 + $0x60] sm:$0xf]
        %v3691 = vld [vmem:[%s651 + $0x64] sm:$0xf]
        %v3692 = vld [vmem:[%s651 + $0x68] sm:$0xf]
        %v3693 = vld [vmem:[%s651 + $0x6c] sm:$0xf]
        %v3694 = vld [vmem:[%s651 + $0x70] sm:$0xf]
        %v3695 = vld [vmem:[%s651 + $0x74] sm:$0xf]
        %v3696 = vld [vmem:[%s651 + $0x78] sm:$0xf]
        %v3697 = vld [vmem:[%s651 + $0x7c] sm:$0xf]
        %v3698 = vld [vmem:[%s651 + $0x80] sm:$0xf]
        %v3699 = vld [vmem:[%s651 + $0x84] sm:$0xf]
        %v3700 = vld [vmem:[%s651 + $0x88] sm:$0xf]
        %v3701 = vld [vmem:[%s651 + $0x8c] sm:$0xf]
        %v3702 = vld [vmem:[%s651 + $0x90] sm:$0xf]
        %v3703 = vld [vmem:[%s651 + $0x94] sm:$0xf]
        %v3704 = vld [vmem:[%s651 + $0x98] sm:$0xf]
        %v3705 = vld [vmem:[%s651 + $0x9c] sm:$0xf]
        %v3706 = vld [vmem:[%s651 + $0xa0] sm:$0xf]
        %v3707 = vld [vmem:[%s651 + $0xa4] sm:$0xf]
        %v3708 = vld [vmem:[%s651 + $0xa8] sm:$0xf]
        %v3709 = vld [vmem:[%s651 + $0xac] sm:$0xf]
        %v3710 = vld [vmem:[%s651 + $0xb0] sm:$0xf]
        %v3711 = vld [vmem:[%s651 + $0xb4] sm:$0xf]
        %v3712 = vld [vmem:[%s651 + $0xb8] sm:$0xf]
        %v3713 = vld [vmem:[%s651 + $0xbc] sm:$0xf]
        %v3714 = vld [vmem:[%s651 + $0xc0] sm:$0xf]
        %v3715 = vld [vmem:[%s651 + $0xc4] sm:$0xf]
        %v3716 = vld [vmem:[%s651 + $0xc8] sm:$0xf]
        %v3717 = vld [vmem:[%s651 + $0xcc] sm:$0xf]
        %v3718 = vld [vmem:[%s651 + $0xd0] sm:$0xf]
        %v3719 = vld [vmem:[%s651 + $0xd4] sm:$0xf]
        %v3720 = vld [vmem:[%s651 + $0xd8] sm:$0xf]
        %v3721 = vld [vmem:[%s651 + $0xdc] sm:$0xf]
        %v3722 = vld [vmem:[%s651 + $0xe0] sm:$0xf]
        %v3723 = vld [vmem:[%s651 + $0xe4] sm:$0xf]
        %v3724 = vld [vmem:[%s651 + $0xe8] sm:$0xf]
        %v3725 = vld [vmem:[%s651 + $0xec] sm:$0xf]
        %v3726 = vld [vmem:[%s651 + $0xf0] sm:$0xf]
        %v3727 = vld [vmem:[%s651 + $0xf4] sm:$0xf]
        %v3728 = vld [vmem:[%s651 + $0xf8] sm:$0xf]
        %v3729 = vld [vmem:[%s651 + $0xfc] sm:$0xf]
        %v3730 = vld [vmem:[%s651 + $0x100] sm:$0xf]
        %v3731 = vld [vmem:[%s651 + $0x104] sm:$0xf]
        %v3732 = vld [vmem:[%s651 + $0x108] sm:$0xf]
        %v3733 = vld [vmem:[%s651 + $0x10c] sm:$0xf]
        %v3734 = vld [vmem:[%s651 + $0x110] sm:$0xf]
        %v3735 = vld [vmem:[%s651 + $0x114] sm:$0xf]
        %v3736 = vld [vmem:[%s651 + $0x118] sm:$0xf]
        %v3737 = vld [vmem:[%s651 + $0x11c] sm:$0xf]
        %v3738 = vld [vmem:[%s651 + $0x120] sm:$0xf]
        %v3739 = vld [vmem:[%s651 + $0x124] sm:$0xf]
        %v3740 = vld [vmem:[%s651 + $0x128] sm:$0xf]
        %v3741 = vld [vmem:[%s651 + $0x12c] sm:$0xf]
        %v3742 = vld [vmem:[%s651 + $0x130] sm:$0xf]
        %v3743 = vld [vmem:[%s651 + $0x134] sm:$0xf]
        %v3744 = vld [vmem:[%s651 + $0x138] sm:$0xf]
        %v3745 = vld [vmem:[%s651 + $0x13c] sm:$0xf]
        %v3746 = vld [vmem:[%s651 + $0x140] sm:$0xf]
        %v3747 = vld [vmem:[%s651 + $0x144] sm:$0xf]
        %v3748 = vld [vmem:[%s651 + $0x148] sm:$0xf]
        %v3749 = vld [vmem:[%s651 + $0x14c] sm:$0xf]
        %v3750 = vld [vmem:[%s651 + $0x150] sm:$0xf]
        %v3751 = vld [vmem:[%s651 + $0x154] sm:$0xf]
        %v3752 = vld [vmem:[%s651 + $0x158] sm:$0xf]
        %v3753 = vld [vmem:[%s651 + $0x15c] sm:$0xf]
        %v3754 = vld [vmem:[%s651 + $0x160] sm:$0xf]
        %v3755 = vld [vmem:[%s651 + $0x164] sm:$0xf]
        %v3756 = vld [vmem:[%s651 + $0x168] sm:$0xf]
        %v3757 = vld [vmem:[%s651 + $0x16c] sm:$0xf]
        %v3758 = vld [vmem:[%s651 + $0x170] sm:$0xf]
        %v3759 = vld [vmem:[%s651 + $0x174] sm:$0xf]
        %v3760 = vld [vmem:[%s651 + $0x178] sm:$0xf]
        %v3761 = vld [vmem:[%s651 + $0x17c] sm:$0xf]
        %v3762 = vld [vmem:[%s651 + $0x180] sm:$0xf]
        %v3763 = vld [vmem:[%s651 + $0x184] sm:$0xf]
        %v3764 = vld [vmem:[%s651 + $0x188] sm:$0xf]
        %v3765 = vld [vmem:[%s651 + $0x18c] sm:$0xf]
        %v3766 = vld [vmem:[%s651 + $0x190] sm:$0xf]
        %v3767 = vld [vmem:[%s651 + $0x194] sm:$0xf]
        %v3768 = vld [vmem:[%s651 + $0x198] sm:$0xf]
        %v3769 = vld [vmem:[%s651 + $0x19c] sm:$0xf]
        %v3770 = vld [vmem:[%s651 + $0x1a0] sm:$0xf]
        %v3771 = vld [vmem:[%s651 + $0x1a4] sm:$0xf]
        %v3772 = vld [vmem:[%s651 + $0x1a8] sm:$0xf]
        %v3773 = vld [vmem:[%s651 + $0x1ac] sm:$0xf]
        %v3774 = vld [vmem:[%s651 + $0x1b0] sm:$0xf]
        %v3775 = vld [vmem:[%s651 + $0x1b4] sm:$0xf]
        %v3776 = vld [vmem:[%s651 + $0x1b8] sm:$0xf]
        %v3777 = vld [vmem:[%s651 + $0x1bc] sm:$0xf]
        %v3778 = vld [vmem:[%s651 + $0x1c0] sm:$0xf]
        %v3779 = vld [vmem:[%s651 + $0x1c4] sm:$0xf]
        %v3780 = vld [vmem:[%s651 + $0x1c8] sm:$0xf]
        %v3781 = vld [vmem:[%s651 + $0x1cc] sm:$0xf]
        %v3782 = vld [vmem:[%s651 + $0x1d0] sm:$0xf]
        %v3783 = vld [vmem:[%s651 + $0x1d4] sm:$0xf]
        %v3784 = vld [vmem:[%s651 + $0x1d8] sm:$0xf]
        %v3785 = vld [vmem:[%s651 + $0x1dc] sm:$0xf]
        %v3786 = vld [vmem:[%s651 + $0x1e0] sm:$0xf]
        %v3787 = vld [vmem:[%s651 + $0x1e4] sm:$0xf]
        %v3788 = vld [vmem:[%s651 + $0x1e8] sm:$0xf]
        %v3789 = vld [vmem:[%s651 + $0x1ec] sm:$0xf]
        %v3790 = vld [vmem:[%s651 + $0x1f0] sm:$0xf]
        %v3791 = vld [vmem:[%s651 + $0x1f4] sm:$0xf]
        %v3792 = vld [vmem:[%s651 + $0x1f8] sm:$0xf]
        %v3793 = vld [vmem:[%s651 + $0x1fc] sm:$0xf]
        %v3794 = vld [vmem:[%s651 + $0x200] sm:$0xf]
        %v3795 = vld [vmem:[%s651 + $0x204] sm:$0xf]
        %v3796 = vld [vmem:[%s651 + $0x208] sm:$0xf]
        %v3797 = vld [vmem:[%s651 + $0x20c] sm:$0xf]
        %v3798 = vld [vmem:[%s651 + $0x210] sm:$0xf]
        %v3799 = vld [vmem:[%s651 + $0x214] sm:$0xf]
        %v3800 = vld [vmem:[%s651 + $0x218] sm:$0xf]
        %v3801 = vld [vmem:[%s651 + $0x21c] sm:$0xf]
        %v3802 = vld [vmem:[%s651 + $0x220] sm:$0xf]
        %v3803 = vld [vmem:[%s651 + $0x224] sm:$0xf]
        %v3804 = vld [vmem:[%s651 + $0x228] sm:$0xf]
        %v3805 = vld [vmem:[%s651 + $0x22c] sm:$0xf]
        %v3806 = vld [vmem:[%s651 + $0x230] sm:$0xf]
        %v3807 = vld [vmem:[%s651 + $0x234] sm:$0xf]
        %v3808 = vld [vmem:[%s651 + $0x238] sm:$0xf]
        %v3809 = vld [vmem:[%s651 + $0x23c] sm:$0xf]
        %v3954 = vunpack.c.l.b16 %v3666
        %v3955 = vunpack.c.l.b16 %v3667
        %v3956 = vunpack.c.l.b16 %v3668
        %v3957 = vunpack.c.l.b16 %v3669
        %v3958 = vunpack.c.l.b16 %v3670
        %v3959 = vunpack.c.l.b16 %v3671
        %v3960 = vunpack.c.l.b16 %v3672
        %v3961 = vunpack.c.l.b16 %v3673
        %v3962 = vunpack.c.l.b16 %v3674
        %v3963 = vunpack.c.l.b16 %v3675
        %v3964 = vunpack.c.l.b16 %v3676
        %v3965 = vunpack.c.l.b16 %v3677
        %v3966 = vunpack.c.l.b16 %v3678
        %v3967 = vunpack.c.l.b16 %v3679
        %v3968 = vunpack.c.l.b16 %v3680
        %v3969 = vunpack.c.l.b16 %v3681
        %v3970 = vunpack.c.l.b16 %v3682
        %v3971 = vunpack.c.l.b16 %v3683
        %v3972 = vunpack.c.l.b16 %v3684
        %v3973 = vunpack.c.l.b16 %v3685
        %v3974 = vunpack.c.l.b16 %v3686
        %v3975 = vunpack.c.l.b16 %v3687
        %v3976 = vunpack.c.l.b16 %v3688
        %v3977 = vunpack.c.l.b16 %v3689
        %v3978 = vunpack.c.l.b16 %v3690
        %v3979 = vunpack.c.l.b16 %v3691
        %v3980 = vunpack.c.l.b16 %v3692
        %v3981 = vunpack.c.l.b16 %v3693
        %v3982 = vunpack.c.l.b16 %v3694
        %v3983 = vunpack.c.l.b16 %v3695
        %v3984 = vunpack.c.l.b16 %v3696
        %v3985 = vunpack.c.l.b16 %v3697
        %v3986 = vunpack.c.l.b16 %v3698
        %v3987 = vunpack.c.l.b16 %v3699
        %v3988 = vunpack.c.l.b16 %v3700
        %v3989 = vunpack.c.l.b16 %v3701
        %v3990 = vunpack.c.l.b16 %v3702
        %v3991 = vunpack.c.l.b16 %v3703
        %v3992 = vunpack.c.l.b16 %v3704
        %v3993 = vunpack.c.l.b16 %v3705
        %v3994 = vunpack.c.l.b16 %v3706
        %v3995 = vunpack.c.l.b16 %v3707
        %v3996 = vunpack.c.l.b16 %v3708
        %v3997 = vunpack.c.l.b16 %v3709
        %v3998 = vunpack.c.l.b16 %v3710
        %v3999 = vunpack.c.l.b16 %v3711
        %v4000 = vunpack.c.l.b16 %v3712
        %v4001 = vunpack.c.l.b16 %v3713
        %v4002 = vunpack.c.l.b16 %v3714
        %v4003 = vunpack.c.l.b16 %v3715
        %v4004 = vunpack.c.l.b16 %v3716
        %v4005 = vunpack.c.l.b16 %v3717
        %v4006 = vunpack.c.l.b16 %v3718
        %v4007 = vunpack.c.l.b16 %v3719
        %v4008 = vunpack.c.l.b16 %v3720
        %v4009 = vunpack.c.l.b16 %v3721
        %v4010 = vunpack.c.l.b16 %v3722
        %v4011 = vunpack.c.l.b16 %v3723
        %v4012 = vunpack.c.l.b16 %v3724
        %v4013 = vunpack.c.l.b16 %v3725
        %v4014 = vunpack.c.l.b16 %v3726
        %v4015 = vunpack.c.l.b16 %v3727
        %v4016 = vunpack.c.l.b16 %v3728
        %v4017 = vunpack.c.l.b16 %v3729
        %v4018 = vunpack.c.l.b16 %v3730
        %v4019 = vunpack.c.l.b16 %v3731
        %v4020 = vunpack.c.l.b16 %v3732
        %v4021 = vunpack.c.l.b16 %v3733
        %v4022 = vunpack.c.l.b16 %v3734
        %v4023 = vunpack.c.l.b16 %v3735
        %v4024 = vunpack.c.l.b16 %v3736
        %v4025 = vunpack.c.l.b16 %v3737
        %v4026 = vunpack.c.l.b16 %v3738
        %v4027 = vunpack.c.l.b16 %v3739
        %v4028 = vunpack.c.l.b16 %v3740
        %v4029 = vunpack.c.l.b16 %v3741
        %v4030 = vunpack.c.l.b16 %v3742
        %v4031 = vunpack.c.l.b16 %v3743
        %v4032 = vunpack.c.l.b16 %v3744
        %v4033 = vunpack.c.l.b16 %v3745
        %v4034 = vunpack.c.l.b16 %v3746
        %v4035 = vunpack.c.l.b16 %v3747
        %v4036 = vunpack.c.l.b16 %v3748
        %v4037 = vunpack.c.l.b16 %v3749
        %v4038 = vunpack.c.l.b16 %v3750
        %v4039 = vunpack.c.l.b16 %v3751
        %v4040 = vunpack.c.l.b16 %v3752
        %v4041 = vunpack.c.l.b16 %v3753
        %v4042 = vunpack.c.l.b16 %v3754
        %v4043 = vunpack.c.l.b16 %v3755
        %v4044 = vunpack.c.l.b16 %v3756
        %v4045 = vunpack.c.l.b16 %v3757
        %v4046 = vunpack.c.l.b16 %v3758
        %v4047 = vunpack.c.l.b16 %v3759
        %v4048 = vunpack.c.l.b16 %v3760
        %v4049 = vunpack.c.l.b16 %v3761
        %v4050 = vunpack.c.l.b16 %v3762
        %v4051 = vunpack.c.l.b16 %v3763
        %v4052 = vunpack.c.l.b16 %v3764
        %v4053 = vunpack.c.l.b16 %v3765
        %v4054 = vunpack.c.l.b16 %v3766
        %v4055 = vunpack.c.l.b16 %v3767
        %v4056 = vunpack.c.l.b16 %v3768
        %v4057 = vunpack.c.l.b16 %v3769
        %v4058 = vunpack.c.l.b16 %v3770
        %v4059 = vunpack.c.l.b16 %v3771
        %v4060 = vunpack.c.l.b16 %v3772
        %v4061 = vunpack.c.l.b16 %v3773
        %v4062 = vunpack.c.l.b16 %v3774
        %v4063 = vunpack.c.l.b16 %v3775
        %v4064 = vunpack.c.l.b16 %v3776
        %v4065 = vunpack.c.l.b16 %v3777
        %v4066 = vunpack.c.l.b16 %v3778
        %v4067 = vunpack.c.l.b16 %v3779
        %v4068 = vunpack.c.l.b16 %v3780
        %v4069 = vunpack.c.l.b16 %v3781
        %v4070 = vunpack.c.l.b16 %v3782
        %v4071 = vunpack.c.l.b16 %v3783
        %v4072 = vunpack.c.l.b16 %v3784
        %v4073 = vunpack.c.l.b16 %v3785
        %v4074 = vunpack.c.l.b16 %v3786
        %v4075 = vunpack.c.l.b16 %v3787
        %v4076 = vunpack.c.l.b16 %v3788
        %v4077 = vunpack.c.l.b16 %v3789
        %v4078 = vunpack.c.l.b16 %v3790
        %v4079 = vunpack.c.l.b16 %v3791
        %v4080 = vunpack.c.l.b16 %v3792
        %v4081 = vunpack.c.l.b16 %v3793
        %v4082 = vunpack.c.l.b16 %v3794
        %v4083 = vunpack.c.l.b16 %v3795
        %v4084 = vunpack.c.l.b16 %v3796
        %v4085 = vunpack.c.l.b16 %v3797
        %v4086 = vunpack.c.l.b16 %v3798
        %v4087 = vunpack.c.l.b16 %v3799
        %v4088 = vunpack.c.l.b16 %v3800
        %v4089 = vunpack.c.l.b16 %v3801
        %v4090 = vunpack.c.l.b16 %v3802
        %v4091 = vunpack.c.l.b16 %v3803
        %v4092 = vunpack.c.l.b16 %v3804
        %v4093 = vunpack.c.l.b16 %v3805
        %v4094 = vunpack.c.l.b16 %v3806
        %v4095 = vunpack.c.l.b16 %v3807
        %v4096 = vunpack.c.l.b16 %v3808
        %v4097 = vunpack.c.l.b16 %v3809
        %v4098 = vpack.c.b16 %v3955, %v3954
        %v4099 = vpack.c.b16 %v3957, %v3956
        %v4100 = vpack.c.b16 %v3959, %v3958
        %v4101 = vpack.c.b16 %v3961, %v3960
        %v4102 = vpack.c.b16 %v3963, %v3962
        %v4103 = vpack.c.b16 %v3965, %v3964
        %v4104 = vpack.c.b16 %v3967, %v3966
        %v4105 = vpack.c.b16 %v3969, %v3968
        %v4106 = vpack.c.b16 %v3971, %v3970
        %v4107 = vpack.c.b16 %v3973, %v3972
        %v4108 = vpack.c.b16 %v3975, %v3974
        %v4109 = vpack.c.b16 %v3977, %v3976
        %v4110 = vpack.c.b16 %v3979, %v3978
        %v4111 = vpack.c.b16 %v3981, %v3980
        %v4112 = vpack.c.b16 %v3983, %v3982
        %v4113 = vpack.c.b16 %v3985, %v3984
        %v4114 = vpack.c.b16 %v3987, %v3986
        %v4115 = vpack.c.b16 %v3989, %v3988
        %v4116 = vpack.c.b16 %v3991, %v3990
        %v4117 = vpack.c.b16 %v3993, %v3992
        %v4118 = vpack.c.b16 %v3995, %v3994
        %v4119 = vpack.c.b16 %v3997, %v3996
        %v4120 = vpack.c.b16 %v3999, %v3998
        %v4121 = vpack.c.b16 %v4001, %v4000
        %v4122 = vpack.c.b16 %v4003, %v4002
        %v4123 = vpack.c.b16 %v4005, %v4004
        %v4124 = vpack.c.b16 %v4007, %v4006
        %v4125 = vpack.c.b16 %v4009, %v4008
        %v4126 = vpack.c.b16 %v4011, %v4010
        %v4127 = vpack.c.b16 %v4013, %v4012
        %v4128 = vpack.c.b16 %v4015, %v4014
        %v4129 = vpack.c.b16 %v4017, %v4016
        %v4130 = vpack.c.b16 %v4019, %v4018
        %v4131 = vpack.c.b16 %v4021, %v4020
        %v4132 = vpack.c.b16 %v4023, %v4022
        %v4133 = vpack.c.b16 %v4025, %v4024
        %v4134 = vpack.c.b16 %v4027, %v4026
        %v4135 = vpack.c.b16 %v4029, %v4028
        %v4136 = vpack.c.b16 %v4031, %v4030
        %v4137 = vpack.c.b16 %v4033, %v4032
        %v4138 = vpack.c.b16 %v4035, %v4034
        %v4139 = vpack.c.b16 %v4037, %v4036
        %v4140 = vpack.c.b16 %v4039, %v4038
        %v4141 = vpack.c.b16 %v4041, %v4040
        %v4142 = vpack.c.b16 %v4043, %v4042
        %v4143 = vpack.c.b16 %v4045, %v4044
        %v4144 = vpack.c.b16 %v4047, %v4046
        %v4145 = vpack.c.b16 %v4049, %v4048
        %v4146 = vpack.c.b16 %v4051, %v4050
        %v4147 = vpack.c.b16 %v4053, %v4052
        %v4148 = vpack.c.b16 %v4055, %v4054
        %v4149 = vpack.c.b16 %v4057, %v4056
        %v4150 = vpack.c.b16 %v4059, %v4058
        %v4151 = vpack.c.b16 %v4061, %v4060
        %v4152 = vpack.c.b16 %v4063, %v4062
        %v4153 = vpack.c.b16 %v4065, %v4064
        %v4154 = vpack.c.b16 %v4067, %v4066
        %v4155 = vpack.c.b16 %v4069, %v4068
        %v4156 = vpack.c.b16 %v4071, %v4070
        %v4157 = vpack.c.b16 %v4073, %v4072
        %v4158 = vpack.c.b16 %v4075, %v4074
        %v4159 = vpack.c.b16 %v4077, %v4076
        %v4160 = vpack.c.b16 %v4079, %v4078
        %v4161 = vpack.c.b16 %v4081, %v4080
        %v4162 = vpack.c.b16 %v4083, %v4082
        %v4163 = vpack.c.b16 %v4085, %v4084
        %v4164 = vpack.c.b16 %v4087, %v4086
        %v4165 = vpack.c.b16 %v4089, %v4088
        %v4166 = vpack.c.b16 %v4091, %v4090
        %v4167 = vpack.c.b16 %v4093, %v4092
        %v4168 = vpack.c.b16 %v4095, %v4094
        %v4169 = vpack.c.b16 %v4097, %v4096
        %4242 = vmatprep.subr.bf16.mxu0 0
        %4243 = vmatpush1.bf16.msra.mxu0 %v4105
        %4244 = vmatprep.subr.bf16.mxu0 0
        %4245 = vmatpush1.bf16.msra.mxu0 %v4104
        %4246 = vmatprep.subr.bf16.mxu0 0
        %4247 = vmatpush1.bf16.msra.mxu0 %v4103
        %4248 = vmatprep.subr.bf16.mxu0 0
        %4249 = vmatpush1.bf16.msra.mxu0 %v4102
        %4250 = vmatprep.subr.bf16.mxu0 0
        %4251 = vmatpush1.bf16.msra.mxu0 %v4101
        %4252 = vmatprep.subr.bf16.mxu0 0
        %4253 = vmatpush1.bf16.msra.mxu0 %v4100
        %4254 = vmatprep.subr.bf16.mxu0 0
        %4255 = vmatpush1.bf16.msra.mxu0 %v4099
        %4256 = vmatprep.subr.bf16.mxu0 0
        %4257 = vmatpush1.bf16.msra.mxu0 %v4098
        %4258 = vmatprep.subr.bf16.mxu0 0
        %4259 = vmatpush2.bf16.msra.mxu0 %v4113
        %4260 = vmatprep.subr.bf16.mxu0 0
        %4261 = vmatpush2.bf16.msra.mxu0 %v4112
        %4262 = vmatprep.subr.bf16.mxu0 0
        %4263 = vmatpush2.bf16.msra.mxu0 %v4111
        %4264 = vmatprep.subr.bf16.mxu0 0
        %4265 = vmatpush2.bf16.msra.mxu0 %v4110
        %4266 = vmatprep.subr.bf16.mxu0 0
        %4267 = vmatpush2.bf16.msra.mxu0 %v4109
        %4268 = vmatprep.subr.bf16.mxu0 0
        %4269 = vmatpush2.bf16.msra.mxu0 %v4108
        %4270 = vmatprep.subr.bf16.mxu0 0
        %4271 = vmatpush2.bf16.msra.mxu0 %v4107
        %4272 = vmatprep.subr.bf16.mxu0 0
        %4273 = vmatpush2.bf16.msra.mxu0 %v4106
        %4274 = vmatprep.mubr.bf16.mxu0 %v3313
        %4275 = vmatmul.mubr.bf16.gmra.mxu0 %v3265
        %v4276 = vpop.f32.mrf.mxu0
        %v4277 = vadd.f32 0.0, %v4276
        %v4278 = vpop.f32.mrf.mxu0
        %v4279 = vpop.f32.mrf.mxu0
        %v4280 = vadd.f32 0.0, %v4279
        %v4281 = vpop.f32.mrf.mxu0
        %4282 = vmatprep.mubr.bf16.mxu0 %v3314
        %4283 = vmatmul.mubr.bf16.gmra.mxu0 %v3266
        %v4284 = vpop.f32.mrf.mxu0
        %v4285 = vadd.f32 0.0, %v4284
        %v4286 = vpop.f32.mrf.mxu0
        %v4287 = vpop.f32.mrf.mxu0
        %v4288 = vadd.f32 0.0, %v4287
        %v4289 = vpop.f32.mrf.mxu0
        %4290 = vmatprep.mubr.bf16.mxu0 %v3315
        %4291 = vmatmul.mubr.bf16.gmra.mxu0 %v3267
        %v4292 = vpop.f32.mrf.mxu0
        %v4293 = vadd.f32 0.0, %v4292
        %v4294 = vpop.f32.mrf.mxu0
        %v4295 = vpop.f32.mrf.mxu0
        %v4296 = vadd.f32 0.0, %v4295
        %v4297 = vpop.f32.mrf.mxu0
        %4298 = vmatprep.mubr.bf16.mxu0 %v3316
        %4299 = vmatmul.mubr.bf16.gmra.mxu0 %v3268
        %v4300 = vpop.f32.mrf.mxu0
        %v4301 = vadd.f32 0.0, %v4300
        %v4302 = vpop.f32.mrf.mxu0
        %v4303 = vpop.f32.mrf.mxu0
        %v4304 = vadd.f32 0.0, %v4303
        %v4305 = vpop.f32.mrf.mxu0
        %4306 = vmatprep.mubr.bf16.mxu0 %v3317
        %4307 = vmatmul.mubr.bf16.gmra.mxu0 %v3269
        %v4308 = vpop.f32.mrf.mxu0
        %v4309 = vadd.f32 0.0, %v4308
        %v4310 = vpop.f32.mrf.mxu0
        %v4311 = vpop.f32.mrf.mxu0
        %v4312 = vadd.f32 0.0, %v4311
        %v4313 = vpop.f32.mrf.mxu0
        %4314 = vmatprep.mubr.bf16.mxu0 %v3318
        %4315 = vmatmul.mubr.bf16.gmra.mxu0 %v3270
        %v4316 = vpop.f32.mrf.mxu0
        %v4317 = vadd.f32 0.0, %v4316
        %v4318 = vpop.f32.mrf.mxu0
        %v4319 = vpop.f32.mrf.mxu0
        %v4320 = vadd.f32 0.0, %v4319
        %v4321 = vpop.f32.mrf.mxu0
        %4322 = vmatprep.mubr.bf16.mxu0 %v3319
        %4323 = vmatmul.mubr.bf16.gmra.mxu0 %v3271
        %v4324 = vpop.f32.mrf.mxu0
        %v4325 = vadd.f32 0.0, %v4324
        %v4326 = vpop.f32.mrf.mxu0
        %v4327 = vpop.f32.mrf.mxu0
        %v4328 = vadd.f32 0.0, %v4327
        %v4329 = vpop.f32.mrf.mxu0
        %4330 = vmatprep.mubr.bf16.mxu0 %v3320
        %4331 = vmatmul.mubr.bf16.gmra.mxu0 %v3272
        %v4332 = vpop.f32.mrf.mxu0
        %v4333 = vadd.f32 0.0, %v4332
        %v4334 = vpop.f32.mrf.mxu0
        %v4335 = vpop.f32.mrf.mxu0
        %v4336 = vadd.f32 0.0, %v4335
        %v4337 = vpop.f32.mrf.mxu0
        %4338 = vmatprep.mubr.bf16.mxu0 %v3321
        %4339 = vmatmul.mubr.bf16.gmra.mxu0 %v3273
        %v4340 = vpop.f32.mrf.mxu0
        %v4341 = vadd.f32 0.0, %v4340
        %v4342 = vpop.f32.mrf.mxu0
        %v4343 = vpop.f32.mrf.mxu0
        %v4344 = vadd.f32 0.0, %v4343
        %v4345 = vpop.f32.mrf.mxu0
        %4346 = vmatprep.mubr.bf16.mxu0 %v3322
        %4347 = vmatmul.mubr.bf16.gmra.mxu0 %v3274
        %v4348 = vpop.f32.mrf.mxu0
        %v4349 = vadd.f32 0.0, %v4348
        %v4350 = vpop.f32.mrf.mxu0
        %v4351 = vpop.f32.mrf.mxu0
        %v4352 = vadd.f32 0.0, %v4351
        %v4353 = vpop.f32.mrf.mxu0
        %4354 = vmatprep.mubr.bf16.mxu0 %v3323
        %4355 = vmatmul.mubr.bf16.gmra.mxu0 %v3275
        %v4356 = vpop.f32.mrf.mxu0
        %v4357 = vadd.f32 0.0, %v4356
        %v4358 = vpop.f32.mrf.mxu0
        %v4359 = vpop.f32.mrf.mxu0
        %v4360 = vadd.f32 0.0, %v4359
        %v4361 = vpop.f32.mrf.mxu0
        %4362 = vmatprep.mubr.bf16.mxu0 %v3324
        %4363 = vmatmul.mubr.bf16.gmra.mxu0 %v3276
        %v4364 = vpop.f32.mrf.mxu0
        %v4365 = vadd.f32 0.0, %v4364
        %v4366 = vpop.f32.mrf.mxu0
        %v4367 = vpop.f32.mrf.mxu0
        %v4368 = vadd.f32 0.0, %v4367
        %v4369 = vpop.f32.mrf.mxu0
        %4370 = vmatprep.mubr.bf16.mxu0 %v3325
        %4371 = vmatmul.mubr.bf16.gmra.mxu0 %v3277
        %v4372 = vpop.f32.mrf.mxu0
        %v4373 = vadd.f32 0.0, %v4372
        %v4374 = vpop.f32.mrf.mxu0
        %v4375 = vpop.f32.mrf.mxu0
        %v4376 = vadd.f32 0.0, %v4375
        %v4377 = vpop.f32.mrf.mxu0
        %4378 = vmatprep.mubr.bf16.mxu0 %v3326
        %4379 = vmatmul.mubr.bf16.gmra.mxu0 %v3278
        %v4380 = vpop.f32.mrf.mxu0
        %v4381 = vadd.f32 0.0, %v4380
        %v4382 = vpop.f32.mrf.mxu0
        %v4383 = vpop.f32.mrf.mxu0
        %v4384 = vadd.f32 0.0, %v4383
        %v4385 = vpop.f32.mrf.mxu0
        %4386 = vmatprep.mubr.bf16.mxu0 %v3327
        %4387 = vmatmul.mubr.bf16.gmra.mxu0 %v3279
        %v4388 = vpop.f32.mrf.mxu0
        %v4389 = vadd.f32 0.0, %v4388
        %v4390 = vpop.f32.mrf.mxu0
        %v4391 = vpop.f32.mrf.mxu0
        %v4392 = vadd.f32 0.0, %v4391
        %v4393 = vpop.f32.mrf.mxu0
        %4394 = vmatprep.mubr.bf16.mxu0 %v3328
        %4395 = vmatmul.mubr.bf16.gmra.mxu0 %v3280
        %v4396 = vpop.f32.mrf.mxu0
        %v4397 = vadd.f32 0.0, %v4396
        %v4398 = vpop.f32.mrf.mxu0
        %v4399 = vpop.f32.mrf.mxu0
        %v4400 = vadd.f32 0.0, %v4399
        %v4401 = vpop.f32.mrf.mxu0
        %4402 = vdwg.mxu0
        %4403 = vmatprep.subr.bf16.mxu0 0
        %4404 = vmatpush1.bf16.msra.mxu0 %v4121
        %4405 = vmatprep.subr.bf16.mxu0 0
        %4406 = vmatpush1.bf16.msra.mxu0 %v4120
        %4407 = vmatprep.subr.bf16.mxu0 0
        %4408 = vmatpush1.bf16.msra.mxu0 %v4119
        %4409 = vmatprep.subr.bf16.mxu0 0
        %4410 = vmatpush1.bf16.msra.mxu0 %v4118
        %4411 = vmatprep.subr.bf16.mxu0 0
        %4412 = vmatpush1.bf16.msra.mxu0 %v4117
        %4413 = vmatprep.subr.bf16.mxu0 0
        %4414 = vmatpush1.bf16.msra.mxu0 %v4116
        %4415 = vmatprep.subr.bf16.mxu0 0
        %4416 = vmatpush1.bf16.msra.mxu0 %v4115
        %4417 = vmatprep.subr.bf16.mxu0 0
        %4418 = vmatpush1.bf16.msra.mxu0 %v4114
        %4419 = vmatprep.subr.bf16.mxu0 0
        %4420 = vmatpush2.bf16.msra.mxu0 %v4129
        %4421 = vmatprep.subr.bf16.mxu0 0
        %4422 = vmatpush2.bf16.msra.mxu0 %v4128
        %4423 = vmatprep.subr.bf16.mxu0 0
        %4424 = vmatpush2.bf16.msra.mxu0 %v4127
        %4425 = vmatprep.subr.bf16.mxu0 0
        %4426 = vmatpush2.bf16.msra.mxu0 %v4126
        %4427 = vmatprep.subr.bf16.mxu0 0
        %4428 = vmatpush2.bf16.msra.mxu0 %v4125
        %4429 = vmatprep.subr.bf16.mxu0 0
        %4430 = vmatpush2.bf16.msra.mxu0 %v4124
        %4431 = vmatprep.subr.bf16.mxu0 0
        %4432 = vmatpush2.bf16.msra.mxu0 %v4123
        %4433 = vmatprep.subr.bf16.mxu0 0
        %4434 = vmatpush2.bf16.msra.mxu0 %v4122
        %4435 = vmatprep.mubr.bf16.mxu0 %v3409
        %4436 = vmatmul.mubr.bf16.gmra.mxu0 %v3361
        %v4437 = vpop.f32.mrf.mxu0
        %v4438 = vadd.f32 %v4277, %v4437
        %v4439 = vpop.f32.mrf.mxu0
        %v4440 = vpop.f32.mrf.mxu0
        %v4441 = vadd.f32 %v4280, %v4440
        %v4442 = vpop.f32.mrf.mxu0
        %4443 = vmatprep.mubr.bf16.mxu0 %v3410
        %4444 = vmatmul.mubr.bf16.gmra.mxu0 %v3362
        %v4445 = vpop.f32.mrf.mxu0
        %v4446 = vadd.f32 %v4285, %v4445
        %v4447 = vpop.f32.mrf.mxu0
        %v4448 = vpop.f32.mrf.mxu0
        %v4449 = vadd.f32 %v4288, %v4448
        %v4450 = vpop.f32.mrf.mxu0
        %4451 = vmatprep.mubr.bf16.mxu0 %v3411
        %4452 = vmatmul.mubr.bf16.gmra.mxu0 %v3363
        %v4453 = vpop.f32.mrf.mxu0
        %v4454 = vadd.f32 %v4293, %v4453
        %v4455 = vpop.f32.mrf.mxu0
        %v4456 = vpop.f32.mrf.mxu0
        %v4457 = vadd.f32 %v4296, %v4456
        %v4458 = vpop.f32.mrf.mxu0
        %4459 = vmatprep.mubr.bf16.mxu0 %v3412
        %4460 = vmatmul.mubr.bf16.gmra.mxu0 %v3364
        %v4461 = vpop.f32.mrf.mxu0
        %v4462 = vadd.f32 %v4301, %v4461
        %v4463 = vpop.f32.mrf.mxu0
        %v4464 = vpop.f32.mrf.mxu0
        %v4465 = vadd.f32 %v4304, %v4464
        %v4466 = vpop.f32.mrf.mxu0
        %4467 = vmatprep.mubr.bf16.mxu0 %v3413
        %4468 = vmatmul.mubr.bf16.gmra.mxu0 %v3365
        %v4469 = vpop.f32.mrf.mxu0
        %v4470 = vadd.f32 %v4309, %v4469
        %v4471 = vpop.f32.mrf.mxu0
        %v4472 = vpop.f32.mrf.mxu0
        %v4473 = vadd.f32 %v4312, %v4472
        %v4474 = vpop.f32.mrf.mxu0
        %4475 = vmatprep.mubr.bf16.mxu0 %v3414
        %4476 = vmatmul.mubr.bf16.gmra.mxu0 %v3366
        %v4477 = vpop.f32.mrf.mxu0
        %v4478 = vadd.f32 %v4317, %v4477
        %v4479 = vpop.f32.mrf.mxu0
        %v4480 = vpop.f32.mrf.mxu0
        %v4481 = vadd.f32 %v4320, %v4480
        %v4482 = vpop.f32.mrf.mxu0
        %4483 = vmatprep.mubr.bf16.mxu0 %v3415
        %4484 = vmatmul.mubr.bf16.gmra.mxu0 %v3367
        %v4485 = vpop.f32.mrf.mxu0
        %v4486 = vadd.f32 %v4325, %v4485
        %v4487 = vpop.f32.mrf.mxu0
        %v4488 = vpop.f32.mrf.mxu0
        %v4489 = vadd.f32 %v4328, %v4488
        %v4490 = vpop.f32.mrf.mxu0
        %4491 = vmatprep.mubr.bf16.mxu0 %v3416
        %4492 = vmatmul.mubr.bf16.gmra.mxu0 %v3368
        %v4493 = vpop.f32.mrf.mxu0
        %v4494 = vadd.f32 %v4333, %v4493
        %v4495 = vpop.f32.mrf.mxu0
        %v4496 = vpop.f32.mrf.mxu0
        %v4497 = vadd.f32 %v4336, %v4496
        %v4498 = vpop.f32.mrf.mxu0
        %4499 = vmatprep.mubr.bf16.mxu0 %v3417
        %4500 = vmatmul.mubr.bf16.gmra.mxu0 %v3369
        %v4501 = vpop.f32.mrf.mxu0
        %v4502 = vadd.f32 %v4341, %v4501
        %v4503 = vpop.f32.mrf.mxu0
        %v4504 = vpop.f32.mrf.mxu0
        %v4505 = vadd.f32 %v4344, %v4504
        %v4506 = vpop.f32.mrf.mxu0
        %4507 = vmatprep.mubr.bf16.mxu0 %v3418
        %4508 = vmatmul.mubr.bf16.gmra.mxu0 %v3370
        %v4509 = vpop.f32.mrf.mxu0
        %v4510 = vadd.f32 %v4349, %v4509
        %v4511 = vpop.f32.mrf.mxu0
        %v4512 = vpop.f32.mrf.mxu0
        %v4513 = vadd.f32 %v4352, %v4512
        %v4514 = vpop.f32.mrf.mxu0
        %4515 = vmatprep.mubr.bf16.mxu0 %v3419
        %4516 = vmatmul.mubr.bf16.gmra.mxu0 %v3371
        %v4517 = vpop.f32.mrf.mxu0
        %v4518 = vadd.f32 %v4357, %v4517
        %v4519 = vpop.f32.mrf.mxu0
        %v4520 = vpop.f32.mrf.mxu0
        %v4521 = vadd.f32 %v4360, %v4520
        %v4522 = vpop.f32.mrf.mxu0
        %4523 = vmatprep.mubr.bf16.mxu0 %v3420
        %4524 = vmatmul.mubr.bf16.gmra.mxu0 %v3372
        %v4525 = vpop.f32.mrf.mxu0
        %v4526 = vadd.f32 %v4365, %v4525
        %v4527 = vpop.f32.mrf.mxu0
        %v4528 = vpop.f32.mrf.mxu0
        %v4529 = vadd.f32 %v4368, %v4528
        %v4530 = vpop.f32.mrf.mxu0
        %4531 = vmatprep.mubr.bf16.mxu0 %v3421
        %4532 = vmatmul.mubr.bf16.gmra.mxu0 %v3373
        %v4533 = vpop.f32.mrf.mxu0
        %v4534 = vadd.f32 %v4373, %v4533
        %v4535 = vpop.f32.mrf.mxu0
        %v4536 = vpop.f32.mrf.mxu0
        %v4537 = vadd.f32 %v4376, %v4536
        %v4538 = vpop.f32.mrf.mxu0
        %4539 = vmatprep.mubr.bf16.mxu0 %v3422
        %4540 = vmatmul.mubr.bf16.gmra.mxu0 %v3374
        %v4541 = vpop.f32.mrf.mxu0
        %v4542 = vadd.f32 %v4381, %v4541
        %v4543 = vpop.f32.mrf.mxu0
        %v4544 = vpop.f32.mrf.mxu0
        %v4545 = vadd.f32 %v4384, %v4544
        %v4546 = vpop.f32.mrf.mxu0
        %4547 = vmatprep.mubr.bf16.mxu0 %v3423
        %4548 = vmatmul.mubr.bf16.gmra.mxu0 %v3375
        %v4549 = vpop.f32.mrf.mxu0
        %v4550 = vadd.f32 %v4389, %v4549
        %v4551 = vpop.f32.mrf.mxu0
        %v4552 = vpop.f32.mrf.mxu0
        %v4553 = vadd.f32 %v4392, %v4552
        %v4554 = vpop.f32.mrf.mxu0
        %4555 = vmatprep.mubr.bf16.mxu0 %v3424
        %4556 = vmatmul.mubr.bf16.gmra.mxu0 %v3376
        %v4557 = vpop.f32.mrf.mxu0
        %v4558 = vadd.f32 %v4397, %v4557
        %v4559 = vpop.f32.mrf.mxu0
        %v4560 = vpop.f32.mrf.mxu0
        %v4561 = vadd.f32 %v4400, %v4560
        %v4562 = vpop.f32.mrf.mxu0
        %4563 = vdwg.mxu0
        %4564 = vmatprep.subr.bf16.mxu0 0
        %4565 = vmatpush1.bf16.msra.mxu0 %v4137
        %4566 = vmatprep.subr.bf16.mxu0 0
        %4567 = vmatpush1.bf16.msra.mxu0 %v4136
        %4568 = vmatprep.subr.bf16.mxu0 0
        %4569 = vmatpush1.bf16.msra.mxu0 %v4135
        %4570 = vmatprep.subr.bf16.mxu0 0
        %4571 = vmatpush1.bf16.msra.mxu0 %v4134
        %4572 = vmatprep.subr.bf16.mxu0 0
        %4573 = vmatpush1.bf16.msra.mxu0 %v4133
        %4574 = vmatprep.subr.bf16.mxu0 0
        %4575 = vmatpush1.bf16.msra.mxu0 %v4132
        %4576 = vmatprep.subr.bf16.mxu0 0
        %4577 = vmatpush1.bf16.msra.mxu0 %v4131
        %4578 = vmatprep.subr.bf16.mxu0 0
        %4579 = vmatpush1.bf16.msra.mxu0 %v4130
        %4580 = vmatprep.subr.bf16.mxu0 0
        %4581 = vmatpush2.bf16.msra.mxu0 %v4145
        %4582 = vmatprep.subr.bf16.mxu0 0
        %4583 = vmatpush2.bf16.msra.mxu0 %v4144
        %4584 = vmatprep.subr.bf16.mxu0 0
        %4585 = vmatpush2.bf16.msra.mxu0 %v4143
        %4586 = vmatprep.subr.bf16.mxu0 0
        %4587 = vmatpush2.bf16.msra.mxu0 %v4142
        %4588 = vmatprep.subr.bf16.mxu0 0
        %4589 = vmatpush2.bf16.msra.mxu0 %v4141
        %4590 = vmatprep.subr.bf16.mxu0 0
        %4591 = vmatpush2.bf16.msra.mxu0 %v4140
        %4592 = vmatprep.subr.bf16.mxu0 0
        %4593 = vmatpush2.bf16.msra.mxu0 %v4139
        %4594 = vmatprep.subr.bf16.mxu0 0
        %4595 = vmatpush2.bf16.msra.mxu0 %v4138
        %4596 = vmatprep.mubr.bf16.mxu0 %v3505
        %4597 = vmatmul.mubr.bf16.gmra.mxu0 %v3457
        %v4598 = vpop.f32.mrf.mxu0
        %v4599 = vadd.f32 %v4438, %v4598
        %v4600 = vpop.f32.mrf.mxu0
        %v4601 = vpop.f32.mrf.mxu0
        %v4602 = vadd.f32 %v4441, %v4601
        %v4603 = vpop.f32.mrf.mxu0
        %4604 = vmatprep.mubr.bf16.mxu0 %v3506
        %4605 = vmatmul.mubr.bf16.gmra.mxu0 %v3458
        %v4606 = vpop.f32.mrf.mxu0
        %v4607 = vadd.f32 %v4446, %v4606
        %v4608 = vpop.f32.mrf.mxu0
        %v4609 = vpop.f32.mrf.mxu0
        %v4610 = vadd.f32 %v4449, %v4609
        %v4611 = vpop.f32.mrf.mxu0
        %4612 = vmatprep.mubr.bf16.mxu0 %v3507
        %4613 = vmatmul.mubr.bf16.gmra.mxu0 %v3459
        %v4614 = vpop.f32.mrf.mxu0
        %v4615 = vadd.f32 %v4454, %v4614
        %v4616 = vpop.f32.mrf.mxu0
        %v4617 = vpop.f32.mrf.mxu0
        %v4618 = vadd.f32 %v4457, %v4617
        %v4619 = vpop.f32.mrf.mxu0
        %4620 = vmatprep.mubr.bf16.mxu0 %v3508
        %4621 = vmatmul.mubr.bf16.gmra.mxu0 %v3460
        %v4622 = vpop.f32.mrf.mxu0
        %v4623 = vadd.f32 %v4462, %v4622
        %v4624 = vpop.f32.mrf.mxu0
        %v4625 = vpop.f32.mrf.mxu0
        %v4626 = vadd.f32 %v4465, %v4625
        %v4627 = vpop.f32.mrf.mxu0
        %4628 = vmatprep.mubr.bf16.mxu0 %v3509
        %4629 = vmatmul.mubr.bf16.gmra.mxu0 %v3461
        %v4630 = vpop.f32.mrf.mxu0
        %v4631 = vadd.f32 %v4470, %v4630
        %v4632 = vpop.f32.mrf.mxu0
        %v4633 = vpop.f32.mrf.mxu0
        %v4634 = vadd.f32 %v4473, %v4633
        %v4635 = vpop.f32.mrf.mxu0
        %4636 = vmatprep.mubr.bf16.mxu0 %v3510
        %4637 = vmatmul.mubr.bf16.gmra.mxu0 %v3462
        %v4638 = vpop.f32.mrf.mxu0
        %v4639 = vadd.f32 %v4478, %v4638
        %v4640 = vpop.f32.mrf.mxu0
        %v4641 = vpop.f32.mrf.mxu0
        %v4642 = vadd.f32 %v4481, %v4641
        %v4643 = vpop.f32.mrf.mxu0
        %4644 = vmatprep.mubr.bf16.mxu0 %v3511
        %4645 = vmatmul.mubr.bf16.gmra.mxu0 %v3463
        %v4646 = vpop.f32.mrf.mxu0
        %v4647 = vadd.f32 %v4486, %v4646
        %v4648 = vpop.f32.mrf.mxu0
        %v4649 = vpop.f32.mrf.mxu0
        %v4650 = vadd.f32 %v4489, %v4649
        %v4651 = vpop.f32.mrf.mxu0
        %4652 = vmatprep.mubr.bf16.mxu0 %v3512
        %4653 = vmatmul.mubr.bf16.gmra.mxu0 %v3464
        %v4654 = vpop.f32.mrf.mxu0
        %v4655 = vadd.f32 %v4494, %v4654
        %v4656 = vpop.f32.mrf.mxu0
        %v4657 = vpop.f32.mrf.mxu0
        %v4658 = vadd.f32 %v4497, %v4657
        %v4659 = vpop.f32.mrf.mxu0
        %4660 = vmatprep.mubr.bf16.mxu0 %v3513
        %4661 = vmatmul.mubr.bf16.gmra.mxu0 %v3465
        %v4662 = vpop.f32.mrf.mxu0
        %v4663 = vadd.f32 %v4502, %v4662
        %v4664 = vpop.f32.mrf.mxu0
        %v4665 = vpop.f32.mrf.mxu0
        %v4666 = vadd.f32 %v4505, %v4665
        %v4667 = vpop.f32.mrf.mxu0
        %4668 = vmatprep.mubr.bf16.mxu0 %v3514
        %4669 = vmatmul.mubr.bf16.gmra.mxu0 %v3466
        %v4670 = vpop.f32.mrf.mxu0
        %v4671 = vadd.f32 %v4510, %v4670
        %v4672 = vpop.f32.mrf.mxu0
        %v4673 = vpop.f32.mrf.mxu0
        %v4674 = vadd.f32 %v4513, %v4673
        %v4675 = vpop.f32.mrf.mxu0
        %4676 = vmatprep.mubr.bf16.mxu0 %v3515
        %4677 = vmatmul.mubr.bf16.gmra.mxu0 %v3467
        %v4678 = vpop.f32.mrf.mxu0
        %v4679 = vadd.f32 %v4518, %v4678
        %v4680 = vpop.f32.mrf.mxu0
        %v4681 = vpop.f32.mrf.mxu0
        %v4682 = vadd.f32 %v4521, %v4681
        %v4683 = vpop.f32.mrf.mxu0
        %4684 = vmatprep.mubr.bf16.mxu0 %v3516
        %4685 = vmatmul.mubr.bf16.gmra.mxu0 %v3468
        %v4686 = vpop.f32.mrf.mxu0
        %v4687 = vadd.f32 %v4526, %v4686
        %v4688 = vpop.f32.mrf.mxu0
        %v4689 = vpop.f32.mrf.mxu0
        %v4690 = vadd.f32 %v4529, %v4689
        %v4691 = vpop.f32.mrf.mxu0
        %4692 = vmatprep.mubr.bf16.mxu0 %v3517
        %4693 = vmatmul.mubr.bf16.gmra.mxu0 %v3469
        %v4694 = vpop.f32.mrf.mxu0
        %v4695 = vadd.f32 %v4534, %v4694
        %v4696 = vpop.f32.mrf.mxu0
        %v4697 = vpop.f32.mrf.mxu0
        %v4698 = vadd.f32 %v4537, %v4697
        %v4699 = vpop.f32.mrf.mxu0
        %4700 = vmatprep.mubr.bf16.mxu0 %v3518
        %4701 = vmatmul.mubr.bf16.gmra.mxu0 %v3470
        %v4702 = vpop.f32.mrf.mxu0
        %v4703 = vadd.f32 %v4542, %v4702
        %v4704 = vpop.f32.mrf.mxu0
        %v4705 = vpop.f32.mrf.mxu0
        %v4706 = vadd.f32 %v4545, %v4705
        %v4707 = vpop.f32.mrf.mxu0
        %4708 = vmatprep.mubr.bf16.mxu0 %v3519
        %4709 = vmatmul.mubr.bf16.gmra.mxu0 %v3471
        %v4710 = vpop.f32.mrf.mxu0
        %v4711 = vadd.f32 %v4550, %v4710
        %v4712 = vpop.f32.mrf.mxu0
        %v4713 = vpop.f32.mrf.mxu0
        %v4714 = vadd.f32 %v4553, %v4713
        %v4715 = vpop.f32.mrf.mxu0
        %4716 = vmatprep.mubr.bf16.mxu0 %v3520
        %4717 = vmatmul.mubr.bf16.gmra.mxu0 %v3472
        %v4718 = vpop.f32.mrf.mxu0
        %v4719 = vadd.f32 %v4558, %v4718
        %v4720 = vpop.f32.mrf.mxu0
        %v4721 = vpop.f32.mrf.mxu0
        %v4722 = vadd.f32 %v4561, %v4721
        %v4723 = vpop.f32.mrf.mxu0
        %4724 = vdwg.mxu0
        %4725 = vmatprep.subr.bf16.mxu0 0
        %4726 = vmatpush1.bf16.msra.mxu0 %v4153
        %4727 = vmatprep.subr.bf16.mxu0 0
        %4728 = vmatpush1.bf16.msra.mxu0 %v4152
        %4729 = vmatprep.subr.bf16.mxu0 0
        %4730 = vmatpush1.bf16.msra.mxu0 %v4151
        %4731 = vmatprep.subr.bf16.mxu0 0
        %4732 = vmatpush1.bf16.msra.mxu0 %v4150
        %4733 = vmatprep.subr.bf16.mxu0 0
        %4734 = vmatpush1.bf16.msra.mxu0 %v4149
        %4735 = vmatprep.subr.bf16.mxu0 0
        %4736 = vmatpush1.bf16.msra.mxu0 %v4148
        %4737 = vmatprep.subr.bf16.mxu0 0
        %4738 = vmatpush1.bf16.msra.mxu0 %v4147
        %4739 = vmatprep.subr.bf16.mxu0 0
        %4740 = vmatpush1.bf16.msra.mxu0 %v4146
        %4741 = vmatprep.subr.bf16.mxu0 0
        %4742 = vmatpush2.bf16.msra.mxu0 %v4161
        %4743 = vmatprep.subr.bf16.mxu0 0
        %4744 = vmatpush2.bf16.msra.mxu0 %v4160
        %4745 = vmatprep.subr.bf16.mxu0 0
        %4746 = vmatpush2.bf16.msra.mxu0 %v4159
        %4747 = vmatprep.subr.bf16.mxu0 0
        %4748 = vmatpush2.bf16.msra.mxu0 %v4158
        %4749 = vmatprep.subr.bf16.mxu0 0
        %4750 = vmatpush2.bf16.msra.mxu0 %v4157
        %4751 = vmatprep.subr.bf16.mxu0 0
        %4752 = vmatpush2.bf16.msra.mxu0 %v4156
        %4753 = vmatprep.subr.bf16.mxu0 0
        %4754 = vmatpush2.bf16.msra.mxu0 %v4155
        %4755 = vmatprep.subr.bf16.mxu0 0
        %4756 = vmatpush2.bf16.msra.mxu0 %v4154
        %4757 = vmatprep.mubr.bf16.mxu0 %v3602
        %4758 = vmatmul.mubr.bf16.gmra.mxu0 %v3554
        %v4759 = vpop.f32.mrf.mxu0
        %v4760 = vadd.f32 %v4599, %v4759
        %v4761 = vpop.f32.mrf.mxu0
        %v4762 = vpop.f32.mrf.mxu0
        %v4763 = vadd.f32 %v4602, %v4762
        %v4764 = vpop.f32.mrf.mxu0
        %4765 = vmatprep.mubr.bf16.mxu0 %v3603
        %4766 = vmatmul.mubr.bf16.gmra.mxu0 %v3555
        %v4767 = vpop.f32.mrf.mxu0
        %v4768 = vadd.f32 %v4607, %v4767
        %v4769 = vpop.f32.mrf.mxu0
        %v4770 = vpop.f32.mrf.mxu0
        %v4771 = vadd.f32 %v4610, %v4770
        %v4772 = vpop.f32.mrf.mxu0
        %4773 = vmatprep.mubr.bf16.mxu0 %v3604
        %4774 = vmatmul.mubr.bf16.gmra.mxu0 %v3556
        %v4775 = vpop.f32.mrf.mxu0
        %v4776 = vadd.f32 %v4615, %v4775
        %v4777 = vpop.f32.mrf.mxu0
        %v4778 = vpop.f32.mrf.mxu0
        %v4779 = vadd.f32 %v4618, %v4778
        %v4780 = vpop.f32.mrf.mxu0
        %4781 = vmatprep.mubr.bf16.mxu0 %v3605
        %4782 = vmatmul.mubr.bf16.gmra.mxu0 %v3557
        %v4783 = vpop.f32.mrf.mxu0
        %v4784 = vadd.f32 %v4623, %v4783
        %v4785 = vpop.f32.mrf.mxu0
        %v4786 = vpop.f32.mrf.mxu0
        %v4787 = vadd.f32 %v4626, %v4786
        %v4788 = vpop.f32.mrf.mxu0
        %4789 = vmatprep.mubr.bf16.mxu0 %v3606
        %4790 = vmatmul.mubr.bf16.gmra.mxu0 %v3558
        %v4791 = vpop.f32.mrf.mxu0
        %v4792 = vadd.f32 %v4631, %v4791
        %v4793 = vpop.f32.mrf.mxu0
        %v4794 = vpop.f32.mrf.mxu0
        %v4795 = vadd.f32 %v4634, %v4794
        %v4796 = vpop.f32.mrf.mxu0
        %4797 = vmatprep.mubr.bf16.mxu0 %v3607
        %4798 = vmatmul.mubr.bf16.gmra.mxu0 %v3559
        %v4799 = vpop.f32.mrf.mxu0
        %v4800 = vadd.f32 %v4639, %v4799
        %v4801 = vpop.f32.mrf.mxu0
        %v4802 = vpop.f32.mrf.mxu0
        %v4803 = vadd.f32 %v4642, %v4802
        %v4804 = vpop.f32.mrf.mxu0
        %4805 = vmatprep.mubr.bf16.mxu0 %v3608
        %4806 = vmatmul.mubr.bf16.gmra.mxu0 %v3560
        %v4807 = vpop.f32.mrf.mxu0
        %v4808 = vadd.f32 %v4647, %v4807
        %v4809 = vpop.f32.mrf.mxu0
        %v4810 = vpop.f32.mrf.mxu0
        %v4811 = vadd.f32 %v4650, %v4810
        %v4812 = vpop.f32.mrf.mxu0
        %4813 = vmatprep.mubr.bf16.mxu0 %v3609
        %4814 = vmatmul.mubr.bf16.gmra.mxu0 %v3561
        %v4815 = vpop.f32.mrf.mxu0
        %v4816 = vadd.f32 %v4655, %v4815
        %v4817 = vpop.f32.mrf.mxu0
        %v4818 = vpop.f32.mrf.mxu0
        %v4819 = vadd.f32 %v4658, %v4818
        %v4820 = vpop.f32.mrf.mxu0
        %4821 = vmatprep.mubr.bf16.mxu0 %v3610
        %4822 = vmatmul.mubr.bf16.gmra.mxu0 %v3562
        %v4823 = vpop.f32.mrf.mxu0
        %v4824 = vadd.f32 %v4663, %v4823
        %v4825 = vpop.f32.mrf.mxu0
        %v4826 = vpop.f32.mrf.mxu0
        %v4827 = vadd.f32 %v4666, %v4826
        %v4828 = vpop.f32.mrf.mxu0
        %4829 = vmatprep.mubr.bf16.mxu0 %v3611
        %4830 = vmatmul.mubr.bf16.gmra.mxu0 %v3563
        %v4831 = vpop.f32.mrf.mxu0
        %v4832 = vadd.f32 %v4671, %v4831
        %v4833 = vpop.f32.mrf.mxu0
        %v4834 = vpop.f32.mrf.mxu0
        %v4835 = vadd.f32 %v4674, %v4834
        %v4836 = vpop.f32.mrf.mxu0
        %4837 = vmatprep.mubr.bf16.mxu0 %v3612
        %4838 = vmatmul.mubr.bf16.gmra.mxu0 %v3564
        %v4839 = vpop.f32.mrf.mxu0
        %v4840 = vadd.f32 %v4679, %v4839
        %v4841 = vpop.f32.mrf.mxu0
        %v4842 = vpop.f32.mrf.mxu0
        %v4843 = vadd.f32 %v4682, %v4842
        %v4844 = vpop.f32.mrf.mxu0
        %4845 = vmatprep.mubr.bf16.mxu0 %v3613
        %4846 = vmatmul.mubr.bf16.gmra.mxu0 %v3565
        %v4847 = vpop.f32.mrf.mxu0
        %v4848 = vadd.f32 %v4687, %v4847
        %v4849 = vpop.f32.mrf.mxu0
        %v4850 = vpop.f32.mrf.mxu0
        %v4851 = vadd.f32 %v4690, %v4850
        %v4852 = vpop.f32.mrf.mxu0
        %4853 = vmatprep.mubr.bf16.mxu0 %v3614
        %4854 = vmatmul.mubr.bf16.gmra.mxu0 %v3566
        %v4855 = vpop.f32.mrf.mxu0
        %v4856 = vadd.f32 %v4695, %v4855
        %v4857 = vpop.f32.mrf.mxu0
        %v4858 = vpop.f32.mrf.mxu0
        %v4859 = vadd.f32 %v4698, %v4858
        %v4860 = vpop.f32.mrf.mxu0
        %4861 = vmatprep.mubr.bf16.mxu0 %v3615
        %4862 = vmatmul.mubr.bf16.gmra.mxu0 %v3567
        %v4863 = vpop.f32.mrf.mxu0
        %v4864 = vadd.f32 %v4703, %v4863
        %v4865 = vpop.f32.mrf.mxu0
        %v4866 = vpop.f32.mrf.mxu0
        %v4867 = vadd.f32 %v4706, %v4866
        %v4868 = vpop.f32.mrf.mxu0
        %4869 = vmatprep.mubr.bf16.mxu0 %v3616
        %4870 = vmatmul.mubr.bf16.gmra.mxu0 %v3568
        %v4871 = vpop.f32.mrf.mxu0
        %v4872 = vadd.f32 %v4711, %v4871
        %v4873 = vpop.f32.mrf.mxu0
        %v4874 = vpop.f32.mrf.mxu0
        %v4875 = vadd.f32 %v4714, %v4874
        %v4876 = vpop.f32.mrf.mxu0
        %4877 = vmatprep.mubr.bf16.mxu0 %v3617
        %4878 = vmatmul.mubr.bf16.gmra.mxu0 %v3569
        %v4879 = vpop.f32.mrf.mxu0
        %v4880 = vadd.f32 %v4719, %v4879
        %v4881 = vpop.f32.mrf.mxu0
        %v4882 = vpop.f32.mrf.mxu0
        %v4883 = vadd.f32 %v4722, %v4882
        %v4884 = vpop.f32.mrf.mxu0
        %4885 = vdwg.mxu0
        %4886 = vmatprep.subr.bf16.mxu0 0
        %4887 = vmatpush1.bf16.msra.mxu0 %v4169
        %4888 = vmatprep.subr.bf16.mxu0 0
        %4889 = vmatpush1.bf16.msra.mxu0 %v4168
        %4890 = vmatprep.subr.bf16.mxu0 0
        %4891 = vmatpush1.bf16.msra.mxu0 %v4167
        %4892 = vmatprep.subr.bf16.mxu0 0
        %4893 = vmatpush1.bf16.msra.mxu0 %v4166
        %4894 = vmatprep.subr.bf16.mxu0 0
        %4895 = vmatpush1.bf16.msra.mxu0 %v4165
        %4896 = vmatprep.subr.bf16.mxu0 0
        %4897 = vmatpush1.bf16.msra.mxu0 %v4164
        %4898 = vmatprep.subr.bf16.mxu0 0
        %4899 = vmatpush1.bf16.msra.mxu0 %v4163
        %4900 = vmatprep.subr.bf16.mxu0 0
        %4901 = vmatpush1.bf16.msra.mxu0 %v4162
        %4902 = vmatprep.subr.bf16.mxu0 0
        %4903 = vmatpush2.bf16.msra.mxu0 0
        %4904 = vmatprep.subr.bf16.mxu0 0
        %4905 = vmatpush2.bf16.msra.mxu0 0
        %4906 = vmatprep.subr.bf16.mxu0 0
        %4907 = vmatpush2.bf16.msra.mxu0 0
        %4908 = vmatprep.subr.bf16.mxu0 0
        %4909 = vmatpush2.bf16.msra.mxu0 0
        %4910 = vmatprep.subr.bf16.mxu0 0
        %4911 = vmatpush2.bf16.msra.mxu0 0
        %4912 = vmatprep.subr.bf16.mxu0 0
        %4913 = vmatpush2.bf16.msra.mxu0 0
        %4914 = vmatprep.subr.bf16.mxu0 0
        %4915 = vmatpush2.bf16.msra.mxu0 0
        %4916 = vmatprep.subr.bf16.mxu0 0
        %4917 = vmatpush2.bf16.msra.mxu0 0
        %4918 = vmatprep.mubr.bf16.mxu0 0
        %4919 = vmatmul.mubr.bf16.gmra.mxu0 %v3650
        %v4920 = vpop.f32.mrf.mxu0
        %v4921 = vadd.f32 %v4760, %v4920
        %v4922 = vpop.f32.mrf.mxu0
        %v4923 = vpop.f32.mrf.mxu0
        %v4924 = vadd.f32 %v4763, %v4923
        %v4925 = vpop.f32.mrf.mxu0
        %4926 = vmatprep.mubr.bf16.mxu0 0
        %4927 = vmatmul.mubr.bf16.gmra.mxu0 %v3651
        %v4928 = vpop.f32.mrf.mxu0
        %v4929 = vadd.f32 %v4768, %v4928
        %v4930 = vpop.f32.mrf.mxu0
        %v4931 = vpop.f32.mrf.mxu0
        %v4932 = vadd.f32 %v4771, %v4931
        %v4933 = vpop.f32.mrf.mxu0
        %4934 = vmatprep.mubr.bf16.mxu0 0
        %4935 = vmatmul.mubr.bf16.gmra.mxu0 %v3652
        %v4936 = vpop.f32.mrf.mxu0
        %v4937 = vadd.f32 %v4776, %v4936
        %v4938 = vpop.f32.mrf.mxu0
        %v4939 = vpop.f32.mrf.mxu0
        %v4940 = vadd.f32 %v4779, %v4939
        %v4941 = vpop.f32.mrf.mxu0
        %4942 = vmatprep.mubr.bf16.mxu0 0
        %4943 = vmatmul.mubr.bf16.gmra.mxu0 %v3653
        %v4944 = vpop.f32.mrf.mxu0
        %v4945 = vadd.f32 %v4784, %v4944
        %v4946 = vpop.f32.mrf.mxu0
        %v4947 = vpop.f32.mrf.mxu0
        %v4948 = vadd.f32 %v4787, %v4947
        %v4949 = vpop.f32.mrf.mxu0
        %4950 = vmatprep.mubr.bf16.mxu0 0
        %4951 = vmatmul.mubr.bf16.gmra.mxu0 %v3654
        %v4952 = vpop.f32.mrf.mxu0
        %v4953 = vadd.f32 %v4792, %v4952
        %v4954 = vpop.f32.mrf.mxu0
        %v4955 = vpop.f32.mrf.mxu0
        %v4956 = vadd.f32 %v4795, %v4955
        %v4957 = vpop.f32.mrf.mxu0
        %4958 = vmatprep.mubr.bf16.mxu0 0
        %4959 = vmatmul.mubr.bf16.gmra.mxu0 %v3655
        %v4960 = vpop.f32.mrf.mxu0
        %v4961 = vadd.f32 %v4800, %v4960
        %v4962 = vpop.f32.mrf.mxu0
        %v4963 = vpop.f32.mrf.mxu0
        %v4964 = vadd.f32 %v4803, %v4963
        %v4965 = vpop.f32.mrf.mxu0
        %4966 = vmatprep.mubr.bf16.mxu0 0
        %4967 = vmatmul.mubr.bf16.gmra.mxu0 %v3656
        %v4968 = vpop.f32.mrf.mxu0
        %v4969 = vadd.f32 %v4808, %v4968
        %v4970 = vpop.f32.mrf.mxu0
        %v4971 = vpop.f32.mrf.mxu0
        %v4972 = vadd.f32 %v4811, %v4971
        %v4973 = vpop.f32.mrf.mxu0
        %4974 = vmatprep.mubr.bf16.mxu0 0
        %4975 = vmatmul.mubr.bf16.gmra.mxu0 %v3657
        %v4976 = vpop.f32.mrf.mxu0
        %v4977 = vadd.f32 %v4816, %v4976
        %v4978 = vpop.f32.mrf.mxu0
        %v4979 = vpop.f32.mrf.mxu0
        %v4980 = vadd.f32 %v4819, %v4979
        %v4981 = vpop.f32.mrf.mxu0
        %4982 = vmatprep.mubr.bf16.mxu0 0
        %4983 = vmatmul.mubr.bf16.gmra.mxu0 %v3658
        %v4984 = vpop.f32.mrf.mxu0
        %v4985 = vadd.f32 %v4824, %v4984
        %v4986 = vpop.f32.mrf.mxu0
        %v4987 = vpop.f32.mrf.mxu0
        %v4988 = vadd.f32 %v4827, %v4987
        %v4989 = vpop.f32.mrf.mxu0
        %4990 = vmatprep.mubr.bf16.mxu0 0
        %4991 = vmatmul.mubr.bf16.gmra.mxu0 %v3659
        %v4992 = vpop.f32.mrf.mxu0
        %v4993 = vadd.f32 %v4832, %v4992
        %v4994 = vpop.f32.mrf.mxu0
        %v4995 = vpop.f32.mrf.mxu0
        %v4996 = vadd.f32 %v4835, %v4995
        %v4997 = vpop.f32.mrf.mxu0
        %4998 = vmatprep.mubr.bf16.mxu0 0
        %4999 = vmatmul.mubr.bf16.gmra.mxu0 %v3660
        %v5000 = vpop.f32.mrf.mxu0
        %v5001 = vadd.f32 %v4840, %v5000
        %v5002 = vpop.f32.mrf.mxu0
        %v5003 = vpop.f32.mrf.mxu0
        %v5004 = vadd.f32 %v4843, %v5003
        %v5005 = vpop.f32.mrf.mxu0
        %5006 = vmatprep.mubr.bf16.mxu0 0
        %5007 = vmatmul.mubr.bf16.gmra.mxu0 %v3661
        %v5008 = vpop.f32.mrf.mxu0
        %v5009 = vadd.f32 %v4848, %v5008
        %v5010 = vpop.f32.mrf.mxu0
        %v5011 = vpop.f32.mrf.mxu0
        %v5012 = vadd.f32 %v4851, %v5011
        %v5013 = vpop.f32.mrf.mxu0
        %5014 = vmatprep.mubr.bf16.mxu0 0
        %5015 = vmatmul.mubr.bf16.gmra.mxu0 %v3662
        %v5016 = vpop.f32.mrf.mxu0
        %v5017 = vadd.f32 %v4856, %v5016
        %v5018 = vpop.f32.mrf.mxu0
        %v5019 = vpop.f32.mrf.mxu0
        %v5020 = vadd.f32 %v4859, %v5019
        %v5021 = vpop.f32.mrf.mxu0
        %5022 = vmatprep.mubr.bf16.mxu0 0
        %5023 = vmatmul.mubr.bf16.gmra.mxu0 %v3663
        %v5024 = vpop.f32.mrf.mxu0
        %v5025 = vadd.f32 %v4864, %v5024
        %v5026 = vpop.f32.mrf.mxu0
        %v5027 = vpop.f32.mrf.mxu0
        %v5028 = vadd.f32 %v4867, %v5027
        %v5029 = vpop.f32.mrf.mxu0
        %5030 = vmatprep.mubr.bf16.mxu0 0
        %5031 = vmatmul.mubr.bf16.gmra.mxu0 %v3664
        %v5032 = vpop.f32.mrf.mxu0
        %v5033 = vadd.f32 %v4872, %v5032
        %v5034 = vpop.f32.mrf.mxu0
        %v5035 = vpop.f32.mrf.mxu0
        %v5036 = vadd.f32 %v4875, %v5035
        %v5037 = vpop.f32.mrf.mxu0
        %5038 = vmatprep.mubr.bf16.mxu0 0
        %5039 = vmatmul.mubr.bf16.gmra.mxu0 %v3665
        %v5040 = vpop.f32.mrf.mxu0
        %v5041 = vadd.f32 %v4880, %v5040
        %v5042 = vpop.f32.mrf.mxu0
        %v5043 = vpop.f32.mrf.mxu0
        %v5044 = vadd.f32 %v4883, %v5043
        %v5045 = vpop.f32.mrf.mxu0
        %5046 = vdwg.mxu0
        %v5047 = vadd.f32 %v2657, %v4921
        %v5048 = vadd.f32 %v2658, %v4924
        %v5049 = vadd.f32 %v2659, %v4929
        %v5050 = vadd.f32 %v2660, %v4932
        %v5051 = vadd.f32 %v2661, %v4937
        %v5052 = vadd.f32 %v2662, %v4940
        %v5053 = vadd.f32 %v2663, %v4945
        %v5054 = vadd.f32 %v2664, %v4948
        %v5055 = vadd.f32 %v2665, %v4953
        %v5056 = vadd.f32 %v2666, %v4956
        %v5057 = vadd.f32 %v2667, %v4961
        %v5058 = vadd.f32 %v2668, %v4964
        %v5059 = vadd.f32 %v2669, %v4969
        %v5060 = vadd.f32 %v2670, %v4972
        %v5061 = vadd.f32 %v2671, %v4977
        %v5062 = vadd.f32 %v2672, %v4980
        %v5063 = vadd.f32 %v2673, %v4985
        %v5064 = vadd.f32 %v2674, %v4988
        %v5065 = vadd.f32 %v2675, %v4993
        %v5066 = vadd.f32 %v2676, %v4996
        %v5067 = vadd.f32 %v2677, %v5001
        %v5068 = vadd.f32 %v2678, %v5004
        %v5069 = vadd.f32 %v2679, %v5009
        %v5070 = vadd.f32 %v2680, %v5012
        %v5071 = vadd.f32 %v2681, %v5017
        %v5072 = vadd.f32 %v2682, %v5020
        %v5073 = vadd.f32 %v2683, %v5025
        %v5074 = vadd.f32 %v2684, %v5028
        %v5075 = vadd.f32 %v2685, %v5033
        %v5076 = vadd.f32 %v2686, %v5036
        %v5077 = vadd.f32 %v2687, %v5041
        %v5078 = vadd.f32 %v2688, %v5044
        %v5079 = vld [vmem:[%s654] sm:$0x1]
        %v5081 = vlaneseq
        %v5082 = vshrl.u32 %v5081, 7
        %v5083 = vsub.s32 0, %v5082
        %v5084 = vrot.slane %v5079, %v5083
        %v5086 = vadd.f32 %v5047, %v5084
        %v5087 = vadd.f32 %v5048, %v5084
        %v5088 = vadd.f32 %v5049, %v5084
        %v5089 = vadd.f32 %v5050, %v5084
        %v5090 = vadd.f32 %v5051, %v5084
        %v5091 = vadd.f32 %v5052, %v5084
        %v5092 = vadd.f32 %v5053, %v5084
        %v5093 = vadd.f32 %v5054, %v5084
        %v5094 = vadd.f32 %v5055, %v5084
        %v5095 = vadd.f32 %v5056, %v5084
        %v5096 = vadd.f32 %v5057, %v5084
        %v5097 = vadd.f32 %v5058, %v5084
        %v5098 = vadd.f32 %v5059, %v5084
        %v5099 = vadd.f32 %v5060, %v5084
        %v5100 = vadd.f32 %v5061, %v5084
        %v5101 = vadd.f32 %v5062, %v5084
        %v5102 = vadd.f32 %v5063, %v5084
        %v5103 = vadd.f32 %v5064, %v5084
        %v5104 = vadd.f32 %v5065, %v5084
        %v5105 = vadd.f32 %v5066, %v5084
        %v5106 = vadd.f32 %v5067, %v5084
        %v5107 = vadd.f32 %v5068, %v5084
        %v5108 = vadd.f32 %v5069, %v5084
        %v5109 = vadd.f32 %v5070, %v5084
        %v5110 = vadd.f32 %v5071, %v5084
        %v5111 = vadd.f32 %v5072, %v5084
        %v5112 = vadd.f32 %v5073, %v5084
        %v5113 = vadd.f32 %v5074, %v5084
        %v5114 = vadd.f32 %v5075, %v5084
        %v5115 = vadd.f32 %v5076, %v5084
        %v5116 = vadd.f32 %v5077, %v5084
        %v5117 = vadd.f32 %v5078, %v5084
        %5118 = vst [vmem:[#allocation2] sm:$0xff] %v5086
        %5119 = vst [vmem:[#allocation2 + $0x8] sm:$0xff] %v5087
        %5120 = vst [vmem:[#allocation2 + $0x10] sm:$0xff] %v5088
        %5121 = vst [vmem:[#allocation2 + $0x18] sm:$0xff] %v5089
        %5122 = vst [vmem:[#allocation2 + $0x20] sm:$0xff] %v5090
        %5123 = vst [vmem:[#allocation2 + $0x28] sm:$0xff] %v5091
        %5124 = vst [vmem:[#allocation2 + $0x30] sm:$0xff] %v5092
        %5125 = vst [vmem:[#allocation2 + $0x38] sm:$0xff] %v5093
        %5126 = vst [vmem:[#allocation2 + $0x40] sm:$0xff] %v5094
        %5127 = vst [vmem:[#allocation2 + $0x48] sm:$0xff] %v5095
        %5128 = vst [vmem:[#allocation2 + $0x50] sm:$0xff] %v5096
        %5129 = vst [vmem:[#allocation2 + $0x58] sm:$0xff] %v5097
        %5130 = vst [vmem:[#allocation2 + $0x60] sm:$0xff] %v5098
        %5131 = vst [vmem:[#allocation2 + $0x68] sm:$0xff] %v5099
        %5132 = vst [vmem:[#allocation2 + $0x70] sm:$0xff] %v5100
        %5133 = vst [vmem:[#allocation2 + $0x78] sm:$0xff] %v5101
        %5134 = vst [vmem:[#allocation2 + $0x80] sm:$0xff] %v5102
        %5135 = vst [vmem:[#allocation2 + $0x88] sm:$0xff] %v5103
        %5136 = vst [vmem:[#allocation2 + $0x90] sm:$0xff] %v5104
        %5137 = vst [vmem:[#allocation2 + $0x98] sm:$0xff] %v5105
        %5138 = vst [vmem:[#allocation2 + $0xa0] sm:$0xff] %v5106
        %5139 = vst [vmem:[#allocation2 + $0xa8] sm:$0xff] %v5107
        %5140 = vst [vmem:[#allocation2 + $0xb0] sm:$0xff] %v5108
        %5141 = vst [vmem:[#allocation2 + $0xb8] sm:$0xff] %v5109
        %5142 = vst [vmem:[#allocation2 + $0xc0] sm:$0xff] %v5110
        %5143 = vst [vmem:[#allocation2 + $0xc8] sm:$0xff] %v5111
        %5144 = vst [vmem:[#allocation2 + $0xd0] sm:$0xff] %v5112
        %5145 = vst [vmem:[#allocation2 + $0xd8] sm:$0xff] %v5113
        %5146 = vst [vmem:[#allocation2 + $0xe0] sm:$0xff] %v5114
        %5147 = vst [vmem:[#allocation2 + $0xe8] sm:$0xff] %v5115
        %5148 = vst [vmem:[#allocation2 + $0xf0] sm:$0xff] %v5116
        %5149 = vst [vmem:[#allocation2 + $0xf8] sm:$0xff] %v5117
        %p5150 = scmp.eq.s32.totalorder %s33, 1
        // Predicated region
        $region93: #{densenet_forward.1} parent=79 // pred_check
          %p5151 = pneg %p5150
        $region94: #{densenet_forward.1} parent=79 // pred_check_branch
          %5153 = sbr.rel (%p5151) target = $region96
        $region95: #{densenet_forward.1} parent=79 // pred_region
          %v5154 = vld [vmem:[#allocation2] sm:$0xff]
          %v5155 = vld [vmem:[#allocation2 + $0x8] sm:$0xff]
          %v5156 = vld [vmem:[#allocation2 + $0x10] sm:$0xff]
          %v5157 = vld [vmem:[#allocation2 + $0x18] sm:$0xff]
          %v5158 = vld [vmem:[#allocation2 + $0x20] sm:$0xff]
          %v5159 = vld [vmem:[#allocation2 + $0x28] sm:$0xff]
          %v5160 = vld [vmem:[#allocation2 + $0x30] sm:$0xff]
          %v5161 = vld [vmem:[#allocation2 + $0x38] sm:$0xff]
          %v5162 = vld [vmem:[#allocation2 + $0x40] sm:$0xff]
          %v5163 = vld [vmem:[#allocation2 + $0x48] sm:$0xff]
          %v5164 = vld [vmem:[#allocation2 + $0x50] sm:$0xff]
          %v5165 = vld [vmem:[#allocation2 + $0x58] sm:$0xff]
          %v5166 = vld [vmem:[#allocation2 + $0x60] sm:$0xff]
          %v5167 = vld [vmem:[#allocation2 + $0x68] sm:$0xff]
          %v5168 = vld [vmem:[#allocation2 + $0x70] sm:$0xff]
          %v5169 = vld [vmem:[#allocation2 + $0x78] sm:$0xff]
          %v5170 = vld [vmem:[#allocation2 + $0x80] sm:$0xff]
          %v5171 = vld [vmem:[#allocation2 + $0x88] sm:$0xff]
          %v5172 = vld [vmem:[#allocation2 + $0x90] sm:$0xff]
          %v5173 = vld [vmem:[#allocation2 + $0x98] sm:$0xff]
          %v5174 = vld [vmem:[#allocation2 + $0xa0] sm:$0xff]
          %v5175 = vld [vmem:[#allocation2 + $0xa8] sm:$0xff]
          %v5176 = vld [vmem:[#allocation2 + $0xb0] sm:$0xff]
          %v5177 = vld [vmem:[#allocation2 + $0xb8] sm:$0xff]
          %v5178 = vld [vmem:[#allocation2 + $0xc0] sm:$0xff]
          %v5179 = vld [vmem:[#allocation2 + $0xc8] sm:$0xff]
          %v5180 = vld [vmem:[#allocation2 + $0xd0] sm:$0xff]
          %v5181 = vld [vmem:[#allocation2 + $0xd8] sm:$0xff]
          %v5182 = vld [vmem:[#allocation2 + $0xe0] sm:$0xff]
          %v5183 = vld [vmem:[#allocation2 + $0xe8] sm:$0xff]
          %v5184 = vld [vmem:[#allocation2 + $0xf0] sm:$0xff]
          %v5185 = vld [vmem:[#allocation2 + $0xf8] sm:$0xff]
          %v5186 = vadd.f32 %v5154, %v5155
          %v5187 = vadd.f32 %v5186, %v5156
          %v5188 = vadd.f32 %v5187, %v5157
          %v5189 = vadd.f32 %v5188, %v5158
          %v5190 = vadd.f32 %v5189, %v5159
          %v5191 = vadd.f32 %v5190, %v5160
          %v5192 = vadd.f32 %v5191, %v5161
          %v5193 = vadd.f32 %v5192, %v5162
          %v5194 = vadd.f32 %v5193, %v5163
          %v5195 = vadd.f32 %v5194, %v5164
          %v5196 = vadd.f32 %v5195, %v5165
          %v5197 = vadd.f32 %v5196, %v5166
          %v5198 = vadd.f32 %v5197, %v5167
          %v5199 = vadd.f32 %v5198, %v5168
          %v5200 = vadd.f32 %v5199, %v5169
          %v5201 = vadd.f32 %v5200, %v5170
          %v5202 = vadd.f32 %v5201, %v5171
          %v5203 = vadd.f32 %v5202, %v5172
          %v5204 = vadd.f32 %v5203, %v5173
          %v5205 = vadd.f32 %v5204, %v5174
          %v5206 = vadd.f32 %v5205, %v5175
          %v5207 = vadd.f32 %v5206, %v5176
          %v5208 = vadd.f32 %v5207, %v5177
          %v5209 = vadd.f32 %v5208, %v5178
          %v5210 = vadd.f32 %v5209, %v5179
          %v5211 = vadd.f32 %v5210, %v5180
          %v5212 = vadd.f32 %v5211, %v5181
          %v5213 = vadd.f32 %v5212, %v5182
          %v5214 = vadd.f32 %v5213, %v5183
          %v5215 = vadd.f32 %v5214, %v5184
          %v5216 = vadd.f32 %v5215, %v5185
          %v5217 = vrot.slane %v5216, 4
          %v5218 = vadd.f32 %v5216, %v5217
          %v5219 = vrot.slane %v5218, 2
          %v5220 = vadd.f32 %v5218, %v5219
          %v5221 = vrot.slane %v5220, 1
          %v5222 = vadd.f32 %v5220, %v5221
          %v5223 = vmul.f32 %v5222, 0.00390625
          %v5224 = vpack.c.bf16 %v5223, %v5223
          %v5225 = vld [vmem:[#allocation6] sm:$0xff]
          %v5226 = vld [vmem:[#allocation6 + $0x8] sm:$0xff]
          %v5227 = vld [vmem:[#allocation6 + $0x10] sm:$0xff]
          %v5228 = vld [vmem:[#allocation6 + $0x18] sm:$0xff]
          %v5229 = vld [vmem:[#allocation6 + $0x20] sm:$0xff]
          %v5230 = vld [vmem:[#allocation6 + $0x28] sm:$0xff]
          %v5231 = vld [vmem:[#allocation6 + $0x30] sm:$0xff]
          %v5232 = vld [vmem:[#allocation6 + $0x38] sm:$0xff]
          %v5233 = vld [vmem:[#allocation6 + $0x40] sm:$0xff]
          %v5234 = vld [vmem:[#allocation6 + $0x48] sm:$0xff]
          %v5235 = vld [vmem:[#allocation6 + $0x50] sm:$0xff]
          %v5236 = vld [vmem:[#allocation6 + $0x58] sm:$0xff]
          %v5237 = vld [vmem:[#allocation6 + $0x60] sm:$0xff]
          %v5238 = vld [vmem:[#allocation6 + $0x68] sm:$0xff]
          %v5239 = vld [vmem:[#allocation6 + $0x70] sm:$0xff]
          %v5240 = vld [vmem:[#allocation6 + $0x78] sm:$0xff]
          %v5241 = vld [vmem:[#allocation6 + $0x80] sm:$0xff]
          %v5242 = vld [vmem:[#allocation6 + $0x88] sm:$0xff]
          %v5243 = vld [vmem:[#allocation6 + $0x90] sm:$0xff]
          %v5244 = vld [vmem:[#allocation6 + $0x98] sm:$0xff]
          %v5245 = vld [vmem:[#allocation6 + $0xa0] sm:$0xff]
          %v5246 = vld [vmem:[#allocation6 + $0xa8] sm:$0xff]
          %v5247 = vld [vmem:[#allocation6 + $0xb0] sm:$0xff]
          %v5248 = vld [vmem:[#allocation6 + $0xb8] sm:$0xff]
          %v5249 = vld [vmem:[#allocation6 + $0xc0] sm:$0xff]
          %v5250 = vld [vmem:[#allocation6 + $0xc8] sm:$0xff]
          %v5251 = vld [vmem:[#allocation6 + $0xd0] sm:$0xff]
          %v5252 = vld [vmem:[#allocation6 + $0xd8] sm:$0xff]
          %v5253 = vld [vmem:[#allocation6 + $0xe0] sm:$0xff]
          %v5254 = vld [vmem:[#allocation6 + $0xe8] sm:$0xff]
          %v5255 = vld [vmem:[#allocation6 + $0xf0] sm:$0xff]
          %v5256 = vld [vmem:[#allocation6 + $0xf8] sm:$0xff]
          %v5257 = vld [vmem:[%s12] sm:$0xf]
          %v5290 = vunpack.c.l.b16 %v5225
          %v5291 = vunpack.c.h.b16 %v5225
          %v5292 = vunpack.c.l.b16 %v5226
          %v5293 = vunpack.c.h.b16 %v5226
          %v5294 = vunpack.c.l.b16 %v5227
          %v5295 = vunpack.c.h.b16 %v5227
          %v5296 = vunpack.c.l.b16 %v5228
          %v5297 = vunpack.c.h.b16 %v5228
          %v5298 = vunpack.c.l.b16 %v5229
          %v5299 = vunpack.c.h.b16 %v5229
          %v5300 = vunpack.c.l.b16 %v5230
          %v5301 = vunpack.c.h.b16 %v5230
          %v5302 = vunpack.c.l.b16 %v5231
          %v5303 = vunpack.c.h.b16 %v5231
          %v5304 = vunpack.c.l.b16 %v5232
          %v5305 = vunpack.c.h.b16 %v5232
          %v5306 = vunpack.c.l.b16 %v5233
          %v5307 = vunpack.c.h.b16 %v5233
          %v5308 = vunpack.c.l.b16 %v5234
          %v5309 = vunpack.c.h.b16 %v5234
          %v5310 = vunpack.c.l.b16 %v5235
          %v5311 = vunpack.c.h.b16 %v5235
          %v5312 = vunpack.c.l.b16 %v5236
          %v5313 = vunpack.c.h.b16 %v5236
          %v5314 = vunpack.c.l.b16 %v5237
          %v5315 = vunpack.c.h.b16 %v5237
          %v5316 = vunpack.c.l.b16 %v5238
          %v5317 = vunpack.c.h.b16 %v5238
          %v5318 = vunpack.c.l.b16 %v5239
          %v5319 = vunpack.c.h.b16 %v5239
          %v5320 = vunpack.c.l.b16 %v5240
          %v5321 = vunpack.c.h.b16 %v5240
          %v5322 = vunpack.c.l.b16 %v5241
          %v5323 = vunpack.c.h.b16 %v5241
          %v5324 = vunpack.c.l.b16 %v5242
          %v5325 = vunpack.c.h.b16 %v5242
          %v5326 = vunpack.c.l.b16 %v5243
          %v5327 = vunpack.c.h.b16 %v5243
          %v5328 = vunpack.c.l.b16 %v5244
          %v5329 = vunpack.c.h.b16 %v5244
          %v5330 = vunpack.c.l.b16 %v5245
          %v5331 = vunpack.c.h.b16 %v5245
          %v5332 = vunpack.c.l.b16 %v5246
          %v5333 = vunpack.c.h.b16 %v5246
          %v5334 = vunpack.c.l.b16 %v5247
          %v5335 = vunpack.c.h.b16 %v5247
          %v5336 = vunpack.c.l.b16 %v5248
          %v5337 = vunpack.c.h.b16 %v5248
          %v5338 = vunpack.c.l.b16 %v5249
          %v5339 = vunpack.c.h.b16 %v5249
          %v5340 = vunpack.c.l.b16 %v5250
          %v5341 = vunpack.c.h.b16 %v5250
          %v5342 = vunpack.c.l.b16 %v5251
          %v5343 = vunpack.c.h.b16 %v5251
          %v5344 = vunpack.c.l.b16 %v5252
          %v5345 = vunpack.c.h.b16 %v5252
          %v5346 = vunpack.c.l.b16 %v5253
          %v5347 = vunpack.c.h.b16 %v5253
          %v5348 = vunpack.c.l.b16 %v5254
          %v5349 = vunpack.c.h.b16 %v5254
          %v5350 = vunpack.c.l.b16 %v5255
          %v5351 = vunpack.c.h.b16 %v5255
          %v5352 = vunpack.c.l.b16 %v5256
          %v5353 = vunpack.c.h.b16 %v5256
          %v5354 = vpack.c.b16 %v5294, %v5290
          %v5355 = vpack.c.b16 %v5295, %v5291
          %v5356 = vpack.c.b16 %v5296, %v5292
          %v5357 = vpack.c.b16 %v5297, %v5293
          %v5358 = vpack.c.b16 %v5302, %v5298
          %v5359 = vpack.c.b16 %v5303, %v5299
          %v5360 = vpack.c.b16 %v5304, %v5300
          %v5361 = vpack.c.b16 %v5305, %v5301
          %v5362 = vpack.c.b16 %v5310, %v5306
          %v5363 = vpack.c.b16 %v5311, %v5307
          %v5364 = vpack.c.b16 %v5312, %v5308
          %v5365 = vpack.c.b16 %v5313, %v5309
          %v5366 = vpack.c.b16 %v5318, %v5314
          %v5367 = vpack.c.b16 %v5319, %v5315
          %v5368 = vpack.c.b16 %v5320, %v5316
          %v5369 = vpack.c.b16 %v5321, %v5317
          %v5370 = vpack.c.b16 %v5326, %v5322
          %v5371 = vpack.c.b16 %v5327, %v5323
          %v5372 = vpack.c.b16 %v5328, %v5324
          %v5373 = vpack.c.b16 %v5329, %v5325
          %v5374 = vpack.c.b16 %v5334, %v5330
          %v5375 = vpack.c.b16 %v5335, %v5331
          %v5376 = vpack.c.b16 %v5336, %v5332
          %v5377 = vpack.c.b16 %v5337, %v5333
          %v5378 = vpack.c.b16 %v5342, %v5338
          %v5379 = vpack.c.b16 %v5343, %v5339
          %v5380 = vpack.c.b16 %v5344, %v5340
          %v5381 = vpack.c.b16 %v5345, %v5341
          %v5382 = vpack.c.b16 %v5350, %v5346
          %v5383 = vpack.c.b16 %v5351, %v5347
          %v5384 = vpack.c.b16 %v5352, %v5348
          %v5385 = vpack.c.b16 %v5353, %v5349
          %v5419 = vlaneseq
          %v5420 = vshrl.u32 %v5419, 7
          %v5421 = vsub.s32 0, %v5420
          %v5422 = vrot.slane %v5257, %v5421
          %v5423 = vlaneseq
          %v5424 = vshrl.u32 %v5423, 7
          %v5425 = vsub.s32 1, %v5424
          %v5426 = vrot.slane %v5257, %v5425
          %v5427 = vlaneseq
          %v5428 = vshrl.u32 %v5427, 7
          %v5429 = vsub.s32 2, %v5428
          %v5430 = vrot.slane %v5257, %v5429
          %v5431 = vlaneseq
          %v5432 = vshrl.u32 %v5431, 7
          %v5433 = vsub.s32 3, %v5432
          %v5434 = vrot.slane %v5257, %v5433
          %5439 = vmatprep.subr.bf16.mxu0 %v5383
          %5440 = vmatpush1.bf16.msra.mxu0 %v5382
          %5441 = vmatprep.subr.bf16.mxu0 %v5379
          %5442 = vmatpush1.bf16.msra.mxu0 %v5378
          %5443 = vmatprep.subr.bf16.mxu0 %v5375
          %5444 = vmatpush1.bf16.msra.mxu0 %v5374
          %5445 = vmatprep.subr.bf16.mxu0 %v5371
          %5446 = vmatpush1.bf16.msra.mxu0 %v5370
          %5447 = vmatprep.subr.bf16.mxu0 %v5367
          %5448 = vmatpush1.bf16.msra.mxu0 %v5366
          %5449 = vmatprep.subr.bf16.mxu0 %v5363
          %5450 = vmatpush1.bf16.msra.mxu0 %v5362
          %5451 = vmatprep.subr.bf16.mxu0 %v5359
          %5452 = vmatpush1.bf16.msra.mxu0 %v5358
          %5453 = vmatprep.subr.bf16.mxu0 %v5355
          %5454 = vmatpush1.bf16.msra.mxu0 %v5354
          %5455 = vmatprep.subr.bf16.mxu0 0
          %5456 = vmatpush2.bf16.msra.mxu0 0
          %5457 = vmatprep.subr.bf16.mxu0 0
          %5458 = vmatpush2.bf16.msra.mxu0 0
          %5459 = vmatprep.subr.bf16.mxu0 0
          %5460 = vmatpush2.bf16.msra.mxu0 0
          %5461 = vmatprep.subr.bf16.mxu0 0
          %5462 = vmatpush2.bf16.msra.mxu0 0
          %5463 = vmatprep.subr.bf16.mxu0 0
          %5464 = vmatpush2.bf16.msra.mxu0 0
          %5465 = vmatprep.subr.bf16.mxu0 0
          %5466 = vmatpush2.bf16.msra.mxu0 0
          %5467 = vmatprep.subr.bf16.mxu0 0
          %5468 = vmatpush2.bf16.msra.mxu0 0
          %5469 = vmatprep.subr.bf16.mxu0 0
          %5470 = vmatpush2.bf16.msra.mxu0 0
          %5471 = vmatprep.mubr.bf16.mxu0 0
          %5472 = vmatmul.mubr.bf16.gmra.mxu0 %v5224
          %v5473 = vpop.f32.mrf.mxu0
          %v5474 = vadd.f32 %v5422, %v5473
          %v5475 = vpop.f32.mrf.mxu0
          %v5476 = vadd.f32 %v5426, %v5475
          %v5477 = vpop.f32.mrf.mxu0
          %v5478 = vpop.f32.mrf.mxu0
          %5479 = vdwg.mxu0
          %5480 = vmatprep.subr.bf16.mxu0 %v5385
          %5481 = vmatpush1.bf16.msra.mxu0 %v5384
          %5482 = vmatprep.subr.bf16.mxu0 %v5381
          %5483 = vmatpush1.bf16.msra.mxu0 %v5380
          %5484 = vmatprep.subr.bf16.mxu0 %v5377
          %5485 = vmatpush1.bf16.msra.mxu0 %v5376
          %5486 = vmatprep.subr.bf16.mxu0 %v5373
          %5487 = vmatpush1.bf16.msra.mxu0 %v5372
          %5488 = vmatprep.subr.bf16.mxu0 %v5369
          %5489 = vmatpush1.bf16.msra.mxu0 %v5368
          %5490 = vmatprep.subr.bf16.mxu0 %v5365
          %5491 = vmatpush1.bf16.msra.mxu0 %v5364
          %5492 = vmatprep.subr.bf16.mxu0 %v5361
          %5493 = vmatpush1.bf16.msra.mxu0 %v5360
          %5494 = vmatprep.subr.bf16.mxu0 %v5357
          %5495 = vmatpush1.bf16.msra.mxu0 %v5356
          %5496 = vmatprep.subr.bf16.mxu0 0
          %5497 = vmatpush2.bf16.msra.mxu0 0
          %5498 = vmatprep.subr.bf16.mxu0 0
          %5499 = vmatpush2.bf16.msra.mxu0 0
          %5500 = vmatprep.subr.bf16.mxu0 0
          %5501 = vmatpush2.bf16.msra.mxu0 0
          %5502 = vmatprep.subr.bf16.mxu0 0
          %5503 = vmatpush2.bf16.msra.mxu0 0
          %5504 = vmatprep.subr.bf16.mxu0 0
          %5505 = vmatpush2.bf16.msra.mxu0 0
          %5506 = vmatprep.subr.bf16.mxu0 0
          %5507 = vmatpush2.bf16.msra.mxu0 0
          %5508 = vmatprep.subr.bf16.mxu0 0
          %5509 = vmatpush2.bf16.msra.mxu0 0
          %5510 = vmatprep.subr.bf16.mxu0 0
          %5511 = vmatpush2.bf16.msra.mxu0 0
          %5512 = vmatprep.mubr.bf16.mxu0 0
          %5513 = vmatmul.mubr.bf16.gmra.mxu0 %v5224
          %v5514 = vpop.f32.mrf.mxu0
          %v5515 = vadd.f32 %v5430, %v5514
          %v5516 = vpop.f32.mrf.mxu0
          %v5517 = vadd.f32 %v5434, %v5516
          %v5518 = vpop.f32.mrf.mxu0
          %v5519 = vpop.f32.mrf.mxu0
          %5520 = vdwg.mxu0
          %v5521 = vxor.u32 %v5474, 2147483648
          %v5522 = vxor.u32 %v5476, 2147483648
          %v5523 = vxor.u32 %v5515, 2147483648
          %v5524 = vxor.u32 %v5517, 2147483648
          %v5525 = vmul.f32 %v5521, 1.442695
          %v5526 = vpow.pop %v5525
          %v5527 = vmul.f32 %v5522, 1.442695
          %v5528 = vpow.pop %v5527
          %v5529 = vmul.f32 %v5523, 1.442695
          %v5530 = vpow.pop %v5529
          %v5531 = vmul.f32 %v5524, 1.442695
          %v5532 = vpow.pop %v5531
          %v5533 = vadd.f32 %v5526, 1.0
          %v5534 = vadd.f32 %v5528, 1.0
          %v5535 = vadd.f32 %v5530, 1.0
          %v5536 = vadd.f32 %v5532, 1.0
          %v5537 = vrcp.pop %v5533
          %v5538 = vmul.f32 1.0, %v5537
          %v5539 = vrcp.pop %v5534
          %v5540 = vmul.f32 1.0, %v5539
          %v5541 = vrcp.pop %v5535
          %v5542 = vmul.f32 1.0, %v5541
          %v5543 = vrcp.pop %v5536
          %v5544 = vmul.f32 1.0, %v5543
          %v5545 = vmul.f32 %v5474, %v5538
          %v5546 = vmul.f32 %v5476, %v5540
          %v5547 = vmul.f32 %v5515, %v5542
          %v5548 = vmul.f32 %v5517, %v5544
          %v5549 = vpack.c.bf16 %v5545, %v5545
          %v5550 = vpack.c.bf16 %v5546, %v5546
          %v5551 = vpack.c.bf16 %v5547, %v5547
          %v5552 = vpack.c.bf16 %v5548, %v5548
          %v5553 = vld [vmem:[%s13] sm:$0xf]
          %v5554 = vld [vmem:[%s13 + $0x4] sm:$0xf]
          %v5555 = vld [vmem:[%s13 + $0x8] sm:$0xf]
          %v5556 = vld [vmem:[%s13 + $0xc] sm:$0xf]
          %v5557 = vld [vmem:[%s13 + $0x10] sm:$0xf]
          %v5558 = vld [vmem:[%s13 + $0x14] sm:$0xf]
          %v5559 = vld [vmem:[%s13 + $0x18] sm:$0xf]
          %v5560 = vld [vmem:[%s13 + $0x1c] sm:$0xf]
          %v5561 = vld [vmem:[%s13 + $0x20] sm:$0xf]
          %v5562 = vld [vmem:[%s13 + $0x24] sm:$0xf]
          %v5563 = vld [vmem:[%s13 + $0x28] sm:$0xf]
          %v5564 = vld [vmem:[%s13 + $0x2c] sm:$0xf]
          %v5565 = vld [vmem:[%s13 + $0x30] sm:$0xf]
          %v5566 = vld [vmem:[%s13 + $0x34] sm:$0xf]
          %v5567 = vld [vmem:[%s13 + $0x38] sm:$0xf]
          %v5568 = vld [vmem:[%s13 + $0x3c] sm:$0xf]
          %v5569 = vld [vmem:[%s13 + $0x40] sm:$0xf]
          %v5570 = vld [vmem:[%s13 + $0x44] sm:$0xf]
          %v5571 = vld [vmem:[%s13 + $0x48] sm:$0xf]
          %v5572 = vld [vmem:[%s13 + $0x4c] sm:$0xf]
          %v5573 = vld [vmem:[%s13 + $0x50] sm:$0xf]
          %v5574 = vld [vmem:[%s13 + $0x54] sm:$0xf]
          %v5575 = vld [vmem:[%s13 + $0x58] sm:$0xf]
          %v5576 = vld [vmem:[%s13 + $0x5c] sm:$0xf]
          %v5577 = vld [vmem:[%s13 + $0x60] sm:$0xf]
          %v5578 = vld [vmem:[%s13 + $0x64] sm:$0xf]
          %v5579 = vld [vmem:[%s13 + $0x68] sm:$0xf]
          %v5580 = vld [vmem:[%s13 + $0x6c] sm:$0xf]
          %v5581 = vld [vmem:[%s13 + $0x70] sm:$0xf]
          %v5582 = vld [vmem:[%s13 + $0x74] sm:$0xf]
          %v5583 = vld [vmem:[%s13 + $0x78] sm:$0xf]
          %v5584 = vld [vmem:[%s13 + $0x7c] sm:$0xf]
          %v5585 = vld [vmem:[%s13 + $0x80] sm:$0xf]
          %v5586 = vld [vmem:[%s13 + $0x84] sm:$0xf]
          %v5587 = vld [vmem:[%s13 + $0x88] sm:$0xf]
          %v5588 = vld [vmem:[%s13 + $0x8c] sm:$0xf]
          %v5589 = vld [vmem:[%s13 + $0x90] sm:$0xf]
          %v5590 = vld [vmem:[%s13 + $0x94] sm:$0xf]
          %v5591 = vld [vmem:[%s13 + $0x98] sm:$0xf]
          %v5592 = vld [vmem:[%s13 + $0x9c] sm:$0xf]
          %v5593 = vld [vmem:[%s13 + $0xa0] sm:$0xf]
          %v5594 = vld [vmem:[%s13 + $0xa4] sm:$0xf]
          %v5595 = vld [vmem:[%s13 + $0xa8] sm:$0xf]
          %v5596 = vld [vmem:[%s13 + $0xac] sm:$0xf]
          %v5597 = vld [vmem:[%s13 + $0xb0] sm:$0xf]
          %v5598 = vld [vmem:[%s13 + $0xb4] sm:$0xf]
          %v5599 = vld [vmem:[%s13 + $0xb8] sm:$0xf]
          %v5600 = vld [vmem:[%s13 + $0xbc] sm:$0xf]
          %v5601 = vld [vmem:[%s13 + $0xc0] sm:$0xf]
          %v5602 = vld [vmem:[%s13 + $0xc4] sm:$0xf]
          %v5603 = vld [vmem:[%s13 + $0xc8] sm:$0xf]
          %v5604 = vld [vmem:[%s13 + $0xcc] sm:$0xf]
          %v5605 = vld [vmem:[%s13 + $0xd0] sm:$0xf]
          %v5606 = vld [vmem:[%s13 + $0xd4] sm:$0xf]
          %v5607 = vld [vmem:[%s13 + $0xd8] sm:$0xf]
          %v5608 = vld [vmem:[%s13 + $0xdc] sm:$0xf]
          %v5609 = vld [vmem:[%s13 + $0xe0] sm:$0xf]
          %v5610 = vld [vmem:[%s13 + $0xe4] sm:$0xf]
          %v5611 = vld [vmem:[%s13 + $0xe8] sm:$0xf]
          %v5612 = vld [vmem:[%s13 + $0xec] sm:$0xf]
          %v5613 = vld [vmem:[%s13 + $0xf0] sm:$0xf]
          %v5614 = vld [vmem:[%s13 + $0xf4] sm:$0xf]
          %v5615 = vld [vmem:[%s13 + $0xf8] sm:$0xf]
          %v5616 = vld [vmem:[%s13 + $0xfc] sm:$0xf]
          %v5617 = vld [vmem:[%s14] sm:$0x1]
          %v5682 = vunpack.c.l.b16 %v5553
          %v5683 = vunpack.c.l.b16 %v5554
          %v5684 = vunpack.c.l.b16 %v5555
          %v5685 = vunpack.c.l.b16 %v5556
          %v5686 = vunpack.c.l.b16 %v5557
          %v5687 = vunpack.c.l.b16 %v5558
          %v5688 = vunpack.c.l.b16 %v5559
          %v5689 = vunpack.c.l.b16 %v5560
          %v5690 = vunpack.c.l.b16 %v5561
          %v5691 = vunpack.c.l.b16 %v5562
          %v5692 = vunpack.c.l.b16 %v5563
          %v5693 = vunpack.c.l.b16 %v5564
          %v5694 = vunpack.c.l.b16 %v5565
          %v5695 = vunpack.c.l.b16 %v5566
          %v5696 = vunpack.c.l.b16 %v5567
          %v5697 = vunpack.c.l.b16 %v5568
          %v5698 = vunpack.c.l.b16 %v5569
          %v5699 = vunpack.c.l.b16 %v5570
          %v5700 = vunpack.c.l.b16 %v5571
          %v5701 = vunpack.c.l.b16 %v5572
          %v5702 = vunpack.c.l.b16 %v5573
          %v5703 = vunpack.c.l.b16 %v5574
          %v5704 = vunpack.c.l.b16 %v5575
          %v5705 = vunpack.c.l.b16 %v5576
          %v5706 = vunpack.c.l.b16 %v5577
          %v5707 = vunpack.c.l.b16 %v5578
          %v5708 = vunpack.c.l.b16 %v5579
          %v5709 = vunpack.c.l.b16 %v5580
          %v5710 = vunpack.c.l.b16 %v5581
          %v5711 = vunpack.c.l.b16 %v5582
          %v5712 = vunpack.c.l.b16 %v5583
          %v5713 = vunpack.c.l.b16 %v5584
          %v5714 = vunpack.c.l.b16 %v5585
          %v5715 = vunpack.c.l.b16 %v5586
          %v5716 = vunpack.c.l.b16 %v5587
          %v5717 = vunpack.c.l.b16 %v5588
          %v5718 = vunpack.c.l.b16 %v5589
          %v5719 = vunpack.c.l.b16 %v5590
          %v5720 = vunpack.c.l.b16 %v5591
          %v5721 = vunpack.c.l.b16 %v5592
          %v5722 = vunpack.c.l.b16 %v5593
          %v5723 = vunpack.c.l.b16 %v5594
          %v5724 = vunpack.c.l.b16 %v5595
          %v5725 = vunpack.c.l.b16 %v5596
          %v5726 = vunpack.c.l.b16 %v5597
          %v5727 = vunpack.c.l.b16 %v5598
          %v5728 = vunpack.c.l.b16 %v5599
          %v5729 = vunpack.c.l.b16 %v5600
          %v5730 = vunpack.c.l.b16 %v5601
          %v5731 = vunpack.c.l.b16 %v5602
          %v5732 = vunpack.c.l.b16 %v5603
          %v5733 = vunpack.c.l.b16 %v5604
          %v5734 = vunpack.c.l.b16 %v5605
          %v5735 = vunpack.c.l.b16 %v5606
          %v5736 = vunpack.c.l.b16 %v5607
          %v5737 = vunpack.c.l.b16 %v5608
          %v5738 = vunpack.c.l.b16 %v5609
          %v5739 = vunpack.c.l.b16 %v5610
          %v5740 = vunpack.c.l.b16 %v5611
          %v5741 = vunpack.c.l.b16 %v5612
          %v5742 = vunpack.c.l.b16 %v5613
          %v5743 = vunpack.c.l.b16 %v5614
          %v5744 = vunpack.c.l.b16 %v5615
          %v5745 = vunpack.c.l.b16 %v5616
          %v5746 = vpack.c.b16 %v5683, %v5682
          %v5747 = vpack.c.b16 %v5685, %v5684
          %v5748 = vpack.c.b16 %v5687, %v5686
          %v5749 = vpack.c.b16 %v5689, %v5688
          %v5750 = vpack.c.b16 %v5691, %v5690
          %v5751 = vpack.c.b16 %v5693, %v5692
          %v5752 = vpack.c.b16 %v5695, %v5694
          %v5753 = vpack.c.b16 %v5697, %v5696
          %v5754 = vpack.c.b16 %v5699, %v5698
          %v5755 = vpack.c.b16 %v5701, %v5700
          %v5756 = vpack.c.b16 %v5703, %v5702
          %v5757 = vpack.c.b16 %v5705, %v5704
          %v5758 = vpack.c.b16 %v5707, %v5706
          %v5759 = vpack.c.b16 %v5709, %v5708
          %v5760 = vpack.c.b16 %v5711, %v5710
          %v5761 = vpack.c.b16 %v5713, %v5712
          %v5762 = vpack.c.b16 %v5715, %v5714
          %v5763 = vpack.c.b16 %v5717, %v5716
          %v5764 = vpack.c.b16 %v5719, %v5718
          %v5765 = vpack.c.b16 %v5721, %v5720
          %v5766 = vpack.c.b16 %v5723, %v5722
          %v5767 = vpack.c.b16 %v5725, %v5724
          %v5768 = vpack.c.b16 %v5727, %v5726
          %v5769 = vpack.c.b16 %v5729, %v5728
          %v5770 = vpack.c.b16 %v5731, %v5730
          %v5771 = vpack.c.b16 %v5733, %v5732
          %v5772 = vpack.c.b16 %v5735, %v5734
          %v5773 = vpack.c.b16 %v5737, %v5736
          %v5774 = vpack.c.b16 %v5739, %v5738
          %v5775 = vpack.c.b16 %v5741, %v5740
          %v5776 = vpack.c.b16 %v5743, %v5742
          %v5777 = vpack.c.b16 %v5745, %v5744
          %5810 = vmatprep.subr.bf16.mxu0 0
          %5811 = vmatpush1.bf16.msra.mxu0 %v5753
          %5812 = vmatprep.subr.bf16.mxu0 0
          %5813 = vmatpush1.bf16.msra.mxu0 %v5752
          %5814 = vmatprep.subr.bf16.mxu0 0
          %5815 = vmatpush1.bf16.msra.mxu0 %v5751
          %5816 = vmatprep.subr.bf16.mxu0 0
          %5817 = vmatpush1.bf16.msra.mxu0 %v5750
          %5818 = vmatprep.subr.bf16.mxu0 0
          %5819 = vmatpush1.bf16.msra.mxu0 %v5749
          %5820 = vmatprep.subr.bf16.mxu0 0
          %5821 = vmatpush1.bf16.msra.mxu0 %v5748
          %5822 = vmatprep.subr.bf16.mxu0 0
          %5823 = vmatpush1.bf16.msra.mxu0 %v5747
          %5824 = vmatprep.subr.bf16.mxu0 0
          %5825 = vmatpush1.bf16.msra.mxu0 %v5746
          %5826 = vmatprep.subr.bf16.mxu0 0
          %5827 = vmatpush2.bf16.msra.mxu0 %v5761
          %5828 = vmatprep.subr.bf16.mxu0 0
          %5829 = vmatpush2.bf16.msra.mxu0 %v5760
          %5830 = vmatprep.subr.bf16.mxu0 0
          %5831 = vmatpush2.bf16.msra.mxu0 %v5759
          %5832 = vmatprep.subr.bf16.mxu0 0
          %5833 = vmatpush2.bf16.msra.mxu0 %v5758
          %5834 = vmatprep.subr.bf16.mxu0 0
          %5835 = vmatpush2.bf16.msra.mxu0 %v5757
          %5836 = vmatprep.subr.bf16.mxu0 0
          %5837 = vmatpush2.bf16.msra.mxu0 %v5756
          %5838 = vmatprep.subr.bf16.mxu0 0
          %5839 = vmatpush2.bf16.msra.mxu0 %v5755
          %5840 = vmatprep.subr.bf16.mxu0 0
          %5841 = vmatpush2.bf16.msra.mxu0 %v5754
          %5842 = vmatprep.mubr.bf16.mxu0 %v5550
          %5843 = vmatmul.mubr.bf16.gmra.mxu0 %v5549
          %v5844 = vpop.f32.mrf.mxu0
          %v5845 = vadd.f32 %v5617, %v5844
          %v5846 = vpop.f32.mrf.mxu0
          %v5847 = vpop.f32.mrf.mxu0
          %v5848 = vpop.f32.mrf.mxu0
          %5849 = vdwg.mxu0
          %5850 = vmatprep.subr.bf16.mxu0 0
          %5851 = vmatpush1.bf16.msra.mxu0 %v5769
          %5852 = vmatprep.subr.bf16.mxu0 0
          %5853 = vmatpush1.bf16.msra.mxu0 %v5768
          %5854 = vmatprep.subr.bf16.mxu0 0
          %5855 = vmatpush1.bf16.msra.mxu0 %v5767
          %5856 = vmatprep.subr.bf16.mxu0 0
          %5857 = vmatpush1.bf16.msra.mxu0 %v5766
          %5858 = vmatprep.subr.bf16.mxu0 0
          %5859 = vmatpush1.bf16.msra.mxu0 %v5765
          %5860 = vmatprep.subr.bf16.mxu0 0
          %5861 = vmatpush1.bf16.msra.mxu0 %v5764
          %5862 = vmatprep.subr.bf16.mxu0 0
          %5863 = vmatpush1.bf16.msra.mxu0 %v5763
          %5864 = vmatprep.subr.bf16.mxu0 0
          %5865 = vmatpush1.bf16.msra.mxu0 %v5762
          %5866 = vmatprep.subr.bf16.mxu0 0
          %5867 = vmatpush2.bf16.msra.mxu0 %v5777
          %5868 = vmatprep.subr.bf16.mxu0 0
          %5869 = vmatpush2.bf16.msra.mxu0 %v5776
          %5870 = vmatprep.subr.bf16.mxu0 0
          %5871 = vmatpush2.bf16.msra.mxu0 %v5775
          %5872 = vmatprep.subr.bf16.mxu0 0
          %5873 = vmatpush2.bf16.msra.mxu0 %v5774
          %5874 = vmatprep.subr.bf16.mxu0 0
          %5875 = vmatpush2.bf16.msra.mxu0 %v5773
          %5876 = vmatprep.subr.bf16.mxu0 0
          %5877 = vmatpush2.bf16.msra.mxu0 %v5772
          %5878 = vmatprep.subr.bf16.mxu0 0
          %5879 = vmatpush2.bf16.msra.mxu0 %v5771
          %5880 = vmatprep.subr.bf16.mxu0 0
          %5881 = vmatpush2.bf16.msra.mxu0 %v5770
          %5882 = vmatprep.mubr.bf16.mxu0 %v5552
          %5883 = vmatmul.mubr.bf16.gmra.mxu0 %v5551
          %v5884 = vpop.f32.mrf.mxu0
          %v5885 = vadd.f32 %v5845, %v5884
          %v5886 = vpop.f32.mrf.mxu0
          %v5887 = vpop.f32.mrf.mxu0
          %v5888 = vpop.f32.mrf.mxu0
          %5889 = vdwg.mxu0
          %v5890 = vlaneseq
          %v5891 = vshrl.u32 %v5890, 7
          %v5892 = vsub.s32 0, %v5891
          %v5893 = vrot.slane %v5885, %v5892
          %5894 = vst [vmem:[%s658] sm:$0xff] %v5893
        $region96: #{densenet_forward.1} parent=79 // pred_fallthru
          _
        %p5895 = scmp.lt.s32.totalorder %s32, 1
        %s5896 = scalar_select %p5895, %s32, 1
        %s5897 = smul.addr %s5896, 8
        %s5898 = scalar_lea.vmem %s15, %s5897
        // Predicated region
        $region97: #{densenet_forward.1} parent=79 // pred_check
          %p5899 = pneg %p418
        $region98: #{densenet_forward.1} parent=79 // pred_check_branch
          %5901 = sbr.rel (%p5899) target = $region100
        $region99: #{densenet_forward.1} parent=79 // pred_region
          _
        $region100: #{densenet_forward.1} parent=79 // pred_fallthru
          _
      $region80: #{densenet_forward.1} parent=5 // pred_fallthru
        _
      %p5902 = scmp.le.s32.totalorder 2, %s23
      // Predicated region
      $region101: #{densenet_forward.1} parent=5 // pred_check
        %p5903 = pneg %p5902
      $region102: #{densenet_forward.1} parent=5 // pred_check_branch
        %5905 = sbr.rel (%p5903) target = $region104
      $region103: #{densenet_forward.1} parent=5 // pred_region
        %s5906 = ssub.s32 %s23, 2
        // Predicated region
        $region105: #{densenet_forward.1} parent=103 // pred_check
          %p5907 = pneg %p424
        $region106: #{densenet_forward.1} parent=103 // pred_check_branch
          %5909 = sbr.rel (%p5907) target = $region108
        $region107: #{densenet_forward.1} parent=103 // pred_region
          %p5910 = scmp.lt.s32.totalorder %s34, 1
          %s5911 = scalar_select %p5910, %s34, 1
          %s5912 = smul.addr %s5911, 8
          %s5913 = scalar_lea.vmem %s15, %s5912
        $region108: #{densenet_forward.1} parent=103 // pred_fallthru
          _
      $region104: #{densenet_forward.1} parent=5 // pred_fallthru
        _
    $region6: #{densenet_forward.1} parent=1 // loop_footer
      %s27 = sadd.s32 1, %s23
    $region7: #{densenet_forward.1} parent=1 // loop_footer_branch
      %22 = sbr.rel target = $region3
    $region8: #{densenet_forward.1} parent=1 // loop_exit
      _
    %5914 = vsyncpa [#allocation5], 1
    %s5915 = scalar_lea.sflag [#allocation5], 1
    %5916 = vsyncpa %s5915, 1
    %5917 = vsyncpa [#allocation7], 1

</llo_original>
